<compile_context>
chip_gen: v5e
topology: v5e:2x2
jax: 0.10.0
libtpu: 0.0.40
codegen_flags: <defaults>
</compile_context>

<pallas_src>
import math

import jax
import jax.numpy as jnp
from jax.experimental import pallas as pl
from jax.experimental.pallas import tpu as pltpu

NEG_SLOPE = 0.2
BN_EPS = 1e-5
COMPUTE_DTYPE = jnp.bfloat16          # MXU-native operand dtype
K_TILE = 1024                         # K-reduction tile for layers 2-4
# Largest per-call resident set is ~2.5 MiB (double-buffered); 16 MiB leaves
# ample compiler headroom on all generations (incl. v7x's 64 MiB VMEM).
VMEM_LIMIT_BYTES = 16 * 1024 * 1024


# ----------------------------- Pallas kernels ------------------------------ #

def _conv1_bias_lrelu_kernel(p_ref, w_ref, b_ref, o_ref):
    # Layer 1: paired-output conv-as-matmul + bias + LeakyReLU(0.2).
    # The caller packs two adjacent output pixels per row (block-diagonal
    # weight), so the store is a 128-lane-dense slab, not a masked 64-lane one.
    y = jnp.dot(p_ref[...], w_ref[...], preferred_element_type=jnp.float32)
    y = y + b_ref[...]
    o_ref[...] = jnp.where(y > 0, y, NEG_SLOPE * y).astype(o_ref.dtype)


def _bn_lrelu(y, g, b):
    # Training-mode BatchNorm over the M rows (= N*Ho*Wo per channel, biased
    # variance), one-pass sum / sum-of-squares stats, affine, LeakyReLU(0.2).
    m = y.shape[0]
    inv_m = 1.0 / m
    mean = jnp.sum(y, axis=0, keepdims=True) * inv_m
    var = jnp.sum(y * y, axis=0, keepdims=True) * inv_m - mean * mean
    y = (y - mean) * jax.lax.rsqrt(var + BN_EPS)
    y = y * g + b
    return jnp.where(y > 0, y, NEG_SLOPE * y)


def _conv_bn_lrelu_kernel(p_ref, w_ref, g_ref, b_ref, o_ref, acc_ref):
    # K-tiled conv-as-matmul; BN + LeakyReLU epilogue on the last K step.
    k = pl.program_id(0)

    @pl.when(k == 0)
    def _():
        acc_ref[...] = jnp.zeros_like(acc_ref)

    acc_ref[...] += jnp.dot(p_ref[...], w_ref[...],
                            preferred_element_type=jnp.float32)

    @pl.when(k == pl.num_programs(0) - 1)
    def _():
        y = _bn_lrelu(acc_ref[...], g_ref[...], b_ref[...])
        o_ref[...] = y.astype(o_ref.dtype)


def _conv_bn_lrelu_head_kernel(p_ref, w_ref, g_ref, b_ref, w5_ref, b5_ref,
                               o_ref, acc_ref):
    # Layer 4 (K-tiled conv + BN + LeakyReLU) with the layer-5 head
    # (4x4 valid conv -> 1 channel -> Sigmoid) fused as a VPU multiply +
    # lane/sublane reduction epilogue: layer-4 activations never leave VMEM.
    k = pl.program_id(0)

    @pl.when(k == 0)
    def _():
        acc_ref[...] = jnp.zeros_like(acc_ref)

    acc_ref[...] += jnp.dot(p_ref[...], w_ref[...],
                            preferred_element_type=jnp.float32)

    @pl.when(k == pl.num_programs(0) - 1)
    def _():
        y = _bn_lrelu(acc_ref[...], g_ref[...], b_ref[...])      # (M4, 512) f32
        m4, c4 = y.shape
        n = m4 // 16
        # Rows of y are ordered (n, h, w) over the 4x4 map — exactly the tap
        # order of the 4x4 valid conv, so the head is a per-row dot with
        # the un-tiled (16, 512) w5 followed by a per-sample reduction.
        prod = y.reshape(n, 16, c4) * w5_ref[...]                # VPU
        s = jnp.sum(prod, axis=-1)                               # (N, 16)
        s = jnp.sum(s, axis=-1, keepdims=True)                   # (N, 1)
        o_ref[...] = jax.nn.sigmoid(s + b5_ref[...])


# ----------------------------- pallas_call glue ----------------------------- #

def _cost(flops, transcendentals, args, out_shape, out_dtype):
    ba = sum(int(a.size) * jnp.dtype(a.dtype).itemsize for a in args)
    ba += math.prod(out_shape) * jnp.dtype(out_dtype).itemsize
    return pl.CostEstimate(flops=int(flops), transcendentals=int(transcendentals),
                           bytes_accessed=int(ba))


def _conv1_call(p, w, b):
    m, kdim = p.shape
    cout = w.shape[1]
    out_shape = (m, cout)
    return pl.pallas_call(
        _conv1_bias_lrelu_kernel,
        grid=(1,),
        in_specs=[pl.BlockSpec((m, kdim), lambda i: (0, 0)),
                  pl.BlockSpec((kdim, cout), lambda i: (0, 0)),
                  pl.BlockSpec((1, cout), lambda i: (0, 0))],
        out_specs=pl.BlockSpec(out_shape, lambda i: (0, 0)),
        out_shape=jax.ShapeDtypeStruct(out_shape, COMPUTE_DTYPE),
        compiler_params=pltpu.CompilerParams(
            dimension_semantics=("arbitrary",),
            vmem_limit_bytes=VMEM_LIMIT_BYTES),
        cost_estimate=_cost(2 * m * kdim * cout + 3 * m * cout, 0,
                            (p, w, b), out_shape, COMPUTE_DTYPE),
    )(p, w, b)


def _conv_bn_call(kernel, p, w, extras, out_shape, out_dtype, acc_shape,
                  *, transcendentals):
    m, k_total = p.shape
    cout = w.shape[1]
    tk = min(k_total, K_TILE)          # stream only the larger weight matrices
    assert k_total % tk == 0
    nk = k_total // tk
    extra_specs = [pl.BlockSpec(e.shape, lambda k, nd=e.ndim: (0,) * nd)
                   for e in extras]
    nd_out = len(out_shape)
    return pl.pallas_call(
        kernel,
        grid=(nk,),
        in_specs=[pl.BlockSpec((m, tk), lambda k: (0, k)),
                  pl.BlockSpec((tk, cout), lambda k: (k, 0))] + extra_specs,
        out_specs=pl.BlockSpec(out_shape, lambda k, nd=nd_out: (0,) * nd),
        out_shape=jax.ShapeDtypeStruct(out_shape, out_dtype),
        scratch_shapes=[pltpu.VMEM(acc_shape, jnp.float32)],
        compiler_params=pltpu.CompilerParams(
            dimension_semantics=("arbitrary",),
            vmem_limit_bytes=VMEM_LIMIT_BYTES),
        cost_estimate=_cost(2 * m * k_total * cout + 10 * m * cout,
                            transcendentals,
                            (p, w) + tuple(extras), out_shape, out_dtype),
    )(p, w, *extras)


# --------------------------------- im2col ---------------------------------- #

def _im2col_nhwc(x, k, stride, pad):
    """x: (N, H, W, C) -> patches (N*Ho*Wo, k*k*C); feature order (kh, kw, c),
    row order (n, ho, wo). Pure channels-last slicing + concat (XLA side)."""
    n, h, w, c = x.shape
    if pad:
        x = jnp.pad(x, ((0, 0), (pad, pad), (pad, pad), (0, 0)))
    ho = (h + 2 * pad - k) // stride + 1
    wo = (w + 2 * pad - k) // stride + 1
    cols = [
        x[:, i:i + stride * ho:stride, j:j + stride * wo:stride, :]
        for i in range(k) for j in range(k)
    ]
    patches = jnp.concatenate(cols, axis=-1)       # (N, Ho, Wo, k*k*C)
    return patches.reshape(n * ho * wo, k * k * c), ho, wo


# ----------------------------- weight packing ------------------------------ #

def _wmat(w):
    """PyTorch conv weight (Cout, Cin, k, k) -> (k*k*Cin, Cout), row order
    (kh, kw, cin), matching _im2col_nhwc's feature order."""
    cout = w.shape[0]
    return jnp.transpose(w, (2, 3, 1, 0)).reshape(-1, cout)


def pack_params(params):
    """One-time conversion of PyTorch-layout parameters into the matmul
    layouts / dtypes the kernels consume. Run once, outside the jitted
    forward, so there is no per-forward repacking HBM traffic."""
    w1m = _wmat(params["w1"])                              # (16, 64)
    # Block-diagonal layer-1 weight: two adjacent output pixels per GEMM row
    # -> 128-lane-dense layer-1 output store.
    w1p = jnp.zeros((32, 128), jnp.float32)
    w1p = w1p.at[:16, :64].set(w1m).at[16:, 64:].set(w1m)
    w5p = jnp.transpose(params["w5"][0], (1, 2, 0)).reshape(16, 512)
    return {
        "w1": w1p.astype(COMPUTE_DTYPE),
        "b1": jnp.concatenate([params["b1"], params["b1"]], axis=1),
        "w2": _wmat(params["w2"]).astype(COMPUTE_DTYPE),
        "g2": params["g2"], "beta2": params["beta2"],
        "w3": _wmat(params["w3"]).astype(COMPUTE_DTYPE),
        "g3": params["g3"], "beta3": params["beta3"],
        "w4": _wmat(params["w4"]).astype(COMPUTE_DTYPE),
        "g4": params["g4"], "beta4": params["beta4"],
        "w5": w5p.astype(jnp.float32),
        "b5": params["b5"],
    }


# --------------------------------- Forward --------------------------------- #

def discriminator_forward(x, pp):
    """x: (N, 1, 64, 64) NCHW f32 -> (N, 1, 1, 1) probabilities."""
    n = x.shape[0]
    # NCHW -> channels-last once at the boundary (free for C=1); all internal
    # activations stay NHWC bf16 rows.
    x = jnp.transpose(x, (0, 2, 3, 1)).astype(COMPUTE_DTYPE)

    # Conv2d(1, 64, 4, 2, 1) + bias + LeakyReLU  [paired, lane-dense output]
    p, ho, wo = _im2col_nhwc(x, 4, 2, 1)                   # (N*32*32, 16)
    p = p.reshape(p.shape[0] // 2, 32)                     # pair adjacent rows
    y = _conv1_call(p, pp["w1"], pp["b1"])                 # (N*32*32/2, 128)
    x = y.reshape(n, ho, wo, 64)

    # Conv2d(64, 128, 4, 2, 1, bias=False) + BN + LeakyReLU
    p, ho, wo = _im2col_nhwc(x, 4, 2, 1)                   # (N*16*16, 1024)
    y = _conv_bn_call(_conv_bn_lrelu_kernel, p, pp["w2"],
                      (pp["g2"], pp["beta2"]),
                      (p.shape[0], 128), COMPUTE_DTYPE, (p.shape[0], 128),
                      transcendentals=128)
    x = y.reshape(n, ho, wo, 128)

    # Conv2d(128, 256, 4, 2, 1, bias=False) + BN + LeakyReLU
    p, ho, wo = _im2col_nhwc(x, 4, 2, 1)                   # (N*8*8, 2048)
    y = _conv_bn_call(_conv_bn_lrelu_kernel, p, pp["w3"],
                      (pp["g3"], pp["beta3"]),
                      (p.shape[0], 256), COMPUTE_DTYPE, (p.shape[0], 256),
                      transcendentals=256)
    x = y.reshape(n, ho, wo, 256)

    # Conv2d(256, 512, 4, 2, 1, bias=False) + BN + LeakyReLU
    #   fused with Conv2d(512, 1, 4, 1, 0) + bias + Sigmoid
    p, ho, wo = _im2col_nhwc(x, 4, 2, 1)                   # (N*4*4, 4096)
    out = _conv_bn_call(_conv_bn_lrelu_head_kernel, p, pp["w4"],
                        (pp["g4"], pp["beta4"], pp["w5"], pp["b5"]),
                        (n, 1), jnp.float32, (p.shape[0], 512),
                        transcendentals=512 + n)
    return out.reshape(n, 1, 1, 1)          # NCHW (N, 1, 1, 1), as in PyTorch


def init_params(key):
    ks = jax.random.split(key, 6)
    f32 = jnp.float32
    return {
        "w1": 0.02 * jax.random.normal(ks[0], (64, 1, 4, 4), f32),
        "b1": jnp.zeros((1, 64), f32),
        "w2": 0.02 * jax.random.normal(ks[1], (128, 64, 4, 4), f32),
        "g2": jnp.ones((1, 128), f32), "beta2": jnp.zeros((1, 128), f32),
        "w3": 0.02 * jax.random.normal(ks[2], (256, 128, 4, 4), f32),
        "g3": jnp.ones((1, 256), f32), "beta3": jnp.zeros((1, 256), f32),
        "w4": 0.02 * jax.random.normal(ks[3], (512, 256, 4, 4), f32),
        "g4": jnp.ones((1, 512), f32), "beta4": jnp.zeros((1, 512), f32),
        "w5": 0.02 * jax.random.normal(ks[4], (1, 512, 4, 4), f32),
        "b5": jnp.zeros((1, 1), f32),
    }


if __name__ == "__main__":
    key = jax.random.PRNGKey(0)
    k_param, k_x = jax.random.split(key)
    params = init_params(k_param)
    packed = pack_params(params)     # one-time repack into bf16 matmul layout
    # DCGAN discriminator expects 1x64x64 inputs (required by the final 4x4
    # valid conv producing a 1x1 map). Small batch of 2.
    x = jax.random.normal(k_x, (2, 1, 64, 64), jnp.float32)

    fwd = jax.jit(discriminator_forward)
    out = jax.block_until_ready(fwd(x, packed))

    assert out.shape == (2, 1, 1, 1), out.shape
    assert bool(jnp.all(jnp.isfinite(out)))
    assert bool(jnp.all((out >= 0.0) & (out <= 1.0)))
    print("KERNEL_OK")
</pallas_src>

<mosaic_0001>
module attributes {stable_mosaic.version = 11 : i64} {
  func.func @_conv1_bias_lrelu_kernel(%arg0: i32, %arg1: memref<1024x32xbf16, #tpu.memory_space<vmem>>, %arg2: memref<32x128xbf16, #tpu.memory_space<vmem>>, %arg3: memref<1x128xf32, #tpu.memory_space<vmem>>, %arg4: memref<1024x128xbf16, #tpu.memory_space<vmem>>) attributes {dimension_semantics = [#tpu.dimension_semantics<arbitrary>], iteration_bounds = array<i64: 1>, scalar_prefetch = 0 : i64, scratch_operands = 0 : i64, tpu.core_type = #tpu.core_type<tc>, window_params = [{pipeline_mode = #tpu.pipeline_mode<synchronous>, transform_indices = @transform_0, window_bounds = array<i64: 1024, 32>}, {pipeline_mode = #tpu.pipeline_mode<synchronous>, transform_indices = @transform_1, window_bounds = array<i64: 32, 128>}, {pipeline_mode = #tpu.pipeline_mode<synchronous>, transform_indices = @transform_2, window_bounds = array<i64: 1, 128>}, {pipeline_mode = #tpu.pipeline_mode<synchronous>, transform_indices = @transform_3, window_bounds = array<i64: 1024, 128>}]} {
    %c0 = arith.constant 0 : index
    %c0_0 = arith.constant 0 : index
    %0 = vector.load %arg1[%c0, %c0_0] : memref<1024x32xbf16, #tpu.memory_space<vmem>>, vector<1024x32xbf16>
    %c0_1 = arith.constant 0 : index
    %c0_2 = arith.constant 0 : index
    %1 = vector.load %arg2[%c0_1, %c0_2] : memref<32x128xbf16, #tpu.memory_space<vmem>>, vector<32x128xbf16>
    %cst = arith.constant dense<0.000000e+00> : vector<1024x128xf32>
    %2 = tpu.matmul %0, %1, %cst {dimension_numbers = #tpu.dot_dimension_numbers<[1], [0], [0], [1], [0, 0, 1, 1], [], []>} : vector<1024x32xbf16>, vector<32x128xbf16>, vector<1024x128xf32> -> vector<1024x128xf32>
    %c0_3 = arith.constant 0 : index
    %c0_4 = arith.constant 0 : index
    %3 = vector.load %arg3[%c0_3, %c0_4] : memref<1x128xf32, #tpu.memory_space<vmem>>, vector<1x128xf32>
    %4 = vector.broadcast %3 : vector<1x128xf32> to vector<1024x128xf32>
    %5 = arith.addf %2, %4 : vector<1024x128xf32>
    %cst_5 = arith.constant 0.000000e+00 : f32
    %6 = vector.broadcast %cst_5 : f32 to vector<1024x128xf32>
    %7 = arith.cmpf ogt, %5, %6 : vector<1024x128xf32>
    %cst_6 = arith.constant 2.000000e-01 : f32
    %8 = vector.broadcast %cst_6 : f32 to vector<1024x128xf32>
    %9 = arith.mulf %8, %5 : vector<1024x128xf32>
    %10 = arith.select %7, %5, %9 : vector<1024x128xi1>, vector<1024x128xf32>
    %11 = arith.truncf %10 : vector<1024x128xf32> to vector<1024x128xbf16>
    %c0_7 = arith.constant 0 : index
    %c0_8 = arith.constant 0 : index
    %12 = vector.load %arg4[%c0_7, %c0_8] : memref<1024x128xbf16, #tpu.memory_space<vmem>>, vector<1024x128xbf16>
    tpu.vector_store %arg4[%c0_7, %c0_8], %11 {strides = array<i32>} : memref<1024x128xbf16, #tpu.memory_space<vmem>>, vector<1024x128xbf16>,
    return
  }
  func.func @transform_0(%arg0: i32) -> (i32, i32) {
    %c0_i32 = arith.constant 0 : i32
    %c0_i32_0 = arith.constant 0 : i32
    %c0_i32_1 = arith.constant 0 : i32
    return %c0_i32, %c0_i32_0 : i32, i32
  }
  func.func @transform_1(%arg0: i32) -> (i32, i32) {
    %c0_i32 = arith.constant 0 : i32
    %c0_i32_0 = arith.constant 0 : i32
    %c0_i32_1 = arith.constant 0 : i32
    return %c0_i32, %c0_i32_0 : i32, i32
  }
  func.func @transform_2(%arg0: i32) -> (i32, i32) {
    %c0_i32 = arith.constant 0 : i32
    %c0_i32_0 = arith.constant 0 : i32
    %c0_i32_1 = arith.constant 0 : i32
    return %c0_i32, %c0_i32_0 : i32, i32
  }
  func.func @transform_3(%arg0: i32) -> (i32, i32) {
    %c0_i32 = arith.constant 0 : i32
    %c0_i32_0 = arith.constant 0 : i32
    %c0_i32_1 = arith.constant 0 : i32
    return %c0_i32, %c0_i32_0 : i32, i32
  }
}

module attributes {stable_mosaic.version = 11 : i64} {
  func.func @_conv_bn_lrelu_kernel(%arg0: i32, %arg1: memref<512x1024xbf16, #tpu.memory_space<vmem>>, %arg2: memref<1024x128xbf16, #tpu.memory_space<vmem>>, %arg3: memref<1x128xf32, #tpu.memory_space<vmem>>, %arg4: memref<1x128xf32, #tpu.memory_space<vmem>>, %arg5: memref<512x128xbf16, #tpu.memory_space<vmem>>, %arg6: memref<512x128xf32, #tpu.memory_space<vmem>>) attributes {dimension_semantics = [#tpu.dimension_semantics<arbitrary>], iteration_bounds = array<i64: 1>, scalar_prefetch = 0 : i64, scratch_operands = 1 : i64, tpu.core_type = #tpu.core_type<tc>, window_params = [{transform_indices = @transform_0, window_bounds = array<i64: 512, 1024>}, {transform_indices = @transform_1, window_bounds = array<i64: 1024, 128>}, {pipeline_mode = #tpu.pipeline_mode<synchronous>, transform_indices = @transform_2, window_bounds = array<i64: 1, 128>}, {pipeline_mode = #tpu.pipeline_mode<synchronous>, transform_indices = @transform_3, window_bounds = array<i64: 1, 128>}, {pipeline_mode = #tpu.pipeline_mode<synchronous>, transform_indices = @transform_4, window_bounds = array<i64: 512, 128>}]} {
    %c0_i32 = arith.constant 0 : i32
    %0 = arith.cmpi eq, %arg0, %c0_i32 : i32
    %1 = arith.extui %0 : i1 to i32
    %c0_i32_0 = arith.constant 0 : i32
    %2 = arith.cmpi ne, %1, %c0_i32_0 : i32
    scf.if %2 {
      %cst_10 = arith.constant 0.000000e+00 : f32
      %12 = vector.broadcast %cst_10 : f32 to vector<512x128xf32>
      %c0_11 = arith.constant 0 : index
      %c0_12 = arith.constant 0 : index
      %13 = vector.load %arg6[%c0_11, %c0_12] : memref<512x128xf32, #tpu.memory_space<vmem>>, vector<512x128xf32>
      tpu.vector_store %arg6[%c0_11, %c0_12], %12 {strides = array<i32>} : memref<512x128xf32, #tpu.memory_space<vmem>>, vector<512x128xf32>,
    } else {
    }
    %c0 = arith.constant 0 : index
    %c0_1 = arith.constant 0 : index
    %3 = vector.load %arg6[%c0, %c0_1] : memref<512x128xf32, #tpu.memory_space<vmem>>, vector<512x128xf32>
    %c0_2 = arith.constant 0 : index
    %c0_3 = arith.constant 0 : index
    %4 = vector.load %arg1[%c0_2, %c0_3] : memref<512x1024xbf16, #tpu.memory_space<vmem>>, vector<512x1024xbf16>
    %c0_4 = arith.constant 0 : index
    %c0_5 = arith.constant 0 : index
    %5 = vector.load %arg2[%c0_4, %c0_5] : memref<1024x128xbf16, #tpu.memory_space<vmem>>, vector<1024x128xbf16>
    %cst = arith.constant dense<0.000000e+00> : vector<512x128xf32>
    %6 = tpu.matmul %4, %5, %cst {dimension_numbers = #tpu.dot_dimension_numbers<[1], [0], [0], [1], [0, 0, 1, 1], [], []>} : vector<512x1024xbf16>, vector<1024x128xbf16>, vector<512x128xf32> -> vector<512x128xf32>
    %7 = arith.addf %3, %6 : vector<512x128xf32>
    %c0_6 = arith.constant 0 : index
    %c0_7 = arith.constant 0 : index
    %8 = vector.load %arg6[%c0_6, %c0_7] : memref<512x128xf32, #tpu.memory_space<vmem>>, vector<512x128xf32>
    tpu.vector_store %arg6[%c0_6, %c0_7], %7 {strides = array<i32>} : memref<512x128xf32, #tpu.memory_space<vmem>>, vector<512x128xf32>,
    %c0_i32_8 = arith.constant 0 : i32
    %9 = arith.cmpi eq, %arg0, %c0_i32_8 : i32
    %10 = arith.extui %9 : i1 to i32
    %c0_i32_9 = arith.constant 0 : i32
    %11 = arith.cmpi ne, %10, %c0_i32_9 : i32
    scf.if %11 {
      %c0_10 = arith.constant 0 : index
      %c0_11 = arith.constant 0 : index
      %12 = vector.load %arg6[%c0_10, %c0_11] : memref<512x128xf32, #tpu.memory_space<vmem>>, vector<512x128xf32>
      %c0_12 = arith.constant 0 : index
      %c0_13 = arith.constant 0 : index
      %13 = vector.load %arg3[%c0_12, %c0_13] : memref<1x128xf32, #tpu.memory_space<vmem>>, vector<1x128xf32>
      %c0_14 = arith.constant 0 : index
      %c0_15 = arith.constant 0 : index
      %14 = vector.load %arg4[%c0_14, %c0_15] : memref<1x128xf32, #tpu.memory_space<vmem>>, vector<1x128xf32>
      %cst_16 = arith.constant dense<0.000000e+00> : vector<128xf32>
      %15 = vector.multi_reduction <add>, %12, %cst_16 [0] : vector<512x128xf32> to vector<128xf32>
      %16 = vector.shape_cast %15 : vector<128xf32> to vector<1x128xf32>
      %cst_17 = arith.constant 0.001953125 : f32
      %17 = vector.broadcast %cst_17 : f32 to vector<1x128xf32>
      %18 = arith.mulf %16, %17 : vector<1x128xf32>
      %19 = arith.mulf %12, %12 : vector<512x128xf32>
      %cst_18 = arith.constant dense<0.000000e+00> : vector<128xf32>
      %20 = vector.multi_reduction <add>, %19, %cst_18 [0] : vector<512x128xf32> to vector<128xf32>
      %21 = vector.shape_cast %20 : vector<128xf32> to vector<1x128xf32>
      %cst_19 = arith.constant 0.001953125 : f32
      %22 = vector.broadcast %cst_19 : f32 to vector<1x128xf32>
      %23 = arith.mulf %21, %22 : vector<1x128xf32>
      %24 = arith.mulf %18, %18 : vector<1x128xf32>
      %25 = arith.subf %23, %24 : vector<1x128xf32>
      %26 = vector.broadcast %18 : vector<1x128xf32> to vector<512x128xf32>
      %27 = arith.subf %12, %26 : vector<512x128xf32>
      %cst_20 = arith.constant 9.99999974E-6 : f32
      %28 = vector.broadcast %cst_20 : f32 to vector<1x128xf32>
      %29 = arith.addf %25, %28 : vector<1x128xf32>
      %30 = math.rsqrt %29 : vector<1x128xf32>
      %31 = vector.broadcast %30 : vector<1x128xf32> to vector<512x128xf32>
      %32 = arith.mulf %27, %31 : vector<512x128xf32>
      %33 = vector.broadcast %13 : vector<1x128xf32> to vector<512x128xf32>
      %34 = arith.mulf %32, %33 : vector<512x128xf32>
      %35 = vector.broadcast %14 : vector<1x128xf32> to vector<512x128xf32>
      %36 = arith.addf %34, %35 : vector<512x128xf32>
      %cst_21 = arith.constant 0.000000e+00 : f32
      %37 = vector.broadcast %cst_21 : f32 to vector<512x128xf32>
      %38 = arith.cmpf ogt, %36, %37 : vector<512x128xf32>
      %cst_22 = arith.constant 2.000000e-01 : f32
      %39 = vector.broadcast %cst_22 : f32 to vector<512x128xf32>
      %40 = arith.mulf %39, %36 : vector<512x128xf32>
      %41 = arith.select %38, %36, %40 : vector<512x128xi1>, vector<512x128xf32>
      %42 = arith.truncf %41 : vector<512x128xf32> to vector<512x128xbf16>
      %c0_23 = arith.constant 0 : index
      %c0_24 = arith.constant 0 : index
      %43 = vector.load %arg5[%c0_23, %c0_24] : memref<512x128xbf16, #tpu.memory_space<vmem>>, vector<512x128xbf16>
      tpu.vector_store %arg5[%c0_23, %c0_24], %42 {strides = array<i32>} : memref<512x128xbf16, #tpu.memory_space<vmem>>, vector<512x128xbf16>,
    } else {
    }
    return
  }
  func.func @transform_0(%arg0: i32) -> (i32, i32) {
    %c0_i32 = arith.constant 0 : i32
    %c0_i32_0 = arith.constant 0 : i32
    return %c0_i32, %arg0 : i32, i32
  }
  func.func @transform_1(%arg0: i32) -> (i32, i32) {
    %c0_i32 = arith.constant 0 : i32
    %c0_i32_0 = arith.constant 0 : i32
    return %arg0, %c0_i32 : i32, i32
  }
  func.func @transform_2(%arg0: i32) -> (i32, i32) {
    %c0_i32 = arith.constant 0 : i32
    %c0_i32_0 = arith.constant 0 : i32
    %c0_i32_1 = arith.constant 0 : i32
    return %c0_i32, %c0_i32_0 : i32, i32
  }
  func.func @transform_3(%arg0: i32) -> (i32, i32) {
    %c0_i32 = arith.constant 0 : i32
    %c0_i32_0 = arith.constant 0 : i32
    %c0_i32_1 = arith.constant 0 : i32
    return %c0_i32, %c0_i32_0 : i32, i32
  }
  func.func @transform_4(%arg0: i32) -> (i32, i32) {
    %c0_i32 = arith.constant 0 : i32
    %c0_i32_0 = arith.constant 0 : i32
    %c0_i32_1 = arith.constant 0 : i32
    return %c0_i32, %c0_i32_0 : i32, i32
  }
}

module attributes {stable_mosaic.version = 11 : i64} {
  func.func @_conv_bn_lrelu_kernel(%arg0: i32, %arg1: memref<128x1024xbf16, #tpu.memory_space<vmem>>, %arg2: memref<1024x256xbf16, #tpu.memory_space<vmem>>, %arg3: memref<1x256xf32, #tpu.memory_space<vmem>>, %arg4: memref<1x256xf32, #tpu.memory_space<vmem>>, %arg5: memref<128x256xbf16, #tpu.memory_space<vmem>>, %arg6: memref<128x256xf32, #tpu.memory_space<vmem>>) attributes {dimension_semantics = [#tpu.dimension_semantics<arbitrary>], iteration_bounds = array<i64: 2>, scalar_prefetch = 0 : i64, scratch_operands = 1 : i64, tpu.core_type = #tpu.core_type<tc>, window_params = [{transform_indices = @transform_0, window_bounds = array<i64: 128, 1024>}, {transform_indices = @transform_1, window_bounds = array<i64: 1024, 256>}, {pipeline_mode = #tpu.pipeline_mode<synchronous>, transform_indices = @transform_2, window_bounds = array<i64: 1, 256>}, {pipeline_mode = #tpu.pipeline_mode<synchronous>, transform_indices = @transform_3, window_bounds = array<i64: 1, 256>}, {pipeline_mode = #tpu.pipeline_mode<synchronous>, transform_indices = @transform_4, window_bounds = array<i64: 128, 256>}]} {
    %c0_i32 = arith.constant 0 : i32
    %0 = arith.cmpi eq, %arg0, %c0_i32 : i32
    %1 = arith.extui %0 : i1 to i32
    %c0_i32_0 = arith.constant 0 : i32
    %2 = arith.cmpi ne, %1, %c0_i32_0 : i32
    scf.if %2 {
      %cst_9 = arith.constant 0.000000e+00 : f32
      %12 = vector.broadcast %cst_9 : f32 to vector<128x256xf32>
      %c0_10 = arith.constant 0 : index
      %c0_11 = arith.constant 0 : index
      %13 = vector.load %arg6[%c0_10, %c0_11] : memref<128x256xf32, #tpu.memory_space<vmem>>, vector<128x256xf32>
      tpu.vector_store %arg6[%c0_10, %c0_11], %12 {strides = array<i32>} : memref<128x256xf32, #tpu.memory_space<vmem>>, vector<128x256xf32>,
    } else {
    }
    %c0 = arith.constant 0 : index
    %c0_1 = arith.constant 0 : index
    %3 = vector.load %arg6[%c0, %c0_1] : memref<128x256xf32, #tpu.memory_space<vmem>>, vector<128x256xf32>
    %c0_2 = arith.constant 0 : index
    %c0_3 = arith.constant 0 : index
    %4 = vector.load %arg1[%c0_2, %c0_3] : memref<128x1024xbf16, #tpu.memory_space<vmem>>, vector<128x1024xbf16>
    %c0_4 = arith.constant 0 : index
    %c0_5 = arith.constant 0 : index
    %5 = vector.load %arg2[%c0_4, %c0_5] : memref<1024x256xbf16, #tpu.memory_space<vmem>>, vector<1024x256xbf16>
    %cst = arith.constant dense<0.000000e+00> : vector<128x256xf32>
    %6 = tpu.matmul %4, %5, %cst {dimension_numbers = #tpu.dot_dimension_numbers<[1], [0], [0], [1], [0, 0, 1, 1], [], []>} : vector<128x1024xbf16>, vector<1024x256xbf16>, vector<128x256xf32> -> vector<128x256xf32>
    %7 = arith.addf %3, %6 : vector<128x256xf32>
    %c0_6 = arith.constant 0 : index
    %c0_7 = arith.constant 0 : index
    %8 = vector.load %arg6[%c0_6, %c0_7] : memref<128x256xf32, #tpu.memory_space<vmem>>, vector<128x256xf32>
    tpu.vector_store %arg6[%c0_6, %c0_7], %7 {strides = array<i32>} : memref<128x256xf32, #tpu.memory_space<vmem>>, vector<128x256xf32>,
    %c1_i32 = arith.constant 1 : i32
    %9 = arith.cmpi eq, %arg0, %c1_i32 : i32
    %10 = arith.extui %9 : i1 to i32
    %c0_i32_8 = arith.constant 0 : i32
    %11 = arith.cmpi ne, %10, %c0_i32_8 : i32
    scf.if %11 {
      %c0_9 = arith.constant 0 : index
      %c0_10 = arith.constant 0 : index
      %12 = vector.load %arg6[%c0_9, %c0_10] : memref<128x256xf32, #tpu.memory_space<vmem>>, vector<128x256xf32>
      %c0_11 = arith.constant 0 : index
      %c0_12 = arith.constant 0 : index
      %13 = vector.load %arg3[%c0_11, %c0_12] : memref<1x256xf32, #tpu.memory_space<vmem>>, vector<1x256xf32>
      %c0_13 = arith.constant 0 : index
      %c0_14 = arith.constant 0 : index
      %14 = vector.load %arg4[%c0_13, %c0_14] : memref<1x256xf32, #tpu.memory_space<vmem>>, vector<1x256xf32>
      %cst_15 = arith.constant dense<0.000000e+00> : vector<256xf32>
      %15 = vector.multi_reduction <add>, %12, %cst_15 [0] : vector<128x256xf32> to vector<256xf32>
      %16 = vector.shape_cast %15 : vector<256xf32> to vector<1x256xf32>
      %cst_16 = arith.constant 7.812500e-03 : f32
      %17 = vector.broadcast %cst_16 : f32 to vector<1x256xf32>
      %18 = arith.mulf %16, %17 : vector<1x256xf32>
      %19 = arith.mulf %12, %12 : vector<128x256xf32>
      %cst_17 = arith.constant dense<0.000000e+00> : vector<256xf32>
      %20 = vector.multi_reduction <add>, %19, %cst_17 [0] : vector<128x256xf32> to vector<256xf32>
      %21 = vector.shape_cast %20 : vector<256xf32> to vector<1x256xf32>
      %cst_18 = arith.constant 7.812500e-03 : f32
      %22 = vector.broadcast %cst_18 : f32 to vector<1x256xf32>
      %23 = arith.mulf %21, %22 : vector<1x256xf32>
      %24 = arith.mulf %18, %18 : vector<1x256xf32>
      %25 = arith.subf %23, %24 : vector<1x256xf32>
      %26 = vector.broadcast %18 : vector<1x256xf32> to vector<128x256xf32>
      %27 = arith.subf %12, %26 : vector<128x256xf32>
      %cst_19 = arith.constant 9.99999974E-6 : f32
      %28 = vector.broadcast %cst_19 : f32 to vector<1x256xf32>
      %29 = arith.addf %25, %28 : vector<1x256xf32>
      %30 = math.rsqrt %29 : vector<1x256xf32>
      %31 = vector.broadcast %30 : vector<1x256xf32> to vector<128x256xf32>
      %32 = arith.mulf %27, %31 : vector<128x256xf32>
      %33 = vector.broadcast %13 : vector<1x256xf32> to vector<128x256xf32>
      %34 = arith.mulf %32, %33 : vector<128x256xf32>
      %35 = vector.broadcast %14 : vector<1x256xf32> to vector<128x256xf32>
      %36 = arith.addf %34, %35 : vector<128x256xf32>
      %cst_20 = arith.constant 0.000000e+00 : f32
      %37 = vector.broadcast %cst_20 : f32 to vector<128x256xf32>
      %38 = arith.cmpf ogt, %36, %37 : vector<128x256xf32>
      %cst_21 = arith.constant 2.000000e-01 : f32
      %39 = vector.broadcast %cst_21 : f32 to vector<128x256xf32>
      %40 = arith.mulf %39, %36 : vector<128x256xf32>
      %41 = arith.select %38, %36, %40 : vector<128x256xi1>, vector<128x256xf32>
      %42 = arith.truncf %41 : vector<128x256xf32> to vector<128x256xbf16>
      %c0_22 = arith.constant 0 : index
      %c0_23 = arith.constant 0 : index
      %43 = vector.load %arg5[%c0_22, %c0_23] : memref<128x256xbf16, #tpu.memory_space<vmem>>, vector<128x256xbf16>
      tpu.vector_store %arg5[%c0_22, %c0_23], %42 {strides = array<i32>} : memref<128x256xbf16, #tpu.memory_space<vmem>>, vector<128x256xbf16>,
    } else {
    }
    return
  }
  func.func @transform_0(%arg0: i32) -> (i32, i32) {
    %c0_i32 = arith.constant 0 : i32
    %c0_i32_0 = arith.constant 0 : i32
    return %c0_i32, %arg0 : i32, i32
  }
  func.func @transform_1(%arg0: i32) -> (i32, i32) {
    %c0_i32 = arith.constant 0 : i32
    %c0_i32_0 = arith.constant 0 : i32
    return %arg0, %c0_i32 : i32, i32
  }
  func.func @transform_2(%arg0: i32) -> (i32, i32) {
    %c0_i32 = arith.constant 0 : i32
    %c0_i32_0 = arith.constant 0 : i32
    %c0_i32_1 = arith.constant 0 : i32
    return %c0_i32, %c0_i32_0 : i32, i32
  }
  func.func @transform_3(%arg0: i32) -> (i32, i32) {
    %c0_i32 = arith.constant 0 : i32
    %c0_i32_0 = arith.constant 0 : i32
    %c0_i32_1 = arith.constant 0 : i32
    return %c0_i32, %c0_i32_0 : i32, i32
  }
  func.func @transform_4(%arg0: i32) -> (i32, i32) {
    %c0_i32 = arith.constant 0 : i32
    %c0_i32_0 = arith.constant 0 : i32
    %c0_i32_1 = arith.constant 0 : i32
    return %c0_i32, %c0_i32_0 : i32, i32
  }
}

module attributes {stable_mosaic.version = 11 : i64} {
  func.func @_conv_bn_lrelu_head_kernel(%arg0: i32, %arg1: memref<32x1024xbf16, #tpu.memory_space<vmem>>, %arg2: memref<1024x512xbf16, #tpu.memory_space<vmem>>, %arg3: memref<1x512xf32, #tpu.memory_space<vmem>>, %arg4: memref<1x512xf32, #tpu.memory_space<vmem>>, %arg5: memref<16x512xf32, #tpu.memory_space<vmem>>, %arg6: memref<1x1xf32, #tpu.memory_space<vmem>>, %arg7: memref<2x1xf32, #tpu.memory_space<vmem>>, %arg8: memref<32x512xf32, #tpu.memory_space<vmem>>) attributes {dimension_semantics = [#tpu.dimension_semantics<arbitrary>], iteration_bounds = array<i64: 4>, scalar_prefetch = 0 : i64, scratch_operands = 1 : i64, tpu.core_type = #tpu.core_type<tc>, window_params = [{transform_indices = @transform_0, window_bounds = array<i64: 32, 1024>}, {transform_indices = @transform_1, window_bounds = array<i64: 1024, 512>}, {pipeline_mode = #tpu.pipeline_mode<synchronous>, transform_indices = @transform_2, window_bounds = array<i64: 1, 512>}, {pipeline_mode = #tpu.pipeline_mode<synchronous>, transform_indices = @transform_3, window_bounds = array<i64: 1, 512>}, {pipeline_mode = #tpu.pipeline_mode<synchronous>, transform_indices = @transform_4, window_bounds = array<i64: 16, 512>}, {pipeline_mode = #tpu.pipeline_mode<synchronous>, transform_indices = @transform_5, window_bounds = array<i64: 1, 1>}, {pipeline_mode = #tpu.pipeline_mode<synchronous>, transform_indices = @transform_6, window_bounds = array<i64: 2, 1>}]} {
    %c0_i32 = arith.constant 0 : i32
    %0 = arith.cmpi eq, %arg0, %c0_i32 : i32
    %1 = arith.extui %0 : i1 to i32
    %c0_i32_0 = arith.constant 0 : i32
    %2 = arith.cmpi ne, %1, %c0_i32_0 : i32
    scf.if %2 {
      %cst_9 = arith.constant 0.000000e+00 : f32
      %12 = vector.broadcast %cst_9 : f32 to vector<32x512xf32>
      %c0_10 = arith.constant 0 : index
      %c0_11 = arith.constant 0 : index
      %13 = vector.load %arg8[%c0_10, %c0_11] : memref<32x512xf32, #tpu.memory_space<vmem>>, vector<32x512xf32>
      tpu.vector_store %arg8[%c0_10, %c0_11], %12 {strides = array<i32>} : memref<32x512xf32, #tpu.memory_space<vmem>>, vector<32x512xf32>,
    } else {
    }
    %c0 = arith.constant 0 : index
    %c0_1 = arith.constant 0 : index
    %3 = vector.load %arg8[%c0, %c0_1] : memref<32x512xf32, #tpu.memory_space<vmem>>, vector<32x512xf32>
    %c0_2 = arith.constant 0 : index
    %c0_3 = arith.constant 0 : index
    %4 = vector.load %arg1[%c0_2, %c0_3] : memref<32x1024xbf16, #tpu.memory_space<vmem>>, vector<32x1024xbf16>
    %c0_4 = arith.constant 0 : index
    %c0_5 = arith.constant 0 : index
    %5 = vector.load %arg2[%c0_4, %c0_5] : memref<1024x512xbf16, #tpu.memory_space<vmem>>, vector<1024x512xbf16>
    %cst = arith.constant dense<0.000000e+00> : vector<32x512xf32>
    %6 = tpu.matmul %4, %5, %cst {dimension_numbers = #tpu.dot_dimension_numbers<[1], [0], [0], [1], [0, 0, 1, 1], [], []>} : vector<32x1024xbf16>, vector<1024x512xbf16>, vector<32x512xf32> -> vector<32x512xf32>
    %7 = arith.addf %3, %6 : vector<32x512xf32>
    %c0_6 = arith.constant 0 : index
    %c0_7 = arith.constant 0 : index
    %8 = vector.load %arg8[%c0_6, %c0_7] : memref<32x512xf32, #tpu.memory_space<vmem>>, vector<32x512xf32>
    tpu.vector_store %arg8[%c0_6, %c0_7], %7 {strides = array<i32>} : memref<32x512xf32, #tpu.memory_space<vmem>>, vector<32x512xf32>,
    %c3_i32 = arith.constant 3 : i32
    %9 = arith.cmpi eq, %arg0, %c3_i32 : i32
    %10 = arith.extui %9 : i1 to i32
    %c0_i32_8 = arith.constant 0 : i32
    %11 = arith.cmpi ne, %10, %c0_i32_8 : i32
    scf.if %11 {
      %c0_9 = arith.constant 0 : index
      %c0_10 = arith.constant 0 : index
      %12 = vector.load %arg8[%c0_9, %c0_10] : memref<32x512xf32, #tpu.memory_space<vmem>>, vector<32x512xf32>
      %c0_11 = arith.constant 0 : index
      %c0_12 = arith.constant 0 : index
      %13 = vector.load %arg3[%c0_11, %c0_12] : memref<1x512xf32, #tpu.memory_space<vmem>>, vector<1x512xf32>
      %c0_13 = arith.constant 0 : index
      %c0_14 = arith.constant 0 : index
      %14 = vector.load %arg4[%c0_13, %c0_14] : memref<1x512xf32, #tpu.memory_space<vmem>>, vector<1x512xf32>
      %cst_15 = arith.constant dense<0.000000e+00> : vector<512xf32>
      %15 = vector.multi_reduction <add>, %12, %cst_15 [0] : vector<32x512xf32> to vector<512xf32>
      %16 = vector.shape_cast %15 : vector<512xf32> to vector<1x512xf32>
      %cst_16 = arith.constant 3.125000e-02 : f32
      %17 = vector.broadcast %cst_16 : f32 to vector<1x512xf32>
      %18 = arith.mulf %16, %17 : vector<1x512xf32>
      %19 = arith.mulf %12, %12 : vector<32x512xf32>
      %cst_17 = arith.constant dense<0.000000e+00> : vector<512xf32>
      %20 = vector.multi_reduction <add>, %19, %cst_17 [0] : vector<32x512xf32> to vector<512xf32>
      %21 = vector.shape_cast %20 : vector<512xf32> to vector<1x512xf32>
      %cst_18 = arith.constant 3.125000e-02 : f32
      %22 = vector.broadcast %cst_18 : f32 to vector<1x512xf32>
      %23 = arith.mulf %21, %22 : vector<1x512xf32>
      %24 = arith.mulf %18, %18 : vector<1x512xf32>
      %25 = arith.subf %23, %24 : vector<1x512xf32>
      %26 = vector.broadcast %18 : vector<1x512xf32> to vector<32x512xf32>
      %27 = arith.subf %12, %26 : vector<32x512xf32>
      %cst_19 = arith.constant 9.99999974E-6 : f32
      %28 = vector.broadcast %cst_19 : f32 to vector<1x512xf32>
      %29 = arith.addf %25, %28 : vector<1x512xf32>
      %30 = math.rsqrt %29 : vector<1x512xf32>
      %31 = vector.broadcast %30 : vector<1x512xf32> to vector<32x512xf32>
      %32 = arith.mulf %27, %31 : vector<32x512xf32>
      %33 = vector.broadcast %13 : vector<1x512xf32> to vector<32x512xf32>
      %34 = arith.mulf %32, %33 : vector<32x512xf32>
      %35 = vector.broadcast %14 : vector<1x512xf32> to vector<32x512xf32>
      %36 = arith.addf %34, %35 : vector<32x512xf32>
      %cst_20 = arith.constant 0.000000e+00 : f32
      %37 = vector.broadcast %cst_20 : f32 to vector<32x512xf32>
      %38 = arith.cmpf ogt, %36, %37 : vector<32x512xf32>
      %cst_21 = arith.constant 2.000000e-01 : f32
      %39 = vector.broadcast %cst_21 : f32 to vector<32x512xf32>
      %40 = arith.mulf %39, %36 : vector<32x512xf32>
      %41 = arith.select %38, %36, %40 : vector<32x512xi1>, vector<32x512xf32>
      %42 = vector.shape_cast %41 : vector<32x512xf32> to vector<2x16x512xf32>
      %c0_22 = arith.constant 0 : index
      %c0_23 = arith.constant 0 : index
      %43 = vector.load %arg5[%c0_22, %c0_23] : memref<16x512xf32, #tpu.memory_space<vmem>>, vector<16x512xf32>
      %44 = vector.shape_cast %43 : vector<16x512xf32> to vector<1x16x512xf32>
      %45 = vector.broadcast %44 : vector<1x16x512xf32> to vector<2x16x512xf32>
      %46 = arith.mulf %42, %45 : vector<2x16x512xf32>
      %cst_24 = arith.constant dense<0.000000e+00> : vector<2x16xf32>
      %47 = vector.multi_reduction <add>, %46, %cst_24 [2] : vector<2x16x512xf32> to vector<2x16xf32>
      %cst_25 = arith.constant dense<0.000000e+00> : vector<2xf32>
      %48 = vector.multi_reduction <add>, %47, %cst_25 [1] : vector<2x16xf32> to vector<2xf32>
      %49 = vector.shape_cast %48 : vector<2xf32> to vector<2x1xf32>
      %c0_26 = arith.constant 0 : index
      %c0_27 = arith.constant 0 : index
      %50 = vector.load %arg6[%c0_26, %c0_27] : memref<1x1xf32, #tpu.memory_space<vmem>>, vector<1x1xf32>
      %51 = vector.broadcast %50 : vector<1x1xf32> to vector<2x1xf32>
      %52 = arith.addf %49, %51 : vector<2x1xf32>
      %53 = arith.negf %52 : vector<2x1xf32>
      %54 = math.exp %53 : vector<2x1xf32>
      %cst_28 = arith.constant 1.000000e+00 : f32
      %55 = vector.broadcast %cst_28 : f32 to vector<2x1xf32>
      %56 = arith.addf %55, %54 : vector<2x1xf32>
      %57 = arith.divf %55, %56 : vector<2x1xf32>
      %c0_29 = arith.constant 0 : index
      %c0_30 = arith.constant 0 : index
      %58 = vector.load %arg7[%c0_29, %c0_30] : memref<2x1xf32, #tpu.memory_space<vmem>>, vector<2x1xf32>
      tpu.vector_store %arg7[%c0_29, %c0_30], %57 {strides = array<i32>} : memref<2x1xf32, #tpu.memory_space<vmem>>, vector<2x1xf32>,
    } else {
    }
    return
  }
  func.func @transform_0(%arg0: i32) -> (i32, i32) {
    %c0_i32 = arith.constant 0 : i32
    %c0_i32_0 = arith.constant 0 : i32
    return %c0_i32, %arg0 : i32, i32
  }
  func.func @transform_1(%arg0: i32) -> (i32, i32) {
    %c0_i32 = arith.constant 0 : i32
    %c0_i32_0 = arith.constant 0 : i32
    return %arg0, %c0_i32 : i32, i32
  }
  func.func @transform_2(%arg0: i32) -> (i32, i32) {
    %c0_i32 = arith.constant 0 : i32
    %c0_i32_0 = arith.constant 0 : i32
    %c0_i32_1 = arith.constant 0 : i32
    return %c0_i32, %c0_i32_0 : i32, i32
  }
  func.func @transform_3(%arg0: i32) -> (i32, i32) {
    %c0_i32 = arith.constant 0 : i32
    %c0_i32_0 = arith.constant 0 : i32
    %c0_i32_1 = arith.constant 0 : i32
    return %c0_i32, %c0_i32_0 : i32, i32
  }
  func.func @transform_4(%arg0: i32) -> (i32, i32) {
    %c0_i32 = arith.constant 0 : i32
    %c0_i32_0 = arith.constant 0 : i32
    %c0_i32_1 = arith.constant 0 : i32
    return %c0_i32, %c0_i32_0 : i32, i32
  }
  func.func @transform_5(%arg0: i32) -> (i32, i32) {
    %c0_i32 = arith.constant 0 : i32
    %c0_i32_0 = arith.constant 0 : i32
    %c0_i32_1 = arith.constant 0 : i32
    return %c0_i32, %c0_i32_0 : i32, i32
  }
  func.func @transform_6(%arg0: i32) -> (i32, i32) {
    %c0_i32 = arith.constant 0 : i32
    %c0_i32_0 = arith.constant 0 : i32
    %c0_i32_1 = arith.constant 0 : i32
    return %c0_i32, %c0_i32_0 : i32, i32
  }
}

</mosaic_0001>

<llo_original>
// kernel: discriminator_forward.4
$region0: #{discriminator_forward.4}
  #allocation0 [shape = 'u32[]', space=smem, size = 0x4, offset = 0x4, fixed_abs, tag = 'smem constant byte address 0x4 - core index']
  #allocation1 [shape = 'u32[72,128]{1,0:T(1,128)}', space=vmem, size = 0x9000, scoped, tag = 'internal scratch']
  %s0 = inlined_call_operand.vmem [shape: bf16[1024,32], index: 0, kind: input, shape index: {}]
  %s1 = inlined_call_operand.hbm [shape: bf16[32,128], index: 1, kind: input, shape index: {}]
  %s2 = inlined_call_operand.hbm [shape: f32[1,128], index: 2, kind: input, shape index: {}]
  %s3 = inlined_call_operand.vmem [shape: bf16[1024,128], index: 3, kind: output, shape index: {}]
  %s4 = sld [smem:[#allocation0]]
  $region30: #{discriminator_forward.4} parent=0
    _
  %s6 = ssub.s32 1, %s4
  %s7 = scalar_select 0, %s6, %s4
  $region1: #{discriminator_forward.4} parent=0
    #allocation2 [shape = 'u8[8192]{0}', space=vmem, size = 0x2000, scoped, tag = 'input window, operand 1, single buffered']
    #allocation3 [shape = 's32[1]{0}', space=sflag, size = 0x4, scoped, tag = 'scoped memory for discriminator_forward.4']
    #allocation4 [shape = 'u8[512]{0}', space=vmem, size = 0x400, scoped, tag = 'input window, operand 2, single buffered']
    #allocation5 [shape = 's32[1]{0}', space=sflag, size = 0x4, scoped, tag = 'scoped memory for discriminator_forward.4']
    %8 = vsyncpa [#allocation3], 0
    %9 = vsyncpa [#allocation5], 0
    // Predicated region
    $region2: #{discriminator_forward.4} parent=1 // pred_check
      _
    $region3: #{discriminator_forward.4} parent=1 // pred_check_branch
      %11 = sbr.rel (0) target = $region5
    $region4: #{discriminator_forward.4} parent=1 // pred_region
      _
    $region5: #{discriminator_forward.4} parent=1 // pred_fallthru
      _
    // Predicated region
    $region6: #{discriminator_forward.4} parent=1 // pred_check
      _
    $region7: #{discriminator_forward.4} parent=1 // pred_check_branch
      %13 = sbr.rel (0) target = $region9
    $region8: #{discriminator_forward.4} parent=1 // pred_region
      %15 = vsyncadd [#allocation3], 0
      %s16 = sshll.u32 %s1, 4
      %s17 = int_to_ptr.hbm [resolvable:$true] %s16
      %s18 = sshll.u32 [#allocation2], 4
      %s19 = int_to_ptr.vmem [resolvable:$true] %s18
      %24 = dma.hbm_to_vmem [thread:$0]  %s17, 256, %s19, [#allocation3], 64, 64, 4
    $region9: #{discriminator_forward.4} parent=1 // pred_fallthru
      _
    // Predicated region
    $region10: #{discriminator_forward.4} parent=1 // pred_check
      _
    $region11: #{discriminator_forward.4} parent=1 // pred_check_branch
      %26 = sbr.rel (0) target = $region13
    $region12: #{discriminator_forward.4} parent=1 // pred_region
      %28 = vsyncadd [#allocation5], 0
      %s30 = sshll.u32 %s2, 4
      %s31 = int_to_ptr.hbm [resolvable:$true] %s30
      %s32 = sshll.u32 [#allocation4], 4
      %s33 = int_to_ptr.vmem [resolvable:$true] %s32
      %35 = dma.hbm_to_vmem [thread:$0]  %s31, 16, %s33, [#allocation5]
    $region13: #{discriminator_forward.4} parent=1 // pred_fallthru
      _
    // Predicated region
    $region14: #{discriminator_forward.4} parent=1 // pred_check
      _
    $region15: #{discriminator_forward.4} parent=1 // pred_check_branch
      %37 = sbr.rel (0) target = $region17
    $region16: #{discriminator_forward.4} parent=1 // pred_region
      %39 = dma.done [#allocation3], 256
    $region17: #{discriminator_forward.4} parent=1 // pred_fallthru
      _
    // Predicated region
    $region18: #{discriminator_forward.4} parent=1 // pred_check
      _
    $region19: #{discriminator_forward.4} parent=1 // pred_check_branch
      %41 = sbr.rel (0) target = $region21
    $region20: #{discriminator_forward.4} parent=1 // pred_region
      %43 = dma.done [#allocation5], 16
    $region21: #{discriminator_forward.4} parent=1 // pred_fallthru
      _
    %v45 = vld [vmem:[%s0] sm:$0xf]
    %v46 = vld [vmem:[%s0 + $0x4] sm:$0xf]
    %v47 = vld [vmem:[%s0 + $0x8] sm:$0xf]
    %v48 = vld [vmem:[%s0 + $0xc] sm:$0xf]
    %v49 = vld [vmem:[%s0 + $0x10] sm:$0xf]
    %v50 = vld [vmem:[%s0 + $0x14] sm:$0xf]
    %v51 = vld [vmem:[%s0 + $0x18] sm:$0xf]
    %v52 = vld [vmem:[%s0 + $0x1c] sm:$0xf]
    %v53 = vld [vmem:[%s0 + $0x20] sm:$0xf]
    %v54 = vld [vmem:[%s0 + $0x24] sm:$0xf]
    %v55 = vld [vmem:[%s0 + $0x28] sm:$0xf]
    %v56 = vld [vmem:[%s0 + $0x2c] sm:$0xf]
    %v57 = vld [vmem:[%s0 + $0x30] sm:$0xf]
    %v58 = vld [vmem:[%s0 + $0x34] sm:$0xf]
    %v59 = vld [vmem:[%s0 + $0x38] sm:$0xf]
    %v60 = vld [vmem:[%s0 + $0x3c] sm:$0xf]
    %v61 = vld [vmem:[%s0 + $0x40] sm:$0xf]
    %v62 = vld [vmem:[%s0 + $0x44] sm:$0xf]
    %v63 = vld [vmem:[%s0 + $0x48] sm:$0xf]
    %v64 = vld [vmem:[%s0 + $0x4c] sm:$0xf]
    %v65 = vld [vmem:[%s0 + $0x50] sm:$0xf]
    %v66 = vld [vmem:[%s0 + $0x54] sm:$0xf]
    %v67 = vld [vmem:[%s0 + $0x58] sm:$0xf]
    %v68 = vld [vmem:[%s0 + $0x5c] sm:$0xf]
    %v69 = vld [vmem:[%s0 + $0x60] sm:$0xf]
    %v70 = vld [vmem:[%s0 + $0x64] sm:$0xf]
    %v71 = vld [vmem:[%s0 + $0x68] sm:$0xf]
    %v72 = vld [vmem:[%s0 + $0x6c] sm:$0xf]
    %v73 = vld [vmem:[%s0 + $0x70] sm:$0xf]
    %v74 = vld [vmem:[%s0 + $0x74] sm:$0xf]
    %v75 = vld [vmem:[%s0 + $0x78] sm:$0xf]
    %v76 = vld [vmem:[%s0 + $0x7c] sm:$0xf]
    %v77 = vld [vmem:[%s0 + $0x80] sm:$0xf]
    %v78 = vld [vmem:[%s0 + $0x84] sm:$0xf]
    %v79 = vld [vmem:[%s0 + $0x88] sm:$0xf]
    %v80 = vld [vmem:[%s0 + $0x8c] sm:$0xf]
    %v81 = vld [vmem:[%s0 + $0x90] sm:$0xf]
    %v82 = vld [vmem:[%s0 + $0x94] sm:$0xf]
    %v83 = vld [vmem:[%s0 + $0x98] sm:$0xf]
    %v84 = vld [vmem:[%s0 + $0x9c] sm:$0xf]
    %v85 = vld [vmem:[%s0 + $0xa0] sm:$0xf]
    %v86 = vld [vmem:[%s0 + $0xa4] sm:$0xf]
    %v87 = vld [vmem:[%s0 + $0xa8] sm:$0xf]
    %v88 = vld [vmem:[%s0 + $0xac] sm:$0xf]
    %v89 = vld [vmem:[%s0 + $0xb0] sm:$0xf]
    %v90 = vld [vmem:[%s0 + $0xb4] sm:$0xf]
    %v91 = vld [vmem:[%s0 + $0xb8] sm:$0xf]
    %v92 = vld [vmem:[%s0 + $0xbc] sm:$0xf]
    %v93 = vld [vmem:[%s0 + $0xc0] sm:$0xf]
    %v94 = vld [vmem:[%s0 + $0xc4] sm:$0xf]
    %v95 = vld [vmem:[%s0 + $0xc8] sm:$0xf]
    %v96 = vld [vmem:[%s0 + $0xcc] sm:$0xf]
    %v97 = vld [vmem:[%s0 + $0xd0] sm:$0xf]
    %v98 = vld [vmem:[%s0 + $0xd4] sm:$0xf]
    %v99 = vld [vmem:[%s0 + $0xd8] sm:$0xf]
    %v100 = vld [vmem:[%s0 + $0xdc] sm:$0xf]
    %v101 = vld [vmem:[%s0 + $0xe0] sm:$0xf]
    %v102 = vld [vmem:[%s0 + $0xe4] sm:$0xf]
    %v103 = vld [vmem:[%s0 + $0xe8] sm:$0xf]
    %v104 = vld [vmem:[%s0 + $0xec] sm:$0xf]
    %v105 = vld [vmem:[%s0 + $0xf0] sm:$0xf]
    %v106 = vld [vmem:[%s0 + $0xf4] sm:$0xf]
    %v107 = vld [vmem:[%s0 + $0xf8] sm:$0xf]
    %v108 = vld [vmem:[%s0 + $0xfc] sm:$0xf]
    %v109 = vld [vmem:[%s0 + $0x100] sm:$0xf]
    %v110 = vld [vmem:[%s0 + $0x104] sm:$0xf]
    %v111 = vld [vmem:[%s0 + $0x108] sm:$0xf]
    %v112 = vld [vmem:[%s0 + $0x10c] sm:$0xf]
    %v113 = vld [vmem:[%s0 + $0x110] sm:$0xf]
    %v114 = vld [vmem:[%s0 + $0x114] sm:$0xf]
    %v115 = vld [vmem:[%s0 + $0x118] sm:$0xf]
    %v116 = vld [vmem:[%s0 + $0x11c] sm:$0xf]
    %v117 = vld [vmem:[%s0 + $0x120] sm:$0xf]
    %v118 = vld [vmem:[%s0 + $0x124] sm:$0xf]
    %v119 = vld [vmem:[%s0 + $0x128] sm:$0xf]
    %v120 = vld [vmem:[%s0 + $0x12c] sm:$0xf]
    %v121 = vld [vmem:[%s0 + $0x130] sm:$0xf]
    %v122 = vld [vmem:[%s0 + $0x134] sm:$0xf]
    %v123 = vld [vmem:[%s0 + $0x138] sm:$0xf]
    %v124 = vld [vmem:[%s0 + $0x13c] sm:$0xf]
    %v125 = vld [vmem:[%s0 + $0x140] sm:$0xf]
    %v126 = vld [vmem:[%s0 + $0x144] sm:$0xf]
    %v127 = vld [vmem:[%s0 + $0x148] sm:$0xf]
    %v128 = vld [vmem:[%s0 + $0x14c] sm:$0xf]
    %v129 = vld [vmem:[%s0 + $0x150] sm:$0xf]
    %v130 = vld [vmem:[%s0 + $0x154] sm:$0xf]
    %v131 = vld [vmem:[%s0 + $0x158] sm:$0xf]
    %v132 = vld [vmem:[%s0 + $0x15c] sm:$0xf]
    %v133 = vld [vmem:[%s0 + $0x160] sm:$0xf]
    %v134 = vld [vmem:[%s0 + $0x164] sm:$0xf]
    %v135 = vld [vmem:[%s0 + $0x168] sm:$0xf]
    %v136 = vld [vmem:[%s0 + $0x16c] sm:$0xf]
    %v137 = vld [vmem:[%s0 + $0x170] sm:$0xf]
    %v138 = vld [vmem:[%s0 + $0x174] sm:$0xf]
    %v139 = vld [vmem:[%s0 + $0x178] sm:$0xf]
    %v140 = vld [vmem:[%s0 + $0x17c] sm:$0xf]
    %v141 = vld [vmem:[%s0 + $0x180] sm:$0xf]
    %v142 = vld [vmem:[%s0 + $0x184] sm:$0xf]
    %v143 = vld [vmem:[%s0 + $0x188] sm:$0xf]
    %v144 = vld [vmem:[%s0 + $0x18c] sm:$0xf]
    %v145 = vld [vmem:[%s0 + $0x190] sm:$0xf]
    %v146 = vld [vmem:[%s0 + $0x194] sm:$0xf]
    %v147 = vld [vmem:[%s0 + $0x198] sm:$0xf]
    %v148 = vld [vmem:[%s0 + $0x19c] sm:$0xf]
    %v149 = vld [vmem:[%s0 + $0x1a0] sm:$0xf]
    %v150 = vld [vmem:[%s0 + $0x1a4] sm:$0xf]
    %v151 = vld [vmem:[%s0 + $0x1a8] sm:$0xf]
    %v152 = vld [vmem:[%s0 + $0x1ac] sm:$0xf]
    %v153 = vld [vmem:[%s0 + $0x1b0] sm:$0xf]
    %v154 = vld [vmem:[%s0 + $0x1b4] sm:$0xf]
    %v155 = vld [vmem:[%s0 + $0x1b8] sm:$0xf]
    %v156 = vld [vmem:[%s0 + $0x1bc] sm:$0xf]
    %v157 = vld [vmem:[%s0 + $0x1c0] sm:$0xf]
    %v158 = vld [vmem:[%s0 + $0x1c4] sm:$0xf]
    %v159 = vld [vmem:[%s0 + $0x1c8] sm:$0xf]
    %v160 = vld [vmem:[%s0 + $0x1cc] sm:$0xf]
    %v161 = vld [vmem:[%s0 + $0x1d0] sm:$0xf]
    %v162 = vld [vmem:[%s0 + $0x1d4] sm:$0xf]
    %v163 = vld [vmem:[%s0 + $0x1d8] sm:$0xf]
    %v164 = vld [vmem:[%s0 + $0x1dc] sm:$0xf]
    %v165 = vld [vmem:[%s0 + $0x1e0] sm:$0xf]
    %v166 = vld [vmem:[%s0 + $0x1e4] sm:$0xf]
    %v167 = vld [vmem:[%s0 + $0x1e8] sm:$0xf]
    %v168 = vld [vmem:[%s0 + $0x1ec] sm:$0xf]
    %v169 = vld [vmem:[%s0 + $0x1f0] sm:$0xf]
    %v170 = vld [vmem:[%s0 + $0x1f4] sm:$0xf]
    %v171 = vld [vmem:[%s0 + $0x1f8] sm:$0xf]
    %v172 = vld [vmem:[%s0 + $0x1fc] sm:$0xf]
    %v173 = vld [vmem:[#allocation2] sm:$0xf]
    %v174 = vld [vmem:[#allocation2 + $0x4] sm:$0xf]
    %v175 = vld [vmem:[#allocation2 + $0x8] sm:$0xf]
    %v176 = vld [vmem:[#allocation2 + $0xc] sm:$0xf]
    %v177 = vld [vmem:[#allocation4] sm:$0x1]
    %v179 = vperm.slane %v177, 0
    %v309 = vunpack.c.l.b16 %v45
    %v310 = vunpack.c.l.b16 %v46
    %v311 = vunpack.c.l.b16 %v47
    %v312 = vunpack.c.l.b16 %v48
    %v313 = vunpack.c.l.b16 %v49
    %v314 = vunpack.c.l.b16 %v50
    %v315 = vunpack.c.l.b16 %v51
    %v316 = vunpack.c.l.b16 %v52
    %v317 = vunpack.c.l.b16 %v53
    %v318 = vunpack.c.l.b16 %v54
    %v319 = vunpack.c.l.b16 %v55
    %v320 = vunpack.c.l.b16 %v56
    %v321 = vunpack.c.l.b16 %v57
    %v322 = vunpack.c.l.b16 %v58
    %v323 = vunpack.c.l.b16 %v59
    %v324 = vunpack.c.l.b16 %v60
    %v325 = vunpack.c.l.b16 %v61
    %v326 = vunpack.c.l.b16 %v62
    %v327 = vunpack.c.l.b16 %v63
    %v328 = vunpack.c.l.b16 %v64
    %v329 = vunpack.c.l.b16 %v65
    %v330 = vunpack.c.l.b16 %v66
    %v331 = vunpack.c.l.b16 %v67
    %v332 = vunpack.c.l.b16 %v68
    %v333 = vunpack.c.l.b16 %v69
    %v334 = vunpack.c.l.b16 %v70
    %v335 = vunpack.c.l.b16 %v71
    %v336 = vunpack.c.l.b16 %v72
    %v337 = vunpack.c.l.b16 %v73
    %v338 = vunpack.c.l.b16 %v74
    %v339 = vunpack.c.l.b16 %v75
    %v340 = vunpack.c.l.b16 %v76
    %v341 = vunpack.c.l.b16 %v77
    %v342 = vunpack.c.l.b16 %v78
    %v343 = vunpack.c.l.b16 %v79
    %v344 = vunpack.c.l.b16 %v80
    %v345 = vunpack.c.l.b16 %v81
    %v346 = vunpack.c.l.b16 %v82
    %v347 = vunpack.c.l.b16 %v83
    %v348 = vunpack.c.l.b16 %v84
    %v349 = vunpack.c.l.b16 %v85
    %v350 = vunpack.c.l.b16 %v86
    %v351 = vunpack.c.l.b16 %v87
    %v352 = vunpack.c.l.b16 %v88
    %v353 = vunpack.c.l.b16 %v89
    %v354 = vunpack.c.l.b16 %v90
    %v355 = vunpack.c.l.b16 %v91
    %v356 = vunpack.c.l.b16 %v92
    %v357 = vunpack.c.l.b16 %v93
    %v358 = vunpack.c.l.b16 %v94
    %v359 = vunpack.c.l.b16 %v95
    %v360 = vunpack.c.l.b16 %v96
    %v361 = vunpack.c.l.b16 %v97
    %v362 = vunpack.c.l.b16 %v98
    %v363 = vunpack.c.l.b16 %v99
    %v364 = vunpack.c.l.b16 %v100
    %v365 = vunpack.c.l.b16 %v101
    %v366 = vunpack.c.l.b16 %v102
    %v367 = vunpack.c.l.b16 %v103
    %v368 = vunpack.c.l.b16 %v104
    %v369 = vunpack.c.l.b16 %v105
    %v370 = vunpack.c.l.b16 %v106
    %v371 = vunpack.c.l.b16 %v107
    %v372 = vunpack.c.l.b16 %v108
    %v373 = vunpack.c.l.b16 %v109
    %v374 = vunpack.c.l.b16 %v110
    %v375 = vunpack.c.l.b16 %v111
    %v376 = vunpack.c.l.b16 %v112
    %v377 = vunpack.c.l.b16 %v113
    %v378 = vunpack.c.l.b16 %v114
    %v379 = vunpack.c.l.b16 %v115
    %v380 = vunpack.c.l.b16 %v116
    %v381 = vunpack.c.l.b16 %v117
    %v382 = vunpack.c.l.b16 %v118
    %v383 = vunpack.c.l.b16 %v119
    %v384 = vunpack.c.l.b16 %v120
    %v385 = vunpack.c.l.b16 %v121
    %v386 = vunpack.c.l.b16 %v122
    %v387 = vunpack.c.l.b16 %v123
    %v388 = vunpack.c.l.b16 %v124
    %v389 = vunpack.c.l.b16 %v125
    %v390 = vunpack.c.l.b16 %v126
    %v391 = vunpack.c.l.b16 %v127
    %v392 = vunpack.c.l.b16 %v128
    %v393 = vunpack.c.l.b16 %v129
    %v394 = vunpack.c.l.b16 %v130
    %v395 = vunpack.c.l.b16 %v131
    %v396 = vunpack.c.l.b16 %v132
    %v397 = vunpack.c.l.b16 %v133
    %v398 = vunpack.c.l.b16 %v134
    %v399 = vunpack.c.l.b16 %v135
    %v400 = vunpack.c.l.b16 %v136
    %v401 = vunpack.c.l.b16 %v137
    %v402 = vunpack.c.l.b16 %v138
    %v403 = vunpack.c.l.b16 %v139
    %v404 = vunpack.c.l.b16 %v140
    %v405 = vunpack.c.l.b16 %v141
    %v406 = vunpack.c.l.b16 %v142
    %v407 = vunpack.c.l.b16 %v143
    %v408 = vunpack.c.l.b16 %v144
    %v409 = vunpack.c.l.b16 %v145
    %v410 = vunpack.c.l.b16 %v146
    %v411 = vunpack.c.l.b16 %v147
    %v412 = vunpack.c.l.b16 %v148
    %v413 = vunpack.c.l.b16 %v149
    %v414 = vunpack.c.l.b16 %v150
    %v415 = vunpack.c.l.b16 %v151
    %v416 = vunpack.c.l.b16 %v152
    %v417 = vunpack.c.l.b16 %v153
    %v418 = vunpack.c.l.b16 %v154
    %v419 = vunpack.c.l.b16 %v155
    %v420 = vunpack.c.l.b16 %v156
    %v421 = vunpack.c.l.b16 %v157
    %v422 = vunpack.c.l.b16 %v158
    %v423 = vunpack.c.l.b16 %v159
    %v424 = vunpack.c.l.b16 %v160
    %v425 = vunpack.c.l.b16 %v161
    %v426 = vunpack.c.l.b16 %v162
    %v427 = vunpack.c.l.b16 %v163
    %v428 = vunpack.c.l.b16 %v164
    %v429 = vunpack.c.l.b16 %v165
    %v430 = vunpack.c.l.b16 %v166
    %v431 = vunpack.c.l.b16 %v167
    %v432 = vunpack.c.l.b16 %v168
    %v433 = vunpack.c.l.b16 %v169
    %v434 = vunpack.c.l.b16 %v170
    %v435 = vunpack.c.l.b16 %v171
    %v436 = vunpack.c.l.b16 %v172
    %v437 = vpack.c.b16 %v310, %v309
    %v438 = vpack.c.b16 %v312, %v311
    %v439 = vpack.c.b16 %v314, %v313
    %v440 = vpack.c.b16 %v316, %v315
    %v441 = vpack.c.b16 %v318, %v317
    %v442 = vpack.c.b16 %v320, %v319
    %v443 = vpack.c.b16 %v322, %v321
    %v444 = vpack.c.b16 %v324, %v323
    %v445 = vpack.c.b16 %v326, %v325
    %v446 = vpack.c.b16 %v328, %v327
    %v447 = vpack.c.b16 %v330, %v329
    %v448 = vpack.c.b16 %v332, %v331
    %v449 = vpack.c.b16 %v334, %v333
    %v450 = vpack.c.b16 %v336, %v335
    %v451 = vpack.c.b16 %v338, %v337
    %v452 = vpack.c.b16 %v340, %v339
    %v453 = vpack.c.b16 %v342, %v341
    %v454 = vpack.c.b16 %v344, %v343
    %v455 = vpack.c.b16 %v346, %v345
    %v456 = vpack.c.b16 %v348, %v347
    %v457 = vpack.c.b16 %v350, %v349
    %v458 = vpack.c.b16 %v352, %v351
    %v459 = vpack.c.b16 %v354, %v353
    %v460 = vpack.c.b16 %v356, %v355
    %v461 = vpack.c.b16 %v358, %v357
    %v462 = vpack.c.b16 %v360, %v359
    %v463 = vpack.c.b16 %v362, %v361
    %v464 = vpack.c.b16 %v364, %v363
    %v465 = vpack.c.b16 %v366, %v365
    %v466 = vpack.c.b16 %v368, %v367
    %v467 = vpack.c.b16 %v370, %v369
    %v468 = vpack.c.b16 %v372, %v371
    %v469 = vpack.c.b16 %v374, %v373
    %v470 = vpack.c.b16 %v376, %v375
    %v471 = vpack.c.b16 %v378, %v377
    %v472 = vpack.c.b16 %v380, %v379
    %v473 = vpack.c.b16 %v382, %v381
    %v474 = vpack.c.b16 %v384, %v383
    %v475 = vpack.c.b16 %v386, %v385
    %v476 = vpack.c.b16 %v388, %v387
    %v477 = vpack.c.b16 %v390, %v389
    %v478 = vpack.c.b16 %v392, %v391
    %v479 = vpack.c.b16 %v394, %v393
    %v480 = vpack.c.b16 %v396, %v395
    %v481 = vpack.c.b16 %v398, %v397
    %v482 = vpack.c.b16 %v400, %v399
    %v483 = vpack.c.b16 %v402, %v401
    %v484 = vpack.c.b16 %v404, %v403
    %v485 = vpack.c.b16 %v406, %v405
    %v486 = vpack.c.b16 %v408, %v407
    %v487 = vpack.c.b16 %v410, %v409
    %v488 = vpack.c.b16 %v412, %v411
    %v489 = vpack.c.b16 %v414, %v413
    %v490 = vpack.c.b16 %v416, %v415
    %v491 = vpack.c.b16 %v418, %v417
    %v492 = vpack.c.b16 %v420, %v419
    %v493 = vpack.c.b16 %v422, %v421
    %v494 = vpack.c.b16 %v424, %v423
    %v495 = vpack.c.b16 %v426, %v425
    %v496 = vpack.c.b16 %v428, %v427
    %v497 = vpack.c.b16 %v430, %v429
    %v498 = vpack.c.b16 %v432, %v431
    %v499 = vpack.c.b16 %v434, %v433
    %v500 = vpack.c.b16 %v436, %v435
    %v505 = vunpack.c.l.b16 %v173
    %v506 = vunpack.c.l.b16 %v174
    %v507 = vunpack.c.l.b16 %v175
    %v508 = vunpack.c.l.b16 %v176
    %v509 = vpack.c.b16 %v506, %v505
    %v510 = vpack.c.b16 %v508, %v507
    %vm513 = vcmask 261120
    %v515 = vsel %vm513, %v437, 0
    %v518 = vsel %vm513, %v438, 0
    %v521 = vsel %vm513, %v439, 0
    %v524 = vsel %vm513, %v440, 0
    %v527 = vsel %vm513, %v441, 0
    %v530 = vsel %vm513, %v442, 0
    %v533 = vsel %vm513, %v443, 0
    %v536 = vsel %vm513, %v444, 0
    %v539 = vsel %vm513, %v445, 0
    %v542 = vsel %vm513, %v446, 0
    %v545 = vsel %vm513, %v447, 0
    %v548 = vsel %vm513, %v448, 0
    %v551 = vsel %vm513, %v449, 0
    %v554 = vsel %vm513, %v450, 0
    %v557 = vsel %vm513, %v451, 0
    %v560 = vsel %vm513, %v452, 0
    %v563 = vsel %vm513, %v453, 0
    %v566 = vsel %vm513, %v454, 0
    %v569 = vsel %vm513, %v455, 0
    %v572 = vsel %vm513, %v456, 0
    %v575 = vsel %vm513, %v457, 0
    %v578 = vsel %vm513, %v458, 0
    %v581 = vsel %vm513, %v459, 0
    %v584 = vsel %vm513, %v460, 0
    %v587 = vsel %vm513, %v461, 0
    %v590 = vsel %vm513, %v462, 0
    %v593 = vsel %vm513, %v463, 0
    %v596 = vsel %vm513, %v464, 0
    %v599 = vsel %vm513, %v465, 0
    %v602 = vsel %vm513, %v466, 0
    %v605 = vsel %vm513, %v467, 0
    %v608 = vsel %vm513, %v468, 0
    %v611 = vsel %vm513, %v469, 0
    %v614 = vsel %vm513, %v470, 0
    %v617 = vsel %vm513, %v471, 0
    %v620 = vsel %vm513, %v472, 0
    %v623 = vsel %vm513, %v473, 0
    %v626 = vsel %vm513, %v474, 0
    %v629 = vsel %vm513, %v475, 0
    %v632 = vsel %vm513, %v476, 0
    %v635 = vsel %vm513, %v477, 0
    %v638 = vsel %vm513, %v478, 0
    %v641 = vsel %vm513, %v479, 0
    %v644 = vsel %vm513, %v480, 0
    %v647 = vsel %vm513, %v481, 0
    %v650 = vsel %vm513, %v482, 0
    %v653 = vsel %vm513, %v483, 0
    %v656 = vsel %vm513, %v484, 0
    %v659 = vsel %vm513, %v485, 0
    %v662 = vsel %vm513, %v486, 0
    %v665 = vsel %vm513, %v487, 0
    %v668 = vsel %vm513, %v488, 0
    %v671 = vsel %vm513, %v489, 0
    %v674 = vsel %vm513, %v490, 0
    %v677 = vsel %vm513, %v491, 0
    %v680 = vsel %vm513, %v492, 0
    %v683 = vsel %vm513, %v493, 0
    %v686 = vsel %vm513, %v494, 0
    %v689 = vsel %vm513, %v495, 0
    %v692 = vsel %vm513, %v496, 0
    %v695 = vsel %vm513, %v497, 0
    %v698 = vsel %vm513, %v498, 0
    %v701 = vsel %vm513, %v499, 0
    %v704 = vsel %vm513, %v500, 0
    %706 = vmatpush.bf16.msra.mxu0 0
    %707 = vmatpush.bf16.msra.mxu0 0
    %708 = vmatpush.bf16.msra.mxu0 0
    %709 = vmatpush.bf16.msra.mxu0 0
    %710 = vmatpush.bf16.msra.mxu0 0
    %711 = vmatpush.bf16.msra.mxu0 0
    %712 = vmatpush.bf16.msra.mxu0 %v510
    %713 = vmatpush.bf16.msra.mxu0 %v509
    %714 = vmatmul.bf16.gmra.mxu0 %v515
    %v715 = vpop.f32.mrf.mxu0
    %v716 = vadd.f32 %v179, %v715
    %v717 = vpop.f32.mrf.mxu0
    %v718 = vadd.f32 %v179, %v717
    %719 = vmatmul.bf16.gmra.mxu0 %v518
    %v720 = vpop.f32.mrf.mxu0
    %v721 = vadd.f32 %v179, %v720
    %v722 = vpop.f32.mrf.mxu0
    %v723 = vadd.f32 %v179, %v722
    %724 = vmatmul.bf16.gmra.mxu0 %v521
    %v725 = vpop.f32.mrf.mxu0
    %v726 = vadd.f32 %v179, %v725
    %v727 = vpop.f32.mrf.mxu0
    %v728 = vadd.f32 %v179, %v727
    %729 = vmatmul.bf16.gmra.mxu0 %v524
    %v730 = vpop.f32.mrf.mxu0
    %v731 = vadd.f32 %v179, %v730
    %v732 = vpop.f32.mrf.mxu0
    %v733 = vadd.f32 %v179, %v732
    %734 = vmatmul.bf16.gmra.mxu0 %v527
    %v735 = vpop.f32.mrf.mxu0
    %v736 = vadd.f32 %v179, %v735
    %v737 = vpop.f32.mrf.mxu0
    %v738 = vadd.f32 %v179, %v737
    %739 = vmatmul.bf16.gmra.mxu0 %v530
    %v740 = vpop.f32.mrf.mxu0
    %v741 = vadd.f32 %v179, %v740
    %v742 = vpop.f32.mrf.mxu0
    %v743 = vadd.f32 %v179, %v742
    %744 = vmatmul.bf16.gmra.mxu0 %v533
    %v745 = vpop.f32.mrf.mxu0
    %v746 = vadd.f32 %v179, %v745
    %v747 = vpop.f32.mrf.mxu0
    %v748 = vadd.f32 %v179, %v747
    %749 = vmatmul.bf16.gmra.mxu0 %v536
    %v750 = vpop.f32.mrf.mxu0
    %v751 = vadd.f32 %v179, %v750
    %v752 = vpop.f32.mrf.mxu0
    %v753 = vadd.f32 %v179, %v752
    %754 = vmatmul.bf16.gmra.mxu0 %v539
    %v755 = vpop.f32.mrf.mxu0
    %v756 = vadd.f32 %v179, %v755
    %v757 = vpop.f32.mrf.mxu0
    %v758 = vadd.f32 %v179, %v757
    %759 = vmatmul.bf16.gmra.mxu0 %v542
    %v760 = vpop.f32.mrf.mxu0
    %v761 = vadd.f32 %v179, %v760
    %v762 = vpop.f32.mrf.mxu0
    %v763 = vadd.f32 %v179, %v762
    %764 = vmatmul.bf16.gmra.mxu0 %v545
    %v765 = vpop.f32.mrf.mxu0
    %v766 = vadd.f32 %v179, %v765
    %v767 = vpop.f32.mrf.mxu0
    %v768 = vadd.f32 %v179, %v767
    %769 = vmatmul.bf16.gmra.mxu0 %v548
    %v770 = vpop.f32.mrf.mxu0
    %v771 = vadd.f32 %v179, %v770
    %v772 = vpop.f32.mrf.mxu0
    %v773 = vadd.f32 %v179, %v772
    %774 = vmatmul.bf16.gmra.mxu0 %v551
    %v775 = vpop.f32.mrf.mxu0
    %v776 = vadd.f32 %v179, %v775
    %v777 = vpop.f32.mrf.mxu0
    %v778 = vadd.f32 %v179, %v777
    %779 = vmatmul.bf16.gmra.mxu0 %v554
    %v780 = vpop.f32.mrf.mxu0
    %v781 = vadd.f32 %v179, %v780
    %v782 = vpop.f32.mrf.mxu0
    %v783 = vadd.f32 %v179, %v782
    %784 = vmatmul.bf16.gmra.mxu0 %v557
    %v785 = vpop.f32.mrf.mxu0
    %v786 = vadd.f32 %v179, %v785
    %v787 = vpop.f32.mrf.mxu0
    %v788 = vadd.f32 %v179, %v787
    %789 = vmatmul.bf16.gmra.mxu0 %v560
    %v790 = vpop.f32.mrf.mxu0
    %v791 = vadd.f32 %v179, %v790
    %v792 = vpop.f32.mrf.mxu0
    %v793 = vadd.f32 %v179, %v792
    %794 = vmatmul.bf16.gmra.mxu0 %v563
    %v795 = vpop.f32.mrf.mxu0
    %v796 = vadd.f32 %v179, %v795
    %v797 = vpop.f32.mrf.mxu0
    %v798 = vadd.f32 %v179, %v797
    %799 = vmatmul.bf16.gmra.mxu0 %v566
    %v800 = vpop.f32.mrf.mxu0
    %v801 = vadd.f32 %v179, %v800
    %v802 = vpop.f32.mrf.mxu0
    %v803 = vadd.f32 %v179, %v802
    %804 = vmatmul.bf16.gmra.mxu0 %v569
    %v805 = vpop.f32.mrf.mxu0
    %v806 = vadd.f32 %v179, %v805
    %v807 = vpop.f32.mrf.mxu0
    %v808 = vadd.f32 %v179, %v807
    %809 = vmatmul.bf16.gmra.mxu0 %v572
    %v810 = vpop.f32.mrf.mxu0
    %v811 = vadd.f32 %v179, %v810
    %v812 = vpop.f32.mrf.mxu0
    %v813 = vadd.f32 %v179, %v812
    %814 = vmatmul.bf16.gmra.mxu0 %v575
    %v815 = vpop.f32.mrf.mxu0
    %v816 = vadd.f32 %v179, %v815
    %v817 = vpop.f32.mrf.mxu0
    %v818 = vadd.f32 %v179, %v817
    %819 = vmatmul.bf16.gmra.mxu0 %v578
    %v820 = vpop.f32.mrf.mxu0
    %v821 = vadd.f32 %v179, %v820
    %v822 = vpop.f32.mrf.mxu0
    %v823 = vadd.f32 %v179, %v822
    %824 = vmatmul.bf16.gmra.mxu0 %v581
    %v825 = vpop.f32.mrf.mxu0
    %v826 = vadd.f32 %v179, %v825
    %v827 = vpop.f32.mrf.mxu0
    %v828 = vadd.f32 %v179, %v827
    %829 = vmatmul.bf16.gmra.mxu0 %v584
    %v830 = vpop.f32.mrf.mxu0
    %v831 = vadd.f32 %v179, %v830
    %v832 = vpop.f32.mrf.mxu0
    %v833 = vadd.f32 %v179, %v832
    %834 = vmatmul.bf16.gmra.mxu0 %v587
    %v835 = vpop.f32.mrf.mxu0
    %v836 = vadd.f32 %v179, %v835
    %v837 = vpop.f32.mrf.mxu0
    %v838 = vadd.f32 %v179, %v837
    %839 = vmatmul.bf16.gmra.mxu0 %v590
    %v840 = vpop.f32.mrf.mxu0
    %v841 = vadd.f32 %v179, %v840
    %v842 = vpop.f32.mrf.mxu0
    %v843 = vadd.f32 %v179, %v842
    %844 = vmatmul.bf16.gmra.mxu0 %v593
    %v845 = vpop.f32.mrf.mxu0
    %v846 = vadd.f32 %v179, %v845
    %v847 = vpop.f32.mrf.mxu0
    %v848 = vadd.f32 %v179, %v847
    %849 = vmatmul.bf16.gmra.mxu0 %v596
    %v850 = vpop.f32.mrf.mxu0
    %v851 = vadd.f32 %v179, %v850
    %v852 = vpop.f32.mrf.mxu0
    %v853 = vadd.f32 %v179, %v852
    %854 = vmatmul.bf16.gmra.mxu0 %v599
    %v855 = vpop.f32.mrf.mxu0
    %v856 = vadd.f32 %v179, %v855
    %v857 = vpop.f32.mrf.mxu0
    %v858 = vadd.f32 %v179, %v857
    %859 = vmatmul.bf16.gmra.mxu0 %v602
    %v860 = vpop.f32.mrf.mxu0
    %v861 = vadd.f32 %v179, %v860
    %v862 = vpop.f32.mrf.mxu0
    %v863 = vadd.f32 %v179, %v862
    %864 = vmatmul.bf16.gmra.mxu0 %v605
    %v865 = vpop.f32.mrf.mxu0
    %v866 = vadd.f32 %v179, %v865
    %v867 = vpop.f32.mrf.mxu0
    %v868 = vadd.f32 %v179, %v867
    %869 = vmatmul.bf16.gmra.mxu0 %v608
    %v870 = vpop.f32.mrf.mxu0
    %v871 = vadd.f32 %v179, %v870
    %v872 = vpop.f32.mrf.mxu0
    %v873 = vadd.f32 %v179, %v872
    %874 = vmatmul.bf16.gmra.mxu0 %v611
    %v875 = vpop.f32.mrf.mxu0
    %v876 = vadd.f32 %v179, %v875
    %v877 = vpop.f32.mrf.mxu0
    %v878 = vadd.f32 %v179, %v877
    %879 = vmatmul.bf16.gmra.mxu0 %v614
    %v880 = vpop.f32.mrf.mxu0
    %v881 = vadd.f32 %v179, %v880
    %v882 = vpop.f32.mrf.mxu0
    %v883 = vadd.f32 %v179, %v882
    %884 = vmatmul.bf16.gmra.mxu0 %v617
    %v885 = vpop.f32.mrf.mxu0
    %v886 = vadd.f32 %v179, %v885
    %v887 = vpop.f32.mrf.mxu0
    %v888 = vadd.f32 %v179, %v887
    %889 = vmatmul.bf16.gmra.mxu0 %v620
    %v890 = vpop.f32.mrf.mxu0
    %v891 = vadd.f32 %v179, %v890
    %v892 = vpop.f32.mrf.mxu0
    %v893 = vadd.f32 %v179, %v892
    %894 = vmatmul.bf16.gmra.mxu0 %v623
    %v895 = vpop.f32.mrf.mxu0
    %v896 = vadd.f32 %v179, %v895
    %v897 = vpop.f32.mrf.mxu0
    %v898 = vadd.f32 %v179, %v897
    %899 = vmatmul.bf16.gmra.mxu0 %v626
    %v900 = vpop.f32.mrf.mxu0
    %v901 = vadd.f32 %v179, %v900
    %v902 = vpop.f32.mrf.mxu0
    %v903 = vadd.f32 %v179, %v902
    %904 = vmatmul.bf16.gmra.mxu0 %v629
    %v905 = vpop.f32.mrf.mxu0
    %v906 = vadd.f32 %v179, %v905
    %v907 = vpop.f32.mrf.mxu0
    %v908 = vadd.f32 %v179, %v907
    %909 = vmatmul.bf16.gmra.mxu0 %v632
    %v910 = vpop.f32.mrf.mxu0
    %v911 = vadd.f32 %v179, %v910
    %v912 = vpop.f32.mrf.mxu0
    %v913 = vadd.f32 %v179, %v912
    %914 = vmatmul.bf16.gmra.mxu0 %v635
    %v915 = vpop.f32.mrf.mxu0
    %v916 = vadd.f32 %v179, %v915
    %v917 = vpop.f32.mrf.mxu0
    %v918 = vadd.f32 %v179, %v917
    %919 = vmatmul.bf16.gmra.mxu0 %v638
    %v920 = vpop.f32.mrf.mxu0
    %v921 = vadd.f32 %v179, %v920
    %v922 = vpop.f32.mrf.mxu0
    %v923 = vadd.f32 %v179, %v922
    %924 = vmatmul.bf16.gmra.mxu0 %v641
    %v925 = vpop.f32.mrf.mxu0
    %v926 = vadd.f32 %v179, %v925
    %v927 = vpop.f32.mrf.mxu0
    %v928 = vadd.f32 %v179, %v927
    %929 = vmatmul.bf16.gmra.mxu0 %v644
    %v930 = vpop.f32.mrf.mxu0
    %v931 = vadd.f32 %v179, %v930
    %v932 = vpop.f32.mrf.mxu0
    %v933 = vadd.f32 %v179, %v932
    %934 = vmatmul.bf16.gmra.mxu0 %v647
    %v935 = vpop.f32.mrf.mxu0
    %v936 = vadd.f32 %v179, %v935
    %v937 = vpop.f32.mrf.mxu0
    %v938 = vadd.f32 %v179, %v937
    %939 = vmatmul.bf16.gmra.mxu0 %v650
    %v940 = vpop.f32.mrf.mxu0
    %v941 = vadd.f32 %v179, %v940
    %v942 = vpop.f32.mrf.mxu0
    %v943 = vadd.f32 %v179, %v942
    %944 = vmatmul.bf16.gmra.mxu0 %v653
    %v945 = vpop.f32.mrf.mxu0
    %v946 = vadd.f32 %v179, %v945
    %v947 = vpop.f32.mrf.mxu0
    %v948 = vadd.f32 %v179, %v947
    %949 = vmatmul.bf16.gmra.mxu0 %v656
    %v950 = vpop.f32.mrf.mxu0
    %v951 = vadd.f32 %v179, %v950
    %v952 = vpop.f32.mrf.mxu0
    %v953 = vadd.f32 %v179, %v952
    %954 = vmatmul.bf16.gmra.mxu0 %v659
    %v955 = vpop.f32.mrf.mxu0
    %v956 = vadd.f32 %v179, %v955
    %v957 = vpop.f32.mrf.mxu0
    %v958 = vadd.f32 %v179, %v957
    %959 = vmatmul.bf16.gmra.mxu0 %v662
    %v960 = vpop.f32.mrf.mxu0
    %v961 = vadd.f32 %v179, %v960
    %v962 = vpop.f32.mrf.mxu0
    %v963 = vadd.f32 %v179, %v962
    %964 = vmatmul.bf16.gmra.mxu0 %v665
    %v965 = vpop.f32.mrf.mxu0
    %v966 = vadd.f32 %v179, %v965
    %v967 = vpop.f32.mrf.mxu0
    %v968 = vadd.f32 %v179, %v967
    %969 = vmatmul.bf16.gmra.mxu0 %v668
    %v970 = vpop.f32.mrf.mxu0
    %v971 = vadd.f32 %v179, %v970
    %v972 = vpop.f32.mrf.mxu0
    %v973 = vadd.f32 %v179, %v972
    %974 = vmatmul.bf16.gmra.mxu0 %v671
    %v975 = vpop.f32.mrf.mxu0
    %v976 = vadd.f32 %v179, %v975
    %v977 = vpop.f32.mrf.mxu0
    %v978 = vadd.f32 %v179, %v977
    %979 = vmatmul.bf16.gmra.mxu0 %v674
    %v980 = vpop.f32.mrf.mxu0
    %v981 = vadd.f32 %v179, %v980
    %v982 = vpop.f32.mrf.mxu0
    %v983 = vadd.f32 %v179, %v982
    %984 = vmatmul.bf16.gmra.mxu0 %v677
    %v985 = vpop.f32.mrf.mxu0
    %v986 = vadd.f32 %v179, %v985
    %v987 = vpop.f32.mrf.mxu0
    %v988 = vadd.f32 %v179, %v987
    %989 = vmatmul.bf16.gmra.mxu0 %v680
    %v990 = vpop.f32.mrf.mxu0
    %v991 = vadd.f32 %v179, %v990
    %v992 = vpop.f32.mrf.mxu0
    %v993 = vadd.f32 %v179, %v992
    %994 = vmatmul.bf16.gmra.mxu0 %v683
    %v995 = vpop.f32.mrf.mxu0
    %v996 = vadd.f32 %v179, %v995
    %v997 = vpop.f32.mrf.mxu0
    %v998 = vadd.f32 %v179, %v997
    %999 = vmatmul.bf16.gmra.mxu0 %v686
    %v1000 = vpop.f32.mrf.mxu0
    %v1001 = vadd.f32 %v179, %v1000
    %v1002 = vpop.f32.mrf.mxu0
    %v1003 = vadd.f32 %v179, %v1002
    %1004 = vmatmul.bf16.gmra.mxu0 %v689
    %v1005 = vpop.f32.mrf.mxu0
    %v1006 = vadd.f32 %v179, %v1005
    %v1007 = vpop.f32.mrf.mxu0
    %v1008 = vadd.f32 %v179, %v1007
    %1009 = vmatmul.bf16.gmra.mxu0 %v692
    %v1010 = vpop.f32.mrf.mxu0
    %v1011 = vadd.f32 %v179, %v1010
    %v1012 = vpop.f32.mrf.mxu0
    %v1013 = vadd.f32 %v179, %v1012
    %1014 = vmatmul.bf16.gmra.mxu0 %v695
    %v1015 = vpop.f32.mrf.mxu0
    %v1016 = vadd.f32 %v179, %v1015
    %v1017 = vpop.f32.mrf.mxu0
    %v1018 = vadd.f32 %v179, %v1017
    %1019 = vmatmul.bf16.gmra.mxu0 %v698
    %v1020 = vpop.f32.mrf.mxu0
    %v1021 = vadd.f32 %v179, %v1020
    %v1022 = vpop.f32.mrf.mxu0
    %v1023 = vadd.f32 %v179, %v1022
    %1024 = vmatmul.bf16.gmra.mxu0 %v701
    %v1025 = vpop.f32.mrf.mxu0
    %v1026 = vadd.f32 %v179, %v1025
    %v1027 = vpop.f32.mrf.mxu0
    %v1028 = vadd.f32 %v179, %v1027
    %1029 = vmatmul.bf16.gmra.mxu0 %v704
    %v1030 = vpop.f32.mrf.mxu0
    %v1031 = vadd.f32 %v179, %v1030
    %v1032 = vpop.f32.mrf.mxu0
    %v1033 = vadd.f32 %v179, %v1032
    %1034 = vdwg.mxu0
    %vm1035 = vcmp.gt.f32.partialorder %v716, 0.0
    %vm1036 = vcmp.gt.f32.partialorder %v718, 0.0
    %vm1037 = vcmp.gt.f32.partialorder %v721, 0.0
    %vm1038 = vcmp.gt.f32.partialorder %v723, 0.0
    %vm1039 = vcmp.gt.f32.partialorder %v726, 0.0
    %vm1040 = vcmp.gt.f32.partialorder %v728, 0.0
    %vm1041 = vcmp.gt.f32.partialorder %v731, 0.0
    %vm1042 = vcmp.gt.f32.partialorder %v733, 0.0
    %vm1043 = vcmp.gt.f32.partialorder %v736, 0.0
    %vm1044 = vcmp.gt.f32.partialorder %v738, 0.0
    %vm1045 = vcmp.gt.f32.partialorder %v741, 0.0
    %vm1046 = vcmp.gt.f32.partialorder %v743, 0.0
    %vm1047 = vcmp.gt.f32.partialorder %v746, 0.0
    %vm1048 = vcmp.gt.f32.partialorder %v748, 0.0
    %vm1049 = vcmp.gt.f32.partialorder %v751, 0.0
    %vm1050 = vcmp.gt.f32.partialorder %v753, 0.0
    %vm1051 = vcmp.gt.f32.partialorder %v756, 0.0
    %vm1052 = vcmp.gt.f32.partialorder %v758, 0.0
    %vm1053 = vcmp.gt.f32.partialorder %v761, 0.0
    %vm1054 = vcmp.gt.f32.partialorder %v763, 0.0
    %vm1055 = vcmp.gt.f32.partialorder %v766, 0.0
    %vm1056 = vcmp.gt.f32.partialorder %v768, 0.0
    %vm1057 = vcmp.gt.f32.partialorder %v771, 0.0
    %vm1058 = vcmp.gt.f32.partialorder %v773, 0.0
    %vm1059 = vcmp.gt.f32.partialorder %v776, 0.0
    %vm1060 = vcmp.gt.f32.partialorder %v778, 0.0
    %vm1061 = vcmp.gt.f32.partialorder %v781, 0.0
    %vm1062 = vcmp.gt.f32.partialorder %v783, 0.0
    %vm1063 = vcmp.gt.f32.partialorder %v786, 0.0
    %vm1064 = vcmp.gt.f32.partialorder %v788, 0.0
    %vm1065 = vcmp.gt.f32.partialorder %v791, 0.0
    %vm1066 = vcmp.gt.f32.partialorder %v793, 0.0
    %vm1067 = vcmp.gt.f32.partialorder %v796, 0.0
    %vm1068 = vcmp.gt.f32.partialorder %v798, 0.0
    %vm1069 = vcmp.gt.f32.partialorder %v801, 0.0
    %vm1070 = vcmp.gt.f32.partialorder %v803, 0.0
    %vm1071 = vcmp.gt.f32.partialorder %v806, 0.0
    %vm1072 = vcmp.gt.f32.partialorder %v808, 0.0
    %vm1073 = vcmp.gt.f32.partialorder %v811, 0.0
    %vm1074 = vcmp.gt.f32.partialorder %v813, 0.0
    %vm1075 = vcmp.gt.f32.partialorder %v816, 0.0
    %vm1076 = vcmp.gt.f32.partialorder %v818, 0.0
    %vm1077 = vcmp.gt.f32.partialorder %v821, 0.0
    %vm1078 = vcmp.gt.f32.partialorder %v823, 0.0
    %vm1079 = vcmp.gt.f32.partialorder %v826, 0.0
    %vm1080 = vcmp.gt.f32.partialorder %v828, 0.0
    %vm1081 = vcmp.gt.f32.partialorder %v831, 0.0
    %vm1082 = vcmp.gt.f32.partialorder %v833, 0.0
    %vm1083 = vcmp.gt.f32.partialorder %v836, 0.0
    %vm1084 = vcmp.gt.f32.partialorder %v838, 0.0
    %vm1085 = vcmp.gt.f32.partialorder %v841, 0.0
    %vm1086 = vcmp.gt.f32.partialorder %v843, 0.0
    %vm1087 = vcmp.gt.f32.partialorder %v846, 0.0
    %vm1088 = vcmp.gt.f32.partialorder %v848, 0.0
    %vm1089 = vcmp.gt.f32.partialorder %v851, 0.0
    %vm1090 = vcmp.gt.f32.partialorder %v853, 0.0
    %vm1091 = vcmp.gt.f32.partialorder %v856, 0.0
    %vm1092 = vcmp.gt.f32.partialorder %v858, 0.0
    %vm1093 = vcmp.gt.f32.partialorder %v861, 0.0
    %vm1094 = vcmp.gt.f32.partialorder %v863, 0.0
    %vm1095 = vcmp.gt.f32.partialorder %v866, 0.0
    %vm1096 = vcmp.gt.f32.partialorder %v868, 0.0
    %vm1097 = vcmp.gt.f32.partialorder %v871, 0.0
    %vm1098 = vcmp.gt.f32.partialorder %v873, 0.0
    %vm1099 = vcmp.gt.f32.partialorder %v876, 0.0
    %vm1100 = vcmp.gt.f32.partialorder %v878, 0.0
    %vm1101 = vcmp.gt.f32.partialorder %v881, 0.0
    %vm1102 = vcmp.gt.f32.partialorder %v883, 0.0
    %vm1103 = vcmp.gt.f32.partialorder %v886, 0.0
    %vm1104 = vcmp.gt.f32.partialorder %v888, 0.0
    %vm1105 = vcmp.gt.f32.partialorder %v891, 0.0
    %vm1106 = vcmp.gt.f32.partialorder %v893, 0.0
    %vm1107 = vcmp.gt.f32.partialorder %v896, 0.0
    %vm1108 = vcmp.gt.f32.partialorder %v898, 0.0
    %vm1109 = vcmp.gt.f32.partialorder %v901, 0.0
    %vm1110 = vcmp.gt.f32.partialorder %v903, 0.0
    %vm1111 = vcmp.gt.f32.partialorder %v906, 0.0
    %vm1112 = vcmp.gt.f32.partialorder %v908, 0.0
    %vm1113 = vcmp.gt.f32.partialorder %v911, 0.0
    %vm1114 = vcmp.gt.f32.partialorder %v913, 0.0
    %vm1115 = vcmp.gt.f32.partialorder %v916, 0.0
    %vm1116 = vcmp.gt.f32.partialorder %v918, 0.0
    %vm1117 = vcmp.gt.f32.partialorder %v921, 0.0
    %vm1118 = vcmp.gt.f32.partialorder %v923, 0.0
    %vm1119 = vcmp.gt.f32.partialorder %v926, 0.0
    %vm1120 = vcmp.gt.f32.partialorder %v928, 0.0
    %vm1121 = vcmp.gt.f32.partialorder %v931, 0.0
    %vm1122 = vcmp.gt.f32.partialorder %v933, 0.0
    %vm1123 = vcmp.gt.f32.partialorder %v936, 0.0
    %vm1124 = vcmp.gt.f32.partialorder %v938, 0.0
    %vm1125 = vcmp.gt.f32.partialorder %v941, 0.0
    %vm1126 = vcmp.gt.f32.partialorder %v943, 0.0
    %vm1127 = vcmp.gt.f32.partialorder %v946, 0.0
    %vm1128 = vcmp.gt.f32.partialorder %v948, 0.0
    %vm1129 = vcmp.gt.f32.partialorder %v951, 0.0
    %vm1130 = vcmp.gt.f32.partialorder %v953, 0.0
    %vm1131 = vcmp.gt.f32.partialorder %v956, 0.0
    %vm1132 = vcmp.gt.f32.partialorder %v958, 0.0
    %vm1133 = vcmp.gt.f32.partialorder %v961, 0.0
    %vm1134 = vcmp.gt.f32.partialorder %v963, 0.0
    %vm1135 = vcmp.gt.f32.partialorder %v966, 0.0
    %vm1136 = vcmp.gt.f32.partialorder %v968, 0.0
    %vm1137 = vcmp.gt.f32.partialorder %v971, 0.0
    %vm1138 = vcmp.gt.f32.partialorder %v973, 0.0
    %vm1139 = vcmp.gt.f32.partialorder %v976, 0.0
    %vm1140 = vcmp.gt.f32.partialorder %v978, 0.0
    %vm1141 = vcmp.gt.f32.partialorder %v981, 0.0
    %vm1142 = vcmp.gt.f32.partialorder %v983, 0.0
    %vm1143 = vcmp.gt.f32.partialorder %v986, 0.0
    %vm1144 = vcmp.gt.f32.partialorder %v988, 0.0
    %vm1145 = vcmp.gt.f32.partialorder %v991, 0.0
    %vm1146 = vcmp.gt.f32.partialorder %v993, 0.0
    %vm1147 = vcmp.gt.f32.partialorder %v996, 0.0
    %vm1148 = vcmp.gt.f32.partialorder %v998, 0.0
    %vm1149 = vcmp.gt.f32.partialorder %v1001, 0.0
    %vm1150 = vcmp.gt.f32.partialorder %v1003, 0.0
    %vm1151 = vcmp.gt.f32.partialorder %v1006, 0.0
    %vm1152 = vcmp.gt.f32.partialorder %v1008, 0.0
    %vm1153 = vcmp.gt.f32.partialorder %v1011, 0.0
    %vm1154 = vcmp.gt.f32.partialorder %v1013, 0.0
    %vm1155 = vcmp.gt.f32.partialorder %v1016, 0.0
    %vm1156 = vcmp.gt.f32.partialorder %v1018, 0.0
    %vm1157 = vcmp.gt.f32.partialorder %v1021, 0.0
    %vm1158 = vcmp.gt.f32.partialorder %v1023, 0.0
    %vm1159 = vcmp.gt.f32.partialorder %v1026, 0.0
    %vm1160 = vcmp.gt.f32.partialorder %v1028, 0.0
    %vm1161 = vcmp.gt.f32.partialorder %v1031, 0.0
    %vm1162 = vcmp.gt.f32.partialorder %v1033, 0.0
    %v1163 = vmul.f32 %v716, 0.2
    %v1164 = vmul.f32 %v718, 0.2
    %v1165 = vmul.f32 %v721, 0.2
    %v1166 = vmul.f32 %v723, 0.2
    %v1167 = vmul.f32 %v726, 0.2
    %v1168 = vmul.f32 %v728, 0.2
    %v1169 = vmul.f32 %v731, 0.2
    %v1170 = vmul.f32 %v733, 0.2
    %v1171 = vmul.f32 %v736, 0.2
    %v1172 = vmul.f32 %v738, 0.2
    %v1173 = vmul.f32 %v741, 0.2
    %v1174 = vmul.f32 %v743, 0.2
    %v1175 = vmul.f32 %v746, 0.2
    %v1176 = vmul.f32 %v748, 0.2
    %v1177 = vmul.f32 %v751, 0.2
    %v1178 = vmul.f32 %v753, 0.2
    %v1179 = vmul.f32 %v756, 0.2
    %v1180 = vmul.f32 %v758, 0.2
    %v1181 = vmul.f32 %v761, 0.2
    %v1182 = vmul.f32 %v763, 0.2
    %v1183 = vmul.f32 %v766, 0.2
    %v1184 = vmul.f32 %v768, 0.2
    %v1185 = vmul.f32 %v771, 0.2
    %v1186 = vmul.f32 %v773, 0.2
    %v1187 = vmul.f32 %v776, 0.2
    %v1188 = vmul.f32 %v778, 0.2
    %v1189 = vmul.f32 %v781, 0.2
    %v1190 = vmul.f32 %v783, 0.2
    %v1191 = vmul.f32 %v786, 0.2
    %v1192 = vmul.f32 %v788, 0.2
    %v1193 = vmul.f32 %v791, 0.2
    %v1194 = vmul.f32 %v793, 0.2
    %v1195 = vmul.f32 %v796, 0.2
    %v1196 = vmul.f32 %v798, 0.2
    %v1197 = vmul.f32 %v801, 0.2
    %v1198 = vmul.f32 %v803, 0.2
    %v1199 = vmul.f32 %v806, 0.2
    %v1200 = vmul.f32 %v808, 0.2
    %v1201 = vmul.f32 %v811, 0.2
    %v1202 = vmul.f32 %v813, 0.2
    %v1203 = vmul.f32 %v816, 0.2
    %v1204 = vmul.f32 %v818, 0.2
    %v1205 = vmul.f32 %v821, 0.2
    %v1206 = vmul.f32 %v823, 0.2
    %v1207 = vmul.f32 %v826, 0.2
    %v1208 = vmul.f32 %v828, 0.2
    %v1209 = vmul.f32 %v831, 0.2
    %v1210 = vmul.f32 %v833, 0.2
    %v1211 = vmul.f32 %v836, 0.2
    %v1212 = vmul.f32 %v838, 0.2
    %v1213 = vmul.f32 %v841, 0.2
    %v1214 = vmul.f32 %v843, 0.2
    %v1215 = vmul.f32 %v846, 0.2
    %v1216 = vmul.f32 %v848, 0.2
    %v1217 = vmul.f32 %v851, 0.2
    %v1218 = vmul.f32 %v853, 0.2
    %v1219 = vmul.f32 %v856, 0.2
    %v1220 = vmul.f32 %v858, 0.2
    %v1221 = vmul.f32 %v861, 0.2
    %v1222 = vmul.f32 %v863, 0.2
    %v1223 = vmul.f32 %v866, 0.2
    %v1224 = vmul.f32 %v868, 0.2
    %v1225 = vmul.f32 %v871, 0.2
    %v1226 = vmul.f32 %v873, 0.2
    %v1227 = vmul.f32 %v876, 0.2
    %v1228 = vmul.f32 %v878, 0.2
    %v1229 = vmul.f32 %v881, 0.2
    %v1230 = vmul.f32 %v883, 0.2
    %v1231 = vmul.f32 %v886, 0.2
    %v1232 = vmul.f32 %v888, 0.2
    %v1233 = vmul.f32 %v891, 0.2
    %v1234 = vmul.f32 %v893, 0.2
    %v1235 = vmul.f32 %v896, 0.2
    %v1236 = vmul.f32 %v898, 0.2
    %v1237 = vmul.f32 %v901, 0.2
    %v1238 = vmul.f32 %v903, 0.2
    %v1239 = vmul.f32 %v906, 0.2
    %v1240 = vmul.f32 %v908, 0.2
    %v1241 = vmul.f32 %v911, 0.2
    %v1242 = vmul.f32 %v913, 0.2
    %v1243 = vmul.f32 %v916, 0.2
    %v1244 = vmul.f32 %v918, 0.2
    %v1245 = vmul.f32 %v921, 0.2
    %v1246 = vmul.f32 %v923, 0.2
    %v1247 = vmul.f32 %v926, 0.2
    %v1248 = vmul.f32 %v928, 0.2
    %v1249 = vmul.f32 %v931, 0.2
    %v1250 = vmul.f32 %v933, 0.2
    %v1251 = vmul.f32 %v936, 0.2
    %v1252 = vmul.f32 %v938, 0.2
    %v1253 = vmul.f32 %v941, 0.2
    %v1254 = vmul.f32 %v943, 0.2
    %v1255 = vmul.f32 %v946, 0.2
    %v1256 = vmul.f32 %v948, 0.2
    %v1257 = vmul.f32 %v951, 0.2
    %v1258 = vmul.f32 %v953, 0.2
    %v1259 = vmul.f32 %v956, 0.2
    %v1260 = vmul.f32 %v958, 0.2
    %v1261 = vmul.f32 %v961, 0.2
    %v1262 = vmul.f32 %v963, 0.2
    %v1263 = vmul.f32 %v966, 0.2
    %v1264 = vmul.f32 %v968, 0.2
    %v1265 = vmul.f32 %v971, 0.2
    %v1266 = vmul.f32 %v973, 0.2
    %v1267 = vmul.f32 %v976, 0.2
    %v1268 = vmul.f32 %v978, 0.2
    %v1269 = vmul.f32 %v981, 0.2
    %v1270 = vmul.f32 %v983, 0.2
    %v1271 = vmul.f32 %v986, 0.2
    %v1272 = vmul.f32 %v988, 0.2
    %v1273 = vmul.f32 %v991, 0.2
    %v1274 = vmul.f32 %v993, 0.2
    %v1275 = vmul.f32 %v996, 0.2
    %v1276 = vmul.f32 %v998, 0.2
    %v1277 = vmul.f32 %v1001, 0.2
    %v1278 = vmul.f32 %v1003, 0.2
    %v1279 = vmul.f32 %v1006, 0.2
    %v1280 = vmul.f32 %v1008, 0.2
    %v1281 = vmul.f32 %v1011, 0.2
    %v1282 = vmul.f32 %v1013, 0.2
    %v1283 = vmul.f32 %v1016, 0.2
    %v1284 = vmul.f32 %v1018, 0.2
    %v1285 = vmul.f32 %v1021, 0.2
    %v1286 = vmul.f32 %v1023, 0.2
    %v1287 = vmul.f32 %v1026, 0.2
    %v1288 = vmul.f32 %v1028, 0.2
    %v1289 = vmul.f32 %v1031, 0.2
    %v1290 = vmul.f32 %v1033, 0.2
    %v1291 = vsel %vm1035, %v716, %v1163
    %v1292 = vsel %vm1036, %v718, %v1164
    %v1293 = vsel %vm1037, %v721, %v1165
    %v1294 = vsel %vm1038, %v723, %v1166
    %v1295 = vsel %vm1039, %v726, %v1167
    %v1296 = vsel %vm1040, %v728, %v1168
    %v1297 = vsel %vm1041, %v731, %v1169
    %v1298 = vsel %vm1042, %v733, %v1170
    %v1299 = vsel %vm1043, %v736, %v1171
    %v1300 = vsel %vm1044, %v738, %v1172
    %v1301 = vsel %vm1045, %v741, %v1173
    %v1302 = vsel %vm1046, %v743, %v1174
    %v1303 = vsel %vm1047, %v746, %v1175
    %v1304 = vsel %vm1048, %v748, %v1176
    %v1305 = vsel %vm1049, %v751, %v1177
    %v1306 = vsel %vm1050, %v753, %v1178
    %v1307 = vsel %vm1051, %v756, %v1179
    %v1308 = vsel %vm1052, %v758, %v1180
    %v1309 = vsel %vm1053, %v761, %v1181
    %v1310 = vsel %vm1054, %v763, %v1182
    %v1311 = vsel %vm1055, %v766, %v1183
    %v1312 = vsel %vm1056, %v768, %v1184
    %v1313 = vsel %vm1057, %v771, %v1185
    %v1314 = vsel %vm1058, %v773, %v1186
    %v1315 = vsel %vm1059, %v776, %v1187
    %v1316 = vsel %vm1060, %v778, %v1188
    %v1317 = vsel %vm1061, %v781, %v1189
    %v1318 = vsel %vm1062, %v783, %v1190
    %v1319 = vsel %vm1063, %v786, %v1191
    %v1320 = vsel %vm1064, %v788, %v1192
    %v1321 = vsel %vm1065, %v791, %v1193
    %v1322 = vsel %vm1066, %v793, %v1194
    %v1323 = vsel %vm1067, %v796, %v1195
    %v1324 = vsel %vm1068, %v798, %v1196
    %v1325 = vsel %vm1069, %v801, %v1197
    %v1326 = vsel %vm1070, %v803, %v1198
    %v1327 = vsel %vm1071, %v806, %v1199
    %v1328 = vsel %vm1072, %v808, %v1200
    %v1329 = vsel %vm1073, %v811, %v1201
    %v1330 = vsel %vm1074, %v813, %v1202
    %v1331 = vsel %vm1075, %v816, %v1203
    %v1332 = vsel %vm1076, %v818, %v1204
    %v1333 = vsel %vm1077, %v821, %v1205
    %v1334 = vsel %vm1078, %v823, %v1206
    %v1335 = vsel %vm1079, %v826, %v1207
    %v1336 = vsel %vm1080, %v828, %v1208
    %v1337 = vsel %vm1081, %v831, %v1209
    %v1338 = vsel %vm1082, %v833, %v1210
    %v1339 = vsel %vm1083, %v836, %v1211
    %v1340 = vsel %vm1084, %v838, %v1212
    %v1341 = vsel %vm1085, %v841, %v1213
    %v1342 = vsel %vm1086, %v843, %v1214
    %v1343 = vsel %vm1087, %v846, %v1215
    %v1344 = vsel %vm1088, %v848, %v1216
    %v1345 = vsel %vm1089, %v851, %v1217
    %v1346 = vsel %vm1090, %v853, %v1218
    %v1347 = vsel %vm1091, %v856, %v1219
    %v1348 = vsel %vm1092, %v858, %v1220
    %v1349 = vsel %vm1093, %v861, %v1221
    %v1350 = vsel %vm1094, %v863, %v1222
    %v1351 = vsel %vm1095, %v866, %v1223
    %v1352 = vsel %vm1096, %v868, %v1224
    %v1353 = vsel %vm1097, %v871, %v1225
    %v1354 = vsel %vm1098, %v873, %v1226
    %v1355 = vsel %vm1099, %v876, %v1227
    %v1356 = vsel %vm1100, %v878, %v1228
    %v1357 = vsel %vm1101, %v881, %v1229
    %v1358 = vsel %vm1102, %v883, %v1230
    %v1359 = vsel %vm1103, %v886, %v1231
    %v1360 = vsel %vm1104, %v888, %v1232
    %v1361 = vsel %vm1105, %v891, %v1233
    %v1362 = vsel %vm1106, %v893, %v1234
    %v1363 = vsel %vm1107, %v896, %v1235
    %v1364 = vsel %vm1108, %v898, %v1236
    %v1365 = vsel %vm1109, %v901, %v1237
    %v1366 = vsel %vm1110, %v903, %v1238
    %v1367 = vsel %vm1111, %v906, %v1239
    %v1368 = vsel %vm1112, %v908, %v1240
    %v1369 = vsel %vm1113, %v911, %v1241
    %v1370 = vsel %vm1114, %v913, %v1242
    %v1371 = vsel %vm1115, %v916, %v1243
    %v1372 = vsel %vm1116, %v918, %v1244
    %v1373 = vsel %vm1117, %v921, %v1245
    %v1374 = vsel %vm1118, %v923, %v1246
    %v1375 = vsel %vm1119, %v926, %v1247
    %v1376 = vsel %vm1120, %v928, %v1248
    %v1377 = vsel %vm1121, %v931, %v1249
    %v1378 = vsel %vm1122, %v933, %v1250
    %v1379 = vsel %vm1123, %v936, %v1251
    %v1380 = vsel %vm1124, %v938, %v1252
    %v1381 = vsel %vm1125, %v941, %v1253
    %v1382 = vsel %vm1126, %v943, %v1254
    %v1383 = vsel %vm1127, %v946, %v1255
    %v1384 = vsel %vm1128, %v948, %v1256
    %v1385 = vsel %vm1129, %v951, %v1257
    %v1386 = vsel %vm1130, %v953, %v1258
    %v1387 = vsel %vm1131, %v956, %v1259
    %v1388 = vsel %vm1132, %v958, %v1260
    %v1389 = vsel %vm1133, %v961, %v1261
    %v1390 = vsel %vm1134, %v963, %v1262
    %v1391 = vsel %vm1135, %v966, %v1263
    %v1392 = vsel %vm1136, %v968, %v1264
    %v1393 = vsel %vm1137, %v971, %v1265
    %v1394 = vsel %vm1138, %v973, %v1266
    %v1395 = vsel %vm1139, %v976, %v1267
    %v1396 = vsel %vm1140, %v978, %v1268
    %v1397 = vsel %vm1141, %v981, %v1269
    %v1398 = vsel %vm1142, %v983, %v1270
    %v1399 = vsel %vm1143, %v986, %v1271
    %v1400 = vsel %vm1144, %v988, %v1272
    %v1401 = vsel %vm1145, %v991, %v1273
    %v1402 = vsel %vm1146, %v993, %v1274
    %v1403 = vsel %vm1147, %v996, %v1275
    %v1404 = vsel %vm1148, %v998, %v1276
    %v1405 = vsel %vm1149, %v1001, %v1277
    %v1406 = vsel %vm1150, %v1003, %v1278
    %v1407 = vsel %vm1151, %v1006, %v1279
    %v1408 = vsel %vm1152, %v1008, %v1280
    %v1409 = vsel %vm1153, %v1011, %v1281
    %v1410 = vsel %vm1154, %v1013, %v1282
    %v1411 = vsel %vm1155, %v1016, %v1283
    %v1412 = vsel %vm1156, %v1018, %v1284
    %v1413 = vsel %vm1157, %v1021, %v1285
    %v1414 = vsel %vm1158, %v1023, %v1286
    %v1415 = vsel %vm1159, %v1026, %v1287
    %v1416 = vsel %vm1160, %v1028, %v1288
    %v1417 = vsel %vm1161, %v1031, %v1289
    %v1418 = vsel %vm1162, %v1033, %v1290
    %v1419 = vpack.c.bf16 %v1291, %v1291
    %v1420 = vpack.c.bf16 %v1292, %v1292
    %v1421 = vpack.c.bf16 %v1293, %v1293
    %v1422 = vpack.c.bf16 %v1294, %v1294
    %v1423 = vpack.c.bf16 %v1295, %v1295
    %v1424 = vpack.c.bf16 %v1296, %v1296
    %v1425 = vpack.c.bf16 %v1297, %v1297
    %v1426 = vpack.c.bf16 %v1298, %v1298
    %v1427 = vpack.c.bf16 %v1299, %v1299
    %v1428 = vpack.c.bf16 %v1300, %v1300
    %v1429 = vpack.c.bf16 %v1301, %v1301
    %v1430 = vpack.c.bf16 %v1302, %v1302
    %v1431 = vpack.c.bf16 %v1303, %v1303
    %v1432 = vpack.c.bf16 %v1304, %v1304
    %v1433 = vpack.c.bf16 %v1305, %v1305
    %v1434 = vpack.c.bf16 %v1306, %v1306
    %v1435 = vpack.c.bf16 %v1307, %v1307
    %v1436 = vpack.c.bf16 %v1308, %v1308
    %v1437 = vpack.c.bf16 %v1309, %v1309
    %v1438 = vpack.c.bf16 %v1310, %v1310
    %v1439 = vpack.c.bf16 %v1311, %v1311
    %v1440 = vpack.c.bf16 %v1312, %v1312
    %v1441 = vpack.c.bf16 %v1313, %v1313
    %v1442 = vpack.c.bf16 %v1314, %v1314
    %v1443 = vpack.c.bf16 %v1315, %v1315
    %v1444 = vpack.c.bf16 %v1316, %v1316
    %v1445 = vpack.c.bf16 %v1317, %v1317
    %v1446 = vpack.c.bf16 %v1318, %v1318
    %v1447 = vpack.c.bf16 %v1319, %v1319
    %v1448 = vpack.c.bf16 %v1320, %v1320
    %v1449 = vpack.c.bf16 %v1321, %v1321
    %v1450 = vpack.c.bf16 %v1322, %v1322
    %v1451 = vpack.c.bf16 %v1323, %v1323
    %v1452 = vpack.c.bf16 %v1324, %v1324
    %v1453 = vpack.c.bf16 %v1325, %v1325
    %v1454 = vpack.c.bf16 %v1326, %v1326
    %v1455 = vpack.c.bf16 %v1327, %v1327
    %v1456 = vpack.c.bf16 %v1328, %v1328
    %v1457 = vpack.c.bf16 %v1329, %v1329
    %v1458 = vpack.c.bf16 %v1330, %v1330
    %v1459 = vpack.c.bf16 %v1331, %v1331
    %v1460 = vpack.c.bf16 %v1332, %v1332
    %v1461 = vpack.c.bf16 %v1333, %v1333
    %v1462 = vpack.c.bf16 %v1334, %v1334
    %v1463 = vpack.c.bf16 %v1335, %v1335
    %v1464 = vpack.c.bf16 %v1336, %v1336
    %v1465 = vpack.c.bf16 %v1337, %v1337
    %v1466 = vpack.c.bf16 %v1338, %v1338
    %v1467 = vpack.c.bf16 %v1339, %v1339
    %v1468 = vpack.c.bf16 %v1340, %v1340
    %v1469 = vpack.c.bf16 %v1341, %v1341
    %v1470 = vpack.c.bf16 %v1342, %v1342
    %v1471 = vpack.c.bf16 %v1343, %v1343
    %v1472 = vpack.c.bf16 %v1344, %v1344
    %v1473 = vpack.c.bf16 %v1345, %v1345
    %v1474 = vpack.c.bf16 %v1346, %v1346
    %v1475 = vpack.c.bf16 %v1347, %v1347
    %v1476 = vpack.c.bf16 %v1348, %v1348
    %v1477 = vpack.c.bf16 %v1349, %v1349
    %v1478 = vpack.c.bf16 %v1350, %v1350
    %v1479 = vpack.c.bf16 %v1351, %v1351
    %v1480 = vpack.c.bf16 %v1352, %v1352
    %v1481 = vpack.c.bf16 %v1353, %v1353
    %v1482 = vpack.c.bf16 %v1354, %v1354
    %v1483 = vpack.c.bf16 %v1355, %v1355
    %v1484 = vpack.c.bf16 %v1356, %v1356
    %v1485 = vpack.c.bf16 %v1357, %v1357
    %v1486 = vpack.c.bf16 %v1358, %v1358
    %v1487 = vpack.c.bf16 %v1359, %v1359
    %v1488 = vpack.c.bf16 %v1360, %v1360
    %v1489 = vpack.c.bf16 %v1361, %v1361
    %v1490 = vpack.c.bf16 %v1362, %v1362
    %v1491 = vpack.c.bf16 %v1363, %v1363
    %v1492 = vpack.c.bf16 %v1364, %v1364
    %v1493 = vpack.c.bf16 %v1365, %v1365
    %v1494 = vpack.c.bf16 %v1366, %v1366
    %v1495 = vpack.c.bf16 %v1367, %v1367
    %v1496 = vpack.c.bf16 %v1368, %v1368
    %v1497 = vpack.c.bf16 %v1369, %v1369
    %v1498 = vpack.c.bf16 %v1370, %v1370
    %v1499 = vpack.c.bf16 %v1371, %v1371
    %v1500 = vpack.c.bf16 %v1372, %v1372
    %v1501 = vpack.c.bf16 %v1373, %v1373
    %v1502 = vpack.c.bf16 %v1374, %v1374
    %v1503 = vpack.c.bf16 %v1375, %v1375
    %v1504 = vpack.c.bf16 %v1376, %v1376
    %v1505 = vpack.c.bf16 %v1377, %v1377
    %v1506 = vpack.c.bf16 %v1378, %v1378
    %v1507 = vpack.c.bf16 %v1379, %v1379
    %v1508 = vpack.c.bf16 %v1380, %v1380
    %v1509 = vpack.c.bf16 %v1381, %v1381
    %v1510 = vpack.c.bf16 %v1382, %v1382
    %v1511 = vpack.c.bf16 %v1383, %v1383
    %v1512 = vpack.c.bf16 %v1384, %v1384
    %v1513 = vpack.c.bf16 %v1385, %v1385
    %v1514 = vpack.c.bf16 %v1386, %v1386
    %v1515 = vpack.c.bf16 %v1387, %v1387
    %v1516 = vpack.c.bf16 %v1388, %v1388
    %v1517 = vpack.c.bf16 %v1389, %v1389
    %v1518 = vpack.c.bf16 %v1390, %v1390
    %v1519 = vpack.c.bf16 %v1391, %v1391
    %v1520 = vpack.c.bf16 %v1392, %v1392
    %v1521 = vpack.c.bf16 %v1393, %v1393
    %v1522 = vpack.c.bf16 %v1394, %v1394
    %v1523 = vpack.c.bf16 %v1395, %v1395
    %v1524 = vpack.c.bf16 %v1396, %v1396
    %v1525 = vpack.c.bf16 %v1397, %v1397
    %v1526 = vpack.c.bf16 %v1398, %v1398
    %v1527 = vpack.c.bf16 %v1399, %v1399
    %v1528 = vpack.c.bf16 %v1400, %v1400
    %v1529 = vpack.c.bf16 %v1401, %v1401
    %v1530 = vpack.c.bf16 %v1402, %v1402
    %v1531 = vpack.c.bf16 %v1403, %v1403
    %v1532 = vpack.c.bf16 %v1404, %v1404
    %v1533 = vpack.c.bf16 %v1405, %v1405
    %v1534 = vpack.c.bf16 %v1406, %v1406
    %v1535 = vpack.c.bf16 %v1407, %v1407
    %v1536 = vpack.c.bf16 %v1408, %v1408
    %v1537 = vpack.c.bf16 %v1409, %v1409
    %v1538 = vpack.c.bf16 %v1410, %v1410
    %v1539 = vpack.c.bf16 %v1411, %v1411
    %v1540 = vpack.c.bf16 %v1412, %v1412
    %v1541 = vpack.c.bf16 %v1413, %v1413
    %v1542 = vpack.c.bf16 %v1414, %v1414
    %v1543 = vpack.c.bf16 %v1415, %v1415
    %v1544 = vpack.c.bf16 %v1416, %v1416
    %v1545 = vpack.c.bf16 %v1417, %v1417
    %v1546 = vpack.c.bf16 %v1418, %v1418
    %1547 = vst [vmem:[%s3] sm:$0xf] %v1419
    %1548 = vst [vmem:[%s3 + $0x4] sm:$0xf] %v1420
    %1549 = vst [vmem:[%s3 + $0x8] sm:$0xf] %v1421
    %1550 = vst [vmem:[%s3 + $0xc] sm:$0xf] %v1422
    %1551 = vst [vmem:[%s3 + $0x10] sm:$0xf] %v1423
    %1552 = vst [vmem:[%s3 + $0x14] sm:$0xf] %v1424
    %1553 = vst [vmem:[%s3 + $0x18] sm:$0xf] %v1425
    %1554 = vst [vmem:[%s3 + $0x1c] sm:$0xf] %v1426
    %1555 = vst [vmem:[%s3 + $0x20] sm:$0xf] %v1427
    %1556 = vst [vmem:[%s3 + $0x24] sm:$0xf] %v1428
    %1557 = vst [vmem:[%s3 + $0x28] sm:$0xf] %v1429
    %1558 = vst [vmem:[%s3 + $0x2c] sm:$0xf] %v1430
    %1559 = vst [vmem:[%s3 + $0x30] sm:$0xf] %v1431
    %1560 = vst [vmem:[%s3 + $0x34] sm:$0xf] %v1432
    %1561 = vst [vmem:[%s3 + $0x38] sm:$0xf] %v1433
    %1562 = vst [vmem:[%s3 + $0x3c] sm:$0xf] %v1434
    %1563 = vst [vmem:[%s3 + $0x40] sm:$0xf] %v1435
    %1564 = vst [vmem:[%s3 + $0x44] sm:$0xf] %v1436
    %1565 = vst [vmem:[%s3 + $0x48] sm:$0xf] %v1437
    %1566 = vst [vmem:[%s3 + $0x4c] sm:$0xf] %v1438
    %1567 = vst [vmem:[%s3 + $0x50] sm:$0xf] %v1439
    %1568 = vst [vmem:[%s3 + $0x54] sm:$0xf] %v1440
    %1569 = vst [vmem:[%s3 + $0x58] sm:$0xf] %v1441
    %1570 = vst [vmem:[%s3 + $0x5c] sm:$0xf] %v1442
    %1571 = vst [vmem:[%s3 + $0x60] sm:$0xf] %v1443
    %1572 = vst [vmem:[%s3 + $0x64] sm:$0xf] %v1444
    %1573 = vst [vmem:[%s3 + $0x68] sm:$0xf] %v1445
    %1574 = vst [vmem:[%s3 + $0x6c] sm:$0xf] %v1446
    %1575 = vst [vmem:[%s3 + $0x70] sm:$0xf] %v1447
    %1576 = vst [vmem:[%s3 + $0x74] sm:$0xf] %v1448
    %1577 = vst [vmem:[%s3 + $0x78] sm:$0xf] %v1449
    %1578 = vst [vmem:[%s3 + $0x7c] sm:$0xf] %v1450
    %1579 = vst [vmem:[%s3 + $0x80] sm:$0xf] %v1451
    %1580 = vst [vmem:[%s3 + $0x84] sm:$0xf] %v1452
    %1581 = vst [vmem:[%s3 + $0x88] sm:$0xf] %v1453
    %1582 = vst [vmem:[%s3 + $0x8c] sm:$0xf] %v1454
    %1583 = vst [vmem:[%s3 + $0x90] sm:$0xf] %v1455
    %1584 = vst [vmem:[%s3 + $0x94] sm:$0xf] %v1456
    %1585 = vst [vmem:[%s3 + $0x98] sm:$0xf] %v1457
    %1586 = vst [vmem:[%s3 + $0x9c] sm:$0xf] %v1458
    %1587 = vst [vmem:[%s3 + $0xa0] sm:$0xf] %v1459
    %1588 = vst [vmem:[%s3 + $0xa4] sm:$0xf] %v1460
    %1589 = vst [vmem:[%s3 + $0xa8] sm:$0xf] %v1461
    %1590 = vst [vmem:[%s3 + $0xac] sm:$0xf] %v1462
    %1591 = vst [vmem:[%s3 + $0xb0] sm:$0xf] %v1463
    %1592 = vst [vmem:[%s3 + $0xb4] sm:$0xf] %v1464
    %1593 = vst [vmem:[%s3 + $0xb8] sm:$0xf] %v1465
    %1594 = vst [vmem:[%s3 + $0xbc] sm:$0xf] %v1466
    %1595 = vst [vmem:[%s3 + $0xc0] sm:$0xf] %v1467
    %1596 = vst [vmem:[%s3 + $0xc4] sm:$0xf] %v1468
    %1597 = vst [vmem:[%s3 + $0xc8] sm:$0xf] %v1469
    %1598 = vst [vmem:[%s3 + $0xcc] sm:$0xf] %v1470
    %1599 = vst [vmem:[%s3 + $0xd0] sm:$0xf] %v1471
    %1600 = vst [vmem:[%s3 + $0xd4] sm:$0xf] %v1472
    %1601 = vst [vmem:[%s3 + $0xd8] sm:$0xf] %v1473
    %1602 = vst [vmem:[%s3 + $0xdc] sm:$0xf] %v1474
    %1603 = vst [vmem:[%s3 + $0xe0] sm:$0xf] %v1475
    %1604 = vst [vmem:[%s3 + $0xe4] sm:$0xf] %v1476
    %1605 = vst [vmem:[%s3 + $0xe8] sm:$0xf] %v1477
    %1606 = vst [vmem:[%s3 + $0xec] sm:$0xf] %v1478
    %1607 = vst [vmem:[%s3 + $0xf0] sm:$0xf] %v1479
    %1608 = vst [vmem:[%s3 + $0xf4] sm:$0xf] %v1480
    %1609 = vst [vmem:[%s3 + $0xf8] sm:$0xf] %v1481
    %1610 = vst [vmem:[%s3 + $0xfc] sm:$0xf] %v1482
    %1611 = vst [vmem:[%s3 + $0x100] sm:$0xf] %v1483
    %1612 = vst [vmem:[%s3 + $0x104] sm:$0xf] %v1484
    %1613 = vst [vmem:[%s3 + $0x108] sm:$0xf] %v1485
    %1614 = vst [vmem:[%s3 + $0x10c] sm:$0xf] %v1486
    %1615 = vst [vmem:[%s3 + $0x110] sm:$0xf] %v1487
    %1616 = vst [vmem:[%s3 + $0x114] sm:$0xf] %v1488
    %1617 = vst [vmem:[%s3 + $0x118] sm:$0xf] %v1489
    %1618 = vst [vmem:[%s3 + $0x11c] sm:$0xf] %v1490
    %1619 = vst [vmem:[%s3 + $0x120] sm:$0xf] %v1491
    %1620 = vst [vmem:[%s3 + $0x124] sm:$0xf] %v1492
    %1621 = vst [vmem:[%s3 + $0x128] sm:$0xf] %v1493
    %1622 = vst [vmem:[%s3 + $0x12c] sm:$0xf] %v1494
    %1623 = vst [vmem:[%s3 + $0x130] sm:$0xf] %v1495
    %1624 = vst [vmem:[%s3 + $0x134] sm:$0xf] %v1496
    %1625 = vst [vmem:[%s3 + $0x138] sm:$0xf] %v1497
    %1626 = vst [vmem:[%s3 + $0x13c] sm:$0xf] %v1498
    %1627 = vst [vmem:[%s3 + $0x140] sm:$0xf] %v1499
    %1628 = vst [vmem:[%s3 + $0x144] sm:$0xf] %v1500
    %1629 = vst [vmem:[%s3 + $0x148] sm:$0xf] %v1501
    %1630 = vst [vmem:[%s3 + $0x14c] sm:$0xf] %v1502
    %1631 = vst [vmem:[%s3 + $0x150] sm:$0xf] %v1503
    %1632 = vst [vmem:[%s3 + $0x154] sm:$0xf] %v1504
    %1633 = vst [vmem:[%s3 + $0x158] sm:$0xf] %v1505
    %1634 = vst [vmem:[%s3 + $0x15c] sm:$0xf] %v1506
    %1635 = vst [vmem:[%s3 + $0x160] sm:$0xf] %v1507
    %1636 = vst [vmem:[%s3 + $0x164] sm:$0xf] %v1508
    %1637 = vst [vmem:[%s3 + $0x168] sm:$0xf] %v1509
    %1638 = vst [vmem:[%s3 + $0x16c] sm:$0xf] %v1510
    %1639 = vst [vmem:[%s3 + $0x170] sm:$0xf] %v1511
    %1640 = vst [vmem:[%s3 + $0x174] sm:$0xf] %v1512
    %1641 = vst [vmem:[%s3 + $0x178] sm:$0xf] %v1513
    %1642 = vst [vmem:[%s3 + $0x17c] sm:$0xf] %v1514
    %1643 = vst [vmem:[%s3 + $0x180] sm:$0xf] %v1515
    %1644 = vst [vmem:[%s3 + $0x184] sm:$0xf] %v1516
    %1645 = vst [vmem:[%s3 + $0x188] sm:$0xf] %v1517
    %1646 = vst [vmem:[%s3 + $0x18c] sm:$0xf] %v1518
    %1647 = vst [vmem:[%s3 + $0x190] sm:$0xf] %v1519
    %1648 = vst [vmem:[%s3 + $0x194] sm:$0xf] %v1520
    %1649 = vst [vmem:[%s3 + $0x198] sm:$0xf] %v1521
    %1650 = vst [vmem:[%s3 + $0x19c] sm:$0xf] %v1522
    %1651 = vst [vmem:[%s3 + $0x1a0] sm:$0xf] %v1523
    %1652 = vst [vmem:[%s3 + $0x1a4] sm:$0xf] %v1524
    %1653 = vst [vmem:[%s3 + $0x1a8] sm:$0xf] %v1525
    %1654 = vst [vmem:[%s3 + $0x1ac] sm:$0xf] %v1526
    %1655 = vst [vmem:[%s3 + $0x1b0] sm:$0xf] %v1527
    %1656 = vst [vmem:[%s3 + $0x1b4] sm:$0xf] %v1528
    %1657 = vst [vmem:[%s3 + $0x1b8] sm:$0xf] %v1529
    %1658 = vst [vmem:[%s3 + $0x1bc] sm:$0xf] %v1530
    %1659 = vst [vmem:[%s3 + $0x1c0] sm:$0xf] %v1531
    %1660 = vst [vmem:[%s3 + $0x1c4] sm:$0xf] %v1532
    %1661 = vst [vmem:[%s3 + $0x1c8] sm:$0xf] %v1533
    %1662 = vst [vmem:[%s3 + $0x1cc] sm:$0xf] %v1534
    %1663 = vst [vmem:[%s3 + $0x1d0] sm:$0xf] %v1535
    %1664 = vst [vmem:[%s3 + $0x1d4] sm:$0xf] %v1536
    %1665 = vst [vmem:[%s3 + $0x1d8] sm:$0xf] %v1537
    %1666 = vst [vmem:[%s3 + $0x1dc] sm:$0xf] %v1538
    %1667 = vst [vmem:[%s3 + $0x1e0] sm:$0xf] %v1539
    %1668 = vst [vmem:[%s3 + $0x1e4] sm:$0xf] %v1540
    %1669 = vst [vmem:[%s3 + $0x1e8] sm:$0xf] %v1541
    %1670 = vst [vmem:[%s3 + $0x1ec] sm:$0xf] %v1542
    %1671 = vst [vmem:[%s3 + $0x1f0] sm:$0xf] %v1543
    %1672 = vst [vmem:[%s3 + $0x1f4] sm:$0xf] %v1544
    %1673 = vst [vmem:[%s3 + $0x1f8] sm:$0xf] %v1545
    %1674 = vst [vmem:[%s3 + $0x1fc] sm:$0xf] %v1546
    // Predicated region
    $region22: #{discriminator_forward.4} parent=1 // pred_check
      _
    $region23: #{discriminator_forward.4} parent=1 // pred_check_branch
      %1676 = sbr.rel (0) target = $region25
    $region24: #{discriminator_forward.4} parent=1 // pred_region
      _
    $region25: #{discriminator_forward.4} parent=1 // pred_fallthru
      _
    // Predicated region
    $region26: #{discriminator_forward.4} parent=1 // pred_check
      _
    $region27: #{discriminator_forward.4} parent=1 // pred_check_branch
      %1678 = sbr.rel (0) target = $region29
    $region28: #{discriminator_forward.4} parent=1 // pred_region
      _
    $region29: #{discriminator_forward.4} parent=1 // pred_fallthru
      _
    %1679 = vsyncpa [#allocation3], 1
    %1680 = vsyncpa [#allocation5], 1

// kernel: discriminator_forward.6
$region0: #{discriminator_forward.6}
  #allocation0 [shape = 'u32[]', space=smem, size = 0x4, offset = 0x4, fixed_abs, tag = 'smem constant byte address 0x4 - core index']
  #allocation1 [shape = 'u32[72,128]{1,0:T(1,128)}', space=vmem, size = 0x9000, scoped, tag = 'internal scratch']
  #allocation2 [shape = 'f32[128,256]{1,0:T(8,128)}', space=vmem, size = 0x20000, scoped, tag = 'scratch operand']
  %s0 = inlined_call_operand.vmem [shape: bf16[128,2048], index: 0, kind: input, shape index: {}]
  %s1 = inlined_call_operand.vmem [shape: bf16[2048,256], index: 1, kind: input, shape index: {}]
  %s2 = inlined_call_operand.vmem [shape: f32[1,256], index: 2, kind: input, shape index: {}]
  %s3 = inlined_call_operand.vmem [shape: f32[1,256], index: 3, kind: input, shape index: {}]
  %s4 = inlined_call_operand.vmem [shape: bf16[128,256], index: 4, kind: output, shape index: {}]
  %s5 = sld [smem:[#allocation0]]
  $region80: #{discriminator_forward.6} parent=0
    _
  %s7 = ssub.s32 1, %s5
  %s8 = scalar_select 0, %s7, %s5
  $region1: #{discriminator_forward.6} parent=0
    #allocation3 [shape = 'u8[524288]{0}', space=vmem, size = 0x80000, scoped, tag = 'input window, operand 0']
    loop: start=0, step=1, limit=4
    $region2: #{discriminator_forward.6} parent=1 // loop_pre_header
      _
    $region3: #{discriminator_forward.6} parent=1 // loop_header
      %s10 = sphi 0, %s14
      %p11 = scmp.ge.s32.totalorder %s10, 4
      %s20 = sphi 0, %s22
      %s23 = sphi 0, %s20
      %s24 = sphi 0, %s23
      %s40 = sphi 0, %s24
      %s46 = sphi 0, %s48
      %s49 = sphi 0, %s46
      %s50 = sphi 0, %s49
      %s66 = sphi 0, %s50
      %s70 = sphi 0, %s70
      %s72 = sphi 0, %s70
      %s73 = sphi 0, %s72
      %s87 = sphi 0, %s73
      %s91 = sphi 0, %s91
      %s93 = sphi 0, %s91
      %s94 = sphi 0, %s93
      %s108 = sphi 0, %s94
      %s112 = sphi 0, %s112
      %s114 = sphi 0, %s112
      %s115 = sphi 0, %s114
      %s129 = sphi 0, %s115
    $region4: #{discriminator_forward.6} parent=1 // loop_header_branch
      %13 = sbr.rel (%p11) target = $region8
    $region5: #{discriminator_forward.6} parent=1 // loop_body
      %s15 = ssub.s32 %s10, 1
      %s16 = ssub.s32 %s10, 2
      %s17 = sadd.s32 %s10, 1
      %s18 = ssub.s32 %s10, %s17
      %p19 = scmp.eq.s32.totalorder %s18, 0
      %s21 = sadd.s32 %s20, 1
      %s22 = scalar_select %p19, %s20, %s21
      %p25 = pneg %p19
      %p26 = scmp.eq.s32.totalorder %s10, 1
      %p27 = por %p25, %p26
      %p28 = scmp.ne.s32.totalorder %s20, %s23
      %p29 = scmp.eq.s32.totalorder %s10, 0
      %p30 = por %p28, %p29
      %p31 = scmp.ne.s32.totalorder %s20, %s23
      %p32 = scmp.eq.s32.totalorder %s15, 1
      %p33 = por %p31, %p32
      %p34 = scmp.ne.s32.totalorder %s23, %s24
      %p35 = scmp.eq.s32.totalorder %s15, 0
      %p36 = por %p34, %p35
      %p37 = scmp.ne.s32.totalorder %s23, %s24
      %p38 = scmp.eq.s32.totalorder %s16, 1
      %p39 = por %p37, %p38
      %p41 = scmp.ne.s32.totalorder %s24, %s40
      %p42 = scmp.eq.s32.totalorder %s16, 0
      %p43 = por %p41, %p42
      %s44 = ssub.s32 %s10, %s17
      %p45 = scmp.eq.s32.totalorder %s44, 0
      %s47 = sadd.s32 %s46, 1
      %s48 = scalar_select %p45, %s46, %s47
      %p51 = pneg %p45
      %p52 = scmp.eq.s32.totalorder %s10, 1
      %p53 = por %p51, %p52
      %p54 = scmp.ne.s32.totalorder %s46, %s49
      %p55 = scmp.eq.s32.totalorder %s10, 0
      %p56 = por %p54, %p55
      %p57 = scmp.ne.s32.totalorder %s46, %s49
      %p58 = scmp.eq.s32.totalorder %s15, 1
      %p59 = por %p57, %p58
      %p60 = scmp.ne.s32.totalorder %s49, %s50
      %p61 = scmp.eq.s32.totalorder %s15, 0
      %p62 = por %p60, %p61
      %p63 = scmp.ne.s32.totalorder %s49, %s50
      %p64 = scmp.eq.s32.totalorder %s16, 1
      %p65 = por %p63, %p64
      %p67 = scmp.ne.s32.totalorder %s50, %s66
      %p68 = scmp.eq.s32.totalorder %s16, 0
      %p69 = por %p67, %p68
      %s71 = sadd.s32 %s70, 1
      %p74 = scmp.eq.s32.totalorder %s10, 1
      %p75 = scmp.ne.s32.totalorder %s70, %s72
      %p76 = scmp.eq.s32.totalorder %s10, 0
      %p77 = por %p75, %p76
      %p78 = scmp.ne.s32.totalorder %s70, %s72
      %p79 = scmp.eq.s32.totalorder %s15, 1
      %p80 = por %p78, %p79
      %p81 = scmp.ne.s32.totalorder %s72, %s73
      %p82 = scmp.eq.s32.totalorder %s15, 0
      %p83 = por %p81, %p82
      %p84 = scmp.ne.s32.totalorder %s72, %s73
      %p85 = scmp.eq.s32.totalorder %s16, 1
      %p86 = por %p84, %p85
      %p88 = scmp.ne.s32.totalorder %s73, %s87
      %p89 = scmp.eq.s32.totalorder %s16, 0
      %p90 = por %p88, %p89
      %s92 = sadd.s32 %s91, 1
      %p95 = scmp.eq.s32.totalorder %s10, 1
      %p96 = scmp.ne.s32.totalorder %s91, %s93
      %p97 = scmp.eq.s32.totalorder %s10, 0
      %p98 = por %p96, %p97
      %p99 = scmp.ne.s32.totalorder %s91, %s93
      %p100 = scmp.eq.s32.totalorder %s15, 1
      %p101 = por %p99, %p100
      %p102 = scmp.ne.s32.totalorder %s93, %s94
      %p103 = scmp.eq.s32.totalorder %s15, 0
      %p104 = por %p102, %p103
      %p105 = scmp.ne.s32.totalorder %s93, %s94
      %p106 = scmp.eq.s32.totalorder %s16, 1
      %p107 = por %p105, %p106
      %p109 = scmp.ne.s32.totalorder %s94, %s108
      %p110 = scmp.eq.s32.totalorder %s16, 0
      %p111 = por %p109, %p110
      %s113 = sadd.s32 %s112, 1
      %p116 = scmp.eq.s32.totalorder %s10, 1
      %p117 = scmp.ne.s32.totalorder %s112, %s114
      %p118 = scmp.eq.s32.totalorder %s10, 0
      %p119 = por %p117, %p118
      %p120 = scmp.ne.s32.totalorder %s112, %s114
      %p121 = scmp.eq.s32.totalorder %s15, 1
      %p122 = por %p120, %p121
      %p123 = scmp.ne.s32.totalorder %s114, %s115
      %p124 = scmp.eq.s32.totalorder %s15, 0
      %p125 = por %p123, %p124
      %p126 = scmp.ne.s32.totalorder %s114, %s115
      %p127 = scmp.eq.s32.totalorder %s16, 1
      %p128 = por %p126, %p127
      %p130 = scmp.ne.s32.totalorder %s115, %s129
      %p131 = scmp.eq.s32.totalorder %s16, 0
      %p132 = por %p130, %p131
      %p133 = scmp.le.s32.totalorder 1, %s10
      %p134 = scmp.lt.s32.totalorder %s10, 3
      %p135 = pnand %p133, %p134
      %p136 = pneg %p135
      // Predicated region
      $region9: #{discriminator_forward.6} parent=5 // pred_check
        _
      $region10: #{discriminator_forward.6} parent=5 // pred_check_branch
        %138 = sbr.rel (%p135) target = $region12
      $region11: #{discriminator_forward.6} parent=5 // pred_region
        %s139 = ssub.s32 %s10, 1
        // Predicated region
        $region13: #{discriminator_forward.6} parent=11 // pred_check
          %p140 = pneg %p83
        $region14: #{discriminator_forward.6} parent=11 // pred_check_branch
          %142 = sbr.rel (%p140) target = $region16
        $region15: #{discriminator_forward.6} parent=11 // pred_region
          _
        $region16: #{discriminator_forward.6} parent=11 // pred_fallthru
          _
        // Predicated region
        $region17: #{discriminator_forward.6} parent=11 // pred_check
          %p143 = pneg %p104
        $region18: #{discriminator_forward.6} parent=11 // pred_check_branch
          %145 = sbr.rel (%p143) target = $region20
        $region19: #{discriminator_forward.6} parent=11 // pred_region
          _
        $region20: #{discriminator_forward.6} parent=11 // pred_fallthru
          _
      $region12: #{discriminator_forward.6} parent=5 // pred_fallthru
        _
      %p146 = scmp.lt.s32.totalorder %s10, 2
      // Predicated region
      $region21: #{discriminator_forward.6} parent=5 // pred_check
        %p147 = pneg %p146
      $region22: #{discriminator_forward.6} parent=5 // pred_check_branch
        %149 = sbr.rel (%p147) target = $region24
      $region23: #{discriminator_forward.6} parent=5 // pred_region
        // Predicated region
        $region25: #{discriminator_forward.6} parent=23 // pred_check
          %p150 = pneg %p30
        $region26: #{discriminator_forward.6} parent=23 // pred_check_branch
          %152 = sbr.rel (%p150) target = $region28
        $region27: #{discriminator_forward.6} parent=23 // pred_region
          %s153 = sand.u32 %s20, 1
          %s154 = sand.u32 %s20, 1
          %s155 = smul.addr %s154, 512
          %s156 = scalar_lea.vmem [#allocation3], %s155
          %s157 = smul.u32 8, %s10
          %s158 = smul.addr %s157, 4
          %s159 = scalar_lea.vmem %s0, %s158
          // Predicated region
          $region29: #{discriminator_forward.6} parent=27 // pred_check
            _
          $region30: #{discriminator_forward.6} parent=27 // pred_check_branch
            %161 = sbr.rel (0) target = $region32
          $region31: #{discriminator_forward.6} parent=27 // pred_region
            // Predicated region
            $region33: #{discriminator_forward.6} parent=31 // pred_check
              _
            $region34: #{discriminator_forward.6} parent=31 // pred_check_branch
              %163 = sbr.rel (0) target = $region36
            $region35: #{discriminator_forward.6} parent=31 // pred_region
              loop: start=0, step=1, limit=1
              $region37: #{discriminator_forward.6} parent=35 // loop_pre_header
                _
              $region38: #{discriminator_forward.6} parent=35 // loop_header
                %s165 = sphi 0, %s169
                %p166 = scmp.ge.s32.totalorder %s165, 1
                %s170 = sphi %s159, %s159
                %s171 = sphi %s156, %s156
              $region39: #{discriminator_forward.6} parent=35 // loop_header_branch
                %168 = sbr.rel (%p166) target = $region43
              $region40: #{discriminator_forward.6} parent=35 // loop_body
                %v172 = vld [vmem:[%s170] sm:$0xff]
                %173 = vst [vmem:[%s171] sm:$0xff] %v172
                %v174 = vld [vmem:[%s170 + $0x8] sm:$0xff]
                %175 = vst [vmem:[%s171 + $0x8] sm:$0xff] %v174
                %v176 = vld [vmem:[%s170 + $0x10] sm:$0xff]
                %177 = vst [vmem:[%s171 + $0x10] sm:$0xff] %v176
                %v178 = vld [vmem:[%s170 + $0x18] sm:$0xff]
                %179 = vst [vmem:[%s171 + $0x18] sm:$0xff] %v178
                %v180 = vld [vmem:[%s170 + $0x40] sm:$0xff]
                %181 = vst [vmem:[%s171 + $0x20] sm:$0xff] %v180
                %v182 = vld [vmem:[%s170 + $0x48] sm:$0xff]
                %183 = vst [vmem:[%s171 + $0x28] sm:$0xff] %v182
                %v184 = vld [vmem:[%s170 + $0x50] sm:$0xff]
                %185 = vst [vmem:[%s171 + $0x30] sm:$0xff] %v184
                %v186 = vld [vmem:[%s170 + $0x58] sm:$0xff]
                %187 = vst [vmem:[%s171 + $0x38] sm:$0xff] %v186
                %v188 = vld [vmem:[%s170 + $0x80] sm:$0xff]
                %189 = vst [vmem:[%s171 + $0x40] sm:$0xff] %v188
                %v190 = vld [vmem:[%s170 + $0x88] sm:$0xff]
                %191 = vst [vmem:[%s171 + $0x48] sm:$0xff] %v190
                %v192 = vld [vmem:[%s170 + $0x90] sm:$0xff]
                %193 = vst [vmem:[%s171 + $0x50] sm:$0xff] %v192
                %v194 = vld [vmem:[%s170 + $0x98] sm:$0xff]
                %195 = vst [vmem:[%s171 + $0x58] sm:$0xff] %v194
                %v196 = vld [vmem:[%s170 + $0xc0] sm:$0xff]
                %197 = vst [vmem:[%s171 + $0x60] sm:$0xff] %v196
                %v198 = vld [vmem:[%s170 + $0xc8] sm:$0xff]
                %199 = vst [vmem:[%s171 + $0x68] sm:$0xff] %v198
                %v200 = vld [vmem:[%s170 + $0xd0] sm:$0xff]
                %201 = vst [vmem:[%s171 + $0x70] sm:$0xff] %v200
                %v202 = vld [vmem:[%s170 + $0xd8] sm:$0xff]
                %203 = vst [vmem:[%s171 + $0x78] sm:$0xff] %v202
                %v204 = vld [vmem:[%s170 + $0x100] sm:$0xff]
                %205 = vst [vmem:[%s171 + $0x80] sm:$0xff] %v204
                %v206 = vld [vmem:[%s170 + $0x108] sm:$0xff]
                %207 = vst [vmem:[%s171 + $0x88] sm:$0xff] %v206
                %v208 = vld [vmem:[%s170 + $0x110] sm:$0xff]
                %209 = vst [vmem:[%s171 + $0x90] sm:$0xff] %v208
                %v210 = vld [vmem:[%s170 + $0x118] sm:$0xff]
                %211 = vst [vmem:[%s171 + $0x98] sm:$0xff] %v210
                %v212 = vld [vmem:[%s170 + $0x140] sm:$0xff]
                %213 = vst [vmem:[%s171 + $0xa0] sm:$0xff] %v212
                %v214 = vld [vmem:[%s170 + $0x148] sm:$0xff]
                %215 = vst [vmem:[%s171 + $0xa8] sm:$0xff] %v214
                %v216 = vld [vmem:[%s170 + $0x150] sm:$0xff]
                %217 = vst [vmem:[%s171 + $0xb0] sm:$0xff] %v216
                %v218 = vld [vmem:[%s170 + $0x158] sm:$0xff]
                %219 = vst [vmem:[%s171 + $0xb8] sm:$0xff] %v218
                %v220 = vld [vmem:[%s170 + $0x180] sm:$0xff]
                %221 = vst [vmem:[%s171 + $0xc0] sm:$0xff] %v220
                %v222 = vld [vmem:[%s170 + $0x188] sm:$0xff]
                %223 = vst [vmem:[%s171 + $0xc8] sm:$0xff] %v222
                %v224 = vld [vmem:[%s170 + $0x190] sm:$0xff]
                %225 = vst [vmem:[%s171 + $0xd0] sm:$0xff] %v224
                %v226 = vld [vmem:[%s170 + $0x198] sm:$0xff]
                %227 = vst [vmem:[%s171 + $0xd8] sm:$0xff] %v226
                %v228 = vld [vmem:[%s170 + $0x1c0] sm:$0xff]
                %229 = vst [vmem:[%s171 + $0xe0] sm:$0xff] %v228
                %v230 = vld [vmem:[%s170 + $0x1c8] sm:$0xff]
                %231 = vst [vmem:[%s171 + $0xe8] sm:$0xff] %v230
                %v232 = vld [vmem:[%s170 + $0x1d0] sm:$0xff]
                %233 = vst [vmem:[%s171 + $0xf0] sm:$0xff] %v232
                %v234 = vld [vmem:[%s170 + $0x1d8] sm:$0xff]
                %235 = vst [vmem:[%s171 + $0xf8] sm:$0xff] %v234
                %v236 = vld [vmem:[%s170 + $0x200] sm:$0xff]
                %237 = vst [vmem:[%s171 + $0x100] sm:$0xff] %v236
                %v238 = vld [vmem:[%s170 + $0x208] sm:$0xff]
                %239 = vst [vmem:[%s171 + $0x108] sm:$0xff] %v238
                %v240 = vld [vmem:[%s170 + $0x210] sm:$0xff]
                %241 = vst [vmem:[%s171 + $0x110] sm:$0xff] %v240
                %v242 = vld [vmem:[%s170 + $0x218] sm:$0xff]
                %243 = vst [vmem:[%s171 + $0x118] sm:$0xff] %v242
                %v244 = vld [vmem:[%s170 + $0x240] sm:$0xff]
                %245 = vst [vmem:[%s171 + $0x120] sm:$0xff] %v244
                %v246 = vld [vmem:[%s170 + $0x248] sm:$0xff]
                %247 = vst [vmem:[%s171 + $0x128] sm:$0xff] %v246
                %v248 = vld [vmem:[%s170 + $0x250] sm:$0xff]
                %249 = vst [vmem:[%s171 + $0x130] sm:$0xff] %v248
                %v250 = vld [vmem:[%s170 + $0x258] sm:$0xff]
                %251 = vst [vmem:[%s171 + $0x138] sm:$0xff] %v250
                %v252 = vld [vmem:[%s170 + $0x280] sm:$0xff]
                %253 = vst [vmem:[%s171 + $0x140] sm:$0xff] %v252
                %v254 = vld [vmem:[%s170 + $0x288] sm:$0xff]
                %255 = vst [vmem:[%s171 + $0x148] sm:$0xff] %v254
                %v256 = vld [vmem:[%s170 + $0x290] sm:$0xff]
                %257 = vst [vmem:[%s171 + $0x150] sm:$0xff] %v256
                %v258 = vld [vmem:[%s170 + $0x298] sm:$0xff]
                %259 = vst [vmem:[%s171 + $0x158] sm:$0xff] %v258
                %v260 = vld [vmem:[%s170 + $0x2c0] sm:$0xff]
                %261 = vst [vmem:[%s171 + $0x160] sm:$0xff] %v260
                %v262 = vld [vmem:[%s170 + $0x2c8] sm:$0xff]
                %263 = vst [vmem:[%s171 + $0x168] sm:$0xff] %v262
                %v264 = vld [vmem:[%s170 + $0x2d0] sm:$0xff]
                %265 = vst [vmem:[%s171 + $0x170] sm:$0xff] %v264
                %v266 = vld [vmem:[%s170 + $0x2d8] sm:$0xff]
                %267 = vst [vmem:[%s171 + $0x178] sm:$0xff] %v266
                %v268 = vld [vmem:[%s170 + $0x300] sm:$0xff]
                %269 = vst [vmem:[%s171 + $0x180] sm:$0xff] %v268
                %v270 = vld [vmem:[%s170 + $0x308] sm:$0xff]
                %271 = vst [vmem:[%s171 + $0x188] sm:$0xff] %v270
                %v272 = vld [vmem:[%s170 + $0x310] sm:$0xff]
                %273 = vst [vmem:[%s171 + $0x190] sm:$0xff] %v272
                %v274 = vld [vmem:[%s170 + $0x318] sm:$0xff]
                %275 = vst [vmem:[%s171 + $0x198] sm:$0xff] %v274
                %v276 = vld [vmem:[%s170 + $0x340] sm:$0xff]
                %277 = vst [vmem:[%s171 + $0x1a0] sm:$0xff] %v276
                %v278 = vld [vmem:[%s170 + $0x348] sm:$0xff]
                %279 = vst [vmem:[%s171 + $0x1a8] sm:$0xff] %v278
                %v280 = vld [vmem:[%s170 + $0x350] sm:$0xff]
                %281 = vst [vmem:[%s171 + $0x1b0] sm:$0xff] %v280
                %v282 = vld [vmem:[%s170 + $0x358] sm:$0xff]
                %283 = vst [vmem:[%s171 + $0x1b8] sm:$0xff] %v282
                %v284 = vld [vmem:[%s170 + $0x380] sm:$0xff]
                %285 = vst [vmem:[%s171 + $0x1c0] sm:$0xff] %v284
                %v286 = vld [vmem:[%s170 + $0x388] sm:$0xff]
                %287 = vst [vmem:[%s171 + $0x1c8] sm:$0xff] %v286
                %v288 = vld [vmem:[%s170 + $0x390] sm:$0xff]
                %289 = vst [vmem:[%s171 + $0x1d0] sm:$0xff] %v288
                %v290 = vld [vmem:[%s170 + $0x398] sm:$0xff]
                %291 = vst [vmem:[%s171 + $0x1d8] sm:$0xff] %v290
                %v292 = vld [vmem:[%s170 + $0x3c0] sm:$0xff]
                %293 = vst [vmem:[%s171 + $0x1e0] sm:$0xff] %v292
                %v294 = vld [vmem:[%s170 + $0x3c8] sm:$0xff]
                %295 = vst [vmem:[%s171 + $0x1e8] sm:$0xff] %v294
                %v296 = vld [vmem:[%s170 + $0x3d0] sm:$0xff]
                %297 = vst [vmem:[%s171 + $0x1f0] sm:$0xff] %v296
                %v298 = vld [vmem:[%s170 + $0x3d8] sm:$0xff]
                %299 = vst [vmem:[%s171 + $0x1f8] sm:$0xff] %v298
              $region41: #{discriminator_forward.6} parent=35 // loop_footer
                %s169 = sadd.s32 1, %s165
              $region42: #{discriminator_forward.6} parent=35 // loop_footer_branch
                %164 = sbr.rel target = $region38
              $region43: #{discriminator_forward.6} parent=35 // loop_exit
                _
            $region36: #{discriminator_forward.6} parent=31 // pred_fallthru
              _
            // Predicated region
            $region44: #{discriminator_forward.6} parent=31 // pred_check
              _
            $region45: #{discriminator_forward.6} parent=31 // pred_check_branch
              %301 = sbr.rel target = $region47
            $region46: #{discriminator_forward.6} parent=31 // pred_region
              _
            $region47: #{discriminator_forward.6} parent=31 // pred_fallthru
              _
          $region32: #{discriminator_forward.6} parent=27 // pred_fallthru
            _
          %302 = vnop
        $region28: #{discriminator_forward.6} parent=23 // pred_fallthru
          _
        // Predicated region
        $region48: #{discriminator_forward.6} parent=23 // pred_check
          %p303 = pneg %p56
        $region49: #{discriminator_forward.6} parent=23 // pred_check_branch
          %305 = sbr.rel (%p303) target = $region51
        $region50: #{discriminator_forward.6} parent=23 // pred_region
          %s306 = smul.u32 128, %s10
          %p307 = scmp.lt.s32.totalorder %s306, 255
          %s308 = scalar_select %p307, %s306, 255
          %s309 = smul.addr %s308, 2
          %s310 = smul.addr %s309, 4
          %s311 = scalar_lea.vmem %s1, %s310
          %s312 = smul.u32 128, %s10
        $region51: #{discriminator_forward.6} parent=23 // pred_fallthru
          _
      $region24: #{discriminator_forward.6} parent=5 // pred_fallthru
        _
      %p313 = scmp.le.s32.totalorder 1, %s10
      %p314 = scmp.lt.s32.totalorder %s10, 3
      %p315 = pnand %p313, %p314
      %p316 = pneg %p315
      // Predicated region
      $region52: #{discriminator_forward.6} parent=5 // pred_check
        _
      $region53: #{discriminator_forward.6} parent=5 // pred_check_branch
        %318 = sbr.rel (%p315) target = $region55
      $region54: #{discriminator_forward.6} parent=5 // pred_region
        %s319 = ssub.s32 %s10, 1
        %s320 = sand.u32 %s23, 1
        %s321 = sand.u32 %s23, 1
        %s322 = smul.addr %s321, 512
        %s323 = scalar_lea.vmem [#allocation3], %s322
        // Predicated region
        $region56: #{discriminator_forward.6} parent=54 // pred_check
          %p324 = pneg %p36
        $region57: #{discriminator_forward.6} parent=54 // pred_check_branch
          %326 = sbr.rel (%p324) target = $region59
        $region58: #{discriminator_forward.6} parent=54 // pred_region
          _
        $region59: #{discriminator_forward.6} parent=54 // pred_fallthru
          _
        %s327 = sand.u32 %s23, 1
        %s328 = sand.u32 %s23, 1
        %s329 = smul.addr %s328, 512
        %s330 = scalar_lea.vmem [#allocation3], %s329
        %p331 = pneg %p36
        %p332 = pneg %p33
        %s333 = smul.u32 128, %s15
        %p334 = scmp.lt.s32.totalorder %s333, 255
        %s335 = scalar_select %p334, %s333, 255
        %s336 = smul.addr %s335, 2
        %s337 = smul.addr %s336, 4
        %s338 = scalar_lea.vmem %s1, %s337
        %p339 = pneg %p62
        %p340 = pneg %p59
        %p341 = pneg %p83
        %p342 = pneg %p80
        %p343 = pneg %p104
        %p344 = pneg %p101
        %p345 = pneg %p125
        %p346 = pneg %p122
        %s347 = smul.u32 8, %s15
        %s348 = smul.u32 128, %s15
        %p349 = scmp.lt.s32.totalorder %s348, 255
        %s350 = scalar_select %p349, %s348, 255
        %s351 = smul.addr %s350, 2
        %s352 = smul.addr %s351, 4
        %s353 = scalar_lea.vmem %s1, %s352
        %s354 = smul.u32 128, %s15
        %p355 = scmp.eq.s32.totalorder %s15, 0
        // Predicated region
        $region60: #{discriminator_forward.6} parent=54 // pred_check
          %p356 = pneg %p355
        $region61: #{discriminator_forward.6} parent=54 // pred_check_branch
          %358 = sbr.rel (%p356) target = $region63
        $region62: #{discriminator_forward.6} parent=54 // pred_region
          %359 = vst [vmem:[#allocation2] sm:$0xff] 0.0
          %360 = vst [vmem:[#allocation2 + $0x8] sm:$0xff] 0.0
          %361 = vst [vmem:[#allocation2 + $0x10] sm:$0xff] 0.0
          %362 = vst [vmem:[#allocation2 + $0x18] sm:$0xff] 0.0
          %363 = vst [vmem:[#allocation2 + $0x20] sm:$0xff] 0.0
          %364 = vst [vmem:[#allocation2 + $0x28] sm:$0xff] 0.0
          %365 = vst [vmem:[#allocation2 + $0x30] sm:$0xff] 0.0
          %366 = vst [vmem:[#allocation2 + $0x38] sm:$0xff] 0.0
          %367 = vst [vmem:[#allocation2 + $0x40] sm:$0xff] 0.0
          %368 = vst [vmem:[#allocation2 + $0x48] sm:$0xff] 0.0
          %369 = vst [vmem:[#allocation2 + $0x50] sm:$0xff] 0.0
          %370 = vst [vmem:[#allocation2 + $0x58] sm:$0xff] 0.0
          %371 = vst [vmem:[#allocation2 + $0x60] sm:$0xff] 0.0
          %372 = vst [vmem:[#allocation2 + $0x68] sm:$0xff] 0.0
          %373 = vst [vmem:[#allocation2 + $0x70] sm:$0xff] 0.0
          %374 = vst [vmem:[#allocation2 + $0x78] sm:$0xff] 0.0
          %375 = vst [vmem:[#allocation2 + $0x80] sm:$0xff] 0.0
          %376 = vst [vmem:[#allocation2 + $0x88] sm:$0xff] 0.0
          %377 = vst [vmem:[#allocation2 + $0x90] sm:$0xff] 0.0
          %378 = vst [vmem:[#allocation2 + $0x98] sm:$0xff] 0.0
          %379 = vst [vmem:[#allocation2 + $0xa0] sm:$0xff] 0.0
          %380 = vst [vmem:[#allocation2 + $0xa8] sm:$0xff] 0.0
          %381 = vst [vmem:[#allocation2 + $0xb0] sm:$0xff] 0.0
          %382 = vst [vmem:[#allocation2 + $0xb8] sm:$0xff] 0.0
          %383 = vst [vmem:[#allocation2 + $0xc0] sm:$0xff] 0.0
          %384 = vst [vmem:[#allocation2 + $0xc8] sm:$0xff] 0.0
          %385 = vst [vmem:[#allocation2 + $0xd0] sm:$0xff] 0.0
          %386 = vst [vmem:[#allocation2 + $0xd8] sm:$0xff] 0.0
          %387 = vst [vmem:[#allocation2 + $0xe0] sm:$0xff] 0.0
          %388 = vst [vmem:[#allocation2 + $0xe8] sm:$0xff] 0.0
          %389 = vst [vmem:[#allocation2 + $0xf0] sm:$0xff] 0.0
          %390 = vst [vmem:[#allocation2 + $0xf8] sm:$0xff] 0.0
        $region63: #{discriminator_forward.6} parent=54 // pred_fallthru
          _
        %v391 = vld [vmem:[#allocation2] sm:$0xff]
        %v392 = vld [vmem:[#allocation2 + $0x8] sm:$0xff]
        %v393 = vld [vmem:[#allocation2 + $0x10] sm:$0xff]
        %v394 = vld [vmem:[#allocation2 + $0x18] sm:$0xff]
        %v395 = vld [vmem:[#allocation2 + $0x20] sm:$0xff]
        %v396 = vld [vmem:[#allocation2 + $0x28] sm:$0xff]
        %v397 = vld [vmem:[#allocation2 + $0x30] sm:$0xff]
        %v398 = vld [vmem:[#allocation2 + $0x38] sm:$0xff]
        %v399 = vld [vmem:[#allocation2 + $0x40] sm:$0xff]
        %v400 = vld [vmem:[#allocation2 + $0x48] sm:$0xff]
        %v401 = vld [vmem:[#allocation2 + $0x50] sm:$0xff]
        %v402 = vld [vmem:[#allocation2 + $0x58] sm:$0xff]
        %v403 = vld [vmem:[#allocation2 + $0x60] sm:$0xff]
        %v404 = vld [vmem:[#allocation2 + $0x68] sm:$0xff]
        %v405 = vld [vmem:[#allocation2 + $0x70] sm:$0xff]
        %v406 = vld [vmem:[#allocation2 + $0x78] sm:$0xff]
        %v407 = vld [vmem:[#allocation2 + $0x80] sm:$0xff]
        %v408 = vld [vmem:[#allocation2 + $0x88] sm:$0xff]
        %v409 = vld [vmem:[#allocation2 + $0x90] sm:$0xff]
        %v410 = vld [vmem:[#allocation2 + $0x98] sm:$0xff]
        %v411 = vld [vmem:[#allocation2 + $0xa0] sm:$0xff]
        %v412 = vld [vmem:[#allocation2 + $0xa8] sm:$0xff]
        %v413 = vld [vmem:[#allocation2 + $0xb0] sm:$0xff]
        %v414 = vld [vmem:[#allocation2 + $0xb8] sm:$0xff]
        %v415 = vld [vmem:[#allocation2 + $0xc0] sm:$0xff]
        %v416 = vld [vmem:[#allocation2 + $0xc8] sm:$0xff]
        %v417 = vld [vmem:[#allocation2 + $0xd0] sm:$0xff]
        %v418 = vld [vmem:[#allocation2 + $0xd8] sm:$0xff]
        %v419 = vld [vmem:[#allocation2 + $0xe0] sm:$0xff]
        %v420 = vld [vmem:[#allocation2 + $0xe8] sm:$0xff]
        %v421 = vld [vmem:[#allocation2 + $0xf0] sm:$0xff]
        %v422 = vld [vmem:[#allocation2 + $0xf8] sm:$0xff]
        %v423 = vld [vmem:[%s323] sm:$0xff]
        %v424 = vld [vmem:[%s323 + $0x8] sm:$0xff]
        %v425 = vld [vmem:[%s323 + $0x10] sm:$0xff]
        %v426 = vld [vmem:[%s323 + $0x18] sm:$0xff]
        %v427 = vld [vmem:[%s323 + $0x20] sm:$0xff]
        %v428 = vld [vmem:[%s323 + $0x28] sm:$0xff]
        %v429 = vld [vmem:[%s323 + $0x30] sm:$0xff]
        %v430 = vld [vmem:[%s323 + $0x38] sm:$0xff]
        %v431 = vld [vmem:[%s323 + $0x40] sm:$0xff]
        %v432 = vld [vmem:[%s323 + $0x48] sm:$0xff]
        %v433 = vld [vmem:[%s323 + $0x50] sm:$0xff]
        %v434 = vld [vmem:[%s323 + $0x58] sm:$0xff]
        %v435 = vld [vmem:[%s323 + $0x60] sm:$0xff]
        %v436 = vld [vmem:[%s323 + $0x68] sm:$0xff]
        %v437 = vld [vmem:[%s323 + $0x70] sm:$0xff]
        %v438 = vld [vmem:[%s323 + $0x78] sm:$0xff]
        %v439 = vld [vmem:[%s323 + $0x80] sm:$0xff]
        %v440 = vld [vmem:[%s323 + $0x88] sm:$0xff]
        %v441 = vld [vmem:[%s323 + $0x90] sm:$0xff]
        %v442 = vld [vmem:[%s323 + $0x98] sm:$0xff]
        %v443 = vld [vmem:[%s323 + $0xa0] sm:$0xff]
        %v444 = vld [vmem:[%s323 + $0xa8] sm:$0xff]
        %v445 = vld [vmem:[%s323 + $0xb0] sm:$0xff]
        %v446 = vld [vmem:[%s323 + $0xb8] sm:$0xff]
        %v447 = vld [vmem:[%s323 + $0xc0] sm:$0xff]
        %v448 = vld [vmem:[%s323 + $0xc8] sm:$0xff]
        %v449 = vld [vmem:[%s323 + $0xd0] sm:$0xff]
        %v450 = vld [vmem:[%s323 + $0xd8] sm:$0xff]
        %v451 = vld [vmem:[%s323 + $0xe0] sm:$0xff]
        %v452 = vld [vmem:[%s323 + $0xe8] sm:$0xff]
        %v453 = vld [vmem:[%s323 + $0xf0] sm:$0xff]
        %v454 = vld [vmem:[%s323 + $0xf8] sm:$0xff]
        %v455 = vld [vmem:[%s323 + $0x100] sm:$0xff]
        %v456 = vld [vmem:[%s323 + $0x108] sm:$0xff]
        %v457 = vld [vmem:[%s323 + $0x110] sm:$0xff]
        %v458 = vld [vmem:[%s323 + $0x118] sm:$0xff]
        %v459 = vld [vmem:[%s323 + $0x120] sm:$0xff]
        %v460 = vld [vmem:[%s323 + $0x128] sm:$0xff]
        %v461 = vld [vmem:[%s323 + $0x130] sm:$0xff]
        %v462 = vld [vmem:[%s323 + $0x138] sm:$0xff]
        %v463 = vld [vmem:[%s323 + $0x140] sm:$0xff]
        %v464 = vld [vmem:[%s323 + $0x148] sm:$0xff]
        %v465 = vld [vmem:[%s323 + $0x150] sm:$0xff]
        %v466 = vld [vmem:[%s323 + $0x158] sm:$0xff]
        %v467 = vld [vmem:[%s323 + $0x160] sm:$0xff]
        %v468 = vld [vmem:[%s323 + $0x168] sm:$0xff]
        %v469 = vld [vmem:[%s323 + $0x170] sm:$0xff]
        %v470 = vld [vmem:[%s323 + $0x178] sm:$0xff]
        %v471 = vld [vmem:[%s323 + $0x180] sm:$0xff]
        %v472 = vld [vmem:[%s323 + $0x188] sm:$0xff]
        %v473 = vld [vmem:[%s323 + $0x190] sm:$0xff]
        %v474 = vld [vmem:[%s323 + $0x198] sm:$0xff]
        %v475 = vld [vmem:[%s323 + $0x1a0] sm:$0xff]
        %v476 = vld [vmem:[%s323 + $0x1a8] sm:$0xff]
        %v477 = vld [vmem:[%s323 + $0x1b0] sm:$0xff]
        %v478 = vld [vmem:[%s323 + $0x1b8] sm:$0xff]
        %v479 = vld [vmem:[%s323 + $0x1c0] sm:$0xff]
        %v480 = vld [vmem:[%s323 + $0x1c8] sm:$0xff]
        %v481 = vld [vmem:[%s323 + $0x1d0] sm:$0xff]
        %v482 = vld [vmem:[%s323 + $0x1d8] sm:$0xff]
        %v483 = vld [vmem:[%s323 + $0x1e0] sm:$0xff]
        %v484 = vld [vmem:[%s323 + $0x1e8] sm:$0xff]
        %v485 = vld [vmem:[%s323 + $0x1f0] sm:$0xff]
        %v486 = vld [vmem:[%s323 + $0x1f8] sm:$0xff]
        %v487 = vld [vmem:[%s353] sm:$0xff]
        %v488 = vld [vmem:[%s353 + $0x8] sm:$0xff]
        %v489 = vld [vmem:[%s353 + $0x10] sm:$0xff]
        %v490 = vld [vmem:[%s353 + $0x18] sm:$0xff]
        %v491 = vld [vmem:[%s353 + $0x20] sm:$0xff]
        %v492 = vld [vmem:[%s353 + $0x28] sm:$0xff]
        %v493 = vld [vmem:[%s353 + $0x30] sm:$0xff]
        %v494 = vld [vmem:[%s353 + $0x38] sm:$0xff]
        %v495 = vld [vmem:[%s353 + $0x40] sm:$0xff]
        %v496 = vld [vmem:[%s353 + $0x48] sm:$0xff]
        %v497 = vld [vmem:[%s353 + $0x50] sm:$0xff]
        %v498 = vld [vmem:[%s353 + $0x58] sm:$0xff]
        %v499 = vld [vmem:[%s353 + $0x60] sm:$0xff]
        %v500 = vld [vmem:[%s353 + $0x68] sm:$0xff]
        %v501 = vld [vmem:[%s353 + $0x70] sm:$0xff]
        %v502 = vld [vmem:[%s353 + $0x78] sm:$0xff]
        %v503 = vld [vmem:[%s353 + $0x80] sm:$0xff]
        %v504 = vld [vmem:[%s353 + $0x88] sm:$0xff]
        %v505 = vld [vmem:[%s353 + $0x90] sm:$0xff]
        %v506 = vld [vmem:[%s353 + $0x98] sm:$0xff]
        %v507 = vld [vmem:[%s353 + $0xa0] sm:$0xff]
        %v508 = vld [vmem:[%s353 + $0xa8] sm:$0xff]
        %v509 = vld [vmem:[%s353 + $0xb0] sm:$0xff]
        %v510 = vld [vmem:[%s353 + $0xb8] sm:$0xff]
        %v511 = vld [vmem:[%s353 + $0xc0] sm:$0xff]
        %v512 = vld [vmem:[%s353 + $0xc8] sm:$0xff]
        %v513 = vld [vmem:[%s353 + $0xd0] sm:$0xff]
        %v514 = vld [vmem:[%s353 + $0xd8] sm:$0xff]
        %v515 = vld [vmem:[%s353 + $0xe0] sm:$0xff]
        %v516 = vld [vmem:[%s353 + $0xe8] sm:$0xff]
        %v517 = vld [vmem:[%s353 + $0xf0] sm:$0xff]
        %v518 = vld [vmem:[%s353 + $0xf8] sm:$0xff]
        %v519 = vld [vmem:[%s353 + $0x100] sm:$0xff]
        %v520 = vld [vmem:[%s353 + $0x108] sm:$0xff]
        %v521 = vld [vmem:[%s353 + $0x110] sm:$0xff]
        %v522 = vld [vmem:[%s353 + $0x118] sm:$0xff]
        %v523 = vld [vmem:[%s353 + $0x120] sm:$0xff]
        %v524 = vld [vmem:[%s353 + $0x128] sm:$0xff]
        %v525 = vld [vmem:[%s353 + $0x130] sm:$0xff]
        %v526 = vld [vmem:[%s353 + $0x138] sm:$0xff]
        %v527 = vld [vmem:[%s353 + $0x140] sm:$0xff]
        %v528 = vld [vmem:[%s353 + $0x148] sm:$0xff]
        %v529 = vld [vmem:[%s353 + $0x150] sm:$0xff]
        %v530 = vld [vmem:[%s353 + $0x158] sm:$0xff]
        %v531 = vld [vmem:[%s353 + $0x160] sm:$0xff]
        %v532 = vld [vmem:[%s353 + $0x168] sm:$0xff]
        %v533 = vld [vmem:[%s353 + $0x170] sm:$0xff]
        %v534 = vld [vmem:[%s353 + $0x178] sm:$0xff]
        %v535 = vld [vmem:[%s353 + $0x180] sm:$0xff]
        %v536 = vld [vmem:[%s353 + $0x188] sm:$0xff]
        %v537 = vld [vmem:[%s353 + $0x190] sm:$0xff]
        %v538 = vld [vmem:[%s353 + $0x198] sm:$0xff]
        %v539 = vld [vmem:[%s353 + $0x1a0] sm:$0xff]
        %v540 = vld [vmem:[%s353 + $0x1a8] sm:$0xff]
        %v541 = vld [vmem:[%s353 + $0x1b0] sm:$0xff]
        %v542 = vld [vmem:[%s353 + $0x1b8] sm:$0xff]
        %v543 = vld [vmem:[%s353 + $0x1c0] sm:$0xff]
        %v544 = vld [vmem:[%s353 + $0x1c8] sm:$0xff]
        %v545 = vld [vmem:[%s353 + $0x1d0] sm:$0xff]
        %v546 = vld [vmem:[%s353 + $0x1d8] sm:$0xff]
        %v547 = vld [vmem:[%s353 + $0x1e0] sm:$0xff]
        %v548 = vld [vmem:[%s353 + $0x1e8] sm:$0xff]
        %v549 = vld [vmem:[%s353 + $0x1f0] sm:$0xff]
        %v550 = vld [vmem:[%s353 + $0x1f8] sm:$0xff]
        %v551 = vld [vmem:[%s353 + $0x200] sm:$0xff]
        %v552 = vld [vmem:[%s353 + $0x208] sm:$0xff]
        %v553 = vld [vmem:[%s353 + $0x210] sm:$0xff]
        %v554 = vld [vmem:[%s353 + $0x218] sm:$0xff]
        %v555 = vld [vmem:[%s353 + $0x220] sm:$0xff]
        %v556 = vld [vmem:[%s353 + $0x228] sm:$0xff]
        %v557 = vld [vmem:[%s353 + $0x230] sm:$0xff]
        %v558 = vld [vmem:[%s353 + $0x238] sm:$0xff]
        %v559 = vld [vmem:[%s353 + $0x240] sm:$0xff]
        %v560 = vld [vmem:[%s353 + $0x248] sm:$0xff]
        %v561 = vld [vmem:[%s353 + $0x250] sm:$0xff]
        %v562 = vld [vmem:[%s353 + $0x258] sm:$0xff]
        %v563 = vld [vmem:[%s353 + $0x260] sm:$0xff]
        %v564 = vld [vmem:[%s353 + $0x268] sm:$0xff]
        %v565 = vld [vmem:[%s353 + $0x270] sm:$0xff]
        %v566 = vld [vmem:[%s353 + $0x278] sm:$0xff]
        %v567 = vld [vmem:[%s353 + $0x280] sm:$0xff]
        %v568 = vld [vmem:[%s353 + $0x288] sm:$0xff]
        %v569 = vld [vmem:[%s353 + $0x290] sm:$0xff]
        %v570 = vld [vmem:[%s353 + $0x298] sm:$0xff]
        %v571 = vld [vmem:[%s353 + $0x2a0] sm:$0xff]
        %v572 = vld [vmem:[%s353 + $0x2a8] sm:$0xff]
        %v573 = vld [vmem:[%s353 + $0x2b0] sm:$0xff]
        %v574 = vld [vmem:[%s353 + $0x2b8] sm:$0xff]
        %v575 = vld [vmem:[%s353 + $0x2c0] sm:$0xff]
        %v576 = vld [vmem:[%s353 + $0x2c8] sm:$0xff]
        %v577 = vld [vmem:[%s353 + $0x2d0] sm:$0xff]
        %v578 = vld [vmem:[%s353 + $0x2d8] sm:$0xff]
        %v579 = vld [vmem:[%s353 + $0x2e0] sm:$0xff]
        %v580 = vld [vmem:[%s353 + $0x2e8] sm:$0xff]
        %v581 = vld [vmem:[%s353 + $0x2f0] sm:$0xff]
        %v582 = vld [vmem:[%s353 + $0x2f8] sm:$0xff]
        %v583 = vld [vmem:[%s353 + $0x300] sm:$0xff]
        %v584 = vld [vmem:[%s353 + $0x308] sm:$0xff]
        %v585 = vld [vmem:[%s353 + $0x310] sm:$0xff]
        %v586 = vld [vmem:[%s353 + $0x318] sm:$0xff]
        %v587 = vld [vmem:[%s353 + $0x320] sm:$0xff]
        %v588 = vld [vmem:[%s353 + $0x328] sm:$0xff]
        %v589 = vld [vmem:[%s353 + $0x330] sm:$0xff]
        %v590 = vld [vmem:[%s353 + $0x338] sm:$0xff]
        %v591 = vld [vmem:[%s353 + $0x340] sm:$0xff]
        %v592 = vld [vmem:[%s353 + $0x348] sm:$0xff]
        %v593 = vld [vmem:[%s353 + $0x350] sm:$0xff]
        %v594 = vld [vmem:[%s353 + $0x358] sm:$0xff]
        %v595 = vld [vmem:[%s353 + $0x360] sm:$0xff]
        %v596 = vld [vmem:[%s353 + $0x368] sm:$0xff]
        %v597 = vld [vmem:[%s353 + $0x370] sm:$0xff]
        %v598 = vld [vmem:[%s353 + $0x378] sm:$0xff]
        %v599 = vld [vmem:[%s353 + $0x380] sm:$0xff]
        %v600 = vld [vmem:[%s353 + $0x388] sm:$0xff]
        %v601 = vld [vmem:[%s353 + $0x390] sm:$0xff]
        %v602 = vld [vmem:[%s353 + $0x398] sm:$0xff]
        %v603 = vld [vmem:[%s353 + $0x3a0] sm:$0xff]
        %v604 = vld [vmem:[%s353 + $0x3a8] sm:$0xff]
        %v605 = vld [vmem:[%s353 + $0x3b0] sm:$0xff]
        %v606 = vld [vmem:[%s353 + $0x3b8] sm:$0xff]
        %v607 = vld [vmem:[%s353 + $0x3c0] sm:$0xff]
        %v608 = vld [vmem:[%s353 + $0x3c8] sm:$0xff]
        %v609 = vld [vmem:[%s353 + $0x3d0] sm:$0xff]
        %v610 = vld [vmem:[%s353 + $0x3d8] sm:$0xff]
        %v611 = vld [vmem:[%s353 + $0x3e0] sm:$0xff]
        %v612 = vld [vmem:[%s353 + $0x3e8] sm:$0xff]
        %v613 = vld [vmem:[%s353 + $0x3f0] sm:$0xff]
        %v614 = vld [vmem:[%s353 + $0x3f8] sm:$0xff]
        %v679 = vunpack.c.l.b16 %v423
        %v680 = vunpack.c.h.b16 %v423
        %v681 = vunpack.c.l.b16 %v424
        %v682 = vunpack.c.h.b16 %v424
        %v683 = vunpack.c.l.b16 %v425
        %v684 = vunpack.c.h.b16 %v425
        %v685 = vunpack.c.l.b16 %v426
        %v686 = vunpack.c.h.b16 %v426
        %v687 = vunpack.c.l.b16 %v427
        %v688 = vunpack.c.h.b16 %v427
        %v689 = vunpack.c.l.b16 %v428
        %v690 = vunpack.c.h.b16 %v428
        %v691 = vunpack.c.l.b16 %v429
        %v692 = vunpack.c.h.b16 %v429
        %v693 = vunpack.c.l.b16 %v430
        %v694 = vunpack.c.h.b16 %v430
        %v695 = vunpack.c.l.b16 %v431
        %v696 = vunpack.c.h.b16 %v431
        %v697 = vunpack.c.l.b16 %v432
        %v698 = vunpack.c.h.b16 %v432
        %v699 = vunpack.c.l.b16 %v433
        %v700 = vunpack.c.h.b16 %v433
        %v701 = vunpack.c.l.b16 %v434
        %v702 = vunpack.c.h.b16 %v434
        %v703 = vunpack.c.l.b16 %v435
        %v704 = vunpack.c.h.b16 %v435
        %v705 = vunpack.c.l.b16 %v436
        %v706 = vunpack.c.h.b16 %v436
        %v707 = vunpack.c.l.b16 %v437
        %v708 = vunpack.c.h.b16 %v437
        %v709 = vunpack.c.l.b16 %v438
        %v710 = vunpack.c.h.b16 %v438
        %v711 = vunpack.c.l.b16 %v439
        %v712 = vunpack.c.h.b16 %v439
        %v713 = vunpack.c.l.b16 %v440
        %v714 = vunpack.c.h.b16 %v440
        %v715 = vunpack.c.l.b16 %v441
        %v716 = vunpack.c.h.b16 %v441
        %v717 = vunpack.c.l.b16 %v442
        %v718 = vunpack.c.h.b16 %v442
        %v719 = vunpack.c.l.b16 %v443
        %v720 = vunpack.c.h.b16 %v443
        %v721 = vunpack.c.l.b16 %v444
        %v722 = vunpack.c.h.b16 %v444
        %v723 = vunpack.c.l.b16 %v445
        %v724 = vunpack.c.h.b16 %v445
        %v725 = vunpack.c.l.b16 %v446
        %v726 = vunpack.c.h.b16 %v446
        %v727 = vunpack.c.l.b16 %v447
        %v728 = vunpack.c.h.b16 %v447
        %v729 = vunpack.c.l.b16 %v448
        %v730 = vunpack.c.h.b16 %v448
        %v731 = vunpack.c.l.b16 %v449
        %v732 = vunpack.c.h.b16 %v449
        %v733 = vunpack.c.l.b16 %v450
        %v734 = vunpack.c.h.b16 %v450
        %v735 = vunpack.c.l.b16 %v451
        %v736 = vunpack.c.h.b16 %v451
        %v737 = vunpack.c.l.b16 %v452
        %v738 = vunpack.c.h.b16 %v452
        %v739 = vunpack.c.l.b16 %v453
        %v740 = vunpack.c.h.b16 %v453
        %v741 = vunpack.c.l.b16 %v454
        %v742 = vunpack.c.h.b16 %v454
        %v743 = vunpack.c.l.b16 %v455
        %v744 = vunpack.c.h.b16 %v455
        %v745 = vunpack.c.l.b16 %v456
        %v746 = vunpack.c.h.b16 %v456
        %v747 = vunpack.c.l.b16 %v457
        %v748 = vunpack.c.h.b16 %v457
        %v749 = vunpack.c.l.b16 %v458
        %v750 = vunpack.c.h.b16 %v458
        %v751 = vunpack.c.l.b16 %v459
        %v752 = vunpack.c.h.b16 %v459
        %v753 = vunpack.c.l.b16 %v460
        %v754 = vunpack.c.h.b16 %v460
        %v755 = vunpack.c.l.b16 %v461
        %v756 = vunpack.c.h.b16 %v461
        %v757 = vunpack.c.l.b16 %v462
        %v758 = vunpack.c.h.b16 %v462
        %v759 = vunpack.c.l.b16 %v463
        %v760 = vunpack.c.h.b16 %v463
        %v761 = vunpack.c.l.b16 %v464
        %v762 = vunpack.c.h.b16 %v464
        %v763 = vunpack.c.l.b16 %v465
        %v764 = vunpack.c.h.b16 %v465
        %v765 = vunpack.c.l.b16 %v466
        %v766 = vunpack.c.h.b16 %v466
        %v767 = vunpack.c.l.b16 %v467
        %v768 = vunpack.c.h.b16 %v467
        %v769 = vunpack.c.l.b16 %v468
        %v770 = vunpack.c.h.b16 %v468
        %v771 = vunpack.c.l.b16 %v469
        %v772 = vunpack.c.h.b16 %v469
        %v773 = vunpack.c.l.b16 %v470
        %v774 = vunpack.c.h.b16 %v470
        %v775 = vunpack.c.l.b16 %v471
        %v776 = vunpack.c.h.b16 %v471
        %v777 = vunpack.c.l.b16 %v472
        %v778 = vunpack.c.h.b16 %v472
        %v779 = vunpack.c.l.b16 %v473
        %v780 = vunpack.c.h.b16 %v473
        %v781 = vunpack.c.l.b16 %v474
        %v782 = vunpack.c.h.b16 %v474
        %v783 = vunpack.c.l.b16 %v475
        %v784 = vunpack.c.h.b16 %v475
        %v785 = vunpack.c.l.b16 %v476
        %v786 = vunpack.c.h.b16 %v476
        %v787 = vunpack.c.l.b16 %v477
        %v788 = vunpack.c.h.b16 %v477
        %v789 = vunpack.c.l.b16 %v478
        %v790 = vunpack.c.h.b16 %v478
        %v791 = vunpack.c.l.b16 %v479
        %v792 = vunpack.c.h.b16 %v479
        %v793 = vunpack.c.l.b16 %v480
        %v794 = vunpack.c.h.b16 %v480
        %v795 = vunpack.c.l.b16 %v481
        %v796 = vunpack.c.h.b16 %v481
        %v797 = vunpack.c.l.b16 %v482
        %v798 = vunpack.c.h.b16 %v482
        %v799 = vunpack.c.l.b16 %v483
        %v800 = vunpack.c.h.b16 %v483
        %v801 = vunpack.c.l.b16 %v484
        %v802 = vunpack.c.h.b16 %v484
        %v803 = vunpack.c.l.b16 %v485
        %v804 = vunpack.c.h.b16 %v485
        %v805 = vunpack.c.l.b16 %v486
        %v806 = vunpack.c.h.b16 %v486
        %v807 = vpack.c.b16 %v687, %v679
        %v808 = vpack.c.b16 %v688, %v680
        %v809 = vpack.c.b16 %v689, %v681
        %v810 = vpack.c.b16 %v690, %v682
        %v811 = vpack.c.b16 %v691, %v683
        %v812 = vpack.c.b16 %v692, %v684
        %v813 = vpack.c.b16 %v693, %v685
        %v814 = vpack.c.b16 %v694, %v686
        %v815 = vpack.c.b16 %v703, %v695
        %v816 = vpack.c.b16 %v704, %v696
        %v817 = vpack.c.b16 %v705, %v697
        %v818 = vpack.c.b16 %v706, %v698
        %v819 = vpack.c.b16 %v707, %v699
        %v820 = vpack.c.b16 %v708, %v700
        %v821 = vpack.c.b16 %v709, %v701
        %v822 = vpack.c.b16 %v710, %v702
        %v823 = vpack.c.b16 %v719, %v711
        %v824 = vpack.c.b16 %v720, %v712
        %v825 = vpack.c.b16 %v721, %v713
        %v826 = vpack.c.b16 %v722, %v714
        %v827 = vpack.c.b16 %v723, %v715
        %v828 = vpack.c.b16 %v724, %v716
        %v829 = vpack.c.b16 %v725, %v717
        %v830 = vpack.c.b16 %v726, %v718
        %v831 = vpack.c.b16 %v735, %v727
        %v832 = vpack.c.b16 %v736, %v728
        %v833 = vpack.c.b16 %v737, %v729
        %v834 = vpack.c.b16 %v738, %v730
        %v835 = vpack.c.b16 %v739, %v731
        %v836 = vpack.c.b16 %v740, %v732
        %v837 = vpack.c.b16 %v741, %v733
        %v838 = vpack.c.b16 %v742, %v734
        %v839 = vpack.c.b16 %v751, %v743
        %v840 = vpack.c.b16 %v752, %v744
        %v841 = vpack.c.b16 %v753, %v745
        %v842 = vpack.c.b16 %v754, %v746
        %v843 = vpack.c.b16 %v755, %v747
        %v844 = vpack.c.b16 %v756, %v748
        %v845 = vpack.c.b16 %v757, %v749
        %v846 = vpack.c.b16 %v758, %v750
        %v847 = vpack.c.b16 %v767, %v759
        %v848 = vpack.c.b16 %v768, %v760
        %v849 = vpack.c.b16 %v769, %v761
        %v850 = vpack.c.b16 %v770, %v762
        %v851 = vpack.c.b16 %v771, %v763
        %v852 = vpack.c.b16 %v772, %v764
        %v853 = vpack.c.b16 %v773, %v765
        %v854 = vpack.c.b16 %v774, %v766
        %v855 = vpack.c.b16 %v783, %v775
        %v856 = vpack.c.b16 %v784, %v776
        %v857 = vpack.c.b16 %v785, %v777
        %v858 = vpack.c.b16 %v786, %v778
        %v859 = vpack.c.b16 %v787, %v779
        %v860 = vpack.c.b16 %v788, %v780
        %v861 = vpack.c.b16 %v789, %v781
        %v862 = vpack.c.b16 %v790, %v782
        %v863 = vpack.c.b16 %v799, %v791
        %v864 = vpack.c.b16 %v800, %v792
        %v865 = vpack.c.b16 %v801, %v793
        %v866 = vpack.c.b16 %v802, %v794
        %v867 = vpack.c.b16 %v803, %v795
        %v868 = vpack.c.b16 %v804, %v796
        %v869 = vpack.c.b16 %v805, %v797
        %v870 = vpack.c.b16 %v806, %v798
        %v1063 = vunpack.c.l.b16 %v487
        %v1064 = vunpack.c.h.b16 %v487
        %v1065 = vunpack.c.l.b16 %v488
        %v1066 = vunpack.c.h.b16 %v488
        %v1067 = vunpack.c.l.b16 %v489
        %v1068 = vunpack.c.h.b16 %v489
        %v1069 = vunpack.c.l.b16 %v490
        %v1070 = vunpack.c.h.b16 %v490
        %v1071 = vunpack.c.l.b16 %v491
        %v1072 = vunpack.c.h.b16 %v491
        %v1073 = vunpack.c.l.b16 %v492
        %v1074 = vunpack.c.h.b16 %v492
        %v1075 = vunpack.c.l.b16 %v493
        %v1076 = vunpack.c.h.b16 %v493
        %v1077 = vunpack.c.l.b16 %v494
        %v1078 = vunpack.c.h.b16 %v494
        %v1079 = vunpack.c.l.b16 %v495
        %v1080 = vunpack.c.h.b16 %v495
        %v1081 = vunpack.c.l.b16 %v496
        %v1082 = vunpack.c.h.b16 %v496
        %v1083 = vunpack.c.l.b16 %v497
        %v1084 = vunpack.c.h.b16 %v497
        %v1085 = vunpack.c.l.b16 %v498
        %v1086 = vunpack.c.h.b16 %v498
        %v1087 = vunpack.c.l.b16 %v499
        %v1088 = vunpack.c.h.b16 %v499
        %v1089 = vunpack.c.l.b16 %v500
        %v1090 = vunpack.c.h.b16 %v500
        %v1091 = vunpack.c.l.b16 %v501
        %v1092 = vunpack.c.h.b16 %v501
        %v1093 = vunpack.c.l.b16 %v502
        %v1094 = vunpack.c.h.b16 %v502
        %v1095 = vunpack.c.l.b16 %v503
        %v1096 = vunpack.c.h.b16 %v503
        %v1097 = vunpack.c.l.b16 %v504
        %v1098 = vunpack.c.h.b16 %v504
        %v1099 = vunpack.c.l.b16 %v505
        %v1100 = vunpack.c.h.b16 %v505
        %v1101 = vunpack.c.l.b16 %v506
        %v1102 = vunpack.c.h.b16 %v506
        %v1103 = vunpack.c.l.b16 %v507
        %v1104 = vunpack.c.h.b16 %v507
        %v1105 = vunpack.c.l.b16 %v508
        %v1106 = vunpack.c.h.b16 %v508
        %v1107 = vunpack.c.l.b16 %v509
        %v1108 = vunpack.c.h.b16 %v509
        %v1109 = vunpack.c.l.b16 %v510
        %v1110 = vunpack.c.h.b16 %v510
        %v1111 = vunpack.c.l.b16 %v511
        %v1112 = vunpack.c.h.b16 %v511
        %v1113 = vunpack.c.l.b16 %v512
        %v1114 = vunpack.c.h.b16 %v512
        %v1115 = vunpack.c.l.b16 %v513
        %v1116 = vunpack.c.h.b16 %v513
        %v1117 = vunpack.c.l.b16 %v514
        %v1118 = vunpack.c.h.b16 %v514
        %v1119 = vunpack.c.l.b16 %v515
        %v1120 = vunpack.c.h.b16 %v515
        %v1121 = vunpack.c.l.b16 %v516
        %v1122 = vunpack.c.h.b16 %v516
        %v1123 = vunpack.c.l.b16 %v517
        %v1124 = vunpack.c.h.b16 %v517
        %v1125 = vunpack.c.l.b16 %v518
        %v1126 = vunpack.c.h.b16 %v518
        %v1127 = vunpack.c.l.b16 %v519
        %v1128 = vunpack.c.h.b16 %v519
        %v1129 = vunpack.c.l.b16 %v520
        %v1130 = vunpack.c.h.b16 %v520
        %v1131 = vunpack.c.l.b16 %v521
        %v1132 = vunpack.c.h.b16 %v521
        %v1133 = vunpack.c.l.b16 %v522
        %v1134 = vunpack.c.h.b16 %v522
        %v1135 = vunpack.c.l.b16 %v523
        %v1136 = vunpack.c.h.b16 %v523
        %v1137 = vunpack.c.l.b16 %v524
        %v1138 = vunpack.c.h.b16 %v524
        %v1139 = vunpack.c.l.b16 %v525
        %v1140 = vunpack.c.h.b16 %v525
        %v1141 = vunpack.c.l.b16 %v526
        %v1142 = vunpack.c.h.b16 %v526
        %v1143 = vunpack.c.l.b16 %v527
        %v1144 = vunpack.c.h.b16 %v527
        %v1145 = vunpack.c.l.b16 %v528
        %v1146 = vunpack.c.h.b16 %v528
        %v1147 = vunpack.c.l.b16 %v529
        %v1148 = vunpack.c.h.b16 %v529
        %v1149 = vunpack.c.l.b16 %v530
        %v1150 = vunpack.c.h.b16 %v530
        %v1151 = vunpack.c.l.b16 %v531
        %v1152 = vunpack.c.h.b16 %v531
        %v1153 = vunpack.c.l.b16 %v532
        %v1154 = vunpack.c.h.b16 %v532
        %v1155 = vunpack.c.l.b16 %v533
        %v1156 = vunpack.c.h.b16 %v533
        %v1157 = vunpack.c.l.b16 %v534
        %v1158 = vunpack.c.h.b16 %v534
        %v1159 = vunpack.c.l.b16 %v535
        %v1160 = vunpack.c.h.b16 %v535
        %v1161 = vunpack.c.l.b16 %v536
        %v1162 = vunpack.c.h.b16 %v536
        %v1163 = vunpack.c.l.b16 %v537
        %v1164 = vunpack.c.h.b16 %v537
        %v1165 = vunpack.c.l.b16 %v538
        %v1166 = vunpack.c.h.b16 %v538
        %v1167 = vunpack.c.l.b16 %v539
        %v1168 = vunpack.c.h.b16 %v539
        %v1169 = vunpack.c.l.b16 %v540
        %v1170 = vunpack.c.h.b16 %v540
        %v1171 = vunpack.c.l.b16 %v541
        %v1172 = vunpack.c.h.b16 %v541
        %v1173 = vunpack.c.l.b16 %v542
        %v1174 = vunpack.c.h.b16 %v542
        %v1175 = vunpack.c.l.b16 %v543
        %v1176 = vunpack.c.h.b16 %v543
        %v1177 = vunpack.c.l.b16 %v544
        %v1178 = vunpack.c.h.b16 %v544
        %v1179 = vunpack.c.l.b16 %v545
        %v1180 = vunpack.c.h.b16 %v545
        %v1181 = vunpack.c.l.b16 %v546
        %v1182 = vunpack.c.h.b16 %v546
        %v1183 = vunpack.c.l.b16 %v547
        %v1184 = vunpack.c.h.b16 %v547
        %v1185 = vunpack.c.l.b16 %v548
        %v1186 = vunpack.c.h.b16 %v548
        %v1187 = vunpack.c.l.b16 %v549
        %v1188 = vunpack.c.h.b16 %v549
        %v1189 = vunpack.c.l.b16 %v550
        %v1190 = vunpack.c.h.b16 %v550
        %v1191 = vunpack.c.l.b16 %v551
        %v1192 = vunpack.c.h.b16 %v551
        %v1193 = vunpack.c.l.b16 %v552
        %v1194 = vunpack.c.h.b16 %v552
        %v1195 = vunpack.c.l.b16 %v553
        %v1196 = vunpack.c.h.b16 %v553
        %v1197 = vunpack.c.l.b16 %v554
        %v1198 = vunpack.c.h.b16 %v554
        %v1199 = vunpack.c.l.b16 %v555
        %v1200 = vunpack.c.h.b16 %v555
        %v1201 = vunpack.c.l.b16 %v556
        %v1202 = vunpack.c.h.b16 %v556
        %v1203 = vunpack.c.l.b16 %v557
        %v1204 = vunpack.c.h.b16 %v557
        %v1205 = vunpack.c.l.b16 %v558
        %v1206 = vunpack.c.h.b16 %v558
        %v1207 = vunpack.c.l.b16 %v559
        %v1208 = vunpack.c.h.b16 %v559
        %v1209 = vunpack.c.l.b16 %v560
        %v1210 = vunpack.c.h.b16 %v560
        %v1211 = vunpack.c.l.b16 %v561
        %v1212 = vunpack.c.h.b16 %v561
        %v1213 = vunpack.c.l.b16 %v562
        %v1214 = vunpack.c.h.b16 %v562
        %v1215 = vunpack.c.l.b16 %v563
        %v1216 = vunpack.c.h.b16 %v563
        %v1217 = vunpack.c.l.b16 %v564
        %v1218 = vunpack.c.h.b16 %v564
        %v1219 = vunpack.c.l.b16 %v565
        %v1220 = vunpack.c.h.b16 %v565
        %v1221 = vunpack.c.l.b16 %v566
        %v1222 = vunpack.c.h.b16 %v566
        %v1223 = vunpack.c.l.b16 %v567
        %v1224 = vunpack.c.h.b16 %v567
        %v1225 = vunpack.c.l.b16 %v568
        %v1226 = vunpack.c.h.b16 %v568
        %v1227 = vunpack.c.l.b16 %v569
        %v1228 = vunpack.c.h.b16 %v569
        %v1229 = vunpack.c.l.b16 %v570
        %v1230 = vunpack.c.h.b16 %v570
        %v1231 = vunpack.c.l.b16 %v571
        %v1232 = vunpack.c.h.b16 %v571
        %v1233 = vunpack.c.l.b16 %v572
        %v1234 = vunpack.c.h.b16 %v572
        %v1235 = vunpack.c.l.b16 %v573
        %v1236 = vunpack.c.h.b16 %v573
        %v1237 = vunpack.c.l.b16 %v574
        %v1238 = vunpack.c.h.b16 %v574
        %v1239 = vunpack.c.l.b16 %v575
        %v1240 = vunpack.c.h.b16 %v575
        %v1241 = vunpack.c.l.b16 %v576
        %v1242 = vunpack.c.h.b16 %v576
        %v1243 = vunpack.c.l.b16 %v577
        %v1244 = vunpack.c.h.b16 %v577
        %v1245 = vunpack.c.l.b16 %v578
        %v1246 = vunpack.c.h.b16 %v578
        %v1247 = vunpack.c.l.b16 %v579
        %v1248 = vunpack.c.h.b16 %v579
        %v1249 = vunpack.c.l.b16 %v580
        %v1250 = vunpack.c.h.b16 %v580
        %v1251 = vunpack.c.l.b16 %v581
        %v1252 = vunpack.c.h.b16 %v581
        %v1253 = vunpack.c.l.b16 %v582
        %v1254 = vunpack.c.h.b16 %v582
        %v1255 = vunpack.c.l.b16 %v583
        %v1256 = vunpack.c.h.b16 %v583
        %v1257 = vunpack.c.l.b16 %v584
        %v1258 = vunpack.c.h.b16 %v584
        %v1259 = vunpack.c.l.b16 %v585
        %v1260 = vunpack.c.h.b16 %v585
        %v1261 = vunpack.c.l.b16 %v586
        %v1262 = vunpack.c.h.b16 %v586
        %v1263 = vunpack.c.l.b16 %v587
        %v1264 = vunpack.c.h.b16 %v587
        %v1265 = vunpack.c.l.b16 %v588
        %v1266 = vunpack.c.h.b16 %v588
        %v1267 = vunpack.c.l.b16 %v589
        %v1268 = vunpack.c.h.b16 %v589
        %v1269 = vunpack.c.l.b16 %v590
        %v1270 = vunpack.c.h.b16 %v590
        %v1271 = vunpack.c.l.b16 %v591
        %v1272 = vunpack.c.h.b16 %v591
        %v1273 = vunpack.c.l.b16 %v592
        %v1274 = vunpack.c.h.b16 %v592
        %v1275 = vunpack.c.l.b16 %v593
        %v1276 = vunpack.c.h.b16 %v593
        %v1277 = vunpack.c.l.b16 %v594
        %v1278 = vunpack.c.h.b16 %v594
        %v1279 = vunpack.c.l.b16 %v595
        %v1280 = vunpack.c.h.b16 %v595
        %v1281 = vunpack.c.l.b16 %v596
        %v1282 = vunpack.c.h.b16 %v596
        %v1283 = vunpack.c.l.b16 %v597
        %v1284 = vunpack.c.h.b16 %v597
        %v1285 = vunpack.c.l.b16 %v598
        %v1286 = vunpack.c.h.b16 %v598
        %v1287 = vunpack.c.l.b16 %v599
        %v1288 = vunpack.c.h.b16 %v599
        %v1289 = vunpack.c.l.b16 %v600
        %v1290 = vunpack.c.h.b16 %v600
        %v1291 = vunpack.c.l.b16 %v601
        %v1292 = vunpack.c.h.b16 %v601
        %v1293 = vunpack.c.l.b16 %v602
        %v1294 = vunpack.c.h.b16 %v602
        %v1295 = vunpack.c.l.b16 %v603
        %v1296 = vunpack.c.h.b16 %v603
        %v1297 = vunpack.c.l.b16 %v604
        %v1298 = vunpack.c.h.b16 %v604
        %v1299 = vunpack.c.l.b16 %v605
        %v1300 = vunpack.c.h.b16 %v605
        %v1301 = vunpack.c.l.b16 %v606
        %v1302 = vunpack.c.h.b16 %v606
        %v1303 = vunpack.c.l.b16 %v607
        %v1304 = vunpack.c.h.b16 %v607
        %v1305 = vunpack.c.l.b16 %v608
        %v1306 = vunpack.c.h.b16 %v608
        %v1307 = vunpack.c.l.b16 %v609
        %v1308 = vunpack.c.h.b16 %v609
        %v1309 = vunpack.c.l.b16 %v610
        %v1310 = vunpack.c.h.b16 %v610
        %v1311 = vunpack.c.l.b16 %v611
        %v1312 = vunpack.c.h.b16 %v611
        %v1313 = vunpack.c.l.b16 %v612
        %v1314 = vunpack.c.h.b16 %v612
        %v1315 = vunpack.c.l.b16 %v613
        %v1316 = vunpack.c.h.b16 %v613
        %v1317 = vunpack.c.l.b16 %v614
        %v1318 = vunpack.c.h.b16 %v614
        %v1319 = vpack.c.b16 %v1065, %v1063
        %v1320 = vpack.c.b16 %v1066, %v1064
        %v1321 = vpack.c.b16 %v1069, %v1067
        %v1322 = vpack.c.b16 %v1070, %v1068
        %v1323 = vpack.c.b16 %v1073, %v1071
        %v1324 = vpack.c.b16 %v1074, %v1072
        %v1325 = vpack.c.b16 %v1077, %v1075
        %v1326 = vpack.c.b16 %v1078, %v1076
        %v1327 = vpack.c.b16 %v1081, %v1079
        %v1328 = vpack.c.b16 %v1082, %v1080
        %v1329 = vpack.c.b16 %v1085, %v1083
        %v1330 = vpack.c.b16 %v1086, %v1084
        %v1331 = vpack.c.b16 %v1089, %v1087
        %v1332 = vpack.c.b16 %v1090, %v1088
        %v1333 = vpack.c.b16 %v1093, %v1091
        %v1334 = vpack.c.b16 %v1094, %v1092
        %v1335 = vpack.c.b16 %v1097, %v1095
        %v1336 = vpack.c.b16 %v1098, %v1096
        %v1337 = vpack.c.b16 %v1101, %v1099
        %v1338 = vpack.c.b16 %v1102, %v1100
        %v1339 = vpack.c.b16 %v1105, %v1103
        %v1340 = vpack.c.b16 %v1106, %v1104
        %v1341 = vpack.c.b16 %v1109, %v1107
        %v1342 = vpack.c.b16 %v1110, %v1108
        %v1343 = vpack.c.b16 %v1113, %v1111
        %v1344 = vpack.c.b16 %v1114, %v1112
        %v1345 = vpack.c.b16 %v1117, %v1115
        %v1346 = vpack.c.b16 %v1118, %v1116
        %v1347 = vpack.c.b16 %v1121, %v1119
        %v1348 = vpack.c.b16 %v1122, %v1120
        %v1349 = vpack.c.b16 %v1125, %v1123
        %v1350 = vpack.c.b16 %v1126, %v1124
        %v1351 = vpack.c.b16 %v1129, %v1127
        %v1352 = vpack.c.b16 %v1130, %v1128
        %v1353 = vpack.c.b16 %v1133, %v1131
        %v1354 = vpack.c.b16 %v1134, %v1132
        %v1355 = vpack.c.b16 %v1137, %v1135
        %v1356 = vpack.c.b16 %v1138, %v1136
        %v1357 = vpack.c.b16 %v1141, %v1139
        %v1358 = vpack.c.b16 %v1142, %v1140
        %v1359 = vpack.c.b16 %v1145, %v1143
        %v1360 = vpack.c.b16 %v1146, %v1144
        %v1361 = vpack.c.b16 %v1149, %v1147
        %v1362 = vpack.c.b16 %v1150, %v1148
        %v1363 = vpack.c.b16 %v1153, %v1151
        %v1364 = vpack.c.b16 %v1154, %v1152
        %v1365 = vpack.c.b16 %v1157, %v1155
        %v1366 = vpack.c.b16 %v1158, %v1156
        %v1367 = vpack.c.b16 %v1161, %v1159
        %v1368 = vpack.c.b16 %v1162, %v1160
        %v1369 = vpack.c.b16 %v1165, %v1163
        %v1370 = vpack.c.b16 %v1166, %v1164
        %v1371 = vpack.c.b16 %v1169, %v1167
        %v1372 = vpack.c.b16 %v1170, %v1168
        %v1373 = vpack.c.b16 %v1173, %v1171
        %v1374 = vpack.c.b16 %v1174, %v1172
        %v1375 = vpack.c.b16 %v1177, %v1175
        %v1376 = vpack.c.b16 %v1178, %v1176
        %v1377 = vpack.c.b16 %v1181, %v1179
        %v1378 = vpack.c.b16 %v1182, %v1180
        %v1379 = vpack.c.b16 %v1185, %v1183
        %v1380 = vpack.c.b16 %v1186, %v1184
        %v1381 = vpack.c.b16 %v1189, %v1187
        %v1382 = vpack.c.b16 %v1190, %v1188
        %v1383 = vpack.c.b16 %v1193, %v1191
        %v1384 = vpack.c.b16 %v1194, %v1192
        %v1385 = vpack.c.b16 %v1197, %v1195
        %v1386 = vpack.c.b16 %v1198, %v1196
        %v1387 = vpack.c.b16 %v1201, %v1199
        %v1388 = vpack.c.b16 %v1202, %v1200
        %v1389 = vpack.c.b16 %v1205, %v1203
        %v1390 = vpack.c.b16 %v1206, %v1204
        %v1391 = vpack.c.b16 %v1209, %v1207
        %v1392 = vpack.c.b16 %v1210, %v1208
        %v1393 = vpack.c.b16 %v1213, %v1211
        %v1394 = vpack.c.b16 %v1214, %v1212
        %v1395 = vpack.c.b16 %v1217, %v1215
        %v1396 = vpack.c.b16 %v1218, %v1216
        %v1397 = vpack.c.b16 %v1221, %v1219
        %v1398 = vpack.c.b16 %v1222, %v1220
        %v1399 = vpack.c.b16 %v1225, %v1223
        %v1400 = vpack.c.b16 %v1226, %v1224
        %v1401 = vpack.c.b16 %v1229, %v1227
        %v1402 = vpack.c.b16 %v1230, %v1228
        %v1403 = vpack.c.b16 %v1233, %v1231
        %v1404 = vpack.c.b16 %v1234, %v1232
        %v1405 = vpack.c.b16 %v1237, %v1235
        %v1406 = vpack.c.b16 %v1238, %v1236
        %v1407 = vpack.c.b16 %v1241, %v1239
        %v1408 = vpack.c.b16 %v1242, %v1240
        %v1409 = vpack.c.b16 %v1245, %v1243
        %v1410 = vpack.c.b16 %v1246, %v1244
        %v1411 = vpack.c.b16 %v1249, %v1247
        %v1412 = vpack.c.b16 %v1250, %v1248
        %v1413 = vpack.c.b16 %v1253, %v1251
        %v1414 = vpack.c.b16 %v1254, %v1252
        %v1415 = vpack.c.b16 %v1257, %v1255
        %v1416 = vpack.c.b16 %v1258, %v1256
        %v1417 = vpack.c.b16 %v1261, %v1259
        %v1418 = vpack.c.b16 %v1262, %v1260
        %v1419 = vpack.c.b16 %v1265, %v1263
        %v1420 = vpack.c.b16 %v1266, %v1264
        %v1421 = vpack.c.b16 %v1269, %v1267
        %v1422 = vpack.c.b16 %v1270, %v1268
        %v1423 = vpack.c.b16 %v1273, %v1271
        %v1424 = vpack.c.b16 %v1274, %v1272
        %v1425 = vpack.c.b16 %v1277, %v1275
        %v1426 = vpack.c.b16 %v1278, %v1276
        %v1427 = vpack.c.b16 %v1281, %v1279
        %v1428 = vpack.c.b16 %v1282, %v1280
        %v1429 = vpack.c.b16 %v1285, %v1283
        %v1430 = vpack.c.b16 %v1286, %v1284
        %v1431 = vpack.c.b16 %v1289, %v1287
        %v1432 = vpack.c.b16 %v1290, %v1288
        %v1433 = vpack.c.b16 %v1293, %v1291
        %v1434 = vpack.c.b16 %v1294, %v1292
        %v1435 = vpack.c.b16 %v1297, %v1295
        %v1436 = vpack.c.b16 %v1298, %v1296
        %v1437 = vpack.c.b16 %v1301, %v1299
        %v1438 = vpack.c.b16 %v1302, %v1300
        %v1439 = vpack.c.b16 %v1305, %v1303
        %v1440 = vpack.c.b16 %v1306, %v1304
        %v1441 = vpack.c.b16 %v1309, %v1307
        %v1442 = vpack.c.b16 %v1310, %v1308
        %v1443 = vpack.c.b16 %v1313, %v1311
        %v1444 = vpack.c.b16 %v1314, %v1312
        %v1445 = vpack.c.b16 %v1317, %v1315
        %v1446 = vpack.c.b16 %v1318, %v1316
        %1575 = vmatpush.bf16.msra.mxu0 %v1333
        %1576 = vmatpush.bf16.msra.mxu0 %v1331
        %1577 = vmatpush.bf16.msra.mxu0 %v1329
        %1578 = vmatpush.bf16.msra.mxu0 %v1327
        %1579 = vmatpush.bf16.msra.mxu0 %v1325
        %1580 = vmatpush.bf16.msra.mxu0 %v1323
        %1581 = vmatpush.bf16.msra.mxu0 %v1321
        %1582 = vmatpush.bf16.msra.mxu0 %v1319
        %1583 = vmatmul.bf16.gmra.mxu0 %v807
        %v1584 = vpop.f32.mrf.mxu0
        %v1585 = vadd.f32 0.0, %v1584
        %v1586 = vpop.f32.mrf.mxu0
        %v1587 = vadd.f32 0.0, %v1586
        %1588 = vmatmul.bf16.gmra.mxu0 %v815
        %v1589 = vpop.f32.mrf.mxu0
        %v1590 = vadd.f32 0.0, %v1589
        %v1591 = vpop.f32.mrf.mxu0
        %v1592 = vadd.f32 0.0, %v1591
        %1593 = vmatmul.bf16.gmra.mxu0 %v823
        %v1594 = vpop.f32.mrf.mxu0
        %v1595 = vadd.f32 0.0, %v1594
        %v1596 = vpop.f32.mrf.mxu0
        %v1597 = vadd.f32 0.0, %v1596
        %1598 = vmatmul.bf16.gmra.mxu0 %v831
        %v1599 = vpop.f32.mrf.mxu0
        %v1600 = vadd.f32 0.0, %v1599
        %v1601 = vpop.f32.mrf.mxu0
        %v1602 = vadd.f32 0.0, %v1601
        %1603 = vmatmul.bf16.gmra.mxu0 %v839
        %v1604 = vpop.f32.mrf.mxu0
        %v1605 = vadd.f32 0.0, %v1604
        %v1606 = vpop.f32.mrf.mxu0
        %v1607 = vadd.f32 0.0, %v1606
        %1608 = vmatmul.bf16.gmra.mxu0 %v847
        %v1609 = vpop.f32.mrf.mxu0
        %v1610 = vadd.f32 0.0, %v1609
        %v1611 = vpop.f32.mrf.mxu0
        %v1612 = vadd.f32 0.0, %v1611
        %1613 = vmatmul.bf16.gmra.mxu0 %v855
        %v1614 = vpop.f32.mrf.mxu0
        %v1615 = vadd.f32 0.0, %v1614
        %v1616 = vpop.f32.mrf.mxu0
        %v1617 = vadd.f32 0.0, %v1616
        %1618 = vmatmul.bf16.gmra.mxu0 %v863
        %v1619 = vpop.f32.mrf.mxu0
        %v1620 = vadd.f32 0.0, %v1619
        %v1621 = vpop.f32.mrf.mxu0
        %v1622 = vadd.f32 0.0, %v1621
        %1623 = vdwg.mxu0
        %1624 = vmatpush.bf16.msra.mxu0 %v1349
        %1625 = vmatpush.bf16.msra.mxu0 %v1347
        %1626 = vmatpush.bf16.msra.mxu0 %v1345
        %1627 = vmatpush.bf16.msra.mxu0 %v1343
        %1628 = vmatpush.bf16.msra.mxu0 %v1341
        %1629 = vmatpush.bf16.msra.mxu0 %v1339
        %1630 = vmatpush.bf16.msra.mxu0 %v1337
        %1631 = vmatpush.bf16.msra.mxu0 %v1335
        %1632 = vmatmul.bf16.gmra.mxu0 %v808
        %v1633 = vpop.f32.mrf.mxu0
        %v1634 = vadd.f32 %v1585, %v1633
        %v1635 = vpop.f32.mrf.mxu0
        %v1636 = vadd.f32 %v1587, %v1635
        %1637 = vmatmul.bf16.gmra.mxu0 %v816
        %v1638 = vpop.f32.mrf.mxu0
        %v1639 = vadd.f32 %v1590, %v1638
        %v1640 = vpop.f32.mrf.mxu0
        %v1641 = vadd.f32 %v1592, %v1640
        %1642 = vmatmul.bf16.gmra.mxu0 %v824
        %v1643 = vpop.f32.mrf.mxu0
        %v1644 = vadd.f32 %v1595, %v1643
        %v1645 = vpop.f32.mrf.mxu0
        %v1646 = vadd.f32 %v1597, %v1645
        %1647 = vmatmul.bf16.gmra.mxu0 %v832
        %v1648 = vpop.f32.mrf.mxu0
        %v1649 = vadd.f32 %v1600, %v1648
        %v1650 = vpop.f32.mrf.mxu0
        %v1651 = vadd.f32 %v1602, %v1650
        %1652 = vmatmul.bf16.gmra.mxu0 %v840
        %v1653 = vpop.f32.mrf.mxu0
        %v1654 = vadd.f32 %v1605, %v1653
        %v1655 = vpop.f32.mrf.mxu0
        %v1656 = vadd.f32 %v1607, %v1655
        %1657 = vmatmul.bf16.gmra.mxu0 %v848
        %v1658 = vpop.f32.mrf.mxu0
        %v1659 = vadd.f32 %v1610, %v1658
        %v1660 = vpop.f32.mrf.mxu0
        %v1661 = vadd.f32 %v1612, %v1660
        %1662 = vmatmul.bf16.gmra.mxu0 %v856
        %v1663 = vpop.f32.mrf.mxu0
        %v1664 = vadd.f32 %v1615, %v1663
        %v1665 = vpop.f32.mrf.mxu0
        %v1666 = vadd.f32 %v1617, %v1665
        %1667 = vmatmul.bf16.gmra.mxu0 %v864
        %v1668 = vpop.f32.mrf.mxu0
        %v1669 = vadd.f32 %v1620, %v1668
        %v1670 = vpop.f32.mrf.mxu0
        %v1671 = vadd.f32 %v1622, %v1670
        %1672 = vdwg.mxu0
        %1673 = vmatpush.bf16.msra.mxu0 %v1365
        %1674 = vmatpush.bf16.msra.mxu0 %v1363
        %1675 = vmatpush.bf16.msra.mxu0 %v1361
        %1676 = vmatpush.bf16.msra.mxu0 %v1359
        %1677 = vmatpush.bf16.msra.mxu0 %v1357
        %1678 = vmatpush.bf16.msra.mxu0 %v1355
        %1679 = vmatpush.bf16.msra.mxu0 %v1353
        %1680 = vmatpush.bf16.msra.mxu0 %v1351
        %1681 = vmatmul.bf16.gmra.mxu0 %v809
        %v1682 = vpop.f32.mrf.mxu0
        %v1683 = vadd.f32 %v1634, %v1682
        %v1684 = vpop.f32.mrf.mxu0
        %v1685 = vadd.f32 %v1636, %v1684
        %1686 = vmatmul.bf16.gmra.mxu0 %v817
        %v1687 = vpop.f32.mrf.mxu0
        %v1688 = vadd.f32 %v1639, %v1687
        %v1689 = vpop.f32.mrf.mxu0
        %v1690 = vadd.f32 %v1641, %v1689
        %1691 = vmatmul.bf16.gmra.mxu0 %v825
        %v1692 = vpop.f32.mrf.mxu0
        %v1693 = vadd.f32 %v1644, %v1692
        %v1694 = vpop.f32.mrf.mxu0
        %v1695 = vadd.f32 %v1646, %v1694
        %1696 = vmatmul.bf16.gmra.mxu0 %v833
        %v1697 = vpop.f32.mrf.mxu0
        %v1698 = vadd.f32 %v1649, %v1697
        %v1699 = vpop.f32.mrf.mxu0
        %v1700 = vadd.f32 %v1651, %v1699
        %1701 = vmatmul.bf16.gmra.mxu0 %v841
        %v1702 = vpop.f32.mrf.mxu0
        %v1703 = vadd.f32 %v1654, %v1702
        %v1704 = vpop.f32.mrf.mxu0
        %v1705 = vadd.f32 %v1656, %v1704
        %1706 = vmatmul.bf16.gmra.mxu0 %v849
        %v1707 = vpop.f32.mrf.mxu0
        %v1708 = vadd.f32 %v1659, %v1707
        %v1709 = vpop.f32.mrf.mxu0
        %v1710 = vadd.f32 %v1661, %v1709
        %1711 = vmatmul.bf16.gmra.mxu0 %v857
        %v1712 = vpop.f32.mrf.mxu0
        %v1713 = vadd.f32 %v1664, %v1712
        %v1714 = vpop.f32.mrf.mxu0
        %v1715 = vadd.f32 %v1666, %v1714
        %1716 = vmatmul.bf16.gmra.mxu0 %v865
        %v1717 = vpop.f32.mrf.mxu0
        %v1718 = vadd.f32 %v1669, %v1717
        %v1719 = vpop.f32.mrf.mxu0
        %v1720 = vadd.f32 %v1671, %v1719
        %1721 = vdwg.mxu0
        %1722 = vmatpush.bf16.msra.mxu0 %v1381
        %1723 = vmatpush.bf16.msra.mxu0 %v1379
        %1724 = vmatpush.bf16.msra.mxu0 %v1377
        %1725 = vmatpush.bf16.msra.mxu0 %v1375
        %1726 = vmatpush.bf16.msra.mxu0 %v1373
        %1727 = vmatpush.bf16.msra.mxu0 %v1371
        %1728 = vmatpush.bf16.msra.mxu0 %v1369
        %1729 = vmatpush.bf16.msra.mxu0 %v1367
        %1730 = vmatmul.bf16.gmra.mxu0 %v810
        %v1731 = vpop.f32.mrf.mxu0
        %v1732 = vadd.f32 %v1683, %v1731
        %v1733 = vpop.f32.mrf.mxu0
        %v1734 = vadd.f32 %v1685, %v1733
        %1735 = vmatmul.bf16.gmra.mxu0 %v818
        %v1736 = vpop.f32.mrf.mxu0
        %v1737 = vadd.f32 %v1688, %v1736
        %v1738 = vpop.f32.mrf.mxu0
        %v1739 = vadd.f32 %v1690, %v1738
        %1740 = vmatmul.bf16.gmra.mxu0 %v826
        %v1741 = vpop.f32.mrf.mxu0
        %v1742 = vadd.f32 %v1693, %v1741
        %v1743 = vpop.f32.mrf.mxu0
        %v1744 = vadd.f32 %v1695, %v1743
        %1745 = vmatmul.bf16.gmra.mxu0 %v834
        %v1746 = vpop.f32.mrf.mxu0
        %v1747 = vadd.f32 %v1698, %v1746
        %v1748 = vpop.f32.mrf.mxu0
        %v1749 = vadd.f32 %v1700, %v1748
        %1750 = vmatmul.bf16.gmra.mxu0 %v842
        %v1751 = vpop.f32.mrf.mxu0
        %v1752 = vadd.f32 %v1703, %v1751
        %v1753 = vpop.f32.mrf.mxu0
        %v1754 = vadd.f32 %v1705, %v1753
        %1755 = vmatmul.bf16.gmra.mxu0 %v850
        %v1756 = vpop.f32.mrf.mxu0
        %v1757 = vadd.f32 %v1708, %v1756
        %v1758 = vpop.f32.mrf.mxu0
        %v1759 = vadd.f32 %v1710, %v1758
        %1760 = vmatmul.bf16.gmra.mxu0 %v858
        %v1761 = vpop.f32.mrf.mxu0
        %v1762 = vadd.f32 %v1713, %v1761
        %v1763 = vpop.f32.mrf.mxu0
        %v1764 = vadd.f32 %v1715, %v1763
        %1765 = vmatmul.bf16.gmra.mxu0 %v866
        %v1766 = vpop.f32.mrf.mxu0
        %v1767 = vadd.f32 %v1718, %v1766
        %v1768 = vpop.f32.mrf.mxu0
        %v1769 = vadd.f32 %v1720, %v1768
        %1770 = vdwg.mxu0
        %1771 = vmatpush.bf16.msra.mxu0 %v1397
        %1772 = vmatpush.bf16.msra.mxu0 %v1395
        %1773 = vmatpush.bf16.msra.mxu0 %v1393
        %1774 = vmatpush.bf16.msra.mxu0 %v1391
        %1775 = vmatpush.bf16.msra.mxu0 %v1389
        %1776 = vmatpush.bf16.msra.mxu0 %v1387
        %1777 = vmatpush.bf16.msra.mxu0 %v1385
        %1778 = vmatpush.bf16.msra.mxu0 %v1383
        %1779 = vmatmul.bf16.gmra.mxu0 %v811
        %v1780 = vpop.f32.mrf.mxu0
        %v1781 = vadd.f32 %v1732, %v1780
        %v1782 = vpop.f32.mrf.mxu0
        %v1783 = vadd.f32 %v1734, %v1782
        %1784 = vmatmul.bf16.gmra.mxu0 %v819
        %v1785 = vpop.f32.mrf.mxu0
        %v1786 = vadd.f32 %v1737, %v1785
        %v1787 = vpop.f32.mrf.mxu0
        %v1788 = vadd.f32 %v1739, %v1787
        %1789 = vmatmul.bf16.gmra.mxu0 %v827
        %v1790 = vpop.f32.mrf.mxu0
        %v1791 = vadd.f32 %v1742, %v1790
        %v1792 = vpop.f32.mrf.mxu0
        %v1793 = vadd.f32 %v1744, %v1792
        %1794 = vmatmul.bf16.gmra.mxu0 %v835
        %v1795 = vpop.f32.mrf.mxu0
        %v1796 = vadd.f32 %v1747, %v1795
        %v1797 = vpop.f32.mrf.mxu0
        %v1798 = vadd.f32 %v1749, %v1797
        %1799 = vmatmul.bf16.gmra.mxu0 %v843
        %v1800 = vpop.f32.mrf.mxu0
        %v1801 = vadd.f32 %v1752, %v1800
        %v1802 = vpop.f32.mrf.mxu0
        %v1803 = vadd.f32 %v1754, %v1802
        %1804 = vmatmul.bf16.gmra.mxu0 %v851
        %v1805 = vpop.f32.mrf.mxu0
        %v1806 = vadd.f32 %v1757, %v1805
        %v1807 = vpop.f32.mrf.mxu0
        %v1808 = vadd.f32 %v1759, %v1807
        %1809 = vmatmul.bf16.gmra.mxu0 %v859
        %v1810 = vpop.f32.mrf.mxu0
        %v1811 = vadd.f32 %v1762, %v1810
        %v1812 = vpop.f32.mrf.mxu0
        %v1813 = vadd.f32 %v1764, %v1812
        %1814 = vmatmul.bf16.gmra.mxu0 %v867
        %v1815 = vpop.f32.mrf.mxu0
        %v1816 = vadd.f32 %v1767, %v1815
        %v1817 = vpop.f32.mrf.mxu0
        %v1818 = vadd.f32 %v1769, %v1817
        %1819 = vdwg.mxu0
        %1820 = vmatpush.bf16.msra.mxu0 %v1413
        %1821 = vmatpush.bf16.msra.mxu0 %v1411
        %1822 = vmatpush.bf16.msra.mxu0 %v1409
        %1823 = vmatpush.bf16.msra.mxu0 %v1407
        %1824 = vmatpush.bf16.msra.mxu0 %v1405
        %1825 = vmatpush.bf16.msra.mxu0 %v1403
        %1826 = vmatpush.bf16.msra.mxu0 %v1401
        %1827 = vmatpush.bf16.msra.mxu0 %v1399
        %1828 = vmatmul.bf16.gmra.mxu0 %v812
        %v1829 = vpop.f32.mrf.mxu0
        %v1830 = vadd.f32 %v1781, %v1829
        %v1831 = vpop.f32.mrf.mxu0
        %v1832 = vadd.f32 %v1783, %v1831
        %1833 = vmatmul.bf16.gmra.mxu0 %v820
        %v1834 = vpop.f32.mrf.mxu0
        %v1835 = vadd.f32 %v1786, %v1834
        %v1836 = vpop.f32.mrf.mxu0
        %v1837 = vadd.f32 %v1788, %v1836
        %1838 = vmatmul.bf16.gmra.mxu0 %v828
        %v1839 = vpop.f32.mrf.mxu0
        %v1840 = vadd.f32 %v1791, %v1839
        %v1841 = vpop.f32.mrf.mxu0
        %v1842 = vadd.f32 %v1793, %v1841
        %1843 = vmatmul.bf16.gmra.mxu0 %v836
        %v1844 = vpop.f32.mrf.mxu0
        %v1845 = vadd.f32 %v1796, %v1844
        %v1846 = vpop.f32.mrf.mxu0
        %v1847 = vadd.f32 %v1798, %v1846
        %1848 = vmatmul.bf16.gmra.mxu0 %v844
        %v1849 = vpop.f32.mrf.mxu0
        %v1850 = vadd.f32 %v1801, %v1849
        %v1851 = vpop.f32.mrf.mxu0
        %v1852 = vadd.f32 %v1803, %v1851
        %1853 = vmatmul.bf16.gmra.mxu0 %v852
        %v1854 = vpop.f32.mrf.mxu0
        %v1855 = vadd.f32 %v1806, %v1854
        %v1856 = vpop.f32.mrf.mxu0
        %v1857 = vadd.f32 %v1808, %v1856
        %1858 = vmatmul.bf16.gmra.mxu0 %v860
        %v1859 = vpop.f32.mrf.mxu0
        %v1860 = vadd.f32 %v1811, %v1859
        %v1861 = vpop.f32.mrf.mxu0
        %v1862 = vadd.f32 %v1813, %v1861
        %1863 = vmatmul.bf16.gmra.mxu0 %v868
        %v1864 = vpop.f32.mrf.mxu0
        %v1865 = vadd.f32 %v1816, %v1864
        %v1866 = vpop.f32.mrf.mxu0
        %v1867 = vadd.f32 %v1818, %v1866
        %1868 = vdwg.mxu0
        %1869 = vmatpush.bf16.msra.mxu0 %v1429
        %1870 = vmatpush.bf16.msra.mxu0 %v1427
        %1871 = vmatpush.bf16.msra.mxu0 %v1425
        %1872 = vmatpush.bf16.msra.mxu0 %v1423
        %1873 = vmatpush.bf16.msra.mxu0 %v1421
        %1874 = vmatpush.bf16.msra.mxu0 %v1419
        %1875 = vmatpush.bf16.msra.mxu0 %v1417
        %1876 = vmatpush.bf16.msra.mxu0 %v1415
        %1877 = vmatmul.bf16.gmra.mxu0 %v813
        %v1878 = vpop.f32.mrf.mxu0
        %v1879 = vadd.f32 %v1830, %v1878
        %v1880 = vpop.f32.mrf.mxu0
        %v1881 = vadd.f32 %v1832, %v1880
        %1882 = vmatmul.bf16.gmra.mxu0 %v821
        %v1883 = vpop.f32.mrf.mxu0
        %v1884 = vadd.f32 %v1835, %v1883
        %v1885 = vpop.f32.mrf.mxu0
        %v1886 = vadd.f32 %v1837, %v1885
        %1887 = vmatmul.bf16.gmra.mxu0 %v829
        %v1888 = vpop.f32.mrf.mxu0
        %v1889 = vadd.f32 %v1840, %v1888
        %v1890 = vpop.f32.mrf.mxu0
        %v1891 = vadd.f32 %v1842, %v1890
        %1892 = vmatmul.bf16.gmra.mxu0 %v837
        %v1893 = vpop.f32.mrf.mxu0
        %v1894 = vadd.f32 %v1845, %v1893
        %v1895 = vpop.f32.mrf.mxu0
        %v1896 = vadd.f32 %v1847, %v1895
        %1897 = vmatmul.bf16.gmra.mxu0 %v845
        %v1898 = vpop.f32.mrf.mxu0
        %v1899 = vadd.f32 %v1850, %v1898
        %v1900 = vpop.f32.mrf.mxu0
        %v1901 = vadd.f32 %v1852, %v1900
        %1902 = vmatmul.bf16.gmra.mxu0 %v853
        %v1903 = vpop.f32.mrf.mxu0
        %v1904 = vadd.f32 %v1855, %v1903
        %v1905 = vpop.f32.mrf.mxu0
        %v1906 = vadd.f32 %v1857, %v1905
        %1907 = vmatmul.bf16.gmra.mxu0 %v861
        %v1908 = vpop.f32.mrf.mxu0
        %v1909 = vadd.f32 %v1860, %v1908
        %v1910 = vpop.f32.mrf.mxu0
        %v1911 = vadd.f32 %v1862, %v1910
        %1912 = vmatmul.bf16.gmra.mxu0 %v869
        %v1913 = vpop.f32.mrf.mxu0
        %v1914 = vadd.f32 %v1865, %v1913
        %v1915 = vpop.f32.mrf.mxu0
        %v1916 = vadd.f32 %v1867, %v1915
        %1917 = vdwg.mxu0
        %1918 = vmatpush.bf16.msra.mxu0 %v1445
        %1919 = vmatpush.bf16.msra.mxu0 %v1443
        %1920 = vmatpush.bf16.msra.mxu0 %v1441
        %1921 = vmatpush.bf16.msra.mxu0 %v1439
        %1922 = vmatpush.bf16.msra.mxu0 %v1437
        %1923 = vmatpush.bf16.msra.mxu0 %v1435
        %1924 = vmatpush.bf16.msra.mxu0 %v1433
        %1925 = vmatpush.bf16.msra.mxu0 %v1431
        %1926 = vmatmul.bf16.gmra.mxu0 %v814
        %v1927 = vpop.f32.mrf.mxu0
        %v1928 = vadd.f32 %v1879, %v1927
        %v1929 = vpop.f32.mrf.mxu0
        %v1930 = vadd.f32 %v1881, %v1929
        %1931 = vmatmul.bf16.gmra.mxu0 %v822
        %v1932 = vpop.f32.mrf.mxu0
        %v1933 = vadd.f32 %v1884, %v1932
        %v1934 = vpop.f32.mrf.mxu0
        %v1935 = vadd.f32 %v1886, %v1934
        %1936 = vmatmul.bf16.gmra.mxu0 %v830
        %v1937 = vpop.f32.mrf.mxu0
        %v1938 = vadd.f32 %v1889, %v1937
        %v1939 = vpop.f32.mrf.mxu0
        %v1940 = vadd.f32 %v1891, %v1939
        %1941 = vmatmul.bf16.gmra.mxu0 %v838
        %v1942 = vpop.f32.mrf.mxu0
        %v1943 = vadd.f32 %v1894, %v1942
        %v1944 = vpop.f32.mrf.mxu0
        %v1945 = vadd.f32 %v1896, %v1944
        %1946 = vmatmul.bf16.gmra.mxu0 %v846
        %v1947 = vpop.f32.mrf.mxu0
        %v1948 = vadd.f32 %v1899, %v1947
        %v1949 = vpop.f32.mrf.mxu0
        %v1950 = vadd.f32 %v1901, %v1949
        %1951 = vmatmul.bf16.gmra.mxu0 %v854
        %v1952 = vpop.f32.mrf.mxu0
        %v1953 = vadd.f32 %v1904, %v1952
        %v1954 = vpop.f32.mrf.mxu0
        %v1955 = vadd.f32 %v1906, %v1954
        %1956 = vmatmul.bf16.gmra.mxu0 %v862
        %v1957 = vpop.f32.mrf.mxu0
        %v1958 = vadd.f32 %v1909, %v1957
        %v1959 = vpop.f32.mrf.mxu0
        %v1960 = vadd.f32 %v1911, %v1959
        %1961 = vmatmul.bf16.gmra.mxu0 %v870
        %v1962 = vpop.f32.mrf.mxu0
        %v1963 = vadd.f32 %v1914, %v1962
        %v1964 = vpop.f32.mrf.mxu0
        %v1965 = vadd.f32 %v1916, %v1964
        %1966 = vdwg.mxu0
        %1967 = vmatpush.bf16.msra.mxu0 %v1334
        %1968 = vmatpush.bf16.msra.mxu0 %v1332
        %1969 = vmatpush.bf16.msra.mxu0 %v1330
        %1970 = vmatpush.bf16.msra.mxu0 %v1328
        %1971 = vmatpush.bf16.msra.mxu0 %v1326
        %1972 = vmatpush.bf16.msra.mxu0 %v1324
        %1973 = vmatpush.bf16.msra.mxu0 %v1322
        %1974 = vmatpush.bf16.msra.mxu0 %v1320
        %1975 = vmatmul.bf16.gmra.mxu0 %v807
        %v1976 = vpop.f32.mrf.mxu0
        %v1977 = vadd.f32 0.0, %v1976
        %v1978 = vpop.f32.mrf.mxu0
        %v1979 = vadd.f32 0.0, %v1978
        %1980 = vmatmul.bf16.gmra.mxu0 %v815
        %v1981 = vpop.f32.mrf.mxu0
        %v1982 = vadd.f32 0.0, %v1981
        %v1983 = vpop.f32.mrf.mxu0
        %v1984 = vadd.f32 0.0, %v1983
        %1985 = vmatmul.bf16.gmra.mxu0 %v823
        %v1986 = vpop.f32.mrf.mxu0
        %v1987 = vadd.f32 0.0, %v1986
        %v1988 = vpop.f32.mrf.mxu0
        %v1989 = vadd.f32 0.0, %v1988
        %1990 = vmatmul.bf16.gmra.mxu0 %v831
        %v1991 = vpop.f32.mrf.mxu0
        %v1992 = vadd.f32 0.0, %v1991
        %v1993 = vpop.f32.mrf.mxu0
        %v1994 = vadd.f32 0.0, %v1993
        %1995 = vmatmul.bf16.gmra.mxu0 %v839
        %v1996 = vpop.f32.mrf.mxu0
        %v1997 = vadd.f32 0.0, %v1996
        %v1998 = vpop.f32.mrf.mxu0
        %v1999 = vadd.f32 0.0, %v1998
        %2000 = vmatmul.bf16.gmra.mxu0 %v847
        %v2001 = vpop.f32.mrf.mxu0
        %v2002 = vadd.f32 0.0, %v2001
        %v2003 = vpop.f32.mrf.mxu0
        %v2004 = vadd.f32 0.0, %v2003
        %2005 = vmatmul.bf16.gmra.mxu0 %v855
        %v2006 = vpop.f32.mrf.mxu0
        %v2007 = vadd.f32 0.0, %v2006
        %v2008 = vpop.f32.mrf.mxu0
        %v2009 = vadd.f32 0.0, %v2008
        %2010 = vmatmul.bf16.gmra.mxu0 %v863
        %v2011 = vpop.f32.mrf.mxu0
        %v2012 = vadd.f32 0.0, %v2011
        %v2013 = vpop.f32.mrf.mxu0
        %v2014 = vadd.f32 0.0, %v2013
        %2015 = vdwg.mxu0
        %2016 = vmatpush.bf16.msra.mxu0 %v1350
        %2017 = vmatpush.bf16.msra.mxu0 %v1348
        %2018 = vmatpush.bf16.msra.mxu0 %v1346
        %2019 = vmatpush.bf16.msra.mxu0 %v1344
        %2020 = vmatpush.bf16.msra.mxu0 %v1342
        %2021 = vmatpush.bf16.msra.mxu0 %v1340
        %2022 = vmatpush.bf16.msra.mxu0 %v1338
        %2023 = vmatpush.bf16.msra.mxu0 %v1336
        %2024 = vmatmul.bf16.gmra.mxu0 %v808
        %v2025 = vpop.f32.mrf.mxu0
        %v2026 = vadd.f32 %v1977, %v2025
        %v2027 = vpop.f32.mrf.mxu0
        %v2028 = vadd.f32 %v1979, %v2027
        %2029 = vmatmul.bf16.gmra.mxu0 %v816
        %v2030 = vpop.f32.mrf.mxu0
        %v2031 = vadd.f32 %v1982, %v2030
        %v2032 = vpop.f32.mrf.mxu0
        %v2033 = vadd.f32 %v1984, %v2032
        %2034 = vmatmul.bf16.gmra.mxu0 %v824
        %v2035 = vpop.f32.mrf.mxu0
        %v2036 = vadd.f32 %v1987, %v2035
        %v2037 = vpop.f32.mrf.mxu0
        %v2038 = vadd.f32 %v1989, %v2037
        %2039 = vmatmul.bf16.gmra.mxu0 %v832
        %v2040 = vpop.f32.mrf.mxu0
        %v2041 = vadd.f32 %v1992, %v2040
        %v2042 = vpop.f32.mrf.mxu0
        %v2043 = vadd.f32 %v1994, %v2042
        %2044 = vmatmul.bf16.gmra.mxu0 %v840
        %v2045 = vpop.f32.mrf.mxu0
        %v2046 = vadd.f32 %v1997, %v2045
        %v2047 = vpop.f32.mrf.mxu0
        %v2048 = vadd.f32 %v1999, %v2047
        %2049 = vmatmul.bf16.gmra.mxu0 %v848
        %v2050 = vpop.f32.mrf.mxu0
        %v2051 = vadd.f32 %v2002, %v2050
        %v2052 = vpop.f32.mrf.mxu0
        %v2053 = vadd.f32 %v2004, %v2052
        %2054 = vmatmul.bf16.gmra.mxu0 %v856
        %v2055 = vpop.f32.mrf.mxu0
        %v2056 = vadd.f32 %v2007, %v2055
        %v2057 = vpop.f32.mrf.mxu0
        %v2058 = vadd.f32 %v2009, %v2057
        %2059 = vmatmul.bf16.gmra.mxu0 %v864
        %v2060 = vpop.f32.mrf.mxu0
        %v2061 = vadd.f32 %v2012, %v2060
        %v2062 = vpop.f32.mrf.mxu0
        %v2063 = vadd.f32 %v2014, %v2062
        %2064 = vdwg.mxu0
        %2065 = vmatpush.bf16.msra.mxu0 %v1366
        %2066 = vmatpush.bf16.msra.mxu0 %v1364
        %2067 = vmatpush.bf16.msra.mxu0 %v1362
        %2068 = vmatpush.bf16.msra.mxu0 %v1360
        %2069 = vmatpush.bf16.msra.mxu0 %v1358
        %2070 = vmatpush.bf16.msra.mxu0 %v1356
        %2071 = vmatpush.bf16.msra.mxu0 %v1354
        %2072 = vmatpush.bf16.msra.mxu0 %v1352
        %2073 = vmatmul.bf16.gmra.mxu0 %v809
        %v2074 = vpop.f32.mrf.mxu0
        %v2075 = vadd.f32 %v2026, %v2074
        %v2076 = vpop.f32.mrf.mxu0
        %v2077 = vadd.f32 %v2028, %v2076
        %2078 = vmatmul.bf16.gmra.mxu0 %v817
        %v2079 = vpop.f32.mrf.mxu0
        %v2080 = vadd.f32 %v2031, %v2079
        %v2081 = vpop.f32.mrf.mxu0
        %v2082 = vadd.f32 %v2033, %v2081
        %2083 = vmatmul.bf16.gmra.mxu0 %v825
        %v2084 = vpop.f32.mrf.mxu0
        %v2085 = vadd.f32 %v2036, %v2084
        %v2086 = vpop.f32.mrf.mxu0
        %v2087 = vadd.f32 %v2038, %v2086
        %2088 = vmatmul.bf16.gmra.mxu0 %v833
        %v2089 = vpop.f32.mrf.mxu0
        %v2090 = vadd.f32 %v2041, %v2089
        %v2091 = vpop.f32.mrf.mxu0
        %v2092 = vadd.f32 %v2043, %v2091
        %2093 = vmatmul.bf16.gmra.mxu0 %v841
        %v2094 = vpop.f32.mrf.mxu0
        %v2095 = vadd.f32 %v2046, %v2094
        %v2096 = vpop.f32.mrf.mxu0
        %v2097 = vadd.f32 %v2048, %v2096
        %2098 = vmatmul.bf16.gmra.mxu0 %v849
        %v2099 = vpop.f32.mrf.mxu0
        %v2100 = vadd.f32 %v2051, %v2099
        %v2101 = vpop.f32.mrf.mxu0
        %v2102 = vadd.f32 %v2053, %v2101
        %2103 = vmatmul.bf16.gmra.mxu0 %v857
        %v2104 = vpop.f32.mrf.mxu0
        %v2105 = vadd.f32 %v2056, %v2104
        %v2106 = vpop.f32.mrf.mxu0
        %v2107 = vadd.f32 %v2058, %v2106
        %2108 = vmatmul.bf16.gmra.mxu0 %v865
        %v2109 = vpop.f32.mrf.mxu0
        %v2110 = vadd.f32 %v2061, %v2109
        %v2111 = vpop.f32.mrf.mxu0
        %v2112 = vadd.f32 %v2063, %v2111
        %2113 = vdwg.mxu0
        %2114 = vmatpush.bf16.msra.mxu0 %v1382
        %2115 = vmatpush.bf16.msra.mxu0 %v1380
        %2116 = vmatpush.bf16.msra.mxu0 %v1378
        %2117 = vmatpush.bf16.msra.mxu0 %v1376
        %2118 = vmatpush.bf16.msra.mxu0 %v1374
        %2119 = vmatpush.bf16.msra.mxu0 %v1372
        %2120 = vmatpush.bf16.msra.mxu0 %v1370
        %2121 = vmatpush.bf16.msra.mxu0 %v1368
        %2122 = vmatmul.bf16.gmra.mxu0 %v810
        %v2123 = vpop.f32.mrf.mxu0
        %v2124 = vadd.f32 %v2075, %v2123
        %v2125 = vpop.f32.mrf.mxu0
        %v2126 = vadd.f32 %v2077, %v2125
        %2127 = vmatmul.bf16.gmra.mxu0 %v818
        %v2128 = vpop.f32.mrf.mxu0
        %v2129 = vadd.f32 %v2080, %v2128
        %v2130 = vpop.f32.mrf.mxu0
        %v2131 = vadd.f32 %v2082, %v2130
        %2132 = vmatmul.bf16.gmra.mxu0 %v826
        %v2133 = vpop.f32.mrf.mxu0
        %v2134 = vadd.f32 %v2085, %v2133
        %v2135 = vpop.f32.mrf.mxu0
        %v2136 = vadd.f32 %v2087, %v2135
        %2137 = vmatmul.bf16.gmra.mxu0 %v834
        %v2138 = vpop.f32.mrf.mxu0
        %v2139 = vadd.f32 %v2090, %v2138
        %v2140 = vpop.f32.mrf.mxu0
        %v2141 = vadd.f32 %v2092, %v2140
        %2142 = vmatmul.bf16.gmra.mxu0 %v842
        %v2143 = vpop.f32.mrf.mxu0
        %v2144 = vadd.f32 %v2095, %v2143
        %v2145 = vpop.f32.mrf.mxu0
        %v2146 = vadd.f32 %v2097, %v2145
        %2147 = vmatmul.bf16.gmra.mxu0 %v850
        %v2148 = vpop.f32.mrf.mxu0
        %v2149 = vadd.f32 %v2100, %v2148
        %v2150 = vpop.f32.mrf.mxu0
        %v2151 = vadd.f32 %v2102, %v2150
        %2152 = vmatmul.bf16.gmra.mxu0 %v858
        %v2153 = vpop.f32.mrf.mxu0
        %v2154 = vadd.f32 %v2105, %v2153
        %v2155 = vpop.f32.mrf.mxu0
        %v2156 = vadd.f32 %v2107, %v2155
        %2157 = vmatmul.bf16.gmra.mxu0 %v866
        %v2158 = vpop.f32.mrf.mxu0
        %v2159 = vadd.f32 %v2110, %v2158
        %v2160 = vpop.f32.mrf.mxu0
        %v2161 = vadd.f32 %v2112, %v2160
        %2162 = vdwg.mxu0
        %2163 = vmatpush.bf16.msra.mxu0 %v1398
        %2164 = vmatpush.bf16.msra.mxu0 %v1396
        %2165 = vmatpush.bf16.msra.mxu0 %v1394
        %2166 = vmatpush.bf16.msra.mxu0 %v1392
        %2167 = vmatpush.bf16.msra.mxu0 %v1390
        %2168 = vmatpush.bf16.msra.mxu0 %v1388
        %2169 = vmatpush.bf16.msra.mxu0 %v1386
        %2170 = vmatpush.bf16.msra.mxu0 %v1384
        %2171 = vmatmul.bf16.gmra.mxu0 %v811
        %v2172 = vpop.f32.mrf.mxu0
        %v2173 = vadd.f32 %v2124, %v2172
        %v2174 = vpop.f32.mrf.mxu0
        %v2175 = vadd.f32 %v2126, %v2174
        %2176 = vmatmul.bf16.gmra.mxu0 %v819
        %v2177 = vpop.f32.mrf.mxu0
        %v2178 = vadd.f32 %v2129, %v2177
        %v2179 = vpop.f32.mrf.mxu0
        %v2180 = vadd.f32 %v2131, %v2179
        %2181 = vmatmul.bf16.gmra.mxu0 %v827
        %v2182 = vpop.f32.mrf.mxu0
        %v2183 = vadd.f32 %v2134, %v2182
        %v2184 = vpop.f32.mrf.mxu0
        %v2185 = vadd.f32 %v2136, %v2184
        %2186 = vmatmul.bf16.gmra.mxu0 %v835
        %v2187 = vpop.f32.mrf.mxu0
        %v2188 = vadd.f32 %v2139, %v2187
        %v2189 = vpop.f32.mrf.mxu0
        %v2190 = vadd.f32 %v2141, %v2189
        %2191 = vmatmul.bf16.gmra.mxu0 %v843
        %v2192 = vpop.f32.mrf.mxu0
        %v2193 = vadd.f32 %v2144, %v2192
        %v2194 = vpop.f32.mrf.mxu0
        %v2195 = vadd.f32 %v2146, %v2194
        %2196 = vmatmul.bf16.gmra.mxu0 %v851
        %v2197 = vpop.f32.mrf.mxu0
        %v2198 = vadd.f32 %v2149, %v2197
        %v2199 = vpop.f32.mrf.mxu0
        %v2200 = vadd.f32 %v2151, %v2199
        %2201 = vmatmul.bf16.gmra.mxu0 %v859
        %v2202 = vpop.f32.mrf.mxu0
        %v2203 = vadd.f32 %v2154, %v2202
        %v2204 = vpop.f32.mrf.mxu0
        %v2205 = vadd.f32 %v2156, %v2204
        %2206 = vmatmul.bf16.gmra.mxu0 %v867
        %v2207 = vpop.f32.mrf.mxu0
        %v2208 = vadd.f32 %v2159, %v2207
        %v2209 = vpop.f32.mrf.mxu0
        %v2210 = vadd.f32 %v2161, %v2209
        %2211 = vdwg.mxu0
        %2212 = vmatpush.bf16.msra.mxu0 %v1414
        %2213 = vmatpush.bf16.msra.mxu0 %v1412
        %2214 = vmatpush.bf16.msra.mxu0 %v1410
        %2215 = vmatpush.bf16.msra.mxu0 %v1408
        %2216 = vmatpush.bf16.msra.mxu0 %v1406
        %2217 = vmatpush.bf16.msra.mxu0 %v1404
        %2218 = vmatpush.bf16.msra.mxu0 %v1402
        %2219 = vmatpush.bf16.msra.mxu0 %v1400
        %2220 = vmatmul.bf16.gmra.mxu0 %v812
        %v2221 = vpop.f32.mrf.mxu0
        %v2222 = vadd.f32 %v2173, %v2221
        %v2223 = vpop.f32.mrf.mxu0
        %v2224 = vadd.f32 %v2175, %v2223
        %2225 = vmatmul.bf16.gmra.mxu0 %v820
        %v2226 = vpop.f32.mrf.mxu0
        %v2227 = vadd.f32 %v2178, %v2226
        %v2228 = vpop.f32.mrf.mxu0
        %v2229 = vadd.f32 %v2180, %v2228
        %2230 = vmatmul.bf16.gmra.mxu0 %v828
        %v2231 = vpop.f32.mrf.mxu0
        %v2232 = vadd.f32 %v2183, %v2231
        %v2233 = vpop.f32.mrf.mxu0
        %v2234 = vadd.f32 %v2185, %v2233
        %2235 = vmatmul.bf16.gmra.mxu0 %v836
        %v2236 = vpop.f32.mrf.mxu0
        %v2237 = vadd.f32 %v2188, %v2236
        %v2238 = vpop.f32.mrf.mxu0
        %v2239 = vadd.f32 %v2190, %v2238
        %2240 = vmatmul.bf16.gmra.mxu0 %v844
        %v2241 = vpop.f32.mrf.mxu0
        %v2242 = vadd.f32 %v2193, %v2241
        %v2243 = vpop.f32.mrf.mxu0
        %v2244 = vadd.f32 %v2195, %v2243
        %2245 = vmatmul.bf16.gmra.mxu0 %v852
        %v2246 = vpop.f32.mrf.mxu0
        %v2247 = vadd.f32 %v2198, %v2246
        %v2248 = vpop.f32.mrf.mxu0
        %v2249 = vadd.f32 %v2200, %v2248
        %2250 = vmatmul.bf16.gmra.mxu0 %v860
        %v2251 = vpop.f32.mrf.mxu0
        %v2252 = vadd.f32 %v2203, %v2251
        %v2253 = vpop.f32.mrf.mxu0
        %v2254 = vadd.f32 %v2205, %v2253
        %2255 = vmatmul.bf16.gmra.mxu0 %v868
        %v2256 = vpop.f32.mrf.mxu0
        %v2257 = vadd.f32 %v2208, %v2256
        %v2258 = vpop.f32.mrf.mxu0
        %v2259 = vadd.f32 %v2210, %v2258
        %2260 = vdwg.mxu0
        %2261 = vmatpush.bf16.msra.mxu0 %v1430
        %2262 = vmatpush.bf16.msra.mxu0 %v1428
        %2263 = vmatpush.bf16.msra.mxu0 %v1426
        %2264 = vmatpush.bf16.msra.mxu0 %v1424
        %2265 = vmatpush.bf16.msra.mxu0 %v1422
        %2266 = vmatpush.bf16.msra.mxu0 %v1420
        %2267 = vmatpush.bf16.msra.mxu0 %v1418
        %2268 = vmatpush.bf16.msra.mxu0 %v1416
        %2269 = vmatmul.bf16.gmra.mxu0 %v813
        %v2270 = vpop.f32.mrf.mxu0
        %v2271 = vadd.f32 %v2222, %v2270
        %v2272 = vpop.f32.mrf.mxu0
        %v2273 = vadd.f32 %v2224, %v2272
        %2274 = vmatmul.bf16.gmra.mxu0 %v821
        %v2275 = vpop.f32.mrf.mxu0
        %v2276 = vadd.f32 %v2227, %v2275
        %v2277 = vpop.f32.mrf.mxu0
        %v2278 = vadd.f32 %v2229, %v2277
        %2279 = vmatmul.bf16.gmra.mxu0 %v829
        %v2280 = vpop.f32.mrf.mxu0
        %v2281 = vadd.f32 %v2232, %v2280
        %v2282 = vpop.f32.mrf.mxu0
        %v2283 = vadd.f32 %v2234, %v2282
        %2284 = vmatmul.bf16.gmra.mxu0 %v837
        %v2285 = vpop.f32.mrf.mxu0
        %v2286 = vadd.f32 %v2237, %v2285
        %v2287 = vpop.f32.mrf.mxu0
        %v2288 = vadd.f32 %v2239, %v2287
        %2289 = vmatmul.bf16.gmra.mxu0 %v845
        %v2290 = vpop.f32.mrf.mxu0
        %v2291 = vadd.f32 %v2242, %v2290
        %v2292 = vpop.f32.mrf.mxu0
        %v2293 = vadd.f32 %v2244, %v2292
        %2294 = vmatmul.bf16.gmra.mxu0 %v853
        %v2295 = vpop.f32.mrf.mxu0
        %v2296 = vadd.f32 %v2247, %v2295
        %v2297 = vpop.f32.mrf.mxu0
        %v2298 = vadd.f32 %v2249, %v2297
        %2299 = vmatmul.bf16.gmra.mxu0 %v861
        %v2300 = vpop.f32.mrf.mxu0
        %v2301 = vadd.f32 %v2252, %v2300
        %v2302 = vpop.f32.mrf.mxu0
        %v2303 = vadd.f32 %v2254, %v2302
        %2304 = vmatmul.bf16.gmra.mxu0 %v869
        %v2305 = vpop.f32.mrf.mxu0
        %v2306 = vadd.f32 %v2257, %v2305
        %v2307 = vpop.f32.mrf.mxu0
        %v2308 = vadd.f32 %v2259, %v2307
        %2309 = vdwg.mxu0
        %2310 = vmatpush.bf16.msra.mxu0 %v1446
        %2311 = vmatpush.bf16.msra.mxu0 %v1444
        %2312 = vmatpush.bf16.msra.mxu0 %v1442
        %2313 = vmatpush.bf16.msra.mxu0 %v1440
        %2314 = vmatpush.bf16.msra.mxu0 %v1438
        %2315 = vmatpush.bf16.msra.mxu0 %v1436
        %2316 = vmatpush.bf16.msra.mxu0 %v1434
        %2317 = vmatpush.bf16.msra.mxu0 %v1432
        %2318 = vmatmul.bf16.gmra.mxu0 %v814
        %v2319 = vpop.f32.mrf.mxu0
        %v2320 = vadd.f32 %v2271, %v2319
        %v2321 = vpop.f32.mrf.mxu0
        %v2322 = vadd.f32 %v2273, %v2321
        %2323 = vmatmul.bf16.gmra.mxu0 %v822
        %v2324 = vpop.f32.mrf.mxu0
        %v2325 = vadd.f32 %v2276, %v2324
        %v2326 = vpop.f32.mrf.mxu0
        %v2327 = vadd.f32 %v2278, %v2326
        %2328 = vmatmul.bf16.gmra.mxu0 %v830
        %v2329 = vpop.f32.mrf.mxu0
        %v2330 = vadd.f32 %v2281, %v2329
        %v2331 = vpop.f32.mrf.mxu0
        %v2332 = vadd.f32 %v2283, %v2331
        %2333 = vmatmul.bf16.gmra.mxu0 %v838
        %v2334 = vpop.f32.mrf.mxu0
        %v2335 = vadd.f32 %v2286, %v2334
        %v2336 = vpop.f32.mrf.mxu0
        %v2337 = vadd.f32 %v2288, %v2336
        %2338 = vmatmul.bf16.gmra.mxu0 %v846
        %v2339 = vpop.f32.mrf.mxu0
        %v2340 = vadd.f32 %v2291, %v2339
        %v2341 = vpop.f32.mrf.mxu0
        %v2342 = vadd.f32 %v2293, %v2341
        %2343 = vmatmul.bf16.gmra.mxu0 %v854
        %v2344 = vpop.f32.mrf.mxu0
        %v2345 = vadd.f32 %v2296, %v2344
        %v2346 = vpop.f32.mrf.mxu0
        %v2347 = vadd.f32 %v2298, %v2346
        %2348 = vmatmul.bf16.gmra.mxu0 %v862
        %v2349 = vpop.f32.mrf.mxu0
        %v2350 = vadd.f32 %v2301, %v2349
        %v2351 = vpop.f32.mrf.mxu0
        %v2352 = vadd.f32 %v2303, %v2351
        %2353 = vmatmul.bf16.gmra.mxu0 %v870
        %v2354 = vpop.f32.mrf.mxu0
        %v2355 = vadd.f32 %v2306, %v2354
        %v2356 = vpop.f32.mrf.mxu0
        %v2357 = vadd.f32 %v2308, %v2356
        %2358 = vdwg.mxu0
        %v2359 = vadd.f32 %v391, %v1928
        %v2360 = vadd.f32 %v392, %v2320
        %v2361 = vadd.f32 %v393, %v1930
        %v2362 = vadd.f32 %v394, %v2322
        %v2363 = vadd.f32 %v395, %v1933
        %v2364 = vadd.f32 %v396, %v2325
        %v2365 = vadd.f32 %v397, %v1935
        %v2366 = vadd.f32 %v398, %v2327
        %v2367 = vadd.f32 %v399, %v1938
        %v2368 = vadd.f32 %v400, %v2330
        %v2369 = vadd.f32 %v401, %v1940
        %v2370 = vadd.f32 %v402, %v2332
        %v2371 = vadd.f32 %v403, %v1943
        %v2372 = vadd.f32 %v404, %v2335
        %v2373 = vadd.f32 %v405, %v1945
        %v2374 = vadd.f32 %v406, %v2337
        %v2375 = vadd.f32 %v407, %v1948
        %v2376 = vadd.f32 %v408, %v2340
        %v2377 = vadd.f32 %v409, %v1950
        %v2378 = vadd.f32 %v410, %v2342
        %v2379 = vadd.f32 %v411, %v1953
        %v2380 = vadd.f32 %v412, %v2345
        %v2381 = vadd.f32 %v413, %v1955
        %v2382 = vadd.f32 %v414, %v2347
        %v2383 = vadd.f32 %v415, %v1958
        %v2384 = vadd.f32 %v416, %v2350
        %v2385 = vadd.f32 %v417, %v1960
        %v2386 = vadd.f32 %v418, %v2352
        %v2387 = vadd.f32 %v419, %v1963
        %v2388 = vadd.f32 %v420, %v2355
        %v2389 = vadd.f32 %v421, %v1965
        %v2390 = vadd.f32 %v422, %v2357
        %2391 = vst [vmem:[#allocation2] sm:$0xff] %v2359
        %2392 = vst [vmem:[#allocation2 + $0x8] sm:$0xff] %v2360
        %2393 = vst [vmem:[#allocation2 + $0x10] sm:$0xff] %v2361
        %2394 = vst [vmem:[#allocation2 + $0x18] sm:$0xff] %v2362
        %2395 = vst [vmem:[#allocation2 + $0x20] sm:$0xff] %v2363
        %2396 = vst [vmem:[#allocation2 + $0x28] sm:$0xff] %v2364
        %2397 = vst [vmem:[#allocation2 + $0x30] sm:$0xff] %v2365
        %2398 = vst [vmem:[#allocation2 + $0x38] sm:$0xff] %v2366
        %2399 = vst [vmem:[#allocation2 + $0x40] sm:$0xff] %v2367
        %2400 = vst [vmem:[#allocation2 + $0x48] sm:$0xff] %v2368
        %2401 = vst [vmem:[#allocation2 + $0x50] sm:$0xff] %v2369
        %2402 = vst [vmem:[#allocation2 + $0x58] sm:$0xff] %v2370
        %2403 = vst [vmem:[#allocation2 + $0x60] sm:$0xff] %v2371
        %2404 = vst [vmem:[#allocation2 + $0x68] sm:$0xff] %v2372
        %2405 = vst [vmem:[#allocation2 + $0x70] sm:$0xff] %v2373
        %2406 = vst [vmem:[#allocation2 + $0x78] sm:$0xff] %v2374
        %2407 = vst [vmem:[#allocation2 + $0x80] sm:$0xff] %v2375
        %2408 = vst [vmem:[#allocation2 + $0x88] sm:$0xff] %v2376
        %2409 = vst [vmem:[#allocation2 + $0x90] sm:$0xff] %v2377
        %2410 = vst [vmem:[#allocation2 + $0x98] sm:$0xff] %v2378
        %2411 = vst [vmem:[#allocation2 + $0xa0] sm:$0xff] %v2379
        %2412 = vst [vmem:[#allocation2 + $0xa8] sm:$0xff] %v2380
        %2413 = vst [vmem:[#allocation2 + $0xb0] sm:$0xff] %v2381
        %2414 = vst [vmem:[#allocation2 + $0xb8] sm:$0xff] %v2382
        %2415 = vst [vmem:[#allocation2 + $0xc0] sm:$0xff] %v2383
        %2416 = vst [vmem:[#allocation2 + $0xc8] sm:$0xff] %v2384
        %2417 = vst [vmem:[#allocation2 + $0xd0] sm:$0xff] %v2385
        %2418 = vst [vmem:[#allocation2 + $0xd8] sm:$0xff] %v2386
        %2419 = vst [vmem:[#allocation2 + $0xe0] sm:$0xff] %v2387
        %2420 = vst [vmem:[#allocation2 + $0xe8] sm:$0xff] %v2388
        %2421 = vst [vmem:[#allocation2 + $0xf0] sm:$0xff] %v2389
        %2422 = vst [vmem:[#allocation2 + $0xf8] sm:$0xff] %v2390
        %p2423 = scmp.eq.s32.totalorder %s15, 1
        // Predicated region
        $region64: #{discriminator_forward.6} parent=54 // pred_check
          %p2424 = pneg %p2423
        $region65: #{discriminator_forward.6} parent=54 // pred_check_branch
          %2426 = sbr.rel (%p2424) target = $region67
        $region66: #{discriminator_forward.6} parent=54 // pred_region
          %v2427 = vld [vmem:[#allocation2] sm:$0xff]
          %v2428 = vld [vmem:[#allocation2 + $0x8] sm:$0xff]
          %v2429 = vld [vmem:[#allocation2 + $0x10] sm:$0xff]
          %v2430 = vld [vmem:[#allocation2 + $0x18] sm:$0xff]
          %v2431 = vld [vmem:[#allocation2 + $0x20] sm:$0xff]
          %v2432 = vld [vmem:[#allocation2 + $0x28] sm:$0xff]
          %v2433 = vld [vmem:[#allocation2 + $0x30] sm:$0xff]
          %v2434 = vld [vmem:[#allocation2 + $0x38] sm:$0xff]
          %v2435 = vld [vmem:[#allocation2 + $0x40] sm:$0xff]
          %v2436 = vld [vmem:[#allocation2 + $0x48] sm:$0xff]
          %v2437 = vld [vmem:[#allocation2 + $0x50] sm:$0xff]
          %v2438 = vld [vmem:[#allocation2 + $0x58] sm:$0xff]
          %v2439 = vld [vmem:[#allocation2 + $0x60] sm:$0xff]
          %v2440 = vld [vmem:[#allocation2 + $0x68] sm:$0xff]
          %v2441 = vld [vmem:[#allocation2 + $0x70] sm:$0xff]
          %v2442 = vld [vmem:[#allocation2 + $0x78] sm:$0xff]
          %v2443 = vld [vmem:[#allocation2 + $0x80] sm:$0xff]
          %v2444 = vld [vmem:[#allocation2 + $0x88] sm:$0xff]
          %v2445 = vld [vmem:[#allocation2 + $0x90] sm:$0xff]
          %v2446 = vld [vmem:[#allocation2 + $0x98] sm:$0xff]
          %v2447 = vld [vmem:[#allocation2 + $0xa0] sm:$0xff]
          %v2448 = vld [vmem:[#allocation2 + $0xa8] sm:$0xff]
          %v2449 = vld [vmem:[#allocation2 + $0xb0] sm:$0xff]
          %v2450 = vld [vmem:[#allocation2 + $0xb8] sm:$0xff]
          %v2451 = vld [vmem:[#allocation2 + $0xc0] sm:$0xff]
          %v2452 = vld [vmem:[#allocation2 + $0xc8] sm:$0xff]
          %v2453 = vld [vmem:[#allocation2 + $0xd0] sm:$0xff]
          %v2454 = vld [vmem:[#allocation2 + $0xd8] sm:$0xff]
          %v2455 = vld [vmem:[#allocation2 + $0xe0] sm:$0xff]
          %v2456 = vld [vmem:[#allocation2 + $0xe8] sm:$0xff]
          %v2457 = vld [vmem:[#allocation2 + $0xf0] sm:$0xff]
          %v2458 = vld [vmem:[#allocation2 + $0xf8] sm:$0xff]
          %v2459 = vld [vmem:[%s2] sm:$0x3]
          %v2460 = vld [vmem:[%s3] sm:$0x3]
          %v2461 = vadd.f32 %v2427, %v2429
          %v2462 = vadd.f32 %v2461, %v2431
          %v2463 = vadd.f32 %v2462, %v2433
          %v2464 = vadd.f32 %v2463, %v2435
          %v2465 = vadd.f32 %v2464, %v2437
          %v2466 = vadd.f32 %v2465, %v2439
          %v2467 = vadd.f32 %v2466, %v2441
          %v2468 = vadd.f32 %v2467, %v2443
          %v2469 = vadd.f32 %v2468, %v2445
          %v2470 = vadd.f32 %v2469, %v2447
          %v2471 = vadd.f32 %v2470, %v2449
          %v2472 = vadd.f32 %v2471, %v2451
          %v2473 = vadd.f32 %v2472, %v2453
          %v2474 = vadd.f32 %v2473, %v2455
          %v2475 = vadd.f32 %v2474, %v2457
          %v2476 = vrot.slane %v2475, 4
          %v2477 = vadd.f32 %v2475, %v2476
          %v2478 = vrot.slane %v2477, 2
          %v2479 = vadd.f32 %v2477, %v2478
          %v2480 = vrot.slane %v2479, 1
          %v2481 = vadd.f32 %v2479, %v2480
          %v2482 = vadd.f32 %v2428, %v2430
          %v2483 = vadd.f32 %v2482, %v2432
          %v2484 = vadd.f32 %v2483, %v2434
          %v2485 = vadd.f32 %v2484, %v2436
          %v2486 = vadd.f32 %v2485, %v2438
          %v2487 = vadd.f32 %v2486, %v2440
          %v2488 = vadd.f32 %v2487, %v2442
          %v2489 = vadd.f32 %v2488, %v2444
          %v2490 = vadd.f32 %v2489, %v2446
          %v2491 = vadd.f32 %v2490, %v2448
          %v2492 = vadd.f32 %v2491, %v2450
          %v2493 = vadd.f32 %v2492, %v2452
          %v2494 = vadd.f32 %v2493, %v2454
          %v2495 = vadd.f32 %v2494, %v2456
          %v2496 = vadd.f32 %v2495, %v2458
          %v2497 = vrot.slane %v2496, 4
          %v2498 = vadd.f32 %v2496, %v2497
          %v2499 = vrot.slane %v2498, 2
          %v2500 = vadd.f32 %v2498, %v2499
          %v2501 = vrot.slane %v2500, 1
          %v2502 = vadd.f32 %v2500, %v2501
          %v2503 = vmul.f32 %v2481, 0.0078125
          %v2504 = vmul.f32 %v2502, 0.0078125
          %v2505 = vmul.f32 %v2427, %v2427
          %v2506 = vmul.f32 %v2428, %v2428
          %v2507 = vmul.f32 %v2429, %v2429
          %v2508 = vmul.f32 %v2430, %v2430
          %v2509 = vmul.f32 %v2431, %v2431
          %v2510 = vmul.f32 %v2432, %v2432
          %v2511 = vmul.f32 %v2433, %v2433
          %v2512 = vmul.f32 %v2434, %v2434
          %v2513 = vmul.f32 %v2435, %v2435
          %v2514 = vmul.f32 %v2436, %v2436
          %v2515 = vmul.f32 %v2437, %v2437
          %v2516 = vmul.f32 %v2438, %v2438
          %v2517 = vmul.f32 %v2439, %v2439
          %v2518 = vmul.f32 %v2440, %v2440
          %v2519 = vmul.f32 %v2441, %v2441
          %v2520 = vmul.f32 %v2442, %v2442
          %v2521 = vmul.f32 %v2443, %v2443
          %v2522 = vmul.f32 %v2444, %v2444
          %v2523 = vmul.f32 %v2445, %v2445
          %v2524 = vmul.f32 %v2446, %v2446
          %v2525 = vmul.f32 %v2447, %v2447
          %v2526 = vmul.f32 %v2448, %v2448
          %v2527 = vmul.f32 %v2449, %v2449
          %v2528 = vmul.f32 %v2450, %v2450
          %v2529 = vmul.f32 %v2451, %v2451
          %v2530 = vmul.f32 %v2452, %v2452
          %v2531 = vmul.f32 %v2453, %v2453
          %v2532 = vmul.f32 %v2454, %v2454
          %v2533 = vmul.f32 %v2455, %v2455
          %v2534 = vmul.f32 %v2456, %v2456
          %v2535 = vmul.f32 %v2457, %v2457
          %v2536 = vmul.f32 %v2458, %v2458
          %v2537 = vadd.f32 %v2505, %v2507
          %v2538 = vadd.f32 %v2537, %v2509
          %v2539 = vadd.f32 %v2538, %v2511
          %v2540 = vadd.f32 %v2539, %v2513
          %v2541 = vadd.f32 %v2540, %v2515
          %v2542 = vadd.f32 %v2541, %v2517
          %v2543 = vadd.f32 %v2542, %v2519
          %v2544 = vadd.f32 %v2543, %v2521
          %v2545 = vadd.f32 %v2544, %v2523
          %v2546 = vadd.f32 %v2545, %v2525
          %v2547 = vadd.f32 %v2546, %v2527
          %v2548 = vadd.f32 %v2547, %v2529
          %v2549 = vadd.f32 %v2548, %v2531
          %v2550 = vadd.f32 %v2549, %v2533
          %v2551 = vadd.f32 %v2550, %v2535
          %v2552 = vrot.slane %v2551, 4
          %v2553 = vadd.f32 %v2551, %v2552
          %v2554 = vrot.slane %v2553, 2
          %v2555 = vadd.f32 %v2553, %v2554
          %v2556 = vrot.slane %v2555, 1
          %v2557 = vadd.f32 %v2555, %v2556
          %v2558 = vadd.f32 %v2506, %v2508
          %v2559 = vadd.f32 %v2558, %v2510
          %v2560 = vadd.f32 %v2559, %v2512
          %v2561 = vadd.f32 %v2560, %v2514
          %v2562 = vadd.f32 %v2561, %v2516
          %v2563 = vadd.f32 %v2562, %v2518
          %v2564 = vadd.f32 %v2563, %v2520
          %v2565 = vadd.f32 %v2564, %v2522
          %v2566 = vadd.f32 %v2565, %v2524
          %v2567 = vadd.f32 %v2566, %v2526
          %v2568 = vadd.f32 %v2567, %v2528
          %v2569 = vadd.f32 %v2568, %v2530
          %v2570 = vadd.f32 %v2569, %v2532
          %v2571 = vadd.f32 %v2570, %v2534
          %v2572 = vadd.f32 %v2571, %v2536
          %v2573 = vrot.slane %v2572, 4
          %v2574 = vadd.f32 %v2572, %v2573
          %v2575 = vrot.slane %v2574, 2
          %v2576 = vadd.f32 %v2574, %v2575
          %v2577 = vrot.slane %v2576, 1
          %v2578 = vadd.f32 %v2576, %v2577
          %v2579 = vmul.f32 %v2557, 0.0078125
          %v2580 = vmul.f32 %v2578, 0.0078125
          %v2581 = vmul.f32 %v2503, %v2503
          %v2582 = vmul.f32 %v2504, %v2504
          %v2583 = vsub.f32 %v2579, %v2581
          %v2584 = vsub.f32 %v2580, %v2582
          %v2585 = vsub.f32 %v2427, %v2503
          %v2586 = vsub.f32 %v2428, %v2504
          %v2587 = vsub.f32 %v2429, %v2503
          %v2588 = vsub.f32 %v2430, %v2504
          %v2589 = vsub.f32 %v2431, %v2503
          %v2590 = vsub.f32 %v2432, %v2504
          %v2591 = vsub.f32 %v2433, %v2503
          %v2592 = vsub.f32 %v2434, %v2504
          %v2593 = vsub.f32 %v2435, %v2503
          %v2594 = vsub.f32 %v2436, %v2504
          %v2595 = vsub.f32 %v2437, %v2503
          %v2596 = vsub.f32 %v2438, %v2504
          %v2597 = vsub.f32 %v2439, %v2503
          %v2598 = vsub.f32 %v2440, %v2504
          %v2599 = vsub.f32 %v2441, %v2503
          %v2600 = vsub.f32 %v2442, %v2504
          %v2601 = vsub.f32 %v2443, %v2503
          %v2602 = vsub.f32 %v2444, %v2504
          %v2603 = vsub.f32 %v2445, %v2503
          %v2604 = vsub.f32 %v2446, %v2504
          %v2605 = vsub.f32 %v2447, %v2503
          %v2606 = vsub.f32 %v2448, %v2504
          %v2607 = vsub.f32 %v2449, %v2503
          %v2608 = vsub.f32 %v2450, %v2504
          %v2609 = vsub.f32 %v2451, %v2503
          %v2610 = vsub.f32 %v2452, %v2504
          %v2611 = vsub.f32 %v2453, %v2503
          %v2612 = vsub.f32 %v2454, %v2504
          %v2613 = vsub.f32 %v2455, %v2503
          %v2614 = vsub.f32 %v2456, %v2504
          %v2615 = vsub.f32 %v2457, %v2503
          %v2616 = vsub.f32 %v2458, %v2504
          %v2617 = vadd.f32 %v2583, 1e-05
          %v2618 = vadd.f32 %v2584, 1e-05
          %v2619 = vrsqrt.pop %v2617
          %v2620 = vmul.f32 %v2619, %v2617
          %v2621 = vmul.f32 %v2620, %v2619
          %v2622 = vmul.f32 0.5, %v2621
          %v2623 = vsub.f32 1.5, %v2622
          %v2624 = vmul.f32 %v2619, %v2623
          %vm2625 = vweird.f32 %v2617
          %vm2626 = vweird.f32 %v2619
          %vm2627 = vmor %vm2625, %vm2626
          %v2628 = vsel %vm2627, %v2619, %v2624
          %v2629 = vrsqrt.pop %v2618
          %v2630 = vmul.f32 %v2629, %v2618
          %v2631 = vmul.f32 %v2630, %v2629
          %v2632 = vmul.f32 0.5, %v2631
          %v2633 = vsub.f32 1.5, %v2632
          %v2634 = vmul.f32 %v2629, %v2633
          %vm2635 = vweird.f32 %v2618
          %vm2636 = vweird.f32 %v2629
          %vm2637 = vmor %vm2635, %vm2636
          %v2638 = vsel %vm2637, %v2629, %v2634
          %v2639 = vmul.f32 %v2585, %v2628
          %v2640 = vmul.f32 %v2586, %v2638
          %v2641 = vmul.f32 %v2587, %v2628
          %v2642 = vmul.f32 %v2588, %v2638
          %v2643 = vmul.f32 %v2589, %v2628
          %v2644 = vmul.f32 %v2590, %v2638
          %v2645 = vmul.f32 %v2591, %v2628
          %v2646 = vmul.f32 %v2592, %v2638
          %v2647 = vmul.f32 %v2593, %v2628
          %v2648 = vmul.f32 %v2594, %v2638
          %v2649 = vmul.f32 %v2595, %v2628
          %v2650 = vmul.f32 %v2596, %v2638
          %v2651 = vmul.f32 %v2597, %v2628
          %v2652 = vmul.f32 %v2598, %v2638
          %v2653 = vmul.f32 %v2599, %v2628
          %v2654 = vmul.f32 %v2600, %v2638
          %v2655 = vmul.f32 %v2601, %v2628
          %v2656 = vmul.f32 %v2602, %v2638
          %v2657 = vmul.f32 %v2603, %v2628
          %v2658 = vmul.f32 %v2604, %v2638
          %v2659 = vmul.f32 %v2605, %v2628
          %v2660 = vmul.f32 %v2606, %v2638
          %v2661 = vmul.f32 %v2607, %v2628
          %v2662 = vmul.f32 %v2608, %v2638
          %v2663 = vmul.f32 %v2609, %v2628
          %v2664 = vmul.f32 %v2610, %v2638
          %v2665 = vmul.f32 %v2611, %v2628
          %v2666 = vmul.f32 %v2612, %v2638
          %v2667 = vmul.f32 %v2613, %v2628
          %v2668 = vmul.f32 %v2614, %v2638
          %v2669 = vmul.f32 %v2615, %v2628
          %v2670 = vmul.f32 %v2616, %v2638
          %v2672 = vperm.slane %v2459, 0
          %v2673 = vperm.slane %v2459, 1
          %v2676 = vmul.f32 %v2639, %v2672
          %v2677 = vmul.f32 %v2640, %v2673
          %v2678 = vmul.f32 %v2641, %v2672
          %v2679 = vmul.f32 %v2642, %v2673
          %v2680 = vmul.f32 %v2643, %v2672
          %v2681 = vmul.f32 %v2644, %v2673
          %v2682 = vmul.f32 %v2645, %v2672
          %v2683 = vmul.f32 %v2646, %v2673
          %v2684 = vmul.f32 %v2647, %v2672
          %v2685 = vmul.f32 %v2648, %v2673
          %v2686 = vmul.f32 %v2649, %v2672
          %v2687 = vmul.f32 %v2650, %v2673
          %v2688 = vmul.f32 %v2651, %v2672
          %v2689 = vmul.f32 %v2652, %v2673
          %v2690 = vmul.f32 %v2653, %v2672
          %v2691 = vmul.f32 %v2654, %v2673
          %v2692 = vmul.f32 %v2655, %v2672
          %v2693 = vmul.f32 %v2656, %v2673
          %v2694 = vmul.f32 %v2657, %v2672
          %v2695 = vmul.f32 %v2658, %v2673
          %v2696 = vmul.f32 %v2659, %v2672
          %v2697 = vmul.f32 %v2660, %v2673
          %v2698 = vmul.f32 %v2661, %v2672
          %v2699 = vmul.f32 %v2662, %v2673
          %v2700 = vmul.f32 %v2663, %v2672
          %v2701 = vmul.f32 %v2664, %v2673
          %v2702 = vmul.f32 %v2665, %v2672
          %v2703 = vmul.f32 %v2666, %v2673
          %v2704 = vmul.f32 %v2667, %v2672
          %v2705 = vmul.f32 %v2668, %v2673
          %v2706 = vmul.f32 %v2669, %v2672
          %v2707 = vmul.f32 %v2670, %v2673
          %v2709 = vperm.slane %v2460, 0
          %v2710 = vperm.slane %v2460, 1
          %v2713 = vadd.f32 %v2676, %v2709
          %v2714 = vadd.f32 %v2677, %v2710
          %v2715 = vadd.f32 %v2678, %v2709
          %v2716 = vadd.f32 %v2679, %v2710
          %v2717 = vadd.f32 %v2680, %v2709
          %v2718 = vadd.f32 %v2681, %v2710
          %v2719 = vadd.f32 %v2682, %v2709
          %v2720 = vadd.f32 %v2683, %v2710
          %v2721 = vadd.f32 %v2684, %v2709
          %v2722 = vadd.f32 %v2685, %v2710
          %v2723 = vadd.f32 %v2686, %v2709
          %v2724 = vadd.f32 %v2687, %v2710
          %v2725 = vadd.f32 %v2688, %v2709
          %v2726 = vadd.f32 %v2689, %v2710
          %v2727 = vadd.f32 %v2690, %v2709
          %v2728 = vadd.f32 %v2691, %v2710
          %v2729 = vadd.f32 %v2692, %v2709
          %v2730 = vadd.f32 %v2693, %v2710
          %v2731 = vadd.f32 %v2694, %v2709
          %v2732 = vadd.f32 %v2695, %v2710
          %v2733 = vadd.f32 %v2696, %v2709
          %v2734 = vadd.f32 %v2697, %v2710
          %v2735 = vadd.f32 %v2698, %v2709
          %v2736 = vadd.f32 %v2699, %v2710
          %v2737 = vadd.f32 %v2700, %v2709
          %v2738 = vadd.f32 %v2701, %v2710
          %v2739 = vadd.f32 %v2702, %v2709
          %v2740 = vadd.f32 %v2703, %v2710
          %v2741 = vadd.f32 %v2704, %v2709
          %v2742 = vadd.f32 %v2705, %v2710
          %v2743 = vadd.f32 %v2706, %v2709
          %v2744 = vadd.f32 %v2707, %v2710
          %vm2745 = vcmp.gt.f32.partialorder %v2713, 0.0
          %vm2746 = vcmp.gt.f32.partialorder %v2714, 0.0
          %vm2747 = vcmp.gt.f32.partialorder %v2715, 0.0
          %vm2748 = vcmp.gt.f32.partialorder %v2716, 0.0
          %vm2749 = vcmp.gt.f32.partialorder %v2717, 0.0
          %vm2750 = vcmp.gt.f32.partialorder %v2718, 0.0
          %vm2751 = vcmp.gt.f32.partialorder %v2719, 0.0
          %vm2752 = vcmp.gt.f32.partialorder %v2720, 0.0
          %vm2753 = vcmp.gt.f32.partialorder %v2721, 0.0
          %vm2754 = vcmp.gt.f32.partialorder %v2722, 0.0
          %vm2755 = vcmp.gt.f32.partialorder %v2723, 0.0
          %vm2756 = vcmp.gt.f32.partialorder %v2724, 0.0
          %vm2757 = vcmp.gt.f32.partialorder %v2725, 0.0
          %vm2758 = vcmp.gt.f32.partialorder %v2726, 0.0
          %vm2759 = vcmp.gt.f32.partialorder %v2727, 0.0
          %vm2760 = vcmp.gt.f32.partialorder %v2728, 0.0
          %vm2761 = vcmp.gt.f32.partialorder %v2729, 0.0
          %vm2762 = vcmp.gt.f32.partialorder %v2730, 0.0
          %vm2763 = vcmp.gt.f32.partialorder %v2731, 0.0
          %vm2764 = vcmp.gt.f32.partialorder %v2732, 0.0
          %vm2765 = vcmp.gt.f32.partialorder %v2733, 0.0
          %vm2766 = vcmp.gt.f32.partialorder %v2734, 0.0
          %vm2767 = vcmp.gt.f32.partialorder %v2735, 0.0
          %vm2768 = vcmp.gt.f32.partialorder %v2736, 0.0
          %vm2769 = vcmp.gt.f32.partialorder %v2737, 0.0
          %vm2770 = vcmp.gt.f32.partialorder %v2738, 0.0
          %vm2771 = vcmp.gt.f32.partialorder %v2739, 0.0
          %vm2772 = vcmp.gt.f32.partialorder %v2740, 0.0
          %vm2773 = vcmp.gt.f32.partialorder %v2741, 0.0
          %vm2774 = vcmp.gt.f32.partialorder %v2742, 0.0
          %vm2775 = vcmp.gt.f32.partialorder %v2743, 0.0
          %vm2776 = vcmp.gt.f32.partialorder %v2744, 0.0
          %v2777 = vmul.f32 %v2713, 0.2
          %v2778 = vmul.f32 %v2714, 0.2
          %v2779 = vmul.f32 %v2715, 0.2
          %v2780 = vmul.f32 %v2716, 0.2
          %v2781 = vmul.f32 %v2717, 0.2
          %v2782 = vmul.f32 %v2718, 0.2
          %v2783 = vmul.f32 %v2719, 0.2
          %v2784 = vmul.f32 %v2720, 0.2
          %v2785 = vmul.f32 %v2721, 0.2
          %v2786 = vmul.f32 %v2722, 0.2
          %v2787 = vmul.f32 %v2723, 0.2
          %v2788 = vmul.f32 %v2724, 0.2
          %v2789 = vmul.f32 %v2725, 0.2
          %v2790 = vmul.f32 %v2726, 0.2
          %v2791 = vmul.f32 %v2727, 0.2
          %v2792 = vmul.f32 %v2728, 0.2
          %v2793 = vmul.f32 %v2729, 0.2
          %v2794 = vmul.f32 %v2730, 0.2
          %v2795 = vmul.f32 %v2731, 0.2
          %v2796 = vmul.f32 %v2732, 0.2
          %v2797 = vmul.f32 %v2733, 0.2
          %v2798 = vmul.f32 %v2734, 0.2
          %v2799 = vmul.f32 %v2735, 0.2
          %v2800 = vmul.f32 %v2736, 0.2
          %v2801 = vmul.f32 %v2737, 0.2
          %v2802 = vmul.f32 %v2738, 0.2
          %v2803 = vmul.f32 %v2739, 0.2
          %v2804 = vmul.f32 %v2740, 0.2
          %v2805 = vmul.f32 %v2741, 0.2
          %v2806 = vmul.f32 %v2742, 0.2
          %v2807 = vmul.f32 %v2743, 0.2
          %v2808 = vmul.f32 %v2744, 0.2
          %v2809 = vsel %vm2745, %v2713, %v2777
          %v2810 = vsel %vm2746, %v2714, %v2778
          %v2811 = vsel %vm2747, %v2715, %v2779
          %v2812 = vsel %vm2748, %v2716, %v2780
          %v2813 = vsel %vm2749, %v2717, %v2781
          %v2814 = vsel %vm2750, %v2718, %v2782
          %v2815 = vsel %vm2751, %v2719, %v2783
          %v2816 = vsel %vm2752, %v2720, %v2784
          %v2817 = vsel %vm2753, %v2721, %v2785
          %v2818 = vsel %vm2754, %v2722, %v2786
          %v2819 = vsel %vm2755, %v2723, %v2787
          %v2820 = vsel %vm2756, %v2724, %v2788
          %v2821 = vsel %vm2757, %v2725, %v2789
          %v2822 = vsel %vm2758, %v2726, %v2790
          %v2823 = vsel %vm2759, %v2727, %v2791
          %v2824 = vsel %vm2760, %v2728, %v2792
          %v2825 = vsel %vm2761, %v2729, %v2793
          %v2826 = vsel %vm2762, %v2730, %v2794
          %v2827 = vsel %vm2763, %v2731, %v2795
          %v2828 = vsel %vm2764, %v2732, %v2796
          %v2829 = vsel %vm2765, %v2733, %v2797
          %v2830 = vsel %vm2766, %v2734, %v2798
          %v2831 = vsel %vm2767, %v2735, %v2799
          %v2832 = vsel %vm2768, %v2736, %v2800
          %v2833 = vsel %vm2769, %v2737, %v2801
          %v2834 = vsel %vm2770, %v2738, %v2802
          %v2835 = vsel %vm2771, %v2739, %v2803
          %v2836 = vsel %vm2772, %v2740, %v2804
          %v2837 = vsel %vm2773, %v2741, %v2805
          %v2838 = vsel %vm2774, %v2742, %v2806
          %v2839 = vsel %vm2775, %v2743, %v2807
          %v2840 = vsel %vm2776, %v2744, %v2808
          %v2841 = vpack.c.bf16 %v2810, %v2809
          %v2842 = vpack.c.bf16 %v2812, %v2811
          %v2843 = vpack.c.bf16 %v2814, %v2813
          %v2844 = vpack.c.bf16 %v2816, %v2815
          %v2845 = vpack.c.bf16 %v2818, %v2817
          %v2846 = vpack.c.bf16 %v2820, %v2819
          %v2847 = vpack.c.bf16 %v2822, %v2821
          %v2848 = vpack.c.bf16 %v2824, %v2823
          %v2849 = vpack.c.bf16 %v2826, %v2825
          %v2850 = vpack.c.bf16 %v2828, %v2827
          %v2851 = vpack.c.bf16 %v2830, %v2829
          %v2852 = vpack.c.bf16 %v2832, %v2831
          %v2853 = vpack.c.bf16 %v2834, %v2833
          %v2854 = vpack.c.bf16 %v2836, %v2835
          %v2855 = vpack.c.bf16 %v2838, %v2837
          %v2856 = vpack.c.bf16 %v2840, %v2839
          %2857 = vst [vmem:[%s4] sm:$0xff] %v2841
          %2858 = vst [vmem:[%s4 + $0x8] sm:$0xff] %v2842
          %2859 = vst [vmem:[%s4 + $0x10] sm:$0xff] %v2843
          %2860 = vst [vmem:[%s4 + $0x18] sm:$0xff] %v2844
          %2861 = vst [vmem:[%s4 + $0x20] sm:$0xff] %v2845
          %2862 = vst [vmem:[%s4 + $0x28] sm:$0xff] %v2846
          %2863 = vst [vmem:[%s4 + $0x30] sm:$0xff] %v2847
          %2864 = vst [vmem:[%s4 + $0x38] sm:$0xff] %v2848
          %2865 = vst [vmem:[%s4 + $0x40] sm:$0xff] %v2849
          %2866 = vst [vmem:[%s4 + $0x48] sm:$0xff] %v2850
          %2867 = vst [vmem:[%s4 + $0x50] sm:$0xff] %v2851
          %2868 = vst [vmem:[%s4 + $0x58] sm:$0xff] %v2852
          %2869 = vst [vmem:[%s4 + $0x60] sm:$0xff] %v2853
          %2870 = vst [vmem:[%s4 + $0x68] sm:$0xff] %v2854
          %2871 = vst [vmem:[%s4 + $0x70] sm:$0xff] %v2855
          %2872 = vst [vmem:[%s4 + $0x78] sm:$0xff] %v2856
        $region67: #{discriminator_forward.6} parent=54 // pred_fallthru
          _
        // Predicated region
        $region68: #{discriminator_forward.6} parent=54 // pred_check
          %p2873 = pneg %p122
        $region69: #{discriminator_forward.6} parent=54 // pred_check_branch
          %2875 = sbr.rel (%p2873) target = $region71
        $region70: #{discriminator_forward.6} parent=54 // pred_region
          _
        $region71: #{discriminator_forward.6} parent=54 // pred_fallthru
          _
        // Predicated region
        $region72: #{discriminator_forward.6} parent=54 // pred_check
          %p2876 = pneg %p122
        $region73: #{discriminator_forward.6} parent=54 // pred_check_branch
          %2878 = sbr.rel (%p2876) target = $region75
        $region74: #{discriminator_forward.6} parent=54 // pred_region
          _
        $region75: #{discriminator_forward.6} parent=54 // pred_fallthru
          _
      $region55: #{discriminator_forward.6} parent=5 // pred_fallthru
        _
      %p2879 = scmp.le.s32.totalorder 2, %s10
      // Predicated region
      $region76: #{discriminator_forward.6} parent=5 // pred_check
        %p2880 = pneg %p2879
      $region77: #{discriminator_forward.6} parent=5 // pred_check_branch
        %2882 = sbr.rel (%p2880) target = $region79
      $region78: #{discriminator_forward.6} parent=5 // pred_region
        %s2883 = ssub.s32 %s10, 2
      $region79: #{discriminator_forward.6} parent=5 // pred_fallthru
        _
    $region6: #{discriminator_forward.6} parent=1 // loop_footer
      %s14 = sadd.s32 1, %s10
    $region7: #{discriminator_forward.6} parent=1 // loop_footer_branch
      %9 = sbr.rel target = $region3
    $region8: #{discriminator_forward.6} parent=1 // loop_exit
      _

// kernel: discriminator_forward.5
$region0: #{discriminator_forward.5}
  #allocation0 [shape = 'u32[]', space=smem, size = 0x4, offset = 0x4, fixed_abs, tag = 'smem constant byte address 0x4 - core index']
  #allocation1 [shape = 'u32[72,128]{1,0:T(1,128)}', space=vmem, size = 0x9000, scoped, tag = 'internal scratch']
  #allocation2 [shape = 'f32[512,128]{1,0:T(8,128)}', space=vmem, size = 0x40000, scoped, tag = 'scratch operand']
  %s0 = inlined_call_operand.vmem [shape: bf16[512,1024], index: 0, kind: input, shape index: {}]
  %s1 = inlined_call_operand.vmem [shape: bf16[1024,128], index: 1, kind: input, shape index: {}]
  %s2 = inlined_call_operand.vmem [shape: f32[1,128], index: 2, kind: input, shape index: {}]
  %s3 = inlined_call_operand.vmem [shape: f32[1,128], index: 3, kind: input, shape index: {}]
  %s4 = inlined_call_operand.vmem [shape: bf16[512,128], index: 4, kind: output, shape index: {}]
  %s5 = sld [smem:[#allocation0]]
  $region34: #{discriminator_forward.5} parent=0
    _
  %s7 = ssub.s32 1, %s5
  %s8 = scalar_select 0, %s7, %s5
  // Predicated region
  $region2: #{discriminator_forward.5} parent=0 // pred_check
    _
  $region3: #{discriminator_forward.5} parent=0 // pred_check_branch
    %10 = sbr.rel (0) target = $region5
  $region4: #{discriminator_forward.5} parent=0 // pred_region
    _
  $region5: #{discriminator_forward.5} parent=0 // pred_fallthru
    _
  // Predicated region
  $region6: #{discriminator_forward.5} parent=0 // pred_check
    _
  $region7: #{discriminator_forward.5} parent=0 // pred_check_branch
    %12 = sbr.rel (0) target = $region9
  $region8: #{discriminator_forward.5} parent=0 // pred_region
    _
  $region9: #{discriminator_forward.5} parent=0 // pred_fallthru
    _
  // Predicated region
  $region10: #{discriminator_forward.5} parent=0 // pred_check
    _
  $region11: #{discriminator_forward.5} parent=0 // pred_check_branch
    %14 = sbr.rel (0) target = $region13
  $region12: #{discriminator_forward.5} parent=0 // pred_region
    _
  $region13: #{discriminator_forward.5} parent=0 // pred_fallthru
    _
  // Predicated region
  $region14: #{discriminator_forward.5} parent=0 // pred_check
    _
  $region15: #{discriminator_forward.5} parent=0 // pred_check_branch
    %16 = sbr.rel (0) target = $region17
  $region16: #{discriminator_forward.5} parent=0 // pred_region
    _
  $region17: #{discriminator_forward.5} parent=0 // pred_fallthru
    _
  %p17 = scmp.eq.s32.totalorder 0, 0
  // Predicated region
  $region18: #{discriminator_forward.5} parent=0 // pred_check
    %p18 = pneg %p17
  $region19: #{discriminator_forward.5} parent=0 // pred_check_branch
    %20 = sbr.rel (%p18) target = $region21
  $region20: #{discriminator_forward.5} parent=0 // pred_region
    %21 = vst [vmem:[#allocation2] sm:$0xff] 0.0
    %22 = vst [vmem:[#allocation2 + $0x8] sm:$0xff] 0.0
    %23 = vst [vmem:[#allocation2 + $0x10] sm:$0xff] 0.0
    %24 = vst [vmem:[#allocation2 + $0x18] sm:$0xff] 0.0
    %25 = vst [vmem:[#allocation2 + $0x20] sm:$0xff] 0.0
    %26 = vst [vmem:[#allocation2 + $0x28] sm:$0xff] 0.0
    %27 = vst [vmem:[#allocation2 + $0x30] sm:$0xff] 0.0
    %28 = vst [vmem:[#allocation2 + $0x38] sm:$0xff] 0.0
    %29 = vst [vmem:[#allocation2 + $0x40] sm:$0xff] 0.0
    %30 = vst [vmem:[#allocation2 + $0x48] sm:$0xff] 0.0
    %31 = vst [vmem:[#allocation2 + $0x50] sm:$0xff] 0.0
    %32 = vst [vmem:[#allocation2 + $0x58] sm:$0xff] 0.0
    %33 = vst [vmem:[#allocation2 + $0x60] sm:$0xff] 0.0
    %34 = vst [vmem:[#allocation2 + $0x68] sm:$0xff] 0.0
    %35 = vst [vmem:[#allocation2 + $0x70] sm:$0xff] 0.0
    %36 = vst [vmem:[#allocation2 + $0x78] sm:$0xff] 0.0
    %37 = vst [vmem:[#allocation2 + $0x80] sm:$0xff] 0.0
    %38 = vst [vmem:[#allocation2 + $0x88] sm:$0xff] 0.0
    %39 = vst [vmem:[#allocation2 + $0x90] sm:$0xff] 0.0
    %40 = vst [vmem:[#allocation2 + $0x98] sm:$0xff] 0.0
    %41 = vst [vmem:[#allocation2 + $0xa0] sm:$0xff] 0.0
    %42 = vst [vmem:[#allocation2 + $0xa8] sm:$0xff] 0.0
    %43 = vst [vmem:[#allocation2 + $0xb0] sm:$0xff] 0.0
    %44 = vst [vmem:[#allocation2 + $0xb8] sm:$0xff] 0.0
    %45 = vst [vmem:[#allocation2 + $0xc0] sm:$0xff] 0.0
    %46 = vst [vmem:[#allocation2 + $0xc8] sm:$0xff] 0.0
    %47 = vst [vmem:[#allocation2 + $0xd0] sm:$0xff] 0.0
    %48 = vst [vmem:[#allocation2 + $0xd8] sm:$0xff] 0.0
    %49 = vst [vmem:[#allocation2 + $0xe0] sm:$0xff] 0.0
    %50 = vst [vmem:[#allocation2 + $0xe8] sm:$0xff] 0.0
    %51 = vst [vmem:[#allocation2 + $0xf0] sm:$0xff] 0.0
    %52 = vst [vmem:[#allocation2 + $0xf8] sm:$0xff] 0.0
    %53 = vst [vmem:[#allocation2 + $0x100] sm:$0xff] 0.0
    %54 = vst [vmem:[#allocation2 + $0x108] sm:$0xff] 0.0
    %55 = vst [vmem:[#allocation2 + $0x110] sm:$0xff] 0.0
    %56 = vst [vmem:[#allocation2 + $0x118] sm:$0xff] 0.0
    %57 = vst [vmem:[#allocation2 + $0x120] sm:$0xff] 0.0
    %58 = vst [vmem:[#allocation2 + $0x128] sm:$0xff] 0.0
    %59 = vst [vmem:[#allocation2 + $0x130] sm:$0xff] 0.0
    %60 = vst [vmem:[#allocation2 + $0x138] sm:$0xff] 0.0
    %61 = vst [vmem:[#allocation2 + $0x140] sm:$0xff] 0.0
    %62 = vst [vmem:[#allocation2 + $0x148] sm:$0xff] 0.0
    %63 = vst [vmem:[#allocation2 + $0x150] sm:$0xff] 0.0
    %64 = vst [vmem:[#allocation2 + $0x158] sm:$0xff] 0.0
    %65 = vst [vmem:[#allocation2 + $0x160] sm:$0xff] 0.0
    %66 = vst [vmem:[#allocation2 + $0x168] sm:$0xff] 0.0
    %67 = vst [vmem:[#allocation2 + $0x170] sm:$0xff] 0.0
    %68 = vst [vmem:[#allocation2 + $0x178] sm:$0xff] 0.0
    %69 = vst [vmem:[#allocation2 + $0x180] sm:$0xff] 0.0
    %70 = vst [vmem:[#allocation2 + $0x188] sm:$0xff] 0.0
    %71 = vst [vmem:[#allocation2 + $0x190] sm:$0xff] 0.0
    %72 = vst [vmem:[#allocation2 + $0x198] sm:$0xff] 0.0
    %73 = vst [vmem:[#allocation2 + $0x1a0] sm:$0xff] 0.0
    %74 = vst [vmem:[#allocation2 + $0x1a8] sm:$0xff] 0.0
    %75 = vst [vmem:[#allocation2 + $0x1b0] sm:$0xff] 0.0
    %76 = vst [vmem:[#allocation2 + $0x1b8] sm:$0xff] 0.0
    %77 = vst [vmem:[#allocation2 + $0x1c0] sm:$0xff] 0.0
    %78 = vst [vmem:[#allocation2 + $0x1c8] sm:$0xff] 0.0
    %79 = vst [vmem:[#allocation2 + $0x1d0] sm:$0xff] 0.0
    %80 = vst [vmem:[#allocation2 + $0x1d8] sm:$0xff] 0.0
    %81 = vst [vmem:[#allocation2 + $0x1e0] sm:$0xff] 0.0
    %82 = vst [vmem:[#allocation2 + $0x1e8] sm:$0xff] 0.0
    %83 = vst [vmem:[#allocation2 + $0x1f0] sm:$0xff] 0.0
    %84 = vst [vmem:[#allocation2 + $0x1f8] sm:$0xff] 0.0
  $region21: #{discriminator_forward.5} parent=0 // pred_fallthru
    _
  %v85 = vld [vmem:[#allocation2] sm:$0xff]
  %v86 = vld [vmem:[#allocation2 + $0x8] sm:$0xff]
  %v87 = vld [vmem:[#allocation2 + $0x10] sm:$0xff]
  %v88 = vld [vmem:[#allocation2 + $0x18] sm:$0xff]
  %v89 = vld [vmem:[#allocation2 + $0x20] sm:$0xff]
  %v90 = vld [vmem:[#allocation2 + $0x28] sm:$0xff]
  %v91 = vld [vmem:[#allocation2 + $0x30] sm:$0xff]
  %v92 = vld [vmem:[#allocation2 + $0x38] sm:$0xff]
  %v93 = vld [vmem:[#allocation2 + $0x40] sm:$0xff]
  %v94 = vld [vmem:[#allocation2 + $0x48] sm:$0xff]
  %v95 = vld [vmem:[#allocation2 + $0x50] sm:$0xff]
  %v96 = vld [vmem:[#allocation2 + $0x58] sm:$0xff]
  %v97 = vld [vmem:[#allocation2 + $0x60] sm:$0xff]
  %v98 = vld [vmem:[#allocation2 + $0x68] sm:$0xff]
  %v99 = vld [vmem:[#allocation2 + $0x70] sm:$0xff]
  %v100 = vld [vmem:[#allocation2 + $0x78] sm:$0xff]
  %v101 = vld [vmem:[#allocation2 + $0x80] sm:$0xff]
  %v102 = vld [vmem:[#allocation2 + $0x88] sm:$0xff]
  %v103 = vld [vmem:[#allocation2 + $0x90] sm:$0xff]
  %v104 = vld [vmem:[#allocation2 + $0x98] sm:$0xff]
  %v105 = vld [vmem:[#allocation2 + $0xa0] sm:$0xff]
  %v106 = vld [vmem:[#allocation2 + $0xa8] sm:$0xff]
  %v107 = vld [vmem:[#allocation2 + $0xb0] sm:$0xff]
  %v108 = vld [vmem:[#allocation2 + $0xb8] sm:$0xff]
  %v109 = vld [vmem:[#allocation2 + $0xc0] sm:$0xff]
  %v110 = vld [vmem:[#allocation2 + $0xc8] sm:$0xff]
  %v111 = vld [vmem:[#allocation2 + $0xd0] sm:$0xff]
  %v112 = vld [vmem:[#allocation2 + $0xd8] sm:$0xff]
  %v113 = vld [vmem:[#allocation2 + $0xe0] sm:$0xff]
  %v114 = vld [vmem:[#allocation2 + $0xe8] sm:$0xff]
  %v115 = vld [vmem:[#allocation2 + $0xf0] sm:$0xff]
  %v116 = vld [vmem:[#allocation2 + $0xf8] sm:$0xff]
  %v117 = vld [vmem:[#allocation2 + $0x100] sm:$0xff]
  %v118 = vld [vmem:[#allocation2 + $0x108] sm:$0xff]
  %v119 = vld [vmem:[#allocation2 + $0x110] sm:$0xff]
  %v120 = vld [vmem:[#allocation2 + $0x118] sm:$0xff]
  %v121 = vld [vmem:[#allocation2 + $0x120] sm:$0xff]
  %v122 = vld [vmem:[#allocation2 + $0x128] sm:$0xff]
  %v123 = vld [vmem:[#allocation2 + $0x130] sm:$0xff]
  %v124 = vld [vmem:[#allocation2 + $0x138] sm:$0xff]
  %v125 = vld [vmem:[#allocation2 + $0x140] sm:$0xff]
  %v126 = vld [vmem:[#allocation2 + $0x148] sm:$0xff]
  %v127 = vld [vmem:[#allocation2 + $0x150] sm:$0xff]
  %v128 = vld [vmem:[#allocation2 + $0x158] sm:$0xff]
  %v129 = vld [vmem:[#allocation2 + $0x160] sm:$0xff]
  %v130 = vld [vmem:[#allocation2 + $0x168] sm:$0xff]
  %v131 = vld [vmem:[#allocation2 + $0x170] sm:$0xff]
  %v132 = vld [vmem:[#allocation2 + $0x178] sm:$0xff]
  %v133 = vld [vmem:[#allocation2 + $0x180] sm:$0xff]
  %v134 = vld [vmem:[#allocation2 + $0x188] sm:$0xff]
  %v135 = vld [vmem:[#allocation2 + $0x190] sm:$0xff]
  %v136 = vld [vmem:[#allocation2 + $0x198] sm:$0xff]
  %v137 = vld [vmem:[#allocation2 + $0x1a0] sm:$0xff]
  %v138 = vld [vmem:[#allocation2 + $0x1a8] sm:$0xff]
  %v139 = vld [vmem:[#allocation2 + $0x1b0] sm:$0xff]
  %v140 = vld [vmem:[#allocation2 + $0x1b8] sm:$0xff]
  %v141 = vld [vmem:[#allocation2 + $0x1c0] sm:$0xff]
  %v142 = vld [vmem:[#allocation2 + $0x1c8] sm:$0xff]
  %v143 = vld [vmem:[#allocation2 + $0x1d0] sm:$0xff]
  %v144 = vld [vmem:[#allocation2 + $0x1d8] sm:$0xff]
  %v145 = vld [vmem:[#allocation2 + $0x1e0] sm:$0xff]
  %v146 = vld [vmem:[#allocation2 + $0x1e8] sm:$0xff]
  %v147 = vld [vmem:[#allocation2 + $0x1f0] sm:$0xff]
  %v148 = vld [vmem:[#allocation2 + $0x1f8] sm:$0xff]
  %v149 = vld [vmem:[%s0] sm:$0xff]
  %v150 = vld [vmem:[%s0 + $0x8] sm:$0xff]
  %v151 = vld [vmem:[%s0 + $0x10] sm:$0xff]
  %v152 = vld [vmem:[%s0 + $0x18] sm:$0xff]
  %v153 = vld [vmem:[%s0 + $0x20] sm:$0xff]
  %v154 = vld [vmem:[%s0 + $0x28] sm:$0xff]
  %v155 = vld [vmem:[%s0 + $0x30] sm:$0xff]
  %v156 = vld [vmem:[%s0 + $0x38] sm:$0xff]
  %v157 = vld [vmem:[%s0 + $0x40] sm:$0xff]
  %v158 = vld [vmem:[%s0 + $0x48] sm:$0xff]
  %v159 = vld [vmem:[%s0 + $0x50] sm:$0xff]
  %v160 = vld [vmem:[%s0 + $0x58] sm:$0xff]
  %v161 = vld [vmem:[%s0 + $0x60] sm:$0xff]
  %v162 = vld [vmem:[%s0 + $0x68] sm:$0xff]
  %v163 = vld [vmem:[%s0 + $0x70] sm:$0xff]
  %v164 = vld [vmem:[%s0 + $0x78] sm:$0xff]
  %v165 = vld [vmem:[%s0 + $0x80] sm:$0xff]
  %v166 = vld [vmem:[%s0 + $0x88] sm:$0xff]
  %v167 = vld [vmem:[%s0 + $0x90] sm:$0xff]
  %v168 = vld [vmem:[%s0 + $0x98] sm:$0xff]
  %v169 = vld [vmem:[%s0 + $0xa0] sm:$0xff]
  %v170 = vld [vmem:[%s0 + $0xa8] sm:$0xff]
  %v171 = vld [vmem:[%s0 + $0xb0] sm:$0xff]
  %v172 = vld [vmem:[%s0 + $0xb8] sm:$0xff]
  %v173 = vld [vmem:[%s0 + $0xc0] sm:$0xff]
  %v174 = vld [vmem:[%s0 + $0xc8] sm:$0xff]
  %v175 = vld [vmem:[%s0 + $0xd0] sm:$0xff]
  %v176 = vld [vmem:[%s0 + $0xd8] sm:$0xff]
  %v177 = vld [vmem:[%s0 + $0xe0] sm:$0xff]
  %v178 = vld [vmem:[%s0 + $0xe8] sm:$0xff]
  %v179 = vld [vmem:[%s0 + $0xf0] sm:$0xff]
  %v180 = vld [vmem:[%s0 + $0xf8] sm:$0xff]
  %v181 = vld [vmem:[%s0 + $0x100] sm:$0xff]
  %v182 = vld [vmem:[%s0 + $0x108] sm:$0xff]
  %v183 = vld [vmem:[%s0 + $0x110] sm:$0xff]
  %v184 = vld [vmem:[%s0 + $0x118] sm:$0xff]
  %v185 = vld [vmem:[%s0 + $0x120] sm:$0xff]
  %v186 = vld [vmem:[%s0 + $0x128] sm:$0xff]
  %v187 = vld [vmem:[%s0 + $0x130] sm:$0xff]
  %v188 = vld [vmem:[%s0 + $0x138] sm:$0xff]
  %v189 = vld [vmem:[%s0 + $0x140] sm:$0xff]
  %v190 = vld [vmem:[%s0 + $0x148] sm:$0xff]
  %v191 = vld [vmem:[%s0 + $0x150] sm:$0xff]
  %v192 = vld [vmem:[%s0 + $0x158] sm:$0xff]
  %v193 = vld [vmem:[%s0 + $0x160] sm:$0xff]
  %v194 = vld [vmem:[%s0 + $0x168] sm:$0xff]
  %v195 = vld [vmem:[%s0 + $0x170] sm:$0xff]
  %v196 = vld [vmem:[%s0 + $0x178] sm:$0xff]
  %v197 = vld [vmem:[%s0 + $0x180] sm:$0xff]
  %v198 = vld [vmem:[%s0 + $0x188] sm:$0xff]
  %v199 = vld [vmem:[%s0 + $0x190] sm:$0xff]
  %v200 = vld [vmem:[%s0 + $0x198] sm:$0xff]
  %v201 = vld [vmem:[%s0 + $0x1a0] sm:$0xff]
  %v202 = vld [vmem:[%s0 + $0x1a8] sm:$0xff]
  %v203 = vld [vmem:[%s0 + $0x1b0] sm:$0xff]
  %v204 = vld [vmem:[%s0 + $0x1b8] sm:$0xff]
  %v205 = vld [vmem:[%s0 + $0x1c0] sm:$0xff]
  %v206 = vld [vmem:[%s0 + $0x1c8] sm:$0xff]
  %v207 = vld [vmem:[%s0 + $0x1d0] sm:$0xff]
  %v208 = vld [vmem:[%s0 + $0x1d8] sm:$0xff]
  %v209 = vld [vmem:[%s0 + $0x1e0] sm:$0xff]
  %v210 = vld [vmem:[%s0 + $0x1e8] sm:$0xff]
  %v211 = vld [vmem:[%s0 + $0x1f0] sm:$0xff]
  %v212 = vld [vmem:[%s0 + $0x1f8] sm:$0xff]
  %v213 = vld [vmem:[%s0 + $0x200] sm:$0xff]
  %v214 = vld [vmem:[%s0 + $0x208] sm:$0xff]
  %v215 = vld [vmem:[%s0 + $0x210] sm:$0xff]
  %v216 = vld [vmem:[%s0 + $0x218] sm:$0xff]
  %v217 = vld [vmem:[%s0 + $0x220] sm:$0xff]
  %v218 = vld [vmem:[%s0 + $0x228] sm:$0xff]
  %v219 = vld [vmem:[%s0 + $0x230] sm:$0xff]
  %v220 = vld [vmem:[%s0 + $0x238] sm:$0xff]
  %v221 = vld [vmem:[%s0 + $0x240] sm:$0xff]
  %v222 = vld [vmem:[%s0 + $0x248] sm:$0xff]
  %v223 = vld [vmem:[%s0 + $0x250] sm:$0xff]
  %v224 = vld [vmem:[%s0 + $0x258] sm:$0xff]
  %v225 = vld [vmem:[%s0 + $0x260] sm:$0xff]
  %v226 = vld [vmem:[%s0 + $0x268] sm:$0xff]
  %v227 = vld [vmem:[%s0 + $0x270] sm:$0xff]
  %v228 = vld [vmem:[%s0 + $0x278] sm:$0xff]
  %v229 = vld [vmem:[%s0 + $0x280] sm:$0xff]
  %v230 = vld [vmem:[%s0 + $0x288] sm:$0xff]
  %v231 = vld [vmem:[%s0 + $0x290] sm:$0xff]
  %v232 = vld [vmem:[%s0 + $0x298] sm:$0xff]
  %v233 = vld [vmem:[%s0 + $0x2a0] sm:$0xff]
  %v234 = vld [vmem:[%s0 + $0x2a8] sm:$0xff]
  %v235 = vld [vmem:[%s0 + $0x2b0] sm:$0xff]
  %v236 = vld [vmem:[%s0 + $0x2b8] sm:$0xff]
  %v237 = vld [vmem:[%s0 + $0x2c0] sm:$0xff]
  %v238 = vld [vmem:[%s0 + $0x2c8] sm:$0xff]
  %v239 = vld [vmem:[%s0 + $0x2d0] sm:$0xff]
  %v240 = vld [vmem:[%s0 + $0x2d8] sm:$0xff]
  %v241 = vld [vmem:[%s0 + $0x2e0] sm:$0xff]
  %v242 = vld [vmem:[%s0 + $0x2e8] sm:$0xff]
  %v243 = vld [vmem:[%s0 + $0x2f0] sm:$0xff]
  %v244 = vld [vmem:[%s0 + $0x2f8] sm:$0xff]
  %v245 = vld [vmem:[%s0 + $0x300] sm:$0xff]
  %v246 = vld [vmem:[%s0 + $0x308] sm:$0xff]
  %v247 = vld [vmem:[%s0 + $0x310] sm:$0xff]
  %v248 = vld [vmem:[%s0 + $0x318] sm:$0xff]
  %v249 = vld [vmem:[%s0 + $0x320] sm:$0xff]
  %v250 = vld [vmem:[%s0 + $0x328] sm:$0xff]
  %v251 = vld [vmem:[%s0 + $0x330] sm:$0xff]
  %v252 = vld [vmem:[%s0 + $0x338] sm:$0xff]
  %v253 = vld [vmem:[%s0 + $0x340] sm:$0xff]
  %v254 = vld [vmem:[%s0 + $0x348] sm:$0xff]
  %v255 = vld [vmem:[%s0 + $0x350] sm:$0xff]
  %v256 = vld [vmem:[%s0 + $0x358] sm:$0xff]
  %v257 = vld [vmem:[%s0 + $0x360] sm:$0xff]
  %v258 = vld [vmem:[%s0 + $0x368] sm:$0xff]
  %v259 = vld [vmem:[%s0 + $0x370] sm:$0xff]
  %v260 = vld [vmem:[%s0 + $0x378] sm:$0xff]
  %v261 = vld [vmem:[%s0 + $0x380] sm:$0xff]
  %v262 = vld [vmem:[%s0 + $0x388] sm:$0xff]
  %v263 = vld [vmem:[%s0 + $0x390] sm:$0xff]
  %v264 = vld [vmem:[%s0 + $0x398] sm:$0xff]
  %v265 = vld [vmem:[%s0 + $0x3a0] sm:$0xff]
  %v266 = vld [vmem:[%s0 + $0x3a8] sm:$0xff]
  %v267 = vld [vmem:[%s0 + $0x3b0] sm:$0xff]
  %v268 = vld [vmem:[%s0 + $0x3b8] sm:$0xff]
  %v269 = vld [vmem:[%s0 + $0x3c0] sm:$0xff]
  %v270 = vld [vmem:[%s0 + $0x3c8] sm:$0xff]
  %v271 = vld [vmem:[%s0 + $0x3d0] sm:$0xff]
  %v272 = vld [vmem:[%s0 + $0x3d8] sm:$0xff]
  %v273 = vld [vmem:[%s0 + $0x3e0] sm:$0xff]
  %v274 = vld [vmem:[%s0 + $0x3e8] sm:$0xff]
  %v275 = vld [vmem:[%s0 + $0x3f0] sm:$0xff]
  %v276 = vld [vmem:[%s0 + $0x3f8] sm:$0xff]
  %v277 = vld [vmem:[%s0 + $0x400] sm:$0xff]
  %v278 = vld [vmem:[%s0 + $0x408] sm:$0xff]
  %v279 = vld [vmem:[%s0 + $0x410] sm:$0xff]
  %v280 = vld [vmem:[%s0 + $0x418] sm:$0xff]
  %v281 = vld [vmem:[%s0 + $0x420] sm:$0xff]
  %v282 = vld [vmem:[%s0 + $0x428] sm:$0xff]
  %v283 = vld [vmem:[%s0 + $0x430] sm:$0xff]
  %v284 = vld [vmem:[%s0 + $0x438] sm:$0xff]
  %v285 = vld [vmem:[%s0 + $0x440] sm:$0xff]
  %v286 = vld [vmem:[%s0 + $0x448] sm:$0xff]
  %v287 = vld [vmem:[%s0 + $0x450] sm:$0xff]
  %v288 = vld [vmem:[%s0 + $0x458] sm:$0xff]
  %v289 = vld [vmem:[%s0 + $0x460] sm:$0xff]
  %v290 = vld [vmem:[%s0 + $0x468] sm:$0xff]
  %v291 = vld [vmem:[%s0 + $0x470] sm:$0xff]
  %v292 = vld [vmem:[%s0 + $0x478] sm:$0xff]
  %v293 = vld [vmem:[%s0 + $0x480] sm:$0xff]
  %v294 = vld [vmem:[%s0 + $0x488] sm:$0xff]
  %v295 = vld [vmem:[%s0 + $0x490] sm:$0xff]
  %v296 = vld [vmem:[%s0 + $0x498] sm:$0xff]
  %v297 = vld [vmem:[%s0 + $0x4a0] sm:$0xff]
  %v298 = vld [vmem:[%s0 + $0x4a8] sm:$0xff]
  %v299 = vld [vmem:[%s0 + $0x4b0] sm:$0xff]
  %v300 = vld [vmem:[%s0 + $0x4b8] sm:$0xff]
  %v301 = vld [vmem:[%s0 + $0x4c0] sm:$0xff]
  %v302 = vld [vmem:[%s0 + $0x4c8] sm:$0xff]
  %v303 = vld [vmem:[%s0 + $0x4d0] sm:$0xff]
  %v304 = vld [vmem:[%s0 + $0x4d8] sm:$0xff]
  %v305 = vld [vmem:[%s0 + $0x4e0] sm:$0xff]
  %v306 = vld [vmem:[%s0 + $0x4e8] sm:$0xff]
  %v307 = vld [vmem:[%s0 + $0x4f0] sm:$0xff]
  %v308 = vld [vmem:[%s0 + $0x4f8] sm:$0xff]
  %v309 = vld [vmem:[%s0 + $0x500] sm:$0xff]
  %v310 = vld [vmem:[%s0 + $0x508] sm:$0xff]
  %v311 = vld [vmem:[%s0 + $0x510] sm:$0xff]
  %v312 = vld [vmem:[%s0 + $0x518] sm:$0xff]
  %v313 = vld [vmem:[%s0 + $0x520] sm:$0xff]
  %v314 = vld [vmem:[%s0 + $0x528] sm:$0xff]
  %v315 = vld [vmem:[%s0 + $0x530] sm:$0xff]
  %v316 = vld [vmem:[%s0 + $0x538] sm:$0xff]
  %v317 = vld [vmem:[%s0 + $0x540] sm:$0xff]
  %v318 = vld [vmem:[%s0 + $0x548] sm:$0xff]
  %v319 = vld [vmem:[%s0 + $0x550] sm:$0xff]
  %v320 = vld [vmem:[%s0 + $0x558] sm:$0xff]
  %v321 = vld [vmem:[%s0 + $0x560] sm:$0xff]
  %v322 = vld [vmem:[%s0 + $0x568] sm:$0xff]
  %v323 = vld [vmem:[%s0 + $0x570] sm:$0xff]
  %v324 = vld [vmem:[%s0 + $0x578] sm:$0xff]
  %v325 = vld [vmem:[%s0 + $0x580] sm:$0xff]
  %v326 = vld [vmem:[%s0 + $0x588] sm:$0xff]
  %v327 = vld [vmem:[%s0 + $0x590] sm:$0xff]
  %v328 = vld [vmem:[%s0 + $0x598] sm:$0xff]
  %v329 = vld [vmem:[%s0 + $0x5a0] sm:$0xff]
  %v330 = vld [vmem:[%s0 + $0x5a8] sm:$0xff]
  %v331 = vld [vmem:[%s0 + $0x5b0] sm:$0xff]
  %v332 = vld [vmem:[%s0 + $0x5b8] sm:$0xff]
  %v333 = vld [vmem:[%s0 + $0x5c0] sm:$0xff]
  %v334 = vld [vmem:[%s0 + $0x5c8] sm:$0xff]
  %v335 = vld [vmem:[%s0 + $0x5d0] sm:$0xff]
  %v336 = vld [vmem:[%s0 + $0x5d8] sm:$0xff]
  %v337 = vld [vmem:[%s0 + $0x5e0] sm:$0xff]
  %v338 = vld [vmem:[%s0 + $0x5e8] sm:$0xff]
  %v339 = vld [vmem:[%s0 + $0x5f0] sm:$0xff]
  %v340 = vld [vmem:[%s0 + $0x5f8] sm:$0xff]
  %v341 = vld [vmem:[%s0 + $0x600] sm:$0xff]
  %v342 = vld [vmem:[%s0 + $0x608] sm:$0xff]
  %v343 = vld [vmem:[%s0 + $0x610] sm:$0xff]
  %v344 = vld [vmem:[%s0 + $0x618] sm:$0xff]
  %v345 = vld [vmem:[%s0 + $0x620] sm:$0xff]
  %v346 = vld [vmem:[%s0 + $0x628] sm:$0xff]
  %v347 = vld [vmem:[%s0 + $0x630] sm:$0xff]
  %v348 = vld [vmem:[%s0 + $0x638] sm:$0xff]
  %v349 = vld [vmem:[%s0 + $0x640] sm:$0xff]
  %v350 = vld [vmem:[%s0 + $0x648] sm:$0xff]
  %v351 = vld [vmem:[%s0 + $0x650] sm:$0xff]
  %v352 = vld [vmem:[%s0 + $0x658] sm:$0xff]
  %v353 = vld [vmem:[%s0 + $0x660] sm:$0xff]
  %v354 = vld [vmem:[%s0 + $0x668] sm:$0xff]
  %v355 = vld [vmem:[%s0 + $0x670] sm:$0xff]
  %v356 = vld [vmem:[%s0 + $0x678] sm:$0xff]
  %v357 = vld [vmem:[%s0 + $0x680] sm:$0xff]
  %v358 = vld [vmem:[%s0 + $0x688] sm:$0xff]
  %v359 = vld [vmem:[%s0 + $0x690] sm:$0xff]
  %v360 = vld [vmem:[%s0 + $0x698] sm:$0xff]
  %v361 = vld [vmem:[%s0 + $0x6a0] sm:$0xff]
  %v362 = vld [vmem:[%s0 + $0x6a8] sm:$0xff]
  %v363 = vld [vmem:[%s0 + $0x6b0] sm:$0xff]
  %v364 = vld [vmem:[%s0 + $0x6b8] sm:$0xff]
  %v365 = vld [vmem:[%s0 + $0x6c0] sm:$0xff]
  %v366 = vld [vmem:[%s0 + $0x6c8] sm:$0xff]
  %v367 = vld [vmem:[%s0 + $0x6d0] sm:$0xff]
  %v368 = vld [vmem:[%s0 + $0x6d8] sm:$0xff]
  %v369 = vld [vmem:[%s0 + $0x6e0] sm:$0xff]
  %v370 = vld [vmem:[%s0 + $0x6e8] sm:$0xff]
  %v371 = vld [vmem:[%s0 + $0x6f0] sm:$0xff]
  %v372 = vld [vmem:[%s0 + $0x6f8] sm:$0xff]
  %v373 = vld [vmem:[%s0 + $0x700] sm:$0xff]
  %v374 = vld [vmem:[%s0 + $0x708] sm:$0xff]
  %v375 = vld [vmem:[%s0 + $0x710] sm:$0xff]
  %v376 = vld [vmem:[%s0 + $0x718] sm:$0xff]
  %v377 = vld [vmem:[%s0 + $0x720] sm:$0xff]
  %v378 = vld [vmem:[%s0 + $0x728] sm:$0xff]
  %v379 = vld [vmem:[%s0 + $0x730] sm:$0xff]
  %v380 = vld [vmem:[%s0 + $0x738] sm:$0xff]
  %v381 = vld [vmem:[%s0 + $0x740] sm:$0xff]
  %v382 = vld [vmem:[%s0 + $0x748] sm:$0xff]
  %v383 = vld [vmem:[%s0 + $0x750] sm:$0xff]
  %v384 = vld [vmem:[%s0 + $0x758] sm:$0xff]
  %v385 = vld [vmem:[%s0 + $0x760] sm:$0xff]
  %v386 = vld [vmem:[%s0 + $0x768] sm:$0xff]
  %v387 = vld [vmem:[%s0 + $0x770] sm:$0xff]
  %v388 = vld [vmem:[%s0 + $0x778] sm:$0xff]
  %v389 = vld [vmem:[%s0 + $0x780] sm:$0xff]
  %v390 = vld [vmem:[%s0 + $0x788] sm:$0xff]
  %v391 = vld [vmem:[%s0 + $0x790] sm:$0xff]
  %v392 = vld [vmem:[%s0 + $0x798] sm:$0xff]
  %v393 = vld [vmem:[%s0 + $0x7a0] sm:$0xff]
  %v394 = vld [vmem:[%s0 + $0x7a8] sm:$0xff]
  %v395 = vld [vmem:[%s0 + $0x7b0] sm:$0xff]
  %v396 = vld [vmem:[%s0 + $0x7b8] sm:$0xff]
  %v397 = vld [vmem:[%s0 + $0x7c0] sm:$0xff]
  %v398 = vld [vmem:[%s0 + $0x7c8] sm:$0xff]
  %v399 = vld [vmem:[%s0 + $0x7d0] sm:$0xff]
  %v400 = vld [vmem:[%s0 + $0x7d8] sm:$0xff]
  %v401 = vld [vmem:[%s0 + $0x7e0] sm:$0xff]
  %v402 = vld [vmem:[%s0 + $0x7e8] sm:$0xff]
  %v403 = vld [vmem:[%s0 + $0x7f0] sm:$0xff]
  %v404 = vld [vmem:[%s0 + $0x7f8] sm:$0xff]
  %v405 = vld [vmem:[%s1] sm:$0xf]
  %v406 = vld [vmem:[%s1 + $0x4] sm:$0xf]
  %v407 = vld [vmem:[%s1 + $0x8] sm:$0xf]
  %v408 = vld [vmem:[%s1 + $0xc] sm:$0xf]
  %v409 = vld [vmem:[%s1 + $0x10] sm:$0xf]
  %v410 = vld [vmem:[%s1 + $0x14] sm:$0xf]
  %v411 = vld [vmem:[%s1 + $0x18] sm:$0xf]
  %v412 = vld [vmem:[%s1 + $0x1c] sm:$0xf]
  %v413 = vld [vmem:[%s1 + $0x20] sm:$0xf]
  %v414 = vld [vmem:[%s1 + $0x24] sm:$0xf]
  %v415 = vld [vmem:[%s1 + $0x28] sm:$0xf]
  %v416 = vld [vmem:[%s1 + $0x2c] sm:$0xf]
  %v417 = vld [vmem:[%s1 + $0x30] sm:$0xf]
  %v418 = vld [vmem:[%s1 + $0x34] sm:$0xf]
  %v419 = vld [vmem:[%s1 + $0x38] sm:$0xf]
  %v420 = vld [vmem:[%s1 + $0x3c] sm:$0xf]
  %v421 = vld [vmem:[%s1 + $0x40] sm:$0xf]
  %v422 = vld [vmem:[%s1 + $0x44] sm:$0xf]
  %v423 = vld [vmem:[%s1 + $0x48] sm:$0xf]
  %v424 = vld [vmem:[%s1 + $0x4c] sm:$0xf]
  %v425 = vld [vmem:[%s1 + $0x50] sm:$0xf]
  %v426 = vld [vmem:[%s1 + $0x54] sm:$0xf]
  %v427 = vld [vmem:[%s1 + $0x58] sm:$0xf]
  %v428 = vld [vmem:[%s1 + $0x5c] sm:$0xf]
  %v429 = vld [vmem:[%s1 + $0x60] sm:$0xf]
  %v430 = vld [vmem:[%s1 + $0x64] sm:$0xf]
  %v431 = vld [vmem:[%s1 + $0x68] sm:$0xf]
  %v432 = vld [vmem:[%s1 + $0x6c] sm:$0xf]
  %v433 = vld [vmem:[%s1 + $0x70] sm:$0xf]
  %v434 = vld [vmem:[%s1 + $0x74] sm:$0xf]
  %v435 = vld [vmem:[%s1 + $0x78] sm:$0xf]
  %v436 = vld [vmem:[%s1 + $0x7c] sm:$0xf]
  %v437 = vld [vmem:[%s1 + $0x80] sm:$0xf]
  %v438 = vld [vmem:[%s1 + $0x84] sm:$0xf]
  %v439 = vld [vmem:[%s1 + $0x88] sm:$0xf]
  %v440 = vld [vmem:[%s1 + $0x8c] sm:$0xf]
  %v441 = vld [vmem:[%s1 + $0x90] sm:$0xf]
  %v442 = vld [vmem:[%s1 + $0x94] sm:$0xf]
  %v443 = vld [vmem:[%s1 + $0x98] sm:$0xf]
  %v444 = vld [vmem:[%s1 + $0x9c] sm:$0xf]
  %v445 = vld [vmem:[%s1 + $0xa0] sm:$0xf]
  %v446 = vld [vmem:[%s1 + $0xa4] sm:$0xf]
  %v447 = vld [vmem:[%s1 + $0xa8] sm:$0xf]
  %v448 = vld [vmem:[%s1 + $0xac] sm:$0xf]
  %v449 = vld [vmem:[%s1 + $0xb0] sm:$0xf]
  %v450 = vld [vmem:[%s1 + $0xb4] sm:$0xf]
  %v451 = vld [vmem:[%s1 + $0xb8] sm:$0xf]
  %v452 = vld [vmem:[%s1 + $0xbc] sm:$0xf]
  %v453 = vld [vmem:[%s1 + $0xc0] sm:$0xf]
  %v454 = vld [vmem:[%s1 + $0xc4] sm:$0xf]
  %v455 = vld [vmem:[%s1 + $0xc8] sm:$0xf]
  %v456 = vld [vmem:[%s1 + $0xcc] sm:$0xf]
  %v457 = vld [vmem:[%s1 + $0xd0] sm:$0xf]
  %v458 = vld [vmem:[%s1 + $0xd4] sm:$0xf]
  %v459 = vld [vmem:[%s1 + $0xd8] sm:$0xf]
  %v460 = vld [vmem:[%s1 + $0xdc] sm:$0xf]
  %v461 = vld [vmem:[%s1 + $0xe0] sm:$0xf]
  %v462 = vld [vmem:[%s1 + $0xe4] sm:$0xf]
  %v463 = vld [vmem:[%s1 + $0xe8] sm:$0xf]
  %v464 = vld [vmem:[%s1 + $0xec] sm:$0xf]
  %v465 = vld [vmem:[%s1 + $0xf0] sm:$0xf]
  %v466 = vld [vmem:[%s1 + $0xf4] sm:$0xf]
  %v467 = vld [vmem:[%s1 + $0xf8] sm:$0xf]
  %v468 = vld [vmem:[%s1 + $0xfc] sm:$0xf]
  %v469 = vld [vmem:[%s1 + $0x100] sm:$0xf]
  %v470 = vld [vmem:[%s1 + $0x104] sm:$0xf]
  %v471 = vld [vmem:[%s1 + $0x108] sm:$0xf]
  %v472 = vld [vmem:[%s1 + $0x10c] sm:$0xf]
  %v473 = vld [vmem:[%s1 + $0x110] sm:$0xf]
  %v474 = vld [vmem:[%s1 + $0x114] sm:$0xf]
  %v475 = vld [vmem:[%s1 + $0x118] sm:$0xf]
  %v476 = vld [vmem:[%s1 + $0x11c] sm:$0xf]
  %v477 = vld [vmem:[%s1 + $0x120] sm:$0xf]
  %v478 = vld [vmem:[%s1 + $0x124] sm:$0xf]
  %v479 = vld [vmem:[%s1 + $0x128] sm:$0xf]
  %v480 = vld [vmem:[%s1 + $0x12c] sm:$0xf]
  %v481 = vld [vmem:[%s1 + $0x130] sm:$0xf]
  %v482 = vld [vmem:[%s1 + $0x134] sm:$0xf]
  %v483 = vld [vmem:[%s1 + $0x138] sm:$0xf]
  %v484 = vld [vmem:[%s1 + $0x13c] sm:$0xf]
  %v485 = vld [vmem:[%s1 + $0x140] sm:$0xf]
  %v486 = vld [vmem:[%s1 + $0x144] sm:$0xf]
  %v487 = vld [vmem:[%s1 + $0x148] sm:$0xf]
  %v488 = vld [vmem:[%s1 + $0x14c] sm:$0xf]
  %v489 = vld [vmem:[%s1 + $0x150] sm:$0xf]
  %v490 = vld [vmem:[%s1 + $0x154] sm:$0xf]
  %v491 = vld [vmem:[%s1 + $0x158] sm:$0xf]
  %v492 = vld [vmem:[%s1 + $0x15c] sm:$0xf]
  %v493 = vld [vmem:[%s1 + $0x160] sm:$0xf]
  %v494 = vld [vmem:[%s1 + $0x164] sm:$0xf]
  %v495 = vld [vmem:[%s1 + $0x168] sm:$0xf]
  %v496 = vld [vmem:[%s1 + $0x16c] sm:$0xf]
  %v497 = vld [vmem:[%s1 + $0x170] sm:$0xf]
  %v498 = vld [vmem:[%s1 + $0x174] sm:$0xf]
  %v499 = vld [vmem:[%s1 + $0x178] sm:$0xf]
  %v500 = vld [vmem:[%s1 + $0x17c] sm:$0xf]
  %v501 = vld [vmem:[%s1 + $0x180] sm:$0xf]
  %v502 = vld [vmem:[%s1 + $0x184] sm:$0xf]
  %v503 = vld [vmem:[%s1 + $0x188] sm:$0xf]
  %v504 = vld [vmem:[%s1 + $0x18c] sm:$0xf]
  %v505 = vld [vmem:[%s1 + $0x190] sm:$0xf]
  %v506 = vld [vmem:[%s1 + $0x194] sm:$0xf]
  %v507 = vld [vmem:[%s1 + $0x198] sm:$0xf]
  %v508 = vld [vmem:[%s1 + $0x19c] sm:$0xf]
  %v509 = vld [vmem:[%s1 + $0x1a0] sm:$0xf]
  %v510 = vld [vmem:[%s1 + $0x1a4] sm:$0xf]
  %v511 = vld [vmem:[%s1 + $0x1a8] sm:$0xf]
  %v512 = vld [vmem:[%s1 + $0x1ac] sm:$0xf]
  %v513 = vld [vmem:[%s1 + $0x1b0] sm:$0xf]
  %v514 = vld [vmem:[%s1 + $0x1b4] sm:$0xf]
  %v515 = vld [vmem:[%s1 + $0x1b8] sm:$0xf]
  %v516 = vld [vmem:[%s1 + $0x1bc] sm:$0xf]
  %v517 = vld [vmem:[%s1 + $0x1c0] sm:$0xf]
  %v518 = vld [vmem:[%s1 + $0x1c4] sm:$0xf]
  %v519 = vld [vmem:[%s1 + $0x1c8] sm:$0xf]
  %v520 = vld [vmem:[%s1 + $0x1cc] sm:$0xf]
  %v521 = vld [vmem:[%s1 + $0x1d0] sm:$0xf]
  %v522 = vld [vmem:[%s1 + $0x1d4] sm:$0xf]
  %v523 = vld [vmem:[%s1 + $0x1d8] sm:$0xf]
  %v524 = vld [vmem:[%s1 + $0x1dc] sm:$0xf]
  %v525 = vld [vmem:[%s1 + $0x1e0] sm:$0xf]
  %v526 = vld [vmem:[%s1 + $0x1e4] sm:$0xf]
  %v527 = vld [vmem:[%s1 + $0x1e8] sm:$0xf]
  %v528 = vld [vmem:[%s1 + $0x1ec] sm:$0xf]
  %v529 = vld [vmem:[%s1 + $0x1f0] sm:$0xf]
  %v530 = vld [vmem:[%s1 + $0x1f4] sm:$0xf]
  %v531 = vld [vmem:[%s1 + $0x1f8] sm:$0xf]
  %v532 = vld [vmem:[%s1 + $0x1fc] sm:$0xf]
  %v789 = vunpack.c.l.b16 %v149
  %v790 = vunpack.c.h.b16 %v149
  %v791 = vunpack.c.l.b16 %v150
  %v792 = vunpack.c.h.b16 %v150
  %v793 = vunpack.c.l.b16 %v151
  %v794 = vunpack.c.h.b16 %v151
  %v795 = vunpack.c.l.b16 %v152
  %v796 = vunpack.c.h.b16 %v152
  %v797 = vunpack.c.l.b16 %v153
  %v798 = vunpack.c.h.b16 %v153
  %v799 = vunpack.c.l.b16 %v154
  %v800 = vunpack.c.h.b16 %v154
  %v801 = vunpack.c.l.b16 %v155
  %v802 = vunpack.c.h.b16 %v155
  %v803 = vunpack.c.l.b16 %v156
  %v804 = vunpack.c.h.b16 %v156
  %v805 = vunpack.c.l.b16 %v157
  %v806 = vunpack.c.h.b16 %v157
  %v807 = vunpack.c.l.b16 %v158
  %v808 = vunpack.c.h.b16 %v158
  %v809 = vunpack.c.l.b16 %v159
  %v810 = vunpack.c.h.b16 %v159
  %v811 = vunpack.c.l.b16 %v160
  %v812 = vunpack.c.h.b16 %v160
  %v813 = vunpack.c.l.b16 %v161
  %v814 = vunpack.c.h.b16 %v161
  %v815 = vunpack.c.l.b16 %v162
  %v816 = vunpack.c.h.b16 %v162
  %v817 = vunpack.c.l.b16 %v163
  %v818 = vunpack.c.h.b16 %v163
  %v819 = vunpack.c.l.b16 %v164
  %v820 = vunpack.c.h.b16 %v164
  %v821 = vunpack.c.l.b16 %v165
  %v822 = vunpack.c.h.b16 %v165
  %v823 = vunpack.c.l.b16 %v166
  %v824 = vunpack.c.h.b16 %v166
  %v825 = vunpack.c.l.b16 %v167
  %v826 = vunpack.c.h.b16 %v167
  %v827 = vunpack.c.l.b16 %v168
  %v828 = vunpack.c.h.b16 %v168
  %v829 = vunpack.c.l.b16 %v169
  %v830 = vunpack.c.h.b16 %v169
  %v831 = vunpack.c.l.b16 %v170
  %v832 = vunpack.c.h.b16 %v170
  %v833 = vunpack.c.l.b16 %v171
  %v834 = vunpack.c.h.b16 %v171
  %v835 = vunpack.c.l.b16 %v172
  %v836 = vunpack.c.h.b16 %v172
  %v837 = vunpack.c.l.b16 %v173
  %v838 = vunpack.c.h.b16 %v173
  %v839 = vunpack.c.l.b16 %v174
  %v840 = vunpack.c.h.b16 %v174
  %v841 = vunpack.c.l.b16 %v175
  %v842 = vunpack.c.h.b16 %v175
  %v843 = vunpack.c.l.b16 %v176
  %v844 = vunpack.c.h.b16 %v176
  %v845 = vunpack.c.l.b16 %v177
  %v846 = vunpack.c.h.b16 %v177
  %v847 = vunpack.c.l.b16 %v178
  %v848 = vunpack.c.h.b16 %v178
  %v849 = vunpack.c.l.b16 %v179
  %v850 = vunpack.c.h.b16 %v179
  %v851 = vunpack.c.l.b16 %v180
  %v852 = vunpack.c.h.b16 %v180
  %v853 = vunpack.c.l.b16 %v181
  %v854 = vunpack.c.h.b16 %v181
  %v855 = vunpack.c.l.b16 %v182
  %v856 = vunpack.c.h.b16 %v182
  %v857 = vunpack.c.l.b16 %v183
  %v858 = vunpack.c.h.b16 %v183
  %v859 = vunpack.c.l.b16 %v184
  %v860 = vunpack.c.h.b16 %v184
  %v861 = vunpack.c.l.b16 %v185
  %v862 = vunpack.c.h.b16 %v185
  %v863 = vunpack.c.l.b16 %v186
  %v864 = vunpack.c.h.b16 %v186
  %v865 = vunpack.c.l.b16 %v187
  %v866 = vunpack.c.h.b16 %v187
  %v867 = vunpack.c.l.b16 %v188
  %v868 = vunpack.c.h.b16 %v188
  %v869 = vunpack.c.l.b16 %v189
  %v870 = vunpack.c.h.b16 %v189
  %v871 = vunpack.c.l.b16 %v190
  %v872 = vunpack.c.h.b16 %v190
  %v873 = vunpack.c.l.b16 %v191
  %v874 = vunpack.c.h.b16 %v191
  %v875 = vunpack.c.l.b16 %v192
  %v876 = vunpack.c.h.b16 %v192
  %v877 = vunpack.c.l.b16 %v193
  %v878 = vunpack.c.h.b16 %v193
  %v879 = vunpack.c.l.b16 %v194
  %v880 = vunpack.c.h.b16 %v194
  %v881 = vunpack.c.l.b16 %v195
  %v882 = vunpack.c.h.b16 %v195
  %v883 = vunpack.c.l.b16 %v196
  %v884 = vunpack.c.h.b16 %v196
  %v885 = vunpack.c.l.b16 %v197
  %v886 = vunpack.c.h.b16 %v197
  %v887 = vunpack.c.l.b16 %v198
  %v888 = vunpack.c.h.b16 %v198
  %v889 = vunpack.c.l.b16 %v199
  %v890 = vunpack.c.h.b16 %v199
  %v891 = vunpack.c.l.b16 %v200
  %v892 = vunpack.c.h.b16 %v200
  %v893 = vunpack.c.l.b16 %v201
  %v894 = vunpack.c.h.b16 %v201
  %v895 = vunpack.c.l.b16 %v202
  %v896 = vunpack.c.h.b16 %v202
  %v897 = vunpack.c.l.b16 %v203
  %v898 = vunpack.c.h.b16 %v203
  %v899 = vunpack.c.l.b16 %v204
  %v900 = vunpack.c.h.b16 %v204
  %v901 = vunpack.c.l.b16 %v205
  %v902 = vunpack.c.h.b16 %v205
  %v903 = vunpack.c.l.b16 %v206
  %v904 = vunpack.c.h.b16 %v206
  %v905 = vunpack.c.l.b16 %v207
  %v906 = vunpack.c.h.b16 %v207
  %v907 = vunpack.c.l.b16 %v208
  %v908 = vunpack.c.h.b16 %v208
  %v909 = vunpack.c.l.b16 %v209
  %v910 = vunpack.c.h.b16 %v209
  %v911 = vunpack.c.l.b16 %v210
  %v912 = vunpack.c.h.b16 %v210
  %v913 = vunpack.c.l.b16 %v211
  %v914 = vunpack.c.h.b16 %v211
  %v915 = vunpack.c.l.b16 %v212
  %v916 = vunpack.c.h.b16 %v212
  %v917 = vunpack.c.l.b16 %v213
  %v918 = vunpack.c.h.b16 %v213
  %v919 = vunpack.c.l.b16 %v214
  %v920 = vunpack.c.h.b16 %v214
  %v921 = vunpack.c.l.b16 %v215
  %v922 = vunpack.c.h.b16 %v215
  %v923 = vunpack.c.l.b16 %v216
  %v924 = vunpack.c.h.b16 %v216
  %v925 = vunpack.c.l.b16 %v217
  %v926 = vunpack.c.h.b16 %v217
  %v927 = vunpack.c.l.b16 %v218
  %v928 = vunpack.c.h.b16 %v218
  %v929 = vunpack.c.l.b16 %v219
  %v930 = vunpack.c.h.b16 %v219
  %v931 = vunpack.c.l.b16 %v220
  %v932 = vunpack.c.h.b16 %v220
  %v933 = vunpack.c.l.b16 %v221
  %v934 = vunpack.c.h.b16 %v221
  %v935 = vunpack.c.l.b16 %v222
  %v936 = vunpack.c.h.b16 %v222
  %v937 = vunpack.c.l.b16 %v223
  %v938 = vunpack.c.h.b16 %v223
  %v939 = vunpack.c.l.b16 %v224
  %v940 = vunpack.c.h.b16 %v224
  %v941 = vunpack.c.l.b16 %v225
  %v942 = vunpack.c.h.b16 %v225
  %v943 = vunpack.c.l.b16 %v226
  %v944 = vunpack.c.h.b16 %v226
  %v945 = vunpack.c.l.b16 %v227
  %v946 = vunpack.c.h.b16 %v227
  %v947 = vunpack.c.l.b16 %v228
  %v948 = vunpack.c.h.b16 %v228
  %v949 = vunpack.c.l.b16 %v229
  %v950 = vunpack.c.h.b16 %v229
  %v951 = vunpack.c.l.b16 %v230
  %v952 = vunpack.c.h.b16 %v230
  %v953 = vunpack.c.l.b16 %v231
  %v954 = vunpack.c.h.b16 %v231
  %v955 = vunpack.c.l.b16 %v232
  %v956 = vunpack.c.h.b16 %v232
  %v957 = vunpack.c.l.b16 %v233
  %v958 = vunpack.c.h.b16 %v233
  %v959 = vunpack.c.l.b16 %v234
  %v960 = vunpack.c.h.b16 %v234
  %v961 = vunpack.c.l.b16 %v235
  %v962 = vunpack.c.h.b16 %v235
  %v963 = vunpack.c.l.b16 %v236
  %v964 = vunpack.c.h.b16 %v236
  %v965 = vunpack.c.l.b16 %v237
  %v966 = vunpack.c.h.b16 %v237
  %v967 = vunpack.c.l.b16 %v238
  %v968 = vunpack.c.h.b16 %v238
  %v969 = vunpack.c.l.b16 %v239
  %v970 = vunpack.c.h.b16 %v239
  %v971 = vunpack.c.l.b16 %v240
  %v972 = vunpack.c.h.b16 %v240
  %v973 = vunpack.c.l.b16 %v241
  %v974 = vunpack.c.h.b16 %v241
  %v975 = vunpack.c.l.b16 %v242
  %v976 = vunpack.c.h.b16 %v242
  %v977 = vunpack.c.l.b16 %v243
  %v978 = vunpack.c.h.b16 %v243
  %v979 = vunpack.c.l.b16 %v244
  %v980 = vunpack.c.h.b16 %v244
  %v981 = vunpack.c.l.b16 %v245
  %v982 = vunpack.c.h.b16 %v245
  %v983 = vunpack.c.l.b16 %v246
  %v984 = vunpack.c.h.b16 %v246
  %v985 = vunpack.c.l.b16 %v247
  %v986 = vunpack.c.h.b16 %v247
  %v987 = vunpack.c.l.b16 %v248
  %v988 = vunpack.c.h.b16 %v248
  %v989 = vunpack.c.l.b16 %v249
  %v990 = vunpack.c.h.b16 %v249
  %v991 = vunpack.c.l.b16 %v250
  %v992 = vunpack.c.h.b16 %v250
  %v993 = vunpack.c.l.b16 %v251
  %v994 = vunpack.c.h.b16 %v251
  %v995 = vunpack.c.l.b16 %v252
  %v996 = vunpack.c.h.b16 %v252
  %v997 = vunpack.c.l.b16 %v253
  %v998 = vunpack.c.h.b16 %v253
  %v999 = vunpack.c.l.b16 %v254
  %v1000 = vunpack.c.h.b16 %v254
  %v1001 = vunpack.c.l.b16 %v255
  %v1002 = vunpack.c.h.b16 %v255
  %v1003 = vunpack.c.l.b16 %v256
  %v1004 = vunpack.c.h.b16 %v256
  %v1005 = vunpack.c.l.b16 %v257
  %v1006 = vunpack.c.h.b16 %v257
  %v1007 = vunpack.c.l.b16 %v258
  %v1008 = vunpack.c.h.b16 %v258
  %v1009 = vunpack.c.l.b16 %v259
  %v1010 = vunpack.c.h.b16 %v259
  %v1011 = vunpack.c.l.b16 %v260
  %v1012 = vunpack.c.h.b16 %v260
  %v1013 = vunpack.c.l.b16 %v261
  %v1014 = vunpack.c.h.b16 %v261
  %v1015 = vunpack.c.l.b16 %v262
  %v1016 = vunpack.c.h.b16 %v262
  %v1017 = vunpack.c.l.b16 %v263
  %v1018 = vunpack.c.h.b16 %v263
  %v1019 = vunpack.c.l.b16 %v264
  %v1020 = vunpack.c.h.b16 %v264
  %v1021 = vunpack.c.l.b16 %v265
  %v1022 = vunpack.c.h.b16 %v265
  %v1023 = vunpack.c.l.b16 %v266
  %v1024 = vunpack.c.h.b16 %v266
  %v1025 = vunpack.c.l.b16 %v267
  %v1026 = vunpack.c.h.b16 %v267
  %v1027 = vunpack.c.l.b16 %v268
  %v1028 = vunpack.c.h.b16 %v268
  %v1029 = vunpack.c.l.b16 %v269
  %v1030 = vunpack.c.h.b16 %v269
  %v1031 = vunpack.c.l.b16 %v270
  %v1032 = vunpack.c.h.b16 %v270
  %v1033 = vunpack.c.l.b16 %v271
  %v1034 = vunpack.c.h.b16 %v271
  %v1035 = vunpack.c.l.b16 %v272
  %v1036 = vunpack.c.h.b16 %v272
  %v1037 = vunpack.c.l.b16 %v273
  %v1038 = vunpack.c.h.b16 %v273
  %v1039 = vunpack.c.l.b16 %v274
  %v1040 = vunpack.c.h.b16 %v274
  %v1041 = vunpack.c.l.b16 %v275
  %v1042 = vunpack.c.h.b16 %v275
  %v1043 = vunpack.c.l.b16 %v276
  %v1044 = vunpack.c.h.b16 %v276
  %v1045 = vunpack.c.l.b16 %v277
  %v1046 = vunpack.c.h.b16 %v277
  %v1047 = vunpack.c.l.b16 %v278
  %v1048 = vunpack.c.h.b16 %v278
  %v1049 = vunpack.c.l.b16 %v279
  %v1050 = vunpack.c.h.b16 %v279
  %v1051 = vunpack.c.l.b16 %v280
  %v1052 = vunpack.c.h.b16 %v280
  %v1053 = vunpack.c.l.b16 %v281
  %v1054 = vunpack.c.h.b16 %v281
  %v1055 = vunpack.c.l.b16 %v282
  %v1056 = vunpack.c.h.b16 %v282
  %v1057 = vunpack.c.l.b16 %v283
  %v1058 = vunpack.c.h.b16 %v283
  %v1059 = vunpack.c.l.b16 %v284
  %v1060 = vunpack.c.h.b16 %v284
  %v1061 = vunpack.c.l.b16 %v285
  %v1062 = vunpack.c.h.b16 %v285
  %v1063 = vunpack.c.l.b16 %v286
  %v1064 = vunpack.c.h.b16 %v286
  %v1065 = vunpack.c.l.b16 %v287
  %v1066 = vunpack.c.h.b16 %v287
  %v1067 = vunpack.c.l.b16 %v288
  %v1068 = vunpack.c.h.b16 %v288
  %v1069 = vunpack.c.l.b16 %v289
  %v1070 = vunpack.c.h.b16 %v289
  %v1071 = vunpack.c.l.b16 %v290
  %v1072 = vunpack.c.h.b16 %v290
  %v1073 = vunpack.c.l.b16 %v291
  %v1074 = vunpack.c.h.b16 %v291
  %v1075 = vunpack.c.l.b16 %v292
  %v1076 = vunpack.c.h.b16 %v292
  %v1077 = vunpack.c.l.b16 %v293
  %v1078 = vunpack.c.h.b16 %v293
  %v1079 = vunpack.c.l.b16 %v294
  %v1080 = vunpack.c.h.b16 %v294
  %v1081 = vunpack.c.l.b16 %v295
  %v1082 = vunpack.c.h.b16 %v295
  %v1083 = vunpack.c.l.b16 %v296
  %v1084 = vunpack.c.h.b16 %v296
  %v1085 = vunpack.c.l.b16 %v297
  %v1086 = vunpack.c.h.b16 %v297
  %v1087 = vunpack.c.l.b16 %v298
  %v1088 = vunpack.c.h.b16 %v298
  %v1089 = vunpack.c.l.b16 %v299
  %v1090 = vunpack.c.h.b16 %v299
  %v1091 = vunpack.c.l.b16 %v300
  %v1092 = vunpack.c.h.b16 %v300
  %v1093 = vunpack.c.l.b16 %v301
  %v1094 = vunpack.c.h.b16 %v301
  %v1095 = vunpack.c.l.b16 %v302
  %v1096 = vunpack.c.h.b16 %v302
  %v1097 = vunpack.c.l.b16 %v303
  %v1098 = vunpack.c.h.b16 %v303
  %v1099 = vunpack.c.l.b16 %v304
  %v1100 = vunpack.c.h.b16 %v304
  %v1101 = vunpack.c.l.b16 %v305
  %v1102 = vunpack.c.h.b16 %v305
  %v1103 = vunpack.c.l.b16 %v306
  %v1104 = vunpack.c.h.b16 %v306
  %v1105 = vunpack.c.l.b16 %v307
  %v1106 = vunpack.c.h.b16 %v307
  %v1107 = vunpack.c.l.b16 %v308
  %v1108 = vunpack.c.h.b16 %v308
  %v1109 = vunpack.c.l.b16 %v309
  %v1110 = vunpack.c.h.b16 %v309
  %v1111 = vunpack.c.l.b16 %v310
  %v1112 = vunpack.c.h.b16 %v310
  %v1113 = vunpack.c.l.b16 %v311
  %v1114 = vunpack.c.h.b16 %v311
  %v1115 = vunpack.c.l.b16 %v312
  %v1116 = vunpack.c.h.b16 %v312
  %v1117 = vunpack.c.l.b16 %v313
  %v1118 = vunpack.c.h.b16 %v313
  %v1119 = vunpack.c.l.b16 %v314
  %v1120 = vunpack.c.h.b16 %v314
  %v1121 = vunpack.c.l.b16 %v315
  %v1122 = vunpack.c.h.b16 %v315
  %v1123 = vunpack.c.l.b16 %v316
  %v1124 = vunpack.c.h.b16 %v316
  %v1125 = vunpack.c.l.b16 %v317
  %v1126 = vunpack.c.h.b16 %v317
  %v1127 = vunpack.c.l.b16 %v318
  %v1128 = vunpack.c.h.b16 %v318
  %v1129 = vunpack.c.l.b16 %v319
  %v1130 = vunpack.c.h.b16 %v319
  %v1131 = vunpack.c.l.b16 %v320
  %v1132 = vunpack.c.h.b16 %v320
  %v1133 = vunpack.c.l.b16 %v321
  %v1134 = vunpack.c.h.b16 %v321
  %v1135 = vunpack.c.l.b16 %v322
  %v1136 = vunpack.c.h.b16 %v322
  %v1137 = vunpack.c.l.b16 %v323
  %v1138 = vunpack.c.h.b16 %v323
  %v1139 = vunpack.c.l.b16 %v324
  %v1140 = vunpack.c.h.b16 %v324
  %v1141 = vunpack.c.l.b16 %v325
  %v1142 = vunpack.c.h.b16 %v325
  %v1143 = vunpack.c.l.b16 %v326
  %v1144 = vunpack.c.h.b16 %v326
  %v1145 = vunpack.c.l.b16 %v327
  %v1146 = vunpack.c.h.b16 %v327
  %v1147 = vunpack.c.l.b16 %v328
  %v1148 = vunpack.c.h.b16 %v328
  %v1149 = vunpack.c.l.b16 %v329
  %v1150 = vunpack.c.h.b16 %v329
  %v1151 = vunpack.c.l.b16 %v330
  %v1152 = vunpack.c.h.b16 %v330
  %v1153 = vunpack.c.l.b16 %v331
  %v1154 = vunpack.c.h.b16 %v331
  %v1155 = vunpack.c.l.b16 %v332
  %v1156 = vunpack.c.h.b16 %v332
  %v1157 = vunpack.c.l.b16 %v333
  %v1158 = vunpack.c.h.b16 %v333
  %v1159 = vunpack.c.l.b16 %v334
  %v1160 = vunpack.c.h.b16 %v334
  %v1161 = vunpack.c.l.b16 %v335
  %v1162 = vunpack.c.h.b16 %v335
  %v1163 = vunpack.c.l.b16 %v336
  %v1164 = vunpack.c.h.b16 %v336
  %v1165 = vunpack.c.l.b16 %v337
  %v1166 = vunpack.c.h.b16 %v337
  %v1167 = vunpack.c.l.b16 %v338
  %v1168 = vunpack.c.h.b16 %v338
  %v1169 = vunpack.c.l.b16 %v339
  %v1170 = vunpack.c.h.b16 %v339
  %v1171 = vunpack.c.l.b16 %v340
  %v1172 = vunpack.c.h.b16 %v340
  %v1173 = vunpack.c.l.b16 %v341
  %v1174 = vunpack.c.h.b16 %v341
  %v1175 = vunpack.c.l.b16 %v342
  %v1176 = vunpack.c.h.b16 %v342
  %v1177 = vunpack.c.l.b16 %v343
  %v1178 = vunpack.c.h.b16 %v343
  %v1179 = vunpack.c.l.b16 %v344
  %v1180 = vunpack.c.h.b16 %v344
  %v1181 = vunpack.c.l.b16 %v345
  %v1182 = vunpack.c.h.b16 %v345
  %v1183 = vunpack.c.l.b16 %v346
  %v1184 = vunpack.c.h.b16 %v346
  %v1185 = vunpack.c.l.b16 %v347
  %v1186 = vunpack.c.h.b16 %v347
  %v1187 = vunpack.c.l.b16 %v348
  %v1188 = vunpack.c.h.b16 %v348
  %v1189 = vunpack.c.l.b16 %v349
  %v1190 = vunpack.c.h.b16 %v349
  %v1191 = vunpack.c.l.b16 %v350
  %v1192 = vunpack.c.h.b16 %v350
  %v1193 = vunpack.c.l.b16 %v351
  %v1194 = vunpack.c.h.b16 %v351
  %v1195 = vunpack.c.l.b16 %v352
  %v1196 = vunpack.c.h.b16 %v352
  %v1197 = vunpack.c.l.b16 %v353
  %v1198 = vunpack.c.h.b16 %v353
  %v1199 = vunpack.c.l.b16 %v354
  %v1200 = vunpack.c.h.b16 %v354
  %v1201 = vunpack.c.l.b16 %v355
  %v1202 = vunpack.c.h.b16 %v355
  %v1203 = vunpack.c.l.b16 %v356
  %v1204 = vunpack.c.h.b16 %v356
  %v1205 = vunpack.c.l.b16 %v357
  %v1206 = vunpack.c.h.b16 %v357
  %v1207 = vunpack.c.l.b16 %v358
  %v1208 = vunpack.c.h.b16 %v358
  %v1209 = vunpack.c.l.b16 %v359
  %v1210 = vunpack.c.h.b16 %v359
  %v1211 = vunpack.c.l.b16 %v360
  %v1212 = vunpack.c.h.b16 %v360
  %v1213 = vunpack.c.l.b16 %v361
  %v1214 = vunpack.c.h.b16 %v361
  %v1215 = vunpack.c.l.b16 %v362
  %v1216 = vunpack.c.h.b16 %v362
  %v1217 = vunpack.c.l.b16 %v363
  %v1218 = vunpack.c.h.b16 %v363
  %v1219 = vunpack.c.l.b16 %v364
  %v1220 = vunpack.c.h.b16 %v364
  %v1221 = vunpack.c.l.b16 %v365
  %v1222 = vunpack.c.h.b16 %v365
  %v1223 = vunpack.c.l.b16 %v366
  %v1224 = vunpack.c.h.b16 %v366
  %v1225 = vunpack.c.l.b16 %v367
  %v1226 = vunpack.c.h.b16 %v367
  %v1227 = vunpack.c.l.b16 %v368
  %v1228 = vunpack.c.h.b16 %v368
  %v1229 = vunpack.c.l.b16 %v369
  %v1230 = vunpack.c.h.b16 %v369
  %v1231 = vunpack.c.l.b16 %v370
  %v1232 = vunpack.c.h.b16 %v370
  %v1233 = vunpack.c.l.b16 %v371
  %v1234 = vunpack.c.h.b16 %v371
  %v1235 = vunpack.c.l.b16 %v372
  %v1236 = vunpack.c.h.b16 %v372
  %v1237 = vunpack.c.l.b16 %v373
  %v1238 = vunpack.c.h.b16 %v373
  %v1239 = vunpack.c.l.b16 %v374
  %v1240 = vunpack.c.h.b16 %v374
  %v1241 = vunpack.c.l.b16 %v375
  %v1242 = vunpack.c.h.b16 %v375
  %v1243 = vunpack.c.l.b16 %v376
  %v1244 = vunpack.c.h.b16 %v376
  %v1245 = vunpack.c.l.b16 %v377
  %v1246 = vunpack.c.h.b16 %v377
  %v1247 = vunpack.c.l.b16 %v378
  %v1248 = vunpack.c.h.b16 %v378
  %v1249 = vunpack.c.l.b16 %v379
  %v1250 = vunpack.c.h.b16 %v379
  %v1251 = vunpack.c.l.b16 %v380
  %v1252 = vunpack.c.h.b16 %v380
  %v1253 = vunpack.c.l.b16 %v381
  %v1254 = vunpack.c.h.b16 %v381
  %v1255 = vunpack.c.l.b16 %v382
  %v1256 = vunpack.c.h.b16 %v382
  %v1257 = vunpack.c.l.b16 %v383
  %v1258 = vunpack.c.h.b16 %v383
  %v1259 = vunpack.c.l.b16 %v384
  %v1260 = vunpack.c.h.b16 %v384
  %v1261 = vunpack.c.l.b16 %v385
  %v1262 = vunpack.c.h.b16 %v385
  %v1263 = vunpack.c.l.b16 %v386
  %v1264 = vunpack.c.h.b16 %v386
  %v1265 = vunpack.c.l.b16 %v387
  %v1266 = vunpack.c.h.b16 %v387
  %v1267 = vunpack.c.l.b16 %v388
  %v1268 = vunpack.c.h.b16 %v388
  %v1269 = vunpack.c.l.b16 %v389
  %v1270 = vunpack.c.h.b16 %v389
  %v1271 = vunpack.c.l.b16 %v390
  %v1272 = vunpack.c.h.b16 %v390
  %v1273 = vunpack.c.l.b16 %v391
  %v1274 = vunpack.c.h.b16 %v391
  %v1275 = vunpack.c.l.b16 %v392
  %v1276 = vunpack.c.h.b16 %v392
  %v1277 = vunpack.c.l.b16 %v393
  %v1278 = vunpack.c.h.b16 %v393
  %v1279 = vunpack.c.l.b16 %v394
  %v1280 = vunpack.c.h.b16 %v394
  %v1281 = vunpack.c.l.b16 %v395
  %v1282 = vunpack.c.h.b16 %v395
  %v1283 = vunpack.c.l.b16 %v396
  %v1284 = vunpack.c.h.b16 %v396
  %v1285 = vunpack.c.l.b16 %v397
  %v1286 = vunpack.c.h.b16 %v397
  %v1287 = vunpack.c.l.b16 %v398
  %v1288 = vunpack.c.h.b16 %v398
  %v1289 = vunpack.c.l.b16 %v399
  %v1290 = vunpack.c.h.b16 %v399
  %v1291 = vunpack.c.l.b16 %v400
  %v1292 = vunpack.c.h.b16 %v400
  %v1293 = vunpack.c.l.b16 %v401
  %v1294 = vunpack.c.h.b16 %v401
  %v1295 = vunpack.c.l.b16 %v402
  %v1296 = vunpack.c.h.b16 %v402
  %v1297 = vunpack.c.l.b16 %v403
  %v1298 = vunpack.c.h.b16 %v403
  %v1299 = vunpack.c.l.b16 %v404
  %v1300 = vunpack.c.h.b16 %v404
  %v1301 = vpack.c.b16 %v797, %v789
  %v1302 = vpack.c.b16 %v798, %v790
  %v1303 = vpack.c.b16 %v799, %v791
  %v1304 = vpack.c.b16 %v800, %v792
  %v1305 = vpack.c.b16 %v801, %v793
  %v1306 = vpack.c.b16 %v802, %v794
  %v1307 = vpack.c.b16 %v803, %v795
  %v1308 = vpack.c.b16 %v804, %v796
  %v1309 = vpack.c.b16 %v813, %v805
  %v1310 = vpack.c.b16 %v814, %v806
  %v1311 = vpack.c.b16 %v815, %v807
  %v1312 = vpack.c.b16 %v816, %v808
  %v1313 = vpack.c.b16 %v817, %v809
  %v1314 = vpack.c.b16 %v818, %v810
  %v1315 = vpack.c.b16 %v819, %v811
  %v1316 = vpack.c.b16 %v820, %v812
  %v1317 = vpack.c.b16 %v829, %v821
  %v1318 = vpack.c.b16 %v830, %v822
  %v1319 = vpack.c.b16 %v831, %v823
  %v1320 = vpack.c.b16 %v832, %v824
  %v1321 = vpack.c.b16 %v833, %v825
  %v1322 = vpack.c.b16 %v834, %v826
  %v1323 = vpack.c.b16 %v835, %v827
  %v1324 = vpack.c.b16 %v836, %v828
  %v1325 = vpack.c.b16 %v845, %v837
  %v1326 = vpack.c.b16 %v846, %v838
  %v1327 = vpack.c.b16 %v847, %v839
  %v1328 = vpack.c.b16 %v848, %v840
  %v1329 = vpack.c.b16 %v849, %v841
  %v1330 = vpack.c.b16 %v850, %v842
  %v1331 = vpack.c.b16 %v851, %v843
  %v1332 = vpack.c.b16 %v852, %v844
  %v1333 = vpack.c.b16 %v861, %v853
  %v1334 = vpack.c.b16 %v862, %v854
  %v1335 = vpack.c.b16 %v863, %v855
  %v1336 = vpack.c.b16 %v864, %v856
  %v1337 = vpack.c.b16 %v865, %v857
  %v1338 = vpack.c.b16 %v866, %v858
  %v1339 = vpack.c.b16 %v867, %v859
  %v1340 = vpack.c.b16 %v868, %v860
  %v1341 = vpack.c.b16 %v877, %v869
  %v1342 = vpack.c.b16 %v878, %v870
  %v1343 = vpack.c.b16 %v879, %v871
  %v1344 = vpack.c.b16 %v880, %v872
  %v1345 = vpack.c.b16 %v881, %v873
  %v1346 = vpack.c.b16 %v882, %v874
  %v1347 = vpack.c.b16 %v883, %v875
  %v1348 = vpack.c.b16 %v884, %v876
  %v1349 = vpack.c.b16 %v893, %v885
  %v1350 = vpack.c.b16 %v894, %v886
  %v1351 = vpack.c.b16 %v895, %v887
  %v1352 = vpack.c.b16 %v896, %v888
  %v1353 = vpack.c.b16 %v897, %v889
  %v1354 = vpack.c.b16 %v898, %v890
  %v1355 = vpack.c.b16 %v899, %v891
  %v1356 = vpack.c.b16 %v900, %v892
  %v1357 = vpack.c.b16 %v909, %v901
  %v1358 = vpack.c.b16 %v910, %v902
  %v1359 = vpack.c.b16 %v911, %v903
  %v1360 = vpack.c.b16 %v912, %v904
  %v1361 = vpack.c.b16 %v913, %v905
  %v1362 = vpack.c.b16 %v914, %v906
  %v1363 = vpack.c.b16 %v915, %v907
  %v1364 = vpack.c.b16 %v916, %v908
  %v1365 = vpack.c.b16 %v925, %v917
  %v1366 = vpack.c.b16 %v926, %v918
  %v1367 = vpack.c.b16 %v927, %v919
  %v1368 = vpack.c.b16 %v928, %v920
  %v1369 = vpack.c.b16 %v929, %v921
  %v1370 = vpack.c.b16 %v930, %v922
  %v1371 = vpack.c.b16 %v931, %v923
  %v1372 = vpack.c.b16 %v932, %v924
  %v1373 = vpack.c.b16 %v941, %v933
  %v1374 = vpack.c.b16 %v942, %v934
  %v1375 = vpack.c.b16 %v943, %v935
  %v1376 = vpack.c.b16 %v944, %v936
  %v1377 = vpack.c.b16 %v945, %v937
  %v1378 = vpack.c.b16 %v946, %v938
  %v1379 = vpack.c.b16 %v947, %v939
  %v1380 = vpack.c.b16 %v948, %v940
  %v1381 = vpack.c.b16 %v957, %v949
  %v1382 = vpack.c.b16 %v958, %v950
  %v1383 = vpack.c.b16 %v959, %v951
  %v1384 = vpack.c.b16 %v960, %v952
  %v1385 = vpack.c.b16 %v961, %v953
  %v1386 = vpack.c.b16 %v962, %v954
  %v1387 = vpack.c.b16 %v963, %v955
  %v1388 = vpack.c.b16 %v964, %v956
  %v1389 = vpack.c.b16 %v973, %v965
  %v1390 = vpack.c.b16 %v974, %v966
  %v1391 = vpack.c.b16 %v975, %v967
  %v1392 = vpack.c.b16 %v976, %v968
  %v1393 = vpack.c.b16 %v977, %v969
  %v1394 = vpack.c.b16 %v978, %v970
  %v1395 = vpack.c.b16 %v979, %v971
  %v1396 = vpack.c.b16 %v980, %v972
  %v1397 = vpack.c.b16 %v989, %v981
  %v1398 = vpack.c.b16 %v990, %v982
  %v1399 = vpack.c.b16 %v991, %v983
  %v1400 = vpack.c.b16 %v992, %v984
  %v1401 = vpack.c.b16 %v993, %v985
  %v1402 = vpack.c.b16 %v994, %v986
  %v1403 = vpack.c.b16 %v995, %v987
  %v1404 = vpack.c.b16 %v996, %v988
  %v1405 = vpack.c.b16 %v1005, %v997
  %v1406 = vpack.c.b16 %v1006, %v998
  %v1407 = vpack.c.b16 %v1007, %v999
  %v1408 = vpack.c.b16 %v1008, %v1000
  %v1409 = vpack.c.b16 %v1009, %v1001
  %v1410 = vpack.c.b16 %v1010, %v1002
  %v1411 = vpack.c.b16 %v1011, %v1003
  %v1412 = vpack.c.b16 %v1012, %v1004
  %v1413 = vpack.c.b16 %v1021, %v1013
  %v1414 = vpack.c.b16 %v1022, %v1014
  %v1415 = vpack.c.b16 %v1023, %v1015
  %v1416 = vpack.c.b16 %v1024, %v1016
  %v1417 = vpack.c.b16 %v1025, %v1017
  %v1418 = vpack.c.b16 %v1026, %v1018
  %v1419 = vpack.c.b16 %v1027, %v1019
  %v1420 = vpack.c.b16 %v1028, %v1020
  %v1421 = vpack.c.b16 %v1037, %v1029
  %v1422 = vpack.c.b16 %v1038, %v1030
  %v1423 = vpack.c.b16 %v1039, %v1031
  %v1424 = vpack.c.b16 %v1040, %v1032
  %v1425 = vpack.c.b16 %v1041, %v1033
  %v1426 = vpack.c.b16 %v1042, %v1034
  %v1427 = vpack.c.b16 %v1043, %v1035
  %v1428 = vpack.c.b16 %v1044, %v1036
  %v1429 = vpack.c.b16 %v1053, %v1045
  %v1430 = vpack.c.b16 %v1054, %v1046
  %v1431 = vpack.c.b16 %v1055, %v1047
  %v1432 = vpack.c.b16 %v1056, %v1048
  %v1433 = vpack.c.b16 %v1057, %v1049
  %v1434 = vpack.c.b16 %v1058, %v1050
  %v1435 = vpack.c.b16 %v1059, %v1051
  %v1436 = vpack.c.b16 %v1060, %v1052
  %v1437 = vpack.c.b16 %v1069, %v1061
  %v1438 = vpack.c.b16 %v1070, %v1062
  %v1439 = vpack.c.b16 %v1071, %v1063
  %v1440 = vpack.c.b16 %v1072, %v1064
  %v1441 = vpack.c.b16 %v1073, %v1065
  %v1442 = vpack.c.b16 %v1074, %v1066
  %v1443 = vpack.c.b16 %v1075, %v1067
  %v1444 = vpack.c.b16 %v1076, %v1068
  %v1445 = vpack.c.b16 %v1085, %v1077
  %v1446 = vpack.c.b16 %v1086, %v1078
  %v1447 = vpack.c.b16 %v1087, %v1079
  %v1448 = vpack.c.b16 %v1088, %v1080
  %v1449 = vpack.c.b16 %v1089, %v1081
  %v1450 = vpack.c.b16 %v1090, %v1082
  %v1451 = vpack.c.b16 %v1091, %v1083
  %v1452 = vpack.c.b16 %v1092, %v1084
  %v1453 = vpack.c.b16 %v1101, %v1093
  %v1454 = vpack.c.b16 %v1102, %v1094
  %v1455 = vpack.c.b16 %v1103, %v1095
  %v1456 = vpack.c.b16 %v1104, %v1096
  %v1457 = vpack.c.b16 %v1105, %v1097
  %v1458 = vpack.c.b16 %v1106, %v1098
  %v1459 = vpack.c.b16 %v1107, %v1099
  %v1460 = vpack.c.b16 %v1108, %v1100
  %v1461 = vpack.c.b16 %v1117, %v1109
  %v1462 = vpack.c.b16 %v1118, %v1110
  %v1463 = vpack.c.b16 %v1119, %v1111
  %v1464 = vpack.c.b16 %v1120, %v1112
  %v1465 = vpack.c.b16 %v1121, %v1113
  %v1466 = vpack.c.b16 %v1122, %v1114
  %v1467 = vpack.c.b16 %v1123, %v1115
  %v1468 = vpack.c.b16 %v1124, %v1116
  %v1469 = vpack.c.b16 %v1133, %v1125
  %v1470 = vpack.c.b16 %v1134, %v1126
  %v1471 = vpack.c.b16 %v1135, %v1127
  %v1472 = vpack.c.b16 %v1136, %v1128
  %v1473 = vpack.c.b16 %v1137, %v1129
  %v1474 = vpack.c.b16 %v1138, %v1130
  %v1475 = vpack.c.b16 %v1139, %v1131
  %v1476 = vpack.c.b16 %v1140, %v1132
  %v1477 = vpack.c.b16 %v1149, %v1141
  %v1478 = vpack.c.b16 %v1150, %v1142
  %v1479 = vpack.c.b16 %v1151, %v1143
  %v1480 = vpack.c.b16 %v1152, %v1144
  %v1481 = vpack.c.b16 %v1153, %v1145
  %v1482 = vpack.c.b16 %v1154, %v1146
  %v1483 = vpack.c.b16 %v1155, %v1147
  %v1484 = vpack.c.b16 %v1156, %v1148
  %v1485 = vpack.c.b16 %v1165, %v1157
  %v1486 = vpack.c.b16 %v1166, %v1158
  %v1487 = vpack.c.b16 %v1167, %v1159
  %v1488 = vpack.c.b16 %v1168, %v1160
  %v1489 = vpack.c.b16 %v1169, %v1161
  %v1490 = vpack.c.b16 %v1170, %v1162
  %v1491 = vpack.c.b16 %v1171, %v1163
  %v1492 = vpack.c.b16 %v1172, %v1164
  %v1493 = vpack.c.b16 %v1181, %v1173
  %v1494 = vpack.c.b16 %v1182, %v1174
  %v1495 = vpack.c.b16 %v1183, %v1175
  %v1496 = vpack.c.b16 %v1184, %v1176
  %v1497 = vpack.c.b16 %v1185, %v1177
  %v1498 = vpack.c.b16 %v1186, %v1178
  %v1499 = vpack.c.b16 %v1187, %v1179
  %v1500 = vpack.c.b16 %v1188, %v1180
  %v1501 = vpack.c.b16 %v1197, %v1189
  %v1502 = vpack.c.b16 %v1198, %v1190
  %v1503 = vpack.c.b16 %v1199, %v1191
  %v1504 = vpack.c.b16 %v1200, %v1192
  %v1505 = vpack.c.b16 %v1201, %v1193
  %v1506 = vpack.c.b16 %v1202, %v1194
  %v1507 = vpack.c.b16 %v1203, %v1195
  %v1508 = vpack.c.b16 %v1204, %v1196
  %v1509 = vpack.c.b16 %v1213, %v1205
  %v1510 = vpack.c.b16 %v1214, %v1206
  %v1511 = vpack.c.b16 %v1215, %v1207
  %v1512 = vpack.c.b16 %v1216, %v1208
  %v1513 = vpack.c.b16 %v1217, %v1209
  %v1514 = vpack.c.b16 %v1218, %v1210
  %v1515 = vpack.c.b16 %v1219, %v1211
  %v1516 = vpack.c.b16 %v1220, %v1212
  %v1517 = vpack.c.b16 %v1229, %v1221
  %v1518 = vpack.c.b16 %v1230, %v1222
  %v1519 = vpack.c.b16 %v1231, %v1223
  %v1520 = vpack.c.b16 %v1232, %v1224
  %v1521 = vpack.c.b16 %v1233, %v1225
  %v1522 = vpack.c.b16 %v1234, %v1226
  %v1523 = vpack.c.b16 %v1235, %v1227
  %v1524 = vpack.c.b16 %v1236, %v1228
  %v1525 = vpack.c.b16 %v1245, %v1237
  %v1526 = vpack.c.b16 %v1246, %v1238
  %v1527 = vpack.c.b16 %v1247, %v1239
  %v1528 = vpack.c.b16 %v1248, %v1240
  %v1529 = vpack.c.b16 %v1249, %v1241
  %v1530 = vpack.c.b16 %v1250, %v1242
  %v1531 = vpack.c.b16 %v1251, %v1243
  %v1532 = vpack.c.b16 %v1252, %v1244
  %v1533 = vpack.c.b16 %v1261, %v1253
  %v1534 = vpack.c.b16 %v1262, %v1254
  %v1535 = vpack.c.b16 %v1263, %v1255
  %v1536 = vpack.c.b16 %v1264, %v1256
  %v1537 = vpack.c.b16 %v1265, %v1257
  %v1538 = vpack.c.b16 %v1266, %v1258
  %v1539 = vpack.c.b16 %v1267, %v1259
  %v1540 = vpack.c.b16 %v1268, %v1260
  %v1541 = vpack.c.b16 %v1277, %v1269
  %v1542 = vpack.c.b16 %v1278, %v1270
  %v1543 = vpack.c.b16 %v1279, %v1271
  %v1544 = vpack.c.b16 %v1280, %v1272
  %v1545 = vpack.c.b16 %v1281, %v1273
  %v1546 = vpack.c.b16 %v1282, %v1274
  %v1547 = vpack.c.b16 %v1283, %v1275
  %v1548 = vpack.c.b16 %v1284, %v1276
  %v1549 = vpack.c.b16 %v1293, %v1285
  %v1550 = vpack.c.b16 %v1294, %v1286
  %v1551 = vpack.c.b16 %v1295, %v1287
  %v1552 = vpack.c.b16 %v1296, %v1288
  %v1553 = vpack.c.b16 %v1297, %v1289
  %v1554 = vpack.c.b16 %v1298, %v1290
  %v1555 = vpack.c.b16 %v1299, %v1291
  %v1556 = vpack.c.b16 %v1300, %v1292
  %v1941 = vunpack.c.l.b16 %v405
  %v1942 = vunpack.c.l.b16 %v406
  %v1943 = vunpack.c.l.b16 %v407
  %v1944 = vunpack.c.l.b16 %v408
  %v1945 = vunpack.c.l.b16 %v409
  %v1946 = vunpack.c.l.b16 %v410
  %v1947 = vunpack.c.l.b16 %v411
  %v1948 = vunpack.c.l.b16 %v412
  %v1949 = vunpack.c.l.b16 %v413
  %v1950 = vunpack.c.l.b16 %v414
  %v1951 = vunpack.c.l.b16 %v415
  %v1952 = vunpack.c.l.b16 %v416
  %v1953 = vunpack.c.l.b16 %v417
  %v1954 = vunpack.c.l.b16 %v418
  %v1955 = vunpack.c.l.b16 %v419
  %v1956 = vunpack.c.l.b16 %v420
  %v1957 = vunpack.c.l.b16 %v421
  %v1958 = vunpack.c.l.b16 %v422
  %v1959 = vunpack.c.l.b16 %v423
  %v1960 = vunpack.c.l.b16 %v424
  %v1961 = vunpack.c.l.b16 %v425
  %v1962 = vunpack.c.l.b16 %v426
  %v1963 = vunpack.c.l.b16 %v427
  %v1964 = vunpack.c.l.b16 %v428
  %v1965 = vunpack.c.l.b16 %v429
  %v1966 = vunpack.c.l.b16 %v430
  %v1967 = vunpack.c.l.b16 %v431
  %v1968 = vunpack.c.l.b16 %v432
  %v1969 = vunpack.c.l.b16 %v433
  %v1970 = vunpack.c.l.b16 %v434
  %v1971 = vunpack.c.l.b16 %v435
  %v1972 = vunpack.c.l.b16 %v436
  %v1973 = vunpack.c.l.b16 %v437
  %v1974 = vunpack.c.l.b16 %v438
  %v1975 = vunpack.c.l.b16 %v439
  %v1976 = vunpack.c.l.b16 %v440
  %v1977 = vunpack.c.l.b16 %v441
  %v1978 = vunpack.c.l.b16 %v442
  %v1979 = vunpack.c.l.b16 %v443
  %v1980 = vunpack.c.l.b16 %v444
  %v1981 = vunpack.c.l.b16 %v445
  %v1982 = vunpack.c.l.b16 %v446
  %v1983 = vunpack.c.l.b16 %v447
  %v1984 = vunpack.c.l.b16 %v448
  %v1985 = vunpack.c.l.b16 %v449
  %v1986 = vunpack.c.l.b16 %v450
  %v1987 = vunpack.c.l.b16 %v451
  %v1988 = vunpack.c.l.b16 %v452
  %v1989 = vunpack.c.l.b16 %v453
  %v1990 = vunpack.c.l.b16 %v454
  %v1991 = vunpack.c.l.b16 %v455
  %v1992 = vunpack.c.l.b16 %v456
  %v1993 = vunpack.c.l.b16 %v457
  %v1994 = vunpack.c.l.b16 %v458
  %v1995 = vunpack.c.l.b16 %v459
  %v1996 = vunpack.c.l.b16 %v460
  %v1997 = vunpack.c.l.b16 %v461
  %v1998 = vunpack.c.l.b16 %v462
  %v1999 = vunpack.c.l.b16 %v463
  %v2000 = vunpack.c.l.b16 %v464
  %v2001 = vunpack.c.l.b16 %v465
  %v2002 = vunpack.c.l.b16 %v466
  %v2003 = vunpack.c.l.b16 %v467
  %v2004 = vunpack.c.l.b16 %v468
  %v2005 = vunpack.c.l.b16 %v469
  %v2006 = vunpack.c.l.b16 %v470
  %v2007 = vunpack.c.l.b16 %v471
  %v2008 = vunpack.c.l.b16 %v472
  %v2009 = vunpack.c.l.b16 %v473
  %v2010 = vunpack.c.l.b16 %v474
  %v2011 = vunpack.c.l.b16 %v475
  %v2012 = vunpack.c.l.b16 %v476
  %v2013 = vunpack.c.l.b16 %v477
  %v2014 = vunpack.c.l.b16 %v478
  %v2015 = vunpack.c.l.b16 %v479
  %v2016 = vunpack.c.l.b16 %v480
  %v2017 = vunpack.c.l.b16 %v481
  %v2018 = vunpack.c.l.b16 %v482
  %v2019 = vunpack.c.l.b16 %v483
  %v2020 = vunpack.c.l.b16 %v484
  %v2021 = vunpack.c.l.b16 %v485
  %v2022 = vunpack.c.l.b16 %v486
  %v2023 = vunpack.c.l.b16 %v487
  %v2024 = vunpack.c.l.b16 %v488
  %v2025 = vunpack.c.l.b16 %v489
  %v2026 = vunpack.c.l.b16 %v490
  %v2027 = vunpack.c.l.b16 %v491
  %v2028 = vunpack.c.l.b16 %v492
  %v2029 = vunpack.c.l.b16 %v493
  %v2030 = vunpack.c.l.b16 %v494
  %v2031 = vunpack.c.l.b16 %v495
  %v2032 = vunpack.c.l.b16 %v496
  %v2033 = vunpack.c.l.b16 %v497
  %v2034 = vunpack.c.l.b16 %v498
  %v2035 = vunpack.c.l.b16 %v499
  %v2036 = vunpack.c.l.b16 %v500
  %v2037 = vunpack.c.l.b16 %v501
  %v2038 = vunpack.c.l.b16 %v502
  %v2039 = vunpack.c.l.b16 %v503
  %v2040 = vunpack.c.l.b16 %v504
  %v2041 = vunpack.c.l.b16 %v505
  %v2042 = vunpack.c.l.b16 %v506
  %v2043 = vunpack.c.l.b16 %v507
  %v2044 = vunpack.c.l.b16 %v508
  %v2045 = vunpack.c.l.b16 %v509
  %v2046 = vunpack.c.l.b16 %v510
  %v2047 = vunpack.c.l.b16 %v511
  %v2048 = vunpack.c.l.b16 %v512
  %v2049 = vunpack.c.l.b16 %v513
  %v2050 = vunpack.c.l.b16 %v514
  %v2051 = vunpack.c.l.b16 %v515
  %v2052 = vunpack.c.l.b16 %v516
  %v2053 = vunpack.c.l.b16 %v517
  %v2054 = vunpack.c.l.b16 %v518
  %v2055 = vunpack.c.l.b16 %v519
  %v2056 = vunpack.c.l.b16 %v520
  %v2057 = vunpack.c.l.b16 %v521
  %v2058 = vunpack.c.l.b16 %v522
  %v2059 = vunpack.c.l.b16 %v523
  %v2060 = vunpack.c.l.b16 %v524
  %v2061 = vunpack.c.l.b16 %v525
  %v2062 = vunpack.c.l.b16 %v526
  %v2063 = vunpack.c.l.b16 %v527
  %v2064 = vunpack.c.l.b16 %v528
  %v2065 = vunpack.c.l.b16 %v529
  %v2066 = vunpack.c.l.b16 %v530
  %v2067 = vunpack.c.l.b16 %v531
  %v2068 = vunpack.c.l.b16 %v532
  %v2069 = vpack.c.b16 %v1942, %v1941
  %v2070 = vpack.c.b16 %v1944, %v1943
  %v2071 = vpack.c.b16 %v1946, %v1945
  %v2072 = vpack.c.b16 %v1948, %v1947
  %v2073 = vpack.c.b16 %v1950, %v1949
  %v2074 = vpack.c.b16 %v1952, %v1951
  %v2075 = vpack.c.b16 %v1954, %v1953
  %v2076 = vpack.c.b16 %v1956, %v1955
  %v2077 = vpack.c.b16 %v1958, %v1957
  %v2078 = vpack.c.b16 %v1960, %v1959
  %v2079 = vpack.c.b16 %v1962, %v1961
  %v2080 = vpack.c.b16 %v1964, %v1963
  %v2081 = vpack.c.b16 %v1966, %v1965
  %v2082 = vpack.c.b16 %v1968, %v1967
  %v2083 = vpack.c.b16 %v1970, %v1969
  %v2084 = vpack.c.b16 %v1972, %v1971
  %v2085 = vpack.c.b16 %v1974, %v1973
  %v2086 = vpack.c.b16 %v1976, %v1975
  %v2087 = vpack.c.b16 %v1978, %v1977
  %v2088 = vpack.c.b16 %v1980, %v1979
  %v2089 = vpack.c.b16 %v1982, %v1981
  %v2090 = vpack.c.b16 %v1984, %v1983
  %v2091 = vpack.c.b16 %v1986, %v1985
  %v2092 = vpack.c.b16 %v1988, %v1987
  %v2093 = vpack.c.b16 %v1990, %v1989
  %v2094 = vpack.c.b16 %v1992, %v1991
  %v2095 = vpack.c.b16 %v1994, %v1993
  %v2096 = vpack.c.b16 %v1996, %v1995
  %v2097 = vpack.c.b16 %v1998, %v1997
  %v2098 = vpack.c.b16 %v2000, %v1999
  %v2099 = vpack.c.b16 %v2002, %v2001
  %v2100 = vpack.c.b16 %v2004, %v2003
  %v2101 = vpack.c.b16 %v2006, %v2005
  %v2102 = vpack.c.b16 %v2008, %v2007
  %v2103 = vpack.c.b16 %v2010, %v2009
  %v2104 = vpack.c.b16 %v2012, %v2011
  %v2105 = vpack.c.b16 %v2014, %v2013
  %v2106 = vpack.c.b16 %v2016, %v2015
  %v2107 = vpack.c.b16 %v2018, %v2017
  %v2108 = vpack.c.b16 %v2020, %v2019
  %v2109 = vpack.c.b16 %v2022, %v2021
  %v2110 = vpack.c.b16 %v2024, %v2023
  %v2111 = vpack.c.b16 %v2026, %v2025
  %v2112 = vpack.c.b16 %v2028, %v2027
  %v2113 = vpack.c.b16 %v2030, %v2029
  %v2114 = vpack.c.b16 %v2032, %v2031
  %v2115 = vpack.c.b16 %v2034, %v2033
  %v2116 = vpack.c.b16 %v2036, %v2035
  %v2117 = vpack.c.b16 %v2038, %v2037
  %v2118 = vpack.c.b16 %v2040, %v2039
  %v2119 = vpack.c.b16 %v2042, %v2041
  %v2120 = vpack.c.b16 %v2044, %v2043
  %v2121 = vpack.c.b16 %v2046, %v2045
  %v2122 = vpack.c.b16 %v2048, %v2047
  %v2123 = vpack.c.b16 %v2050, %v2049
  %v2124 = vpack.c.b16 %v2052, %v2051
  %v2125 = vpack.c.b16 %v2054, %v2053
  %v2126 = vpack.c.b16 %v2056, %v2055
  %v2127 = vpack.c.b16 %v2058, %v2057
  %v2128 = vpack.c.b16 %v2060, %v2059
  %v2129 = vpack.c.b16 %v2062, %v2061
  %v2130 = vpack.c.b16 %v2064, %v2063
  %v2131 = vpack.c.b16 %v2066, %v2065
  %v2132 = vpack.c.b16 %v2068, %v2067
  %2197 = vmatpush.bf16.msra.mxu0 %v2076
  %2198 = vmatpush.bf16.msra.mxu0 %v2075
  %2199 = vmatpush.bf16.msra.mxu0 %v2074
  %2200 = vmatpush.bf16.msra.mxu0 %v2073
  %2201 = vmatpush.bf16.msra.mxu0 %v2072
  %2202 = vmatpush.bf16.msra.mxu0 %v2071
  %2203 = vmatpush.bf16.msra.mxu0 %v2070
  %2204 = vmatpush.bf16.msra.mxu0 %v2069
  %2205 = vmatmul.bf16.gmra.mxu0 %v1301
  %v2206 = vpop.f32.mrf.mxu0
  %v2207 = vadd.f32 0.0, %v2206
  %v2208 = vpop.f32.mrf.mxu0
  %v2209 = vadd.f32 0.0, %v2208
  %2210 = vmatmul.bf16.gmra.mxu0 %v1309
  %v2211 = vpop.f32.mrf.mxu0
  %v2212 = vadd.f32 0.0, %v2211
  %v2213 = vpop.f32.mrf.mxu0
  %v2214 = vadd.f32 0.0, %v2213
  %2215 = vmatmul.bf16.gmra.mxu0 %v1317
  %v2216 = vpop.f32.mrf.mxu0
  %v2217 = vadd.f32 0.0, %v2216
  %v2218 = vpop.f32.mrf.mxu0
  %v2219 = vadd.f32 0.0, %v2218
  %2220 = vmatmul.bf16.gmra.mxu0 %v1325
  %v2221 = vpop.f32.mrf.mxu0
  %v2222 = vadd.f32 0.0, %v2221
  %v2223 = vpop.f32.mrf.mxu0
  %v2224 = vadd.f32 0.0, %v2223
  %2225 = vmatmul.bf16.gmra.mxu0 %v1333
  %v2226 = vpop.f32.mrf.mxu0
  %v2227 = vadd.f32 0.0, %v2226
  %v2228 = vpop.f32.mrf.mxu0
  %v2229 = vadd.f32 0.0, %v2228
  %2230 = vmatmul.bf16.gmra.mxu0 %v1341
  %v2231 = vpop.f32.mrf.mxu0
  %v2232 = vadd.f32 0.0, %v2231
  %v2233 = vpop.f32.mrf.mxu0
  %v2234 = vadd.f32 0.0, %v2233
  %2235 = vmatmul.bf16.gmra.mxu0 %v1349
  %v2236 = vpop.f32.mrf.mxu0
  %v2237 = vadd.f32 0.0, %v2236
  %v2238 = vpop.f32.mrf.mxu0
  %v2239 = vadd.f32 0.0, %v2238
  %2240 = vmatmul.bf16.gmra.mxu0 %v1357
  %v2241 = vpop.f32.mrf.mxu0
  %v2242 = vadd.f32 0.0, %v2241
  %v2243 = vpop.f32.mrf.mxu0
  %v2244 = vadd.f32 0.0, %v2243
  %2245 = vmatmul.bf16.gmra.mxu0 %v1365
  %v2246 = vpop.f32.mrf.mxu0
  %v2247 = vadd.f32 0.0, %v2246
  %v2248 = vpop.f32.mrf.mxu0
  %v2249 = vadd.f32 0.0, %v2248
  %2250 = vmatmul.bf16.gmra.mxu0 %v1373
  %v2251 = vpop.f32.mrf.mxu0
  %v2252 = vadd.f32 0.0, %v2251
  %v2253 = vpop.f32.mrf.mxu0
  %v2254 = vadd.f32 0.0, %v2253
  %2255 = vmatmul.bf16.gmra.mxu0 %v1381
  %v2256 = vpop.f32.mrf.mxu0
  %v2257 = vadd.f32 0.0, %v2256
  %v2258 = vpop.f32.mrf.mxu0
  %v2259 = vadd.f32 0.0, %v2258
  %2260 = vmatmul.bf16.gmra.mxu0 %v1389
  %v2261 = vpop.f32.mrf.mxu0
  %v2262 = vadd.f32 0.0, %v2261
  %v2263 = vpop.f32.mrf.mxu0
  %v2264 = vadd.f32 0.0, %v2263
  %2265 = vmatmul.bf16.gmra.mxu0 %v1397
  %v2266 = vpop.f32.mrf.mxu0
  %v2267 = vadd.f32 0.0, %v2266
  %v2268 = vpop.f32.mrf.mxu0
  %v2269 = vadd.f32 0.0, %v2268
  %2270 = vmatmul.bf16.gmra.mxu0 %v1405
  %v2271 = vpop.f32.mrf.mxu0
  %v2272 = vadd.f32 0.0, %v2271
  %v2273 = vpop.f32.mrf.mxu0
  %v2274 = vadd.f32 0.0, %v2273
  %2275 = vmatmul.bf16.gmra.mxu0 %v1413
  %v2276 = vpop.f32.mrf.mxu0
  %v2277 = vadd.f32 0.0, %v2276
  %v2278 = vpop.f32.mrf.mxu0
  %v2279 = vadd.f32 0.0, %v2278
  %2280 = vmatmul.bf16.gmra.mxu0 %v1421
  %v2281 = vpop.f32.mrf.mxu0
  %v2282 = vadd.f32 0.0, %v2281
  %v2283 = vpop.f32.mrf.mxu0
  %v2284 = vadd.f32 0.0, %v2283
  %2285 = vmatmul.bf16.gmra.mxu0 %v1429
  %v2286 = vpop.f32.mrf.mxu0
  %v2287 = vadd.f32 0.0, %v2286
  %v2288 = vpop.f32.mrf.mxu0
  %v2289 = vadd.f32 0.0, %v2288
  %2290 = vmatmul.bf16.gmra.mxu0 %v1437
  %v2291 = vpop.f32.mrf.mxu0
  %v2292 = vadd.f32 0.0, %v2291
  %v2293 = vpop.f32.mrf.mxu0
  %v2294 = vadd.f32 0.0, %v2293
  %2295 = vmatmul.bf16.gmra.mxu0 %v1445
  %v2296 = vpop.f32.mrf.mxu0
  %v2297 = vadd.f32 0.0, %v2296
  %v2298 = vpop.f32.mrf.mxu0
  %v2299 = vadd.f32 0.0, %v2298
  %2300 = vmatmul.bf16.gmra.mxu0 %v1453
  %v2301 = vpop.f32.mrf.mxu0
  %v2302 = vadd.f32 0.0, %v2301
  %v2303 = vpop.f32.mrf.mxu0
  %v2304 = vadd.f32 0.0, %v2303
  %2305 = vmatmul.bf16.gmra.mxu0 %v1461
  %v2306 = vpop.f32.mrf.mxu0
  %v2307 = vadd.f32 0.0, %v2306
  %v2308 = vpop.f32.mrf.mxu0
  %v2309 = vadd.f32 0.0, %v2308
  %2310 = vmatmul.bf16.gmra.mxu0 %v1469
  %v2311 = vpop.f32.mrf.mxu0
  %v2312 = vadd.f32 0.0, %v2311
  %v2313 = vpop.f32.mrf.mxu0
  %v2314 = vadd.f32 0.0, %v2313
  %2315 = vmatmul.bf16.gmra.mxu0 %v1477
  %v2316 = vpop.f32.mrf.mxu0
  %v2317 = vadd.f32 0.0, %v2316
  %v2318 = vpop.f32.mrf.mxu0
  %v2319 = vadd.f32 0.0, %v2318
  %2320 = vmatmul.bf16.gmra.mxu0 %v1485
  %v2321 = vpop.f32.mrf.mxu0
  %v2322 = vadd.f32 0.0, %v2321
  %v2323 = vpop.f32.mrf.mxu0
  %v2324 = vadd.f32 0.0, %v2323
  %2325 = vmatmul.bf16.gmra.mxu0 %v1493
  %v2326 = vpop.f32.mrf.mxu0
  %v2327 = vadd.f32 0.0, %v2326
  %v2328 = vpop.f32.mrf.mxu0
  %v2329 = vadd.f32 0.0, %v2328
  %2330 = vmatmul.bf16.gmra.mxu0 %v1501
  %v2331 = vpop.f32.mrf.mxu0
  %v2332 = vadd.f32 0.0, %v2331
  %v2333 = vpop.f32.mrf.mxu0
  %v2334 = vadd.f32 0.0, %v2333
  %2335 = vmatmul.bf16.gmra.mxu0 %v1509
  %v2336 = vpop.f32.mrf.mxu0
  %v2337 = vadd.f32 0.0, %v2336
  %v2338 = vpop.f32.mrf.mxu0
  %v2339 = vadd.f32 0.0, %v2338
  %2340 = vmatmul.bf16.gmra.mxu0 %v1517
  %v2341 = vpop.f32.mrf.mxu0
  %v2342 = vadd.f32 0.0, %v2341
  %v2343 = vpop.f32.mrf.mxu0
  %v2344 = vadd.f32 0.0, %v2343
  %2345 = vmatmul.bf16.gmra.mxu0 %v1525
  %v2346 = vpop.f32.mrf.mxu0
  %v2347 = vadd.f32 0.0, %v2346
  %v2348 = vpop.f32.mrf.mxu0
  %v2349 = vadd.f32 0.0, %v2348
  %2350 = vmatmul.bf16.gmra.mxu0 %v1533
  %v2351 = vpop.f32.mrf.mxu0
  %v2352 = vadd.f32 0.0, %v2351
  %v2353 = vpop.f32.mrf.mxu0
  %v2354 = vadd.f32 0.0, %v2353
  %2355 = vmatmul.bf16.gmra.mxu0 %v1541
  %v2356 = vpop.f32.mrf.mxu0
  %v2357 = vadd.f32 0.0, %v2356
  %v2358 = vpop.f32.mrf.mxu0
  %v2359 = vadd.f32 0.0, %v2358
  %2360 = vmatmul.bf16.gmra.mxu0 %v1549
  %v2361 = vpop.f32.mrf.mxu0
  %v2362 = vadd.f32 0.0, %v2361
  %v2363 = vpop.f32.mrf.mxu0
  %v2364 = vadd.f32 0.0, %v2363
  %2365 = vdwg.mxu0
  %2366 = vmatpush.bf16.msra.mxu0 %v2084
  %2367 = vmatpush.bf16.msra.mxu0 %v2083
  %2368 = vmatpush.bf16.msra.mxu0 %v2082
  %2369 = vmatpush.bf16.msra.mxu0 %v2081
  %2370 = vmatpush.bf16.msra.mxu0 %v2080
  %2371 = vmatpush.bf16.msra.mxu0 %v2079
  %2372 = vmatpush.bf16.msra.mxu0 %v2078
  %2373 = vmatpush.bf16.msra.mxu0 %v2077
  %2374 = vmatmul.bf16.gmra.mxu0 %v1302
  %v2375 = vpop.f32.mrf.mxu0
  %v2376 = vadd.f32 %v2207, %v2375
  %v2377 = vpop.f32.mrf.mxu0
  %v2378 = vadd.f32 %v2209, %v2377
  %2379 = vmatmul.bf16.gmra.mxu0 %v1310
  %v2380 = vpop.f32.mrf.mxu0
  %v2381 = vadd.f32 %v2212, %v2380
  %v2382 = vpop.f32.mrf.mxu0
  %v2383 = vadd.f32 %v2214, %v2382
  %2384 = vmatmul.bf16.gmra.mxu0 %v1318
  %v2385 = vpop.f32.mrf.mxu0
  %v2386 = vadd.f32 %v2217, %v2385
  %v2387 = vpop.f32.mrf.mxu0
  %v2388 = vadd.f32 %v2219, %v2387
  %2389 = vmatmul.bf16.gmra.mxu0 %v1326
  %v2390 = vpop.f32.mrf.mxu0
  %v2391 = vadd.f32 %v2222, %v2390
  %v2392 = vpop.f32.mrf.mxu0
  %v2393 = vadd.f32 %v2224, %v2392
  %2394 = vmatmul.bf16.gmra.mxu0 %v1334
  %v2395 = vpop.f32.mrf.mxu0
  %v2396 = vadd.f32 %v2227, %v2395
  %v2397 = vpop.f32.mrf.mxu0
  %v2398 = vadd.f32 %v2229, %v2397
  %2399 = vmatmul.bf16.gmra.mxu0 %v1342
  %v2400 = vpop.f32.mrf.mxu0
  %v2401 = vadd.f32 %v2232, %v2400
  %v2402 = vpop.f32.mrf.mxu0
  %v2403 = vadd.f32 %v2234, %v2402
  %2404 = vmatmul.bf16.gmra.mxu0 %v1350
  %v2405 = vpop.f32.mrf.mxu0
  %v2406 = vadd.f32 %v2237, %v2405
  %v2407 = vpop.f32.mrf.mxu0
  %v2408 = vadd.f32 %v2239, %v2407
  %2409 = vmatmul.bf16.gmra.mxu0 %v1358
  %v2410 = vpop.f32.mrf.mxu0
  %v2411 = vadd.f32 %v2242, %v2410
  %v2412 = vpop.f32.mrf.mxu0
  %v2413 = vadd.f32 %v2244, %v2412
  %2414 = vmatmul.bf16.gmra.mxu0 %v1366
  %v2415 = vpop.f32.mrf.mxu0
  %v2416 = vadd.f32 %v2247, %v2415
  %v2417 = vpop.f32.mrf.mxu0
  %v2418 = vadd.f32 %v2249, %v2417
  %2419 = vmatmul.bf16.gmra.mxu0 %v1374
  %v2420 = vpop.f32.mrf.mxu0
  %v2421 = vadd.f32 %v2252, %v2420
  %v2422 = vpop.f32.mrf.mxu0
  %v2423 = vadd.f32 %v2254, %v2422
  %2424 = vmatmul.bf16.gmra.mxu0 %v1382
  %v2425 = vpop.f32.mrf.mxu0
  %v2426 = vadd.f32 %v2257, %v2425
  %v2427 = vpop.f32.mrf.mxu0
  %v2428 = vadd.f32 %v2259, %v2427
  %2429 = vmatmul.bf16.gmra.mxu0 %v1390
  %v2430 = vpop.f32.mrf.mxu0
  %v2431 = vadd.f32 %v2262, %v2430
  %v2432 = vpop.f32.mrf.mxu0
  %v2433 = vadd.f32 %v2264, %v2432
  %2434 = vmatmul.bf16.gmra.mxu0 %v1398
  %v2435 = vpop.f32.mrf.mxu0
  %v2436 = vadd.f32 %v2267, %v2435
  %v2437 = vpop.f32.mrf.mxu0
  %v2438 = vadd.f32 %v2269, %v2437
  %2439 = vmatmul.bf16.gmra.mxu0 %v1406
  %v2440 = vpop.f32.mrf.mxu0
  %v2441 = vadd.f32 %v2272, %v2440
  %v2442 = vpop.f32.mrf.mxu0
  %v2443 = vadd.f32 %v2274, %v2442
  %2444 = vmatmul.bf16.gmra.mxu0 %v1414
  %v2445 = vpop.f32.mrf.mxu0
  %v2446 = vadd.f32 %v2277, %v2445
  %v2447 = vpop.f32.mrf.mxu0
  %v2448 = vadd.f32 %v2279, %v2447
  %2449 = vmatmul.bf16.gmra.mxu0 %v1422
  %v2450 = vpop.f32.mrf.mxu0
  %v2451 = vadd.f32 %v2282, %v2450
  %v2452 = vpop.f32.mrf.mxu0
  %v2453 = vadd.f32 %v2284, %v2452
  %2454 = vmatmul.bf16.gmra.mxu0 %v1430
  %v2455 = vpop.f32.mrf.mxu0
  %v2456 = vadd.f32 %v2287, %v2455
  %v2457 = vpop.f32.mrf.mxu0
  %v2458 = vadd.f32 %v2289, %v2457
  %2459 = vmatmul.bf16.gmra.mxu0 %v1438
  %v2460 = vpop.f32.mrf.mxu0
  %v2461 = vadd.f32 %v2292, %v2460
  %v2462 = vpop.f32.mrf.mxu0
  %v2463 = vadd.f32 %v2294, %v2462
  %2464 = vmatmul.bf16.gmra.mxu0 %v1446
  %v2465 = vpop.f32.mrf.mxu0
  %v2466 = vadd.f32 %v2297, %v2465
  %v2467 = vpop.f32.mrf.mxu0
  %v2468 = vadd.f32 %v2299, %v2467
  %2469 = vmatmul.bf16.gmra.mxu0 %v1454
  %v2470 = vpop.f32.mrf.mxu0
  %v2471 = vadd.f32 %v2302, %v2470
  %v2472 = vpop.f32.mrf.mxu0
  %v2473 = vadd.f32 %v2304, %v2472
  %2474 = vmatmul.bf16.gmra.mxu0 %v1462
  %v2475 = vpop.f32.mrf.mxu0
  %v2476 = vadd.f32 %v2307, %v2475
  %v2477 = vpop.f32.mrf.mxu0
  %v2478 = vadd.f32 %v2309, %v2477
  %2479 = vmatmul.bf16.gmra.mxu0 %v1470
  %v2480 = vpop.f32.mrf.mxu0
  %v2481 = vadd.f32 %v2312, %v2480
  %v2482 = vpop.f32.mrf.mxu0
  %v2483 = vadd.f32 %v2314, %v2482
  %2484 = vmatmul.bf16.gmra.mxu0 %v1478
  %v2485 = vpop.f32.mrf.mxu0
  %v2486 = vadd.f32 %v2317, %v2485
  %v2487 = vpop.f32.mrf.mxu0
  %v2488 = vadd.f32 %v2319, %v2487
  %2489 = vmatmul.bf16.gmra.mxu0 %v1486
  %v2490 = vpop.f32.mrf.mxu0
  %v2491 = vadd.f32 %v2322, %v2490
  %v2492 = vpop.f32.mrf.mxu0
  %v2493 = vadd.f32 %v2324, %v2492
  %2494 = vmatmul.bf16.gmra.mxu0 %v1494
  %v2495 = vpop.f32.mrf.mxu0
  %v2496 = vadd.f32 %v2327, %v2495
  %v2497 = vpop.f32.mrf.mxu0
  %v2498 = vadd.f32 %v2329, %v2497
  %2499 = vmatmul.bf16.gmra.mxu0 %v1502
  %v2500 = vpop.f32.mrf.mxu0
  %v2501 = vadd.f32 %v2332, %v2500
  %v2502 = vpop.f32.mrf.mxu0
  %v2503 = vadd.f32 %v2334, %v2502
  %2504 = vmatmul.bf16.gmra.mxu0 %v1510
  %v2505 = vpop.f32.mrf.mxu0
  %v2506 = vadd.f32 %v2337, %v2505
  %v2507 = vpop.f32.mrf.mxu0
  %v2508 = vadd.f32 %v2339, %v2507
  %2509 = vmatmul.bf16.gmra.mxu0 %v1518
  %v2510 = vpop.f32.mrf.mxu0
  %v2511 = vadd.f32 %v2342, %v2510
  %v2512 = vpop.f32.mrf.mxu0
  %v2513 = vadd.f32 %v2344, %v2512
  %2514 = vmatmul.bf16.gmra.mxu0 %v1526
  %v2515 = vpop.f32.mrf.mxu0
  %v2516 = vadd.f32 %v2347, %v2515
  %v2517 = vpop.f32.mrf.mxu0
  %v2518 = vadd.f32 %v2349, %v2517
  %2519 = vmatmul.bf16.gmra.mxu0 %v1534
  %v2520 = vpop.f32.mrf.mxu0
  %v2521 = vadd.f32 %v2352, %v2520
  %v2522 = vpop.f32.mrf.mxu0
  %v2523 = vadd.f32 %v2354, %v2522
  %2524 = vmatmul.bf16.gmra.mxu0 %v1542
  %v2525 = vpop.f32.mrf.mxu0
  %v2526 = vadd.f32 %v2357, %v2525
  %v2527 = vpop.f32.mrf.mxu0
  %v2528 = vadd.f32 %v2359, %v2527
  %2529 = vmatmul.bf16.gmra.mxu0 %v1550
  %v2530 = vpop.f32.mrf.mxu0
  %v2531 = vadd.f32 %v2362, %v2530
  %v2532 = vpop.f32.mrf.mxu0
  %v2533 = vadd.f32 %v2364, %v2532
  %2534 = vdwg.mxu0
  %2535 = vmatpush.bf16.msra.mxu0 %v2092
  %2536 = vmatpush.bf16.msra.mxu0 %v2091
  %2537 = vmatpush.bf16.msra.mxu0 %v2090
  %2538 = vmatpush.bf16.msra.mxu0 %v2089
  %2539 = vmatpush.bf16.msra.mxu0 %v2088
  %2540 = vmatpush.bf16.msra.mxu0 %v2087
  %2541 = vmatpush.bf16.msra.mxu0 %v2086
  %2542 = vmatpush.bf16.msra.mxu0 %v2085
  %2543 = vmatmul.bf16.gmra.mxu0 %v1303
  %v2544 = vpop.f32.mrf.mxu0
  %v2545 = vadd.f32 %v2376, %v2544
  %v2546 = vpop.f32.mrf.mxu0
  %v2547 = vadd.f32 %v2378, %v2546
  %2548 = vmatmul.bf16.gmra.mxu0 %v1311
  %v2549 = vpop.f32.mrf.mxu0
  %v2550 = vadd.f32 %v2381, %v2549
  %v2551 = vpop.f32.mrf.mxu0
  %v2552 = vadd.f32 %v2383, %v2551
  %2553 = vmatmul.bf16.gmra.mxu0 %v1319
  %v2554 = vpop.f32.mrf.mxu0
  %v2555 = vadd.f32 %v2386, %v2554
  %v2556 = vpop.f32.mrf.mxu0
  %v2557 = vadd.f32 %v2388, %v2556
  %2558 = vmatmul.bf16.gmra.mxu0 %v1327
  %v2559 = vpop.f32.mrf.mxu0
  %v2560 = vadd.f32 %v2391, %v2559
  %v2561 = vpop.f32.mrf.mxu0
  %v2562 = vadd.f32 %v2393, %v2561
  %2563 = vmatmul.bf16.gmra.mxu0 %v1335
  %v2564 = vpop.f32.mrf.mxu0
  %v2565 = vadd.f32 %v2396, %v2564
  %v2566 = vpop.f32.mrf.mxu0
  %v2567 = vadd.f32 %v2398, %v2566
  %2568 = vmatmul.bf16.gmra.mxu0 %v1343
  %v2569 = vpop.f32.mrf.mxu0
  %v2570 = vadd.f32 %v2401, %v2569
  %v2571 = vpop.f32.mrf.mxu0
  %v2572 = vadd.f32 %v2403, %v2571
  %2573 = vmatmul.bf16.gmra.mxu0 %v1351
  %v2574 = vpop.f32.mrf.mxu0
  %v2575 = vadd.f32 %v2406, %v2574
  %v2576 = vpop.f32.mrf.mxu0
  %v2577 = vadd.f32 %v2408, %v2576
  %2578 = vmatmul.bf16.gmra.mxu0 %v1359
  %v2579 = vpop.f32.mrf.mxu0
  %v2580 = vadd.f32 %v2411, %v2579
  %v2581 = vpop.f32.mrf.mxu0
  %v2582 = vadd.f32 %v2413, %v2581
  %2583 = vmatmul.bf16.gmra.mxu0 %v1367
  %v2584 = vpop.f32.mrf.mxu0
  %v2585 = vadd.f32 %v2416, %v2584
  %v2586 = vpop.f32.mrf.mxu0
  %v2587 = vadd.f32 %v2418, %v2586
  %2588 = vmatmul.bf16.gmra.mxu0 %v1375
  %v2589 = vpop.f32.mrf.mxu0
  %v2590 = vadd.f32 %v2421, %v2589
  %v2591 = vpop.f32.mrf.mxu0
  %v2592 = vadd.f32 %v2423, %v2591
  %2593 = vmatmul.bf16.gmra.mxu0 %v1383
  %v2594 = vpop.f32.mrf.mxu0
  %v2595 = vadd.f32 %v2426, %v2594
  %v2596 = vpop.f32.mrf.mxu0
  %v2597 = vadd.f32 %v2428, %v2596
  %2598 = vmatmul.bf16.gmra.mxu0 %v1391
  %v2599 = vpop.f32.mrf.mxu0
  %v2600 = vadd.f32 %v2431, %v2599
  %v2601 = vpop.f32.mrf.mxu0
  %v2602 = vadd.f32 %v2433, %v2601
  %2603 = vmatmul.bf16.gmra.mxu0 %v1399
  %v2604 = vpop.f32.mrf.mxu0
  %v2605 = vadd.f32 %v2436, %v2604
  %v2606 = vpop.f32.mrf.mxu0
  %v2607 = vadd.f32 %v2438, %v2606
  %2608 = vmatmul.bf16.gmra.mxu0 %v1407
  %v2609 = vpop.f32.mrf.mxu0
  %v2610 = vadd.f32 %v2441, %v2609
  %v2611 = vpop.f32.mrf.mxu0
  %v2612 = vadd.f32 %v2443, %v2611
  %2613 = vmatmul.bf16.gmra.mxu0 %v1415
  %v2614 = vpop.f32.mrf.mxu0
  %v2615 = vadd.f32 %v2446, %v2614
  %v2616 = vpop.f32.mrf.mxu0
  %v2617 = vadd.f32 %v2448, %v2616
  %2618 = vmatmul.bf16.gmra.mxu0 %v1423
  %v2619 = vpop.f32.mrf.mxu0
  %v2620 = vadd.f32 %v2451, %v2619
  %v2621 = vpop.f32.mrf.mxu0
  %v2622 = vadd.f32 %v2453, %v2621
  %2623 = vmatmul.bf16.gmra.mxu0 %v1431
  %v2624 = vpop.f32.mrf.mxu0
  %v2625 = vadd.f32 %v2456, %v2624
  %v2626 = vpop.f32.mrf.mxu0
  %v2627 = vadd.f32 %v2458, %v2626
  %2628 = vmatmul.bf16.gmra.mxu0 %v1439
  %v2629 = vpop.f32.mrf.mxu0
  %v2630 = vadd.f32 %v2461, %v2629
  %v2631 = vpop.f32.mrf.mxu0
  %v2632 = vadd.f32 %v2463, %v2631
  %2633 = vmatmul.bf16.gmra.mxu0 %v1447
  %v2634 = vpop.f32.mrf.mxu0
  %v2635 = vadd.f32 %v2466, %v2634
  %v2636 = vpop.f32.mrf.mxu0
  %v2637 = vadd.f32 %v2468, %v2636
  %2638 = vmatmul.bf16.gmra.mxu0 %v1455
  %v2639 = vpop.f32.mrf.mxu0
  %v2640 = vadd.f32 %v2471, %v2639
  %v2641 = vpop.f32.mrf.mxu0
  %v2642 = vadd.f32 %v2473, %v2641
  %2643 = vmatmul.bf16.gmra.mxu0 %v1463
  %v2644 = vpop.f32.mrf.mxu0
  %v2645 = vadd.f32 %v2476, %v2644
  %v2646 = vpop.f32.mrf.mxu0
  %v2647 = vadd.f32 %v2478, %v2646
  %2648 = vmatmul.bf16.gmra.mxu0 %v1471
  %v2649 = vpop.f32.mrf.mxu0
  %v2650 = vadd.f32 %v2481, %v2649
  %v2651 = vpop.f32.mrf.mxu0
  %v2652 = vadd.f32 %v2483, %v2651
  %2653 = vmatmul.bf16.gmra.mxu0 %v1479
  %v2654 = vpop.f32.mrf.mxu0
  %v2655 = vadd.f32 %v2486, %v2654
  %v2656 = vpop.f32.mrf.mxu0
  %v2657 = vadd.f32 %v2488, %v2656
  %2658 = vmatmul.bf16.gmra.mxu0 %v1487
  %v2659 = vpop.f32.mrf.mxu0
  %v2660 = vadd.f32 %v2491, %v2659
  %v2661 = vpop.f32.mrf.mxu0
  %v2662 = vadd.f32 %v2493, %v2661
  %2663 = vmatmul.bf16.gmra.mxu0 %v1495
  %v2664 = vpop.f32.mrf.mxu0
  %v2665 = vadd.f32 %v2496, %v2664
  %v2666 = vpop.f32.mrf.mxu0
  %v2667 = vadd.f32 %v2498, %v2666
  %2668 = vmatmul.bf16.gmra.mxu0 %v1503
  %v2669 = vpop.f32.mrf.mxu0
  %v2670 = vadd.f32 %v2501, %v2669
  %v2671 = vpop.f32.mrf.mxu0
  %v2672 = vadd.f32 %v2503, %v2671
  %2673 = vmatmul.bf16.gmra.mxu0 %v1511
  %v2674 = vpop.f32.mrf.mxu0
  %v2675 = vadd.f32 %v2506, %v2674
  %v2676 = vpop.f32.mrf.mxu0
  %v2677 = vadd.f32 %v2508, %v2676
  %2678 = vmatmul.bf16.gmra.mxu0 %v1519
  %v2679 = vpop.f32.mrf.mxu0
  %v2680 = vadd.f32 %v2511, %v2679
  %v2681 = vpop.f32.mrf.mxu0
  %v2682 = vadd.f32 %v2513, %v2681
  %2683 = vmatmul.bf16.gmra.mxu0 %v1527
  %v2684 = vpop.f32.mrf.mxu0
  %v2685 = vadd.f32 %v2516, %v2684
  %v2686 = vpop.f32.mrf.mxu0
  %v2687 = vadd.f32 %v2518, %v2686
  %2688 = vmatmul.bf16.gmra.mxu0 %v1535
  %v2689 = vpop.f32.mrf.mxu0
  %v2690 = vadd.f32 %v2521, %v2689
  %v2691 = vpop.f32.mrf.mxu0
  %v2692 = vadd.f32 %v2523, %v2691
  %2693 = vmatmul.bf16.gmra.mxu0 %v1543
  %v2694 = vpop.f32.mrf.mxu0
  %v2695 = vadd.f32 %v2526, %v2694
  %v2696 = vpop.f32.mrf.mxu0
  %v2697 = vadd.f32 %v2528, %v2696
  %2698 = vmatmul.bf16.gmra.mxu0 %v1551
  %v2699 = vpop.f32.mrf.mxu0
  %v2700 = vadd.f32 %v2531, %v2699
  %v2701 = vpop.f32.mrf.mxu0
  %v2702 = vadd.f32 %v2533, %v2701
  %2703 = vdwg.mxu0
  %2704 = vmatpush.bf16.msra.mxu0 %v2100
  %2705 = vmatpush.bf16.msra.mxu0 %v2099
  %2706 = vmatpush.bf16.msra.mxu0 %v2098
  %2707 = vmatpush.bf16.msra.mxu0 %v2097
  %2708 = vmatpush.bf16.msra.mxu0 %v2096
  %2709 = vmatpush.bf16.msra.mxu0 %v2095
  %2710 = vmatpush.bf16.msra.mxu0 %v2094
  %2711 = vmatpush.bf16.msra.mxu0 %v2093
  %2712 = vmatmul.bf16.gmra.mxu0 %v1304
  %v2713 = vpop.f32.mrf.mxu0
  %v2714 = vadd.f32 %v2545, %v2713
  %v2715 = vpop.f32.mrf.mxu0
  %v2716 = vadd.f32 %v2547, %v2715
  %2717 = vmatmul.bf16.gmra.mxu0 %v1312
  %v2718 = vpop.f32.mrf.mxu0
  %v2719 = vadd.f32 %v2550, %v2718
  %v2720 = vpop.f32.mrf.mxu0
  %v2721 = vadd.f32 %v2552, %v2720
  %2722 = vmatmul.bf16.gmra.mxu0 %v1320
  %v2723 = vpop.f32.mrf.mxu0
  %v2724 = vadd.f32 %v2555, %v2723
  %v2725 = vpop.f32.mrf.mxu0
  %v2726 = vadd.f32 %v2557, %v2725
  %2727 = vmatmul.bf16.gmra.mxu0 %v1328
  %v2728 = vpop.f32.mrf.mxu0
  %v2729 = vadd.f32 %v2560, %v2728
  %v2730 = vpop.f32.mrf.mxu0
  %v2731 = vadd.f32 %v2562, %v2730
  %2732 = vmatmul.bf16.gmra.mxu0 %v1336
  %v2733 = vpop.f32.mrf.mxu0
  %v2734 = vadd.f32 %v2565, %v2733
  %v2735 = vpop.f32.mrf.mxu0
  %v2736 = vadd.f32 %v2567, %v2735
  %2737 = vmatmul.bf16.gmra.mxu0 %v1344
  %v2738 = vpop.f32.mrf.mxu0
  %v2739 = vadd.f32 %v2570, %v2738
  %v2740 = vpop.f32.mrf.mxu0
  %v2741 = vadd.f32 %v2572, %v2740
  %2742 = vmatmul.bf16.gmra.mxu0 %v1352
  %v2743 = vpop.f32.mrf.mxu0
  %v2744 = vadd.f32 %v2575, %v2743
  %v2745 = vpop.f32.mrf.mxu0
  %v2746 = vadd.f32 %v2577, %v2745
  %2747 = vmatmul.bf16.gmra.mxu0 %v1360
  %v2748 = vpop.f32.mrf.mxu0
  %v2749 = vadd.f32 %v2580, %v2748
  %v2750 = vpop.f32.mrf.mxu0
  %v2751 = vadd.f32 %v2582, %v2750
  %2752 = vmatmul.bf16.gmra.mxu0 %v1368
  %v2753 = vpop.f32.mrf.mxu0
  %v2754 = vadd.f32 %v2585, %v2753
  %v2755 = vpop.f32.mrf.mxu0
  %v2756 = vadd.f32 %v2587, %v2755
  %2757 = vmatmul.bf16.gmra.mxu0 %v1376
  %v2758 = vpop.f32.mrf.mxu0
  %v2759 = vadd.f32 %v2590, %v2758
  %v2760 = vpop.f32.mrf.mxu0
  %v2761 = vadd.f32 %v2592, %v2760
  %2762 = vmatmul.bf16.gmra.mxu0 %v1384
  %v2763 = vpop.f32.mrf.mxu0
  %v2764 = vadd.f32 %v2595, %v2763
  %v2765 = vpop.f32.mrf.mxu0
  %v2766 = vadd.f32 %v2597, %v2765
  %2767 = vmatmul.bf16.gmra.mxu0 %v1392
  %v2768 = vpop.f32.mrf.mxu0
  %v2769 = vadd.f32 %v2600, %v2768
  %v2770 = vpop.f32.mrf.mxu0
  %v2771 = vadd.f32 %v2602, %v2770
  %2772 = vmatmul.bf16.gmra.mxu0 %v1400
  %v2773 = vpop.f32.mrf.mxu0
  %v2774 = vadd.f32 %v2605, %v2773
  %v2775 = vpop.f32.mrf.mxu0
  %v2776 = vadd.f32 %v2607, %v2775
  %2777 = vmatmul.bf16.gmra.mxu0 %v1408
  %v2778 = vpop.f32.mrf.mxu0
  %v2779 = vadd.f32 %v2610, %v2778
  %v2780 = vpop.f32.mrf.mxu0
  %v2781 = vadd.f32 %v2612, %v2780
  %2782 = vmatmul.bf16.gmra.mxu0 %v1416
  %v2783 = vpop.f32.mrf.mxu0
  %v2784 = vadd.f32 %v2615, %v2783
  %v2785 = vpop.f32.mrf.mxu0
  %v2786 = vadd.f32 %v2617, %v2785
  %2787 = vmatmul.bf16.gmra.mxu0 %v1424
  %v2788 = vpop.f32.mrf.mxu0
  %v2789 = vadd.f32 %v2620, %v2788
  %v2790 = vpop.f32.mrf.mxu0
  %v2791 = vadd.f32 %v2622, %v2790
  %2792 = vmatmul.bf16.gmra.mxu0 %v1432
  %v2793 = vpop.f32.mrf.mxu0
  %v2794 = vadd.f32 %v2625, %v2793
  %v2795 = vpop.f32.mrf.mxu0
  %v2796 = vadd.f32 %v2627, %v2795
  %2797 = vmatmul.bf16.gmra.mxu0 %v1440
  %v2798 = vpop.f32.mrf.mxu0
  %v2799 = vadd.f32 %v2630, %v2798
  %v2800 = vpop.f32.mrf.mxu0
  %v2801 = vadd.f32 %v2632, %v2800
  %2802 = vmatmul.bf16.gmra.mxu0 %v1448
  %v2803 = vpop.f32.mrf.mxu0
  %v2804 = vadd.f32 %v2635, %v2803
  %v2805 = vpop.f32.mrf.mxu0
  %v2806 = vadd.f32 %v2637, %v2805
  %2807 = vmatmul.bf16.gmra.mxu0 %v1456
  %v2808 = vpop.f32.mrf.mxu0
  %v2809 = vadd.f32 %v2640, %v2808
  %v2810 = vpop.f32.mrf.mxu0
  %v2811 = vadd.f32 %v2642, %v2810
  %2812 = vmatmul.bf16.gmra.mxu0 %v1464
  %v2813 = vpop.f32.mrf.mxu0
  %v2814 = vadd.f32 %v2645, %v2813
  %v2815 = vpop.f32.mrf.mxu0
  %v2816 = vadd.f32 %v2647, %v2815
  %2817 = vmatmul.bf16.gmra.mxu0 %v1472
  %v2818 = vpop.f32.mrf.mxu0
  %v2819 = vadd.f32 %v2650, %v2818
  %v2820 = vpop.f32.mrf.mxu0
  %v2821 = vadd.f32 %v2652, %v2820
  %2822 = vmatmul.bf16.gmra.mxu0 %v1480
  %v2823 = vpop.f32.mrf.mxu0
  %v2824 = vadd.f32 %v2655, %v2823
  %v2825 = vpop.f32.mrf.mxu0
  %v2826 = vadd.f32 %v2657, %v2825
  %2827 = vmatmul.bf16.gmra.mxu0 %v1488
  %v2828 = vpop.f32.mrf.mxu0
  %v2829 = vadd.f32 %v2660, %v2828
  %v2830 = vpop.f32.mrf.mxu0
  %v2831 = vadd.f32 %v2662, %v2830
  %2832 = vmatmul.bf16.gmra.mxu0 %v1496
  %v2833 = vpop.f32.mrf.mxu0
  %v2834 = vadd.f32 %v2665, %v2833
  %v2835 = vpop.f32.mrf.mxu0
  %v2836 = vadd.f32 %v2667, %v2835
  %2837 = vmatmul.bf16.gmra.mxu0 %v1504
  %v2838 = vpop.f32.mrf.mxu0
  %v2839 = vadd.f32 %v2670, %v2838
  %v2840 = vpop.f32.mrf.mxu0
  %v2841 = vadd.f32 %v2672, %v2840
  %2842 = vmatmul.bf16.gmra.mxu0 %v1512
  %v2843 = vpop.f32.mrf.mxu0
  %v2844 = vadd.f32 %v2675, %v2843
  %v2845 = vpop.f32.mrf.mxu0
  %v2846 = vadd.f32 %v2677, %v2845
  %2847 = vmatmul.bf16.gmra.mxu0 %v1520
  %v2848 = vpop.f32.mrf.mxu0
  %v2849 = vadd.f32 %v2680, %v2848
  %v2850 = vpop.f32.mrf.mxu0
  %v2851 = vadd.f32 %v2682, %v2850
  %2852 = vmatmul.bf16.gmra.mxu0 %v1528
  %v2853 = vpop.f32.mrf.mxu0
  %v2854 = vadd.f32 %v2685, %v2853
  %v2855 = vpop.f32.mrf.mxu0
  %v2856 = vadd.f32 %v2687, %v2855
  %2857 = vmatmul.bf16.gmra.mxu0 %v1536
  %v2858 = vpop.f32.mrf.mxu0
  %v2859 = vadd.f32 %v2690, %v2858
  %v2860 = vpop.f32.mrf.mxu0
  %v2861 = vadd.f32 %v2692, %v2860
  %2862 = vmatmul.bf16.gmra.mxu0 %v1544
  %v2863 = vpop.f32.mrf.mxu0
  %v2864 = vadd.f32 %v2695, %v2863
  %v2865 = vpop.f32.mrf.mxu0
  %v2866 = vadd.f32 %v2697, %v2865
  %2867 = vmatmul.bf16.gmra.mxu0 %v1552
  %v2868 = vpop.f32.mrf.mxu0
  %v2869 = vadd.f32 %v2700, %v2868
  %v2870 = vpop.f32.mrf.mxu0
  %v2871 = vadd.f32 %v2702, %v2870
  %2872 = vdwg.mxu0
  %2873 = vmatpush.bf16.msra.mxu0 %v2108
  %2874 = vmatpush.bf16.msra.mxu0 %v2107
  %2875 = vmatpush.bf16.msra.mxu0 %v2106
  %2876 = vmatpush.bf16.msra.mxu0 %v2105
  %2877 = vmatpush.bf16.msra.mxu0 %v2104
  %2878 = vmatpush.bf16.msra.mxu0 %v2103
  %2879 = vmatpush.bf16.msra.mxu0 %v2102
  %2880 = vmatpush.bf16.msra.mxu0 %v2101
  %2881 = vmatmul.bf16.gmra.mxu0 %v1305
  %v2882 = vpop.f32.mrf.mxu0
  %v2883 = vadd.f32 %v2714, %v2882
  %v2884 = vpop.f32.mrf.mxu0
  %v2885 = vadd.f32 %v2716, %v2884
  %2886 = vmatmul.bf16.gmra.mxu0 %v1313
  %v2887 = vpop.f32.mrf.mxu0
  %v2888 = vadd.f32 %v2719, %v2887
  %v2889 = vpop.f32.mrf.mxu0
  %v2890 = vadd.f32 %v2721, %v2889
  %2891 = vmatmul.bf16.gmra.mxu0 %v1321
  %v2892 = vpop.f32.mrf.mxu0
  %v2893 = vadd.f32 %v2724, %v2892
  %v2894 = vpop.f32.mrf.mxu0
  %v2895 = vadd.f32 %v2726, %v2894
  %2896 = vmatmul.bf16.gmra.mxu0 %v1329
  %v2897 = vpop.f32.mrf.mxu0
  %v2898 = vadd.f32 %v2729, %v2897
  %v2899 = vpop.f32.mrf.mxu0
  %v2900 = vadd.f32 %v2731, %v2899
  %2901 = vmatmul.bf16.gmra.mxu0 %v1337
  %v2902 = vpop.f32.mrf.mxu0
  %v2903 = vadd.f32 %v2734, %v2902
  %v2904 = vpop.f32.mrf.mxu0
  %v2905 = vadd.f32 %v2736, %v2904
  %2906 = vmatmul.bf16.gmra.mxu0 %v1345
  %v2907 = vpop.f32.mrf.mxu0
  %v2908 = vadd.f32 %v2739, %v2907
  %v2909 = vpop.f32.mrf.mxu0
  %v2910 = vadd.f32 %v2741, %v2909
  %2911 = vmatmul.bf16.gmra.mxu0 %v1353
  %v2912 = vpop.f32.mrf.mxu0
  %v2913 = vadd.f32 %v2744, %v2912
  %v2914 = vpop.f32.mrf.mxu0
  %v2915 = vadd.f32 %v2746, %v2914
  %2916 = vmatmul.bf16.gmra.mxu0 %v1361
  %v2917 = vpop.f32.mrf.mxu0
  %v2918 = vadd.f32 %v2749, %v2917
  %v2919 = vpop.f32.mrf.mxu0
  %v2920 = vadd.f32 %v2751, %v2919
  %2921 = vmatmul.bf16.gmra.mxu0 %v1369
  %v2922 = vpop.f32.mrf.mxu0
  %v2923 = vadd.f32 %v2754, %v2922
  %v2924 = vpop.f32.mrf.mxu0
  %v2925 = vadd.f32 %v2756, %v2924
  %2926 = vmatmul.bf16.gmra.mxu0 %v1377
  %v2927 = vpop.f32.mrf.mxu0
  %v2928 = vadd.f32 %v2759, %v2927
  %v2929 = vpop.f32.mrf.mxu0
  %v2930 = vadd.f32 %v2761, %v2929
  %2931 = vmatmul.bf16.gmra.mxu0 %v1385
  %v2932 = vpop.f32.mrf.mxu0
  %v2933 = vadd.f32 %v2764, %v2932
  %v2934 = vpop.f32.mrf.mxu0
  %v2935 = vadd.f32 %v2766, %v2934
  %2936 = vmatmul.bf16.gmra.mxu0 %v1393
  %v2937 = vpop.f32.mrf.mxu0
  %v2938 = vadd.f32 %v2769, %v2937
  %v2939 = vpop.f32.mrf.mxu0
  %v2940 = vadd.f32 %v2771, %v2939
  %2941 = vmatmul.bf16.gmra.mxu0 %v1401
  %v2942 = vpop.f32.mrf.mxu0
  %v2943 = vadd.f32 %v2774, %v2942
  %v2944 = vpop.f32.mrf.mxu0
  %v2945 = vadd.f32 %v2776, %v2944
  %2946 = vmatmul.bf16.gmra.mxu0 %v1409
  %v2947 = vpop.f32.mrf.mxu0
  %v2948 = vadd.f32 %v2779, %v2947
  %v2949 = vpop.f32.mrf.mxu0
  %v2950 = vadd.f32 %v2781, %v2949
  %2951 = vmatmul.bf16.gmra.mxu0 %v1417
  %v2952 = vpop.f32.mrf.mxu0
  %v2953 = vadd.f32 %v2784, %v2952
  %v2954 = vpop.f32.mrf.mxu0
  %v2955 = vadd.f32 %v2786, %v2954
  %2956 = vmatmul.bf16.gmra.mxu0 %v1425
  %v2957 = vpop.f32.mrf.mxu0
  %v2958 = vadd.f32 %v2789, %v2957
  %v2959 = vpop.f32.mrf.mxu0
  %v2960 = vadd.f32 %v2791, %v2959
  %2961 = vmatmul.bf16.gmra.mxu0 %v1433
  %v2962 = vpop.f32.mrf.mxu0
  %v2963 = vadd.f32 %v2794, %v2962
  %v2964 = vpop.f32.mrf.mxu0
  %v2965 = vadd.f32 %v2796, %v2964
  %2966 = vmatmul.bf16.gmra.mxu0 %v1441
  %v2967 = vpop.f32.mrf.mxu0
  %v2968 = vadd.f32 %v2799, %v2967
  %v2969 = vpop.f32.mrf.mxu0
  %v2970 = vadd.f32 %v2801, %v2969
  %2971 = vmatmul.bf16.gmra.mxu0 %v1449
  %v2972 = vpop.f32.mrf.mxu0
  %v2973 = vadd.f32 %v2804, %v2972
  %v2974 = vpop.f32.mrf.mxu0
  %v2975 = vadd.f32 %v2806, %v2974
  %2976 = vmatmul.bf16.gmra.mxu0 %v1457
  %v2977 = vpop.f32.mrf.mxu0
  %v2978 = vadd.f32 %v2809, %v2977
  %v2979 = vpop.f32.mrf.mxu0
  %v2980 = vadd.f32 %v2811, %v2979
  %2981 = vmatmul.bf16.gmra.mxu0 %v1465
  %v2982 = vpop.f32.mrf.mxu0
  %v2983 = vadd.f32 %v2814, %v2982
  %v2984 = vpop.f32.mrf.mxu0
  %v2985 = vadd.f32 %v2816, %v2984
  %2986 = vmatmul.bf16.gmra.mxu0 %v1473
  %v2987 = vpop.f32.mrf.mxu0
  %v2988 = vadd.f32 %v2819, %v2987
  %v2989 = vpop.f32.mrf.mxu0
  %v2990 = vadd.f32 %v2821, %v2989
  %2991 = vmatmul.bf16.gmra.mxu0 %v1481
  %v2992 = vpop.f32.mrf.mxu0
  %v2993 = vadd.f32 %v2824, %v2992
  %v2994 = vpop.f32.mrf.mxu0
  %v2995 = vadd.f32 %v2826, %v2994
  %2996 = vmatmul.bf16.gmra.mxu0 %v1489
  %v2997 = vpop.f32.mrf.mxu0
  %v2998 = vadd.f32 %v2829, %v2997
  %v2999 = vpop.f32.mrf.mxu0
  %v3000 = vadd.f32 %v2831, %v2999
  %3001 = vmatmul.bf16.gmra.mxu0 %v1497
  %v3002 = vpop.f32.mrf.mxu0
  %v3003 = vadd.f32 %v2834, %v3002
  %v3004 = vpop.f32.mrf.mxu0
  %v3005 = vadd.f32 %v2836, %v3004
  %3006 = vmatmul.bf16.gmra.mxu0 %v1505
  %v3007 = vpop.f32.mrf.mxu0
  %v3008 = vadd.f32 %v2839, %v3007
  %v3009 = vpop.f32.mrf.mxu0
  %v3010 = vadd.f32 %v2841, %v3009
  %3011 = vmatmul.bf16.gmra.mxu0 %v1513
  %v3012 = vpop.f32.mrf.mxu0
  %v3013 = vadd.f32 %v2844, %v3012
  %v3014 = vpop.f32.mrf.mxu0
  %v3015 = vadd.f32 %v2846, %v3014
  %3016 = vmatmul.bf16.gmra.mxu0 %v1521
  %v3017 = vpop.f32.mrf.mxu0
  %v3018 = vadd.f32 %v2849, %v3017
  %v3019 = vpop.f32.mrf.mxu0
  %v3020 = vadd.f32 %v2851, %v3019
  %3021 = vmatmul.bf16.gmra.mxu0 %v1529
  %v3022 = vpop.f32.mrf.mxu0
  %v3023 = vadd.f32 %v2854, %v3022
  %v3024 = vpop.f32.mrf.mxu0
  %v3025 = vadd.f32 %v2856, %v3024
  %3026 = vmatmul.bf16.gmra.mxu0 %v1537
  %v3027 = vpop.f32.mrf.mxu0
  %v3028 = vadd.f32 %v2859, %v3027
  %v3029 = vpop.f32.mrf.mxu0
  %v3030 = vadd.f32 %v2861, %v3029
  %3031 = vmatmul.bf16.gmra.mxu0 %v1545
  %v3032 = vpop.f32.mrf.mxu0
  %v3033 = vadd.f32 %v2864, %v3032
  %v3034 = vpop.f32.mrf.mxu0
  %v3035 = vadd.f32 %v2866, %v3034
  %3036 = vmatmul.bf16.gmra.mxu0 %v1553
  %v3037 = vpop.f32.mrf.mxu0
  %v3038 = vadd.f32 %v2869, %v3037
  %v3039 = vpop.f32.mrf.mxu0
  %v3040 = vadd.f32 %v2871, %v3039
  %3041 = vdwg.mxu0
  %3042 = vmatpush.bf16.msra.mxu0 %v2116
  %3043 = vmatpush.bf16.msra.mxu0 %v2115
  %3044 = vmatpush.bf16.msra.mxu0 %v2114
  %3045 = vmatpush.bf16.msra.mxu0 %v2113
  %3046 = vmatpush.bf16.msra.mxu0 %v2112
  %3047 = vmatpush.bf16.msra.mxu0 %v2111
  %3048 = vmatpush.bf16.msra.mxu0 %v2110
  %3049 = vmatpush.bf16.msra.mxu0 %v2109
  %3050 = vmatmul.bf16.gmra.mxu0 %v1306
  %v3051 = vpop.f32.mrf.mxu0
  %v3052 = vadd.f32 %v2883, %v3051
  %v3053 = vpop.f32.mrf.mxu0
  %v3054 = vadd.f32 %v2885, %v3053
  %3055 = vmatmul.bf16.gmra.mxu0 %v1314
  %v3056 = vpop.f32.mrf.mxu0
  %v3057 = vadd.f32 %v2888, %v3056
  %v3058 = vpop.f32.mrf.mxu0
  %v3059 = vadd.f32 %v2890, %v3058
  %3060 = vmatmul.bf16.gmra.mxu0 %v1322
  %v3061 = vpop.f32.mrf.mxu0
  %v3062 = vadd.f32 %v2893, %v3061
  %v3063 = vpop.f32.mrf.mxu0
  %v3064 = vadd.f32 %v2895, %v3063
  %3065 = vmatmul.bf16.gmra.mxu0 %v1330
  %v3066 = vpop.f32.mrf.mxu0
  %v3067 = vadd.f32 %v2898, %v3066
  %v3068 = vpop.f32.mrf.mxu0
  %v3069 = vadd.f32 %v2900, %v3068
  %3070 = vmatmul.bf16.gmra.mxu0 %v1338
  %v3071 = vpop.f32.mrf.mxu0
  %v3072 = vadd.f32 %v2903, %v3071
  %v3073 = vpop.f32.mrf.mxu0
  %v3074 = vadd.f32 %v2905, %v3073
  %3075 = vmatmul.bf16.gmra.mxu0 %v1346
  %v3076 = vpop.f32.mrf.mxu0
  %v3077 = vadd.f32 %v2908, %v3076
  %v3078 = vpop.f32.mrf.mxu0
  %v3079 = vadd.f32 %v2910, %v3078
  %3080 = vmatmul.bf16.gmra.mxu0 %v1354
  %v3081 = vpop.f32.mrf.mxu0
  %v3082 = vadd.f32 %v2913, %v3081
  %v3083 = vpop.f32.mrf.mxu0
  %v3084 = vadd.f32 %v2915, %v3083
  %3085 = vmatmul.bf16.gmra.mxu0 %v1362
  %v3086 = vpop.f32.mrf.mxu0
  %v3087 = vadd.f32 %v2918, %v3086
  %v3088 = vpop.f32.mrf.mxu0
  %v3089 = vadd.f32 %v2920, %v3088
  %3090 = vmatmul.bf16.gmra.mxu0 %v1370
  %v3091 = vpop.f32.mrf.mxu0
  %v3092 = vadd.f32 %v2923, %v3091
  %v3093 = vpop.f32.mrf.mxu0
  %v3094 = vadd.f32 %v2925, %v3093
  %3095 = vmatmul.bf16.gmra.mxu0 %v1378
  %v3096 = vpop.f32.mrf.mxu0
  %v3097 = vadd.f32 %v2928, %v3096
  %v3098 = vpop.f32.mrf.mxu0
  %v3099 = vadd.f32 %v2930, %v3098
  %3100 = vmatmul.bf16.gmra.mxu0 %v1386
  %v3101 = vpop.f32.mrf.mxu0
  %v3102 = vadd.f32 %v2933, %v3101
  %v3103 = vpop.f32.mrf.mxu0
  %v3104 = vadd.f32 %v2935, %v3103
  %3105 = vmatmul.bf16.gmra.mxu0 %v1394
  %v3106 = vpop.f32.mrf.mxu0
  %v3107 = vadd.f32 %v2938, %v3106
  %v3108 = vpop.f32.mrf.mxu0
  %v3109 = vadd.f32 %v2940, %v3108
  %3110 = vmatmul.bf16.gmra.mxu0 %v1402
  %v3111 = vpop.f32.mrf.mxu0
  %v3112 = vadd.f32 %v2943, %v3111
  %v3113 = vpop.f32.mrf.mxu0
  %v3114 = vadd.f32 %v2945, %v3113
  %3115 = vmatmul.bf16.gmra.mxu0 %v1410
  %v3116 = vpop.f32.mrf.mxu0
  %v3117 = vadd.f32 %v2948, %v3116
  %v3118 = vpop.f32.mrf.mxu0
  %v3119 = vadd.f32 %v2950, %v3118
  %3120 = vmatmul.bf16.gmra.mxu0 %v1418
  %v3121 = vpop.f32.mrf.mxu0
  %v3122 = vadd.f32 %v2953, %v3121
  %v3123 = vpop.f32.mrf.mxu0
  %v3124 = vadd.f32 %v2955, %v3123
  %3125 = vmatmul.bf16.gmra.mxu0 %v1426
  %v3126 = vpop.f32.mrf.mxu0
  %v3127 = vadd.f32 %v2958, %v3126
  %v3128 = vpop.f32.mrf.mxu0
  %v3129 = vadd.f32 %v2960, %v3128
  %3130 = vmatmul.bf16.gmra.mxu0 %v1434
  %v3131 = vpop.f32.mrf.mxu0
  %v3132 = vadd.f32 %v2963, %v3131
  %v3133 = vpop.f32.mrf.mxu0
  %v3134 = vadd.f32 %v2965, %v3133
  %3135 = vmatmul.bf16.gmra.mxu0 %v1442
  %v3136 = vpop.f32.mrf.mxu0
  %v3137 = vadd.f32 %v2968, %v3136
  %v3138 = vpop.f32.mrf.mxu0
  %v3139 = vadd.f32 %v2970, %v3138
  %3140 = vmatmul.bf16.gmra.mxu0 %v1450
  %v3141 = vpop.f32.mrf.mxu0
  %v3142 = vadd.f32 %v2973, %v3141
  %v3143 = vpop.f32.mrf.mxu0
  %v3144 = vadd.f32 %v2975, %v3143
  %3145 = vmatmul.bf16.gmra.mxu0 %v1458
  %v3146 = vpop.f32.mrf.mxu0
  %v3147 = vadd.f32 %v2978, %v3146
  %v3148 = vpop.f32.mrf.mxu0
  %v3149 = vadd.f32 %v2980, %v3148
  %3150 = vmatmul.bf16.gmra.mxu0 %v1466
  %v3151 = vpop.f32.mrf.mxu0
  %v3152 = vadd.f32 %v2983, %v3151
  %v3153 = vpop.f32.mrf.mxu0
  %v3154 = vadd.f32 %v2985, %v3153
  %3155 = vmatmul.bf16.gmra.mxu0 %v1474
  %v3156 = vpop.f32.mrf.mxu0
  %v3157 = vadd.f32 %v2988, %v3156
  %v3158 = vpop.f32.mrf.mxu0
  %v3159 = vadd.f32 %v2990, %v3158
  %3160 = vmatmul.bf16.gmra.mxu0 %v1482
  %v3161 = vpop.f32.mrf.mxu0
  %v3162 = vadd.f32 %v2993, %v3161
  %v3163 = vpop.f32.mrf.mxu0
  %v3164 = vadd.f32 %v2995, %v3163
  %3165 = vmatmul.bf16.gmra.mxu0 %v1490
  %v3166 = vpop.f32.mrf.mxu0
  %v3167 = vadd.f32 %v2998, %v3166
  %v3168 = vpop.f32.mrf.mxu0
  %v3169 = vadd.f32 %v3000, %v3168
  %3170 = vmatmul.bf16.gmra.mxu0 %v1498
  %v3171 = vpop.f32.mrf.mxu0
  %v3172 = vadd.f32 %v3003, %v3171
  %v3173 = vpop.f32.mrf.mxu0
  %v3174 = vadd.f32 %v3005, %v3173
  %3175 = vmatmul.bf16.gmra.mxu0 %v1506
  %v3176 = vpop.f32.mrf.mxu0
  %v3177 = vadd.f32 %v3008, %v3176
  %v3178 = vpop.f32.mrf.mxu0
  %v3179 = vadd.f32 %v3010, %v3178
  %3180 = vmatmul.bf16.gmra.mxu0 %v1514
  %v3181 = vpop.f32.mrf.mxu0
  %v3182 = vadd.f32 %v3013, %v3181
  %v3183 = vpop.f32.mrf.mxu0
  %v3184 = vadd.f32 %v3015, %v3183
  %3185 = vmatmul.bf16.gmra.mxu0 %v1522
  %v3186 = vpop.f32.mrf.mxu0
  %v3187 = vadd.f32 %v3018, %v3186
  %v3188 = vpop.f32.mrf.mxu0
  %v3189 = vadd.f32 %v3020, %v3188
  %3190 = vmatmul.bf16.gmra.mxu0 %v1530
  %v3191 = vpop.f32.mrf.mxu0
  %v3192 = vadd.f32 %v3023, %v3191
  %v3193 = vpop.f32.mrf.mxu0
  %v3194 = vadd.f32 %v3025, %v3193
  %3195 = vmatmul.bf16.gmra.mxu0 %v1538
  %v3196 = vpop.f32.mrf.mxu0
  %v3197 = vadd.f32 %v3028, %v3196
  %v3198 = vpop.f32.mrf.mxu0
  %v3199 = vadd.f32 %v3030, %v3198
  %3200 = vmatmul.bf16.gmra.mxu0 %v1546
  %v3201 = vpop.f32.mrf.mxu0
  %v3202 = vadd.f32 %v3033, %v3201
  %v3203 = vpop.f32.mrf.mxu0
  %v3204 = vadd.f32 %v3035, %v3203
  %3205 = vmatmul.bf16.gmra.mxu0 %v1554
  %v3206 = vpop.f32.mrf.mxu0
  %v3207 = vadd.f32 %v3038, %v3206
  %v3208 = vpop.f32.mrf.mxu0
  %v3209 = vadd.f32 %v3040, %v3208
  %3210 = vdwg.mxu0
  %3211 = vmatpush.bf16.msra.mxu0 %v2124
  %3212 = vmatpush.bf16.msra.mxu0 %v2123
  %3213 = vmatpush.bf16.msra.mxu0 %v2122
  %3214 = vmatpush.bf16.msra.mxu0 %v2121
  %3215 = vmatpush.bf16.msra.mxu0 %v2120
  %3216 = vmatpush.bf16.msra.mxu0 %v2119
  %3217 = vmatpush.bf16.msra.mxu0 %v2118
  %3218 = vmatpush.bf16.msra.mxu0 %v2117
  %3219 = vmatmul.bf16.gmra.mxu0 %v1307
  %v3220 = vpop.f32.mrf.mxu0
  %v3221 = vadd.f32 %v3052, %v3220
  %v3222 = vpop.f32.mrf.mxu0
  %v3223 = vadd.f32 %v3054, %v3222
  %3224 = vmatmul.bf16.gmra.mxu0 %v1315
  %v3225 = vpop.f32.mrf.mxu0
  %v3226 = vadd.f32 %v3057, %v3225
  %v3227 = vpop.f32.mrf.mxu0
  %v3228 = vadd.f32 %v3059, %v3227
  %3229 = vmatmul.bf16.gmra.mxu0 %v1323
  %v3230 = vpop.f32.mrf.mxu0
  %v3231 = vadd.f32 %v3062, %v3230
  %v3232 = vpop.f32.mrf.mxu0
  %v3233 = vadd.f32 %v3064, %v3232
  %3234 = vmatmul.bf16.gmra.mxu0 %v1331
  %v3235 = vpop.f32.mrf.mxu0
  %v3236 = vadd.f32 %v3067, %v3235
  %v3237 = vpop.f32.mrf.mxu0
  %v3238 = vadd.f32 %v3069, %v3237
  %3239 = vmatmul.bf16.gmra.mxu0 %v1339
  %v3240 = vpop.f32.mrf.mxu0
  %v3241 = vadd.f32 %v3072, %v3240
  %v3242 = vpop.f32.mrf.mxu0
  %v3243 = vadd.f32 %v3074, %v3242
  %3244 = vmatmul.bf16.gmra.mxu0 %v1347
  %v3245 = vpop.f32.mrf.mxu0
  %v3246 = vadd.f32 %v3077, %v3245
  %v3247 = vpop.f32.mrf.mxu0
  %v3248 = vadd.f32 %v3079, %v3247
  %3249 = vmatmul.bf16.gmra.mxu0 %v1355
  %v3250 = vpop.f32.mrf.mxu0
  %v3251 = vadd.f32 %v3082, %v3250
  %v3252 = vpop.f32.mrf.mxu0
  %v3253 = vadd.f32 %v3084, %v3252
  %3254 = vmatmul.bf16.gmra.mxu0 %v1363
  %v3255 = vpop.f32.mrf.mxu0
  %v3256 = vadd.f32 %v3087, %v3255
  %v3257 = vpop.f32.mrf.mxu0
  %v3258 = vadd.f32 %v3089, %v3257
  %3259 = vmatmul.bf16.gmra.mxu0 %v1371
  %v3260 = vpop.f32.mrf.mxu0
  %v3261 = vadd.f32 %v3092, %v3260
  %v3262 = vpop.f32.mrf.mxu0
  %v3263 = vadd.f32 %v3094, %v3262
  %3264 = vmatmul.bf16.gmra.mxu0 %v1379
  %v3265 = vpop.f32.mrf.mxu0
  %v3266 = vadd.f32 %v3097, %v3265
  %v3267 = vpop.f32.mrf.mxu0
  %v3268 = vadd.f32 %v3099, %v3267
  %3269 = vmatmul.bf16.gmra.mxu0 %v1387
  %v3270 = vpop.f32.mrf.mxu0
  %v3271 = vadd.f32 %v3102, %v3270
  %v3272 = vpop.f32.mrf.mxu0
  %v3273 = vadd.f32 %v3104, %v3272
  %3274 = vmatmul.bf16.gmra.mxu0 %v1395
  %v3275 = vpop.f32.mrf.mxu0
  %v3276 = vadd.f32 %v3107, %v3275
  %v3277 = vpop.f32.mrf.mxu0
  %v3278 = vadd.f32 %v3109, %v3277
  %3279 = vmatmul.bf16.gmra.mxu0 %v1403
  %v3280 = vpop.f32.mrf.mxu0
  %v3281 = vadd.f32 %v3112, %v3280
  %v3282 = vpop.f32.mrf.mxu0
  %v3283 = vadd.f32 %v3114, %v3282
  %3284 = vmatmul.bf16.gmra.mxu0 %v1411
  %v3285 = vpop.f32.mrf.mxu0
  %v3286 = vadd.f32 %v3117, %v3285
  %v3287 = vpop.f32.mrf.mxu0
  %v3288 = vadd.f32 %v3119, %v3287
  %3289 = vmatmul.bf16.gmra.mxu0 %v1419
  %v3290 = vpop.f32.mrf.mxu0
  %v3291 = vadd.f32 %v3122, %v3290
  %v3292 = vpop.f32.mrf.mxu0
  %v3293 = vadd.f32 %v3124, %v3292
  %3294 = vmatmul.bf16.gmra.mxu0 %v1427
  %v3295 = vpop.f32.mrf.mxu0
  %v3296 = vadd.f32 %v3127, %v3295
  %v3297 = vpop.f32.mrf.mxu0
  %v3298 = vadd.f32 %v3129, %v3297
  %3299 = vmatmul.bf16.gmra.mxu0 %v1435
  %v3300 = vpop.f32.mrf.mxu0
  %v3301 = vadd.f32 %v3132, %v3300
  %v3302 = vpop.f32.mrf.mxu0
  %v3303 = vadd.f32 %v3134, %v3302
  %3304 = vmatmul.bf16.gmra.mxu0 %v1443
  %v3305 = vpop.f32.mrf.mxu0
  %v3306 = vadd.f32 %v3137, %v3305
  %v3307 = vpop.f32.mrf.mxu0
  %v3308 = vadd.f32 %v3139, %v3307
  %3309 = vmatmul.bf16.gmra.mxu0 %v1451
  %v3310 = vpop.f32.mrf.mxu0
  %v3311 = vadd.f32 %v3142, %v3310
  %v3312 = vpop.f32.mrf.mxu0
  %v3313 = vadd.f32 %v3144, %v3312
  %3314 = vmatmul.bf16.gmra.mxu0 %v1459
  %v3315 = vpop.f32.mrf.mxu0
  %v3316 = vadd.f32 %v3147, %v3315
  %v3317 = vpop.f32.mrf.mxu0
  %v3318 = vadd.f32 %v3149, %v3317
  %3319 = vmatmul.bf16.gmra.mxu0 %v1467
  %v3320 = vpop.f32.mrf.mxu0
  %v3321 = vadd.f32 %v3152, %v3320
  %v3322 = vpop.f32.mrf.mxu0
  %v3323 = vadd.f32 %v3154, %v3322
  %3324 = vmatmul.bf16.gmra.mxu0 %v1475
  %v3325 = vpop.f32.mrf.mxu0
  %v3326 = vadd.f32 %v3157, %v3325
  %v3327 = vpop.f32.mrf.mxu0
  %v3328 = vadd.f32 %v3159, %v3327
  %3329 = vmatmul.bf16.gmra.mxu0 %v1483
  %v3330 = vpop.f32.mrf.mxu0
  %v3331 = vadd.f32 %v3162, %v3330
  %v3332 = vpop.f32.mrf.mxu0
  %v3333 = vadd.f32 %v3164, %v3332
  %3334 = vmatmul.bf16.gmra.mxu0 %v1491
  %v3335 = vpop.f32.mrf.mxu0
  %v3336 = vadd.f32 %v3167, %v3335
  %v3337 = vpop.f32.mrf.mxu0
  %v3338 = vadd.f32 %v3169, %v3337
  %3339 = vmatmul.bf16.gmra.mxu0 %v1499
  %v3340 = vpop.f32.mrf.mxu0
  %v3341 = vadd.f32 %v3172, %v3340
  %v3342 = vpop.f32.mrf.mxu0
  %v3343 = vadd.f32 %v3174, %v3342
  %3344 = vmatmul.bf16.gmra.mxu0 %v1507
  %v3345 = vpop.f32.mrf.mxu0
  %v3346 = vadd.f32 %v3177, %v3345
  %v3347 = vpop.f32.mrf.mxu0
  %v3348 = vadd.f32 %v3179, %v3347
  %3349 = vmatmul.bf16.gmra.mxu0 %v1515
  %v3350 = vpop.f32.mrf.mxu0
  %v3351 = vadd.f32 %v3182, %v3350
  %v3352 = vpop.f32.mrf.mxu0
  %v3353 = vadd.f32 %v3184, %v3352
  %3354 = vmatmul.bf16.gmra.mxu0 %v1523
  %v3355 = vpop.f32.mrf.mxu0
  %v3356 = vadd.f32 %v3187, %v3355
  %v3357 = vpop.f32.mrf.mxu0
  %v3358 = vadd.f32 %v3189, %v3357
  %3359 = vmatmul.bf16.gmra.mxu0 %v1531
  %v3360 = vpop.f32.mrf.mxu0
  %v3361 = vadd.f32 %v3192, %v3360
  %v3362 = vpop.f32.mrf.mxu0
  %v3363 = vadd.f32 %v3194, %v3362
  %3364 = vmatmul.bf16.gmra.mxu0 %v1539
  %v3365 = vpop.f32.mrf.mxu0
  %v3366 = vadd.f32 %v3197, %v3365
  %v3367 = vpop.f32.mrf.mxu0
  %v3368 = vadd.f32 %v3199, %v3367
  %3369 = vmatmul.bf16.gmra.mxu0 %v1547
  %v3370 = vpop.f32.mrf.mxu0
  %v3371 = vadd.f32 %v3202, %v3370
  %v3372 = vpop.f32.mrf.mxu0
  %v3373 = vadd.f32 %v3204, %v3372
  %3374 = vmatmul.bf16.gmra.mxu0 %v1555
  %v3375 = vpop.f32.mrf.mxu0
  %v3376 = vadd.f32 %v3207, %v3375
  %v3377 = vpop.f32.mrf.mxu0
  %v3378 = vadd.f32 %v3209, %v3377
  %3379 = vdwg.mxu0
  %3380 = vmatpush.bf16.msra.mxu0 %v2132
  %3381 = vmatpush.bf16.msra.mxu0 %v2131
  %3382 = vmatpush.bf16.msra.mxu0 %v2130
  %3383 = vmatpush.bf16.msra.mxu0 %v2129
  %3384 = vmatpush.bf16.msra.mxu0 %v2128
  %3385 = vmatpush.bf16.msra.mxu0 %v2127
  %3386 = vmatpush.bf16.msra.mxu0 %v2126
  %3387 = vmatpush.bf16.msra.mxu0 %v2125
  %3388 = vmatmul.bf16.gmra.mxu0 %v1308
  %v3389 = vpop.f32.mrf.mxu0
  %v3390 = vadd.f32 %v3221, %v3389
  %v3391 = vpop.f32.mrf.mxu0
  %v3392 = vadd.f32 %v3223, %v3391
  %3393 = vmatmul.bf16.gmra.mxu0 %v1316
  %v3394 = vpop.f32.mrf.mxu0
  %v3395 = vadd.f32 %v3226, %v3394
  %v3396 = vpop.f32.mrf.mxu0
  %v3397 = vadd.f32 %v3228, %v3396
  %3398 = vmatmul.bf16.gmra.mxu0 %v1324
  %v3399 = vpop.f32.mrf.mxu0
  %v3400 = vadd.f32 %v3231, %v3399
  %v3401 = vpop.f32.mrf.mxu0
  %v3402 = vadd.f32 %v3233, %v3401
  %3403 = vmatmul.bf16.gmra.mxu0 %v1332
  %v3404 = vpop.f32.mrf.mxu0
  %v3405 = vadd.f32 %v3236, %v3404
  %v3406 = vpop.f32.mrf.mxu0
  %v3407 = vadd.f32 %v3238, %v3406
  %3408 = vmatmul.bf16.gmra.mxu0 %v1340
  %v3409 = vpop.f32.mrf.mxu0
  %v3410 = vadd.f32 %v3241, %v3409
  %v3411 = vpop.f32.mrf.mxu0
  %v3412 = vadd.f32 %v3243, %v3411
  %3413 = vmatmul.bf16.gmra.mxu0 %v1348
  %v3414 = vpop.f32.mrf.mxu0
  %v3415 = vadd.f32 %v3246, %v3414
  %v3416 = vpop.f32.mrf.mxu0
  %v3417 = vadd.f32 %v3248, %v3416
  %3418 = vmatmul.bf16.gmra.mxu0 %v1356
  %v3419 = vpop.f32.mrf.mxu0
  %v3420 = vadd.f32 %v3251, %v3419
  %v3421 = vpop.f32.mrf.mxu0
  %v3422 = vadd.f32 %v3253, %v3421
  %3423 = vmatmul.bf16.gmra.mxu0 %v1364
  %v3424 = vpop.f32.mrf.mxu0
  %v3425 = vadd.f32 %v3256, %v3424
  %v3426 = vpop.f32.mrf.mxu0
  %v3427 = vadd.f32 %v3258, %v3426
  %3428 = vmatmul.bf16.gmra.mxu0 %v1372
  %v3429 = vpop.f32.mrf.mxu0
  %v3430 = vadd.f32 %v3261, %v3429
  %v3431 = vpop.f32.mrf.mxu0
  %v3432 = vadd.f32 %v3263, %v3431
  %3433 = vmatmul.bf16.gmra.mxu0 %v1380
  %v3434 = vpop.f32.mrf.mxu0
  %v3435 = vadd.f32 %v3266, %v3434
  %v3436 = vpop.f32.mrf.mxu0
  %v3437 = vadd.f32 %v3268, %v3436
  %3438 = vmatmul.bf16.gmra.mxu0 %v1388
  %v3439 = vpop.f32.mrf.mxu0
  %v3440 = vadd.f32 %v3271, %v3439
  %v3441 = vpop.f32.mrf.mxu0
  %v3442 = vadd.f32 %v3273, %v3441
  %3443 = vmatmul.bf16.gmra.mxu0 %v1396
  %v3444 = vpop.f32.mrf.mxu0
  %v3445 = vadd.f32 %v3276, %v3444
  %v3446 = vpop.f32.mrf.mxu0
  %v3447 = vadd.f32 %v3278, %v3446
  %3448 = vmatmul.bf16.gmra.mxu0 %v1404
  %v3449 = vpop.f32.mrf.mxu0
  %v3450 = vadd.f32 %v3281, %v3449
  %v3451 = vpop.f32.mrf.mxu0
  %v3452 = vadd.f32 %v3283, %v3451
  %3453 = vmatmul.bf16.gmra.mxu0 %v1412
  %v3454 = vpop.f32.mrf.mxu0
  %v3455 = vadd.f32 %v3286, %v3454
  %v3456 = vpop.f32.mrf.mxu0
  %v3457 = vadd.f32 %v3288, %v3456
  %3458 = vmatmul.bf16.gmra.mxu0 %v1420
  %v3459 = vpop.f32.mrf.mxu0
  %v3460 = vadd.f32 %v3291, %v3459
  %v3461 = vpop.f32.mrf.mxu0
  %v3462 = vadd.f32 %v3293, %v3461
  %3463 = vmatmul.bf16.gmra.mxu0 %v1428
  %v3464 = vpop.f32.mrf.mxu0
  %v3465 = vadd.f32 %v3296, %v3464
  %v3466 = vpop.f32.mrf.mxu0
  %v3467 = vadd.f32 %v3298, %v3466
  %3468 = vmatmul.bf16.gmra.mxu0 %v1436
  %v3469 = vpop.f32.mrf.mxu0
  %v3470 = vadd.f32 %v3301, %v3469
  %v3471 = vpop.f32.mrf.mxu0
  %v3472 = vadd.f32 %v3303, %v3471
  %3473 = vmatmul.bf16.gmra.mxu0 %v1444
  %v3474 = vpop.f32.mrf.mxu0
  %v3475 = vadd.f32 %v3306, %v3474
  %v3476 = vpop.f32.mrf.mxu0
  %v3477 = vadd.f32 %v3308, %v3476
  %3478 = vmatmul.bf16.gmra.mxu0 %v1452
  %v3479 = vpop.f32.mrf.mxu0
  %v3480 = vadd.f32 %v3311, %v3479
  %v3481 = vpop.f32.mrf.mxu0
  %v3482 = vadd.f32 %v3313, %v3481
  %3483 = vmatmul.bf16.gmra.mxu0 %v1460
  %v3484 = vpop.f32.mrf.mxu0
  %v3485 = vadd.f32 %v3316, %v3484
  %v3486 = vpop.f32.mrf.mxu0
  %v3487 = vadd.f32 %v3318, %v3486
  %3488 = vmatmul.bf16.gmra.mxu0 %v1468
  %v3489 = vpop.f32.mrf.mxu0
  %v3490 = vadd.f32 %v3321, %v3489
  %v3491 = vpop.f32.mrf.mxu0
  %v3492 = vadd.f32 %v3323, %v3491
  %3493 = vmatmul.bf16.gmra.mxu0 %v1476
  %v3494 = vpop.f32.mrf.mxu0
  %v3495 = vadd.f32 %v3326, %v3494
  %v3496 = vpop.f32.mrf.mxu0
  %v3497 = vadd.f32 %v3328, %v3496
  %3498 = vmatmul.bf16.gmra.mxu0 %v1484
  %v3499 = vpop.f32.mrf.mxu0
  %v3500 = vadd.f32 %v3331, %v3499
  %v3501 = vpop.f32.mrf.mxu0
  %v3502 = vadd.f32 %v3333, %v3501
  %3503 = vmatmul.bf16.gmra.mxu0 %v1492
  %v3504 = vpop.f32.mrf.mxu0
  %v3505 = vadd.f32 %v3336, %v3504
  %v3506 = vpop.f32.mrf.mxu0
  %v3507 = vadd.f32 %v3338, %v3506
  %3508 = vmatmul.bf16.gmra.mxu0 %v1500
  %v3509 = vpop.f32.mrf.mxu0
  %v3510 = vadd.f32 %v3341, %v3509
  %v3511 = vpop.f32.mrf.mxu0
  %v3512 = vadd.f32 %v3343, %v3511
  %3513 = vmatmul.bf16.gmra.mxu0 %v1508
  %v3514 = vpop.f32.mrf.mxu0
  %v3515 = vadd.f32 %v3346, %v3514
  %v3516 = vpop.f32.mrf.mxu0
  %v3517 = vadd.f32 %v3348, %v3516
  %3518 = vmatmul.bf16.gmra.mxu0 %v1516
  %v3519 = vpop.f32.mrf.mxu0
  %v3520 = vadd.f32 %v3351, %v3519
  %v3521 = vpop.f32.mrf.mxu0
  %v3522 = vadd.f32 %v3353, %v3521
  %3523 = vmatmul.bf16.gmra.mxu0 %v1524
  %v3524 = vpop.f32.mrf.mxu0
  %v3525 = vadd.f32 %v3356, %v3524
  %v3526 = vpop.f32.mrf.mxu0
  %v3527 = vadd.f32 %v3358, %v3526
  %3528 = vmatmul.bf16.gmra.mxu0 %v1532
  %v3529 = vpop.f32.mrf.mxu0
  %v3530 = vadd.f32 %v3361, %v3529
  %v3531 = vpop.f32.mrf.mxu0
  %v3532 = vadd.f32 %v3363, %v3531
  %3533 = vmatmul.bf16.gmra.mxu0 %v1540
  %v3534 = vpop.f32.mrf.mxu0
  %v3535 = vadd.f32 %v3366, %v3534
  %v3536 = vpop.f32.mrf.mxu0
  %v3537 = vadd.f32 %v3368, %v3536
  %3538 = vmatmul.bf16.gmra.mxu0 %v1548
  %v3539 = vpop.f32.mrf.mxu0
  %v3540 = vadd.f32 %v3371, %v3539
  %v3541 = vpop.f32.mrf.mxu0
  %v3542 = vadd.f32 %v3373, %v3541
  %3543 = vmatmul.bf16.gmra.mxu0 %v1556
  %v3544 = vpop.f32.mrf.mxu0
  %v3545 = vadd.f32 %v3376, %v3544
  %v3546 = vpop.f32.mrf.mxu0
  %v3547 = vadd.f32 %v3378, %v3546
  %3548 = vdwg.mxu0
  %v3549 = vadd.f32 %v85, %v3390
  %v3550 = vadd.f32 %v86, %v3392
  %v3551 = vadd.f32 %v87, %v3395
  %v3552 = vadd.f32 %v88, %v3397
  %v3553 = vadd.f32 %v89, %v3400
  %v3554 = vadd.f32 %v90, %v3402
  %v3555 = vadd.f32 %v91, %v3405
  %v3556 = vadd.f32 %v92, %v3407
  %v3557 = vadd.f32 %v93, %v3410
  %v3558 = vadd.f32 %v94, %v3412
  %v3559 = vadd.f32 %v95, %v3415
  %v3560 = vadd.f32 %v96, %v3417
  %v3561 = vadd.f32 %v97, %v3420
  %v3562 = vadd.f32 %v98, %v3422
  %v3563 = vadd.f32 %v99, %v3425
  %v3564 = vadd.f32 %v100, %v3427
  %v3565 = vadd.f32 %v101, %v3430
  %v3566 = vadd.f32 %v102, %v3432
  %v3567 = vadd.f32 %v103, %v3435
  %v3568 = vadd.f32 %v104, %v3437
  %v3569 = vadd.f32 %v105, %v3440
  %v3570 = vadd.f32 %v106, %v3442
  %v3571 = vadd.f32 %v107, %v3445
  %v3572 = vadd.f32 %v108, %v3447
  %v3573 = vadd.f32 %v109, %v3450
  %v3574 = vadd.f32 %v110, %v3452
  %v3575 = vadd.f32 %v111, %v3455
  %v3576 = vadd.f32 %v112, %v3457
  %v3577 = vadd.f32 %v113, %v3460
  %v3578 = vadd.f32 %v114, %v3462
  %v3579 = vadd.f32 %v115, %v3465
  %v3580 = vadd.f32 %v116, %v3467
  %v3581 = vadd.f32 %v117, %v3470
  %v3582 = vadd.f32 %v118, %v3472
  %v3583 = vadd.f32 %v119, %v3475
  %v3584 = vadd.f32 %v120, %v3477
  %v3585 = vadd.f32 %v121, %v3480
  %v3586 = vadd.f32 %v122, %v3482
  %v3587 = vadd.f32 %v123, %v3485
  %v3588 = vadd.f32 %v124, %v3487
  %v3589 = vadd.f32 %v125, %v3490
  %v3590 = vadd.f32 %v126, %v3492
  %v3591 = vadd.f32 %v127, %v3495
  %v3592 = vadd.f32 %v128, %v3497
  %v3593 = vadd.f32 %v129, %v3500
  %v3594 = vadd.f32 %v130, %v3502
  %v3595 = vadd.f32 %v131, %v3505
  %v3596 = vadd.f32 %v132, %v3507
  %v3597 = vadd.f32 %v133, %v3510
  %v3598 = vadd.f32 %v134, %v3512
  %v3599 = vadd.f32 %v135, %v3515
  %v3600 = vadd.f32 %v136, %v3517
  %v3601 = vadd.f32 %v137, %v3520
  %v3602 = vadd.f32 %v138, %v3522
  %v3603 = vadd.f32 %v139, %v3525
  %v3604 = vadd.f32 %v140, %v3527
  %v3605 = vadd.f32 %v141, %v3530
  %v3606 = vadd.f32 %v142, %v3532
  %v3607 = vadd.f32 %v143, %v3535
  %v3608 = vadd.f32 %v144, %v3537
  %v3609 = vadd.f32 %v145, %v3540
  %v3610 = vadd.f32 %v146, %v3542
  %v3611 = vadd.f32 %v147, %v3545
  %v3612 = vadd.f32 %v148, %v3547
  %3613 = vst [vmem:[#allocation2] sm:$0xff] %v3549
  %3614 = vst [vmem:[#allocation2 + $0x8] sm:$0xff] %v3550
  %3615 = vst [vmem:[#allocation2 + $0x10] sm:$0xff] %v3551
  %3616 = vst [vmem:[#allocation2 + $0x18] sm:$0xff] %v3552
  %3617 = vst [vmem:[#allocation2 + $0x20] sm:$0xff] %v3553
  %3618 = vst [vmem:[#allocation2 + $0x28] sm:$0xff] %v3554
  %3619 = vst [vmem:[#allocation2 + $0x30] sm:$0xff] %v3555
  %3620 = vst [vmem:[#allocation2 + $0x38] sm:$0xff] %v3556
  %3621 = vst [vmem:[#allocation2 + $0x40] sm:$0xff] %v3557
  %3622 = vst [vmem:[#allocation2 + $0x48] sm:$0xff] %v3558
  %3623 = vst [vmem:[#allocation2 + $0x50] sm:$0xff] %v3559
  %3624 = vst [vmem:[#allocation2 + $0x58] sm:$0xff] %v3560
  %3625 = vst [vmem:[#allocation2 + $0x60] sm:$0xff] %v3561
  %3626 = vst [vmem:[#allocation2 + $0x68] sm:$0xff] %v3562
  %3627 = vst [vmem:[#allocation2 + $0x70] sm:$0xff] %v3563
  %3628 = vst [vmem:[#allocation2 + $0x78] sm:$0xff] %v3564
  %3629 = vst [vmem:[#allocation2 + $0x80] sm:$0xff] %v3565
  %3630 = vst [vmem:[#allocation2 + $0x88] sm:$0xff] %v3566
  %3631 = vst [vmem:[#allocation2 + $0x90] sm:$0xff] %v3567
  %3632 = vst [vmem:[#allocation2 + $0x98] sm:$0xff] %v3568
  %3633 = vst [vmem:[#allocation2 + $0xa0] sm:$0xff] %v3569
  %3634 = vst [vmem:[#allocation2 + $0xa8] sm:$0xff] %v3570
  %3635 = vst [vmem:[#allocation2 + $0xb0] sm:$0xff] %v3571
  %3636 = vst [vmem:[#allocation2 + $0xb8] sm:$0xff] %v3572
  %3637 = vst [vmem:[#allocation2 + $0xc0] sm:$0xff] %v3573
  %3638 = vst [vmem:[#allocation2 + $0xc8] sm:$0xff] %v3574
  %3639 = vst [vmem:[#allocation2 + $0xd0] sm:$0xff] %v3575
  %3640 = vst [vmem:[#allocation2 + $0xd8] sm:$0xff] %v3576
  %3641 = vst [vmem:[#allocation2 + $0xe0] sm:$0xff] %v3577
  %3642 = vst [vmem:[#allocation2 + $0xe8] sm:$0xff] %v3578
  %3643 = vst [vmem:[#allocation2 + $0xf0] sm:$0xff] %v3579
  %3644 = vst [vmem:[#allocation2 + $0xf8] sm:$0xff] %v3580
  %3645 = vst [vmem:[#allocation2 + $0x100] sm:$0xff] %v3581
  %3646 = vst [vmem:[#allocation2 + $0x108] sm:$0xff] %v3582
  %3647 = vst [vmem:[#allocation2 + $0x110] sm:$0xff] %v3583
  %3648 = vst [vmem:[#allocation2 + $0x118] sm:$0xff] %v3584
  %3649 = vst [vmem:[#allocation2 + $0x120] sm:$0xff] %v3585
  %3650 = vst [vmem:[#allocation2 + $0x128] sm:$0xff] %v3586
  %3651 = vst [vmem:[#allocation2 + $0x130] sm:$0xff] %v3587
  %3652 = vst [vmem:[#allocation2 + $0x138] sm:$0xff] %v3588
  %3653 = vst [vmem:[#allocation2 + $0x140] sm:$0xff] %v3589
  %3654 = vst [vmem:[#allocation2 + $0x148] sm:$0xff] %v3590
  %3655 = vst [vmem:[#allocation2 + $0x150] sm:$0xff] %v3591
  %3656 = vst [vmem:[#allocation2 + $0x158] sm:$0xff] %v3592
  %3657 = vst [vmem:[#allocation2 + $0x160] sm:$0xff] %v3593
  %3658 = vst [vmem:[#allocation2 + $0x168] sm:$0xff] %v3594
  %3659 = vst [vmem:[#allocation2 + $0x170] sm:$0xff] %v3595
  %3660 = vst [vmem:[#allocation2 + $0x178] sm:$0xff] %v3596
  %3661 = vst [vmem:[#allocation2 + $0x180] sm:$0xff] %v3597
  %3662 = vst [vmem:[#allocation2 + $0x188] sm:$0xff] %v3598
  %3663 = vst [vmem:[#allocation2 + $0x190] sm:$0xff] %v3599
  %3664 = vst [vmem:[#allocation2 + $0x198] sm:$0xff] %v3600
  %3665 = vst [vmem:[#allocation2 + $0x1a0] sm:$0xff] %v3601
  %3666 = vst [vmem:[#allocation2 + $0x1a8] sm:$0xff] %v3602
  %3667 = vst [vmem:[#allocation2 + $0x1b0] sm:$0xff] %v3603
  %3668 = vst [vmem:[#allocation2 + $0x1b8] sm:$0xff] %v3604
  %3669 = vst [vmem:[#allocation2 + $0x1c0] sm:$0xff] %v3605
  %3670 = vst [vmem:[#allocation2 + $0x1c8] sm:$0xff] %v3606
  %3671 = vst [vmem:[#allocation2 + $0x1d0] sm:$0xff] %v3607
  %3672 = vst [vmem:[#allocation2 + $0x1d8] sm:$0xff] %v3608
  %3673 = vst [vmem:[#allocation2 + $0x1e0] sm:$0xff] %v3609
  %3674 = vst [vmem:[#allocation2 + $0x1e8] sm:$0xff] %v3610
  %3675 = vst [vmem:[#allocation2 + $0x1f0] sm:$0xff] %v3611
  %3676 = vst [vmem:[#allocation2 + $0x1f8] sm:$0xff] %v3612
  // Predicated region
  $region22: #{discriminator_forward.5} parent=0 // pred_check
    %p3677 = pneg %p17
  $region23: #{discriminator_forward.5} parent=0 // pred_check_branch
    %3679 = sbr.rel (%p3677) target = $region25
  $region24: #{discriminator_forward.5} parent=0 // pred_region
    %v3680 = vld [vmem:[#allocation2] sm:$0xff]
    %v3681 = vld [vmem:[#allocation2 + $0x8] sm:$0xff]
    %v3682 = vld [vmem:[#allocation2 + $0x10] sm:$0xff]
    %v3683 = vld [vmem:[#allocation2 + $0x18] sm:$0xff]
    %v3684 = vld [vmem:[#allocation2 + $0x20] sm:$0xff]
    %v3685 = vld [vmem:[#allocation2 + $0x28] sm:$0xff]
    %v3686 = vld [vmem:[#allocation2 + $0x30] sm:$0xff]
    %v3687 = vld [vmem:[#allocation2 + $0x38] sm:$0xff]
    %v3688 = vld [vmem:[#allocation2 + $0x40] sm:$0xff]
    %v3689 = vld [vmem:[#allocation2 + $0x48] sm:$0xff]
    %v3690 = vld [vmem:[#allocation2 + $0x50] sm:$0xff]
    %v3691 = vld [vmem:[#allocation2 + $0x58] sm:$0xff]
    %v3692 = vld [vmem:[#allocation2 + $0x60] sm:$0xff]
    %v3693 = vld [vmem:[#allocation2 + $0x68] sm:$0xff]
    %v3694 = vld [vmem:[#allocation2 + $0x70] sm:$0xff]
    %v3695 = vld [vmem:[#allocation2 + $0x78] sm:$0xff]
    %v3696 = vld [vmem:[#allocation2 + $0x80] sm:$0xff]
    %v3697 = vld [vmem:[#allocation2 + $0x88] sm:$0xff]
    %v3698 = vld [vmem:[#allocation2 + $0x90] sm:$0xff]
    %v3699 = vld [vmem:[#allocation2 + $0x98] sm:$0xff]
    %v3700 = vld [vmem:[#allocation2 + $0xa0] sm:$0xff]
    %v3701 = vld [vmem:[#allocation2 + $0xa8] sm:$0xff]
    %v3702 = vld [vmem:[#allocation2 + $0xb0] sm:$0xff]
    %v3703 = vld [vmem:[#allocation2 + $0xb8] sm:$0xff]
    %v3704 = vld [vmem:[#allocation2 + $0xc0] sm:$0xff]
    %v3705 = vld [vmem:[#allocation2 + $0xc8] sm:$0xff]
    %v3706 = vld [vmem:[#allocation2 + $0xd0] sm:$0xff]
    %v3707 = vld [vmem:[#allocation2 + $0xd8] sm:$0xff]
    %v3708 = vld [vmem:[#allocation2 + $0xe0] sm:$0xff]
    %v3709 = vld [vmem:[#allocation2 + $0xe8] sm:$0xff]
    %v3710 = vld [vmem:[#allocation2 + $0xf0] sm:$0xff]
    %v3711 = vld [vmem:[#allocation2 + $0xf8] sm:$0xff]
    %v3712 = vld [vmem:[#allocation2 + $0x100] sm:$0xff]
    %v3713 = vld [vmem:[#allocation2 + $0x108] sm:$0xff]
    %v3714 = vld [vmem:[#allocation2 + $0x110] sm:$0xff]
    %v3715 = vld [vmem:[#allocation2 + $0x118] sm:$0xff]
    %v3716 = vld [vmem:[#allocation2 + $0x120] sm:$0xff]
    %v3717 = vld [vmem:[#allocation2 + $0x128] sm:$0xff]
    %v3718 = vld [vmem:[#allocation2 + $0x130] sm:$0xff]
    %v3719 = vld [vmem:[#allocation2 + $0x138] sm:$0xff]
    %v3720 = vld [vmem:[#allocation2 + $0x140] sm:$0xff]
    %v3721 = vld [vmem:[#allocation2 + $0x148] sm:$0xff]
    %v3722 = vld [vmem:[#allocation2 + $0x150] sm:$0xff]
    %v3723 = vld [vmem:[#allocation2 + $0x158] sm:$0xff]
    %v3724 = vld [vmem:[#allocation2 + $0x160] sm:$0xff]
    %v3725 = vld [vmem:[#allocation2 + $0x168] sm:$0xff]
    %v3726 = vld [vmem:[#allocation2 + $0x170] sm:$0xff]
    %v3727 = vld [vmem:[#allocation2 + $0x178] sm:$0xff]
    %v3728 = vld [vmem:[#allocation2 + $0x180] sm:$0xff]
    %v3729 = vld [vmem:[#allocation2 + $0x188] sm:$0xff]
    %v3730 = vld [vmem:[#allocation2 + $0x190] sm:$0xff]
    %v3731 = vld [vmem:[#allocation2 + $0x198] sm:$0xff]
    %v3732 = vld [vmem:[#allocation2 + $0x1a0] sm:$0xff]
    %v3733 = vld [vmem:[#allocation2 + $0x1a8] sm:$0xff]
    %v3734 = vld [vmem:[#allocation2 + $0x1b0] sm:$0xff]
    %v3735 = vld [vmem:[#allocation2 + $0x1b8] sm:$0xff]
    %v3736 = vld [vmem:[#allocation2 + $0x1c0] sm:$0xff]
    %v3737 = vld [vmem:[#allocation2 + $0x1c8] sm:$0xff]
    %v3738 = vld [vmem:[#allocation2 + $0x1d0] sm:$0xff]
    %v3739 = vld [vmem:[#allocation2 + $0x1d8] sm:$0xff]
    %v3740 = vld [vmem:[#allocation2 + $0x1e0] sm:$0xff]
    %v3741 = vld [vmem:[#allocation2 + $0x1e8] sm:$0xff]
    %v3742 = vld [vmem:[#allocation2 + $0x1f0] sm:$0xff]
    %v3743 = vld [vmem:[#allocation2 + $0x1f8] sm:$0xff]
    %v3744 = vld [vmem:[%s2] sm:$0x1]
    %v3745 = vld [vmem:[%s3] sm:$0x1]
    %v3746 = vadd.f32 %v3680, %v3681
    %v3747 = vadd.f32 %v3746, %v3682
    %v3748 = vadd.f32 %v3747, %v3683
    %v3749 = vadd.f32 %v3748, %v3684
    %v3750 = vadd.f32 %v3749, %v3685
    %v3751 = vadd.f32 %v3750, %v3686
    %v3752 = vadd.f32 %v3751, %v3687
    %v3753 = vadd.f32 %v3752, %v3688
    %v3754 = vadd.f32 %v3753, %v3689
    %v3755 = vadd.f32 %v3754, %v3690
    %v3756 = vadd.f32 %v3755, %v3691
    %v3757 = vadd.f32 %v3756, %v3692
    %v3758 = vadd.f32 %v3757, %v3693
    %v3759 = vadd.f32 %v3758, %v3694
    %v3760 = vadd.f32 %v3759, %v3695
    %v3761 = vadd.f32 %v3760, %v3696
    %v3762 = vadd.f32 %v3761, %v3697
    %v3763 = vadd.f32 %v3762, %v3698
    %v3764 = vadd.f32 %v3763, %v3699
    %v3765 = vadd.f32 %v3764, %v3700
    %v3766 = vadd.f32 %v3765, %v3701
    %v3767 = vadd.f32 %v3766, %v3702
    %v3768 = vadd.f32 %v3767, %v3703
    %v3769 = vadd.f32 %v3768, %v3704
    %v3770 = vadd.f32 %v3769, %v3705
    %v3771 = vadd.f32 %v3770, %v3706
    %v3772 = vadd.f32 %v3771, %v3707
    %v3773 = vadd.f32 %v3772, %v3708
    %v3774 = vadd.f32 %v3773, %v3709
    %v3775 = vadd.f32 %v3774, %v3710
    %v3776 = vadd.f32 %v3775, %v3711
    %v3777 = vadd.f32 %v3776, %v3712
    %v3778 = vadd.f32 %v3777, %v3713
    %v3779 = vadd.f32 %v3778, %v3714
    %v3780 = vadd.f32 %v3779, %v3715
    %v3781 = vadd.f32 %v3780, %v3716
    %v3782 = vadd.f32 %v3781, %v3717
    %v3783 = vadd.f32 %v3782, %v3718
    %v3784 = vadd.f32 %v3783, %v3719
    %v3785 = vadd.f32 %v3784, %v3720
    %v3786 = vadd.f32 %v3785, %v3721
    %v3787 = vadd.f32 %v3786, %v3722
    %v3788 = vadd.f32 %v3787, %v3723
    %v3789 = vadd.f32 %v3788, %v3724
    %v3790 = vadd.f32 %v3789, %v3725
    %v3791 = vadd.f32 %v3790, %v3726
    %v3792 = vadd.f32 %v3791, %v3727
    %v3793 = vadd.f32 %v3792, %v3728
    %v3794 = vadd.f32 %v3793, %v3729
    %v3795 = vadd.f32 %v3794, %v3730
    %v3796 = vadd.f32 %v3795, %v3731
    %v3797 = vadd.f32 %v3796, %v3732
    %v3798 = vadd.f32 %v3797, %v3733
    %v3799 = vadd.f32 %v3798, %v3734
    %v3800 = vadd.f32 %v3799, %v3735
    %v3801 = vadd.f32 %v3800, %v3736
    %v3802 = vadd.f32 %v3801, %v3737
    %v3803 = vadd.f32 %v3802, %v3738
    %v3804 = vadd.f32 %v3803, %v3739
    %v3805 = vadd.f32 %v3804, %v3740
    %v3806 = vadd.f32 %v3805, %v3741
    %v3807 = vadd.f32 %v3806, %v3742
    %v3808 = vadd.f32 %v3807, %v3743
    %v3809 = vrot.slane %v3808, 4
    %v3810 = vadd.f32 %v3808, %v3809
    %v3811 = vrot.slane %v3810, 2
    %v3812 = vadd.f32 %v3810, %v3811
    %v3813 = vrot.slane %v3812, 1
    %v3814 = vadd.f32 %v3812, %v3813
    %v3815 = vmul.f32 %v3814, 0.001953125
    %v3816 = vmul.f32 %v3680, %v3680
    %v3817 = vmul.f32 %v3681, %v3681
    %v3818 = vmul.f32 %v3682, %v3682
    %v3819 = vmul.f32 %v3683, %v3683
    %v3820 = vmul.f32 %v3684, %v3684
    %v3821 = vmul.f32 %v3685, %v3685
    %v3822 = vmul.f32 %v3686, %v3686
    %v3823 = vmul.f32 %v3687, %v3687
    %v3824 = vmul.f32 %v3688, %v3688
    %v3825 = vmul.f32 %v3689, %v3689
    %v3826 = vmul.f32 %v3690, %v3690
    %v3827 = vmul.f32 %v3691, %v3691
    %v3828 = vmul.f32 %v3692, %v3692
    %v3829 = vmul.f32 %v3693, %v3693
    %v3830 = vmul.f32 %v3694, %v3694
    %v3831 = vmul.f32 %v3695, %v3695
    %v3832 = vmul.f32 %v3696, %v3696
    %v3833 = vmul.f32 %v3697, %v3697
    %v3834 = vmul.f32 %v3698, %v3698
    %v3835 = vmul.f32 %v3699, %v3699
    %v3836 = vmul.f32 %v3700, %v3700
    %v3837 = vmul.f32 %v3701, %v3701
    %v3838 = vmul.f32 %v3702, %v3702
    %v3839 = vmul.f32 %v3703, %v3703
    %v3840 = vmul.f32 %v3704, %v3704
    %v3841 = vmul.f32 %v3705, %v3705
    %v3842 = vmul.f32 %v3706, %v3706
    %v3843 = vmul.f32 %v3707, %v3707
    %v3844 = vmul.f32 %v3708, %v3708
    %v3845 = vmul.f32 %v3709, %v3709
    %v3846 = vmul.f32 %v3710, %v3710
    %v3847 = vmul.f32 %v3711, %v3711
    %v3848 = vmul.f32 %v3712, %v3712
    %v3849 = vmul.f32 %v3713, %v3713
    %v3850 = vmul.f32 %v3714, %v3714
    %v3851 = vmul.f32 %v3715, %v3715
    %v3852 = vmul.f32 %v3716, %v3716
    %v3853 = vmul.f32 %v3717, %v3717
    %v3854 = vmul.f32 %v3718, %v3718
    %v3855 = vmul.f32 %v3719, %v3719
    %v3856 = vmul.f32 %v3720, %v3720
    %v3857 = vmul.f32 %v3721, %v3721
    %v3858 = vmul.f32 %v3722, %v3722
    %v3859 = vmul.f32 %v3723, %v3723
    %v3860 = vmul.f32 %v3724, %v3724
    %v3861 = vmul.f32 %v3725, %v3725
    %v3862 = vmul.f32 %v3726, %v3726
    %v3863 = vmul.f32 %v3727, %v3727
    %v3864 = vmul.f32 %v3728, %v3728
    %v3865 = vmul.f32 %v3729, %v3729
    %v3866 = vmul.f32 %v3730, %v3730
    %v3867 = vmul.f32 %v3731, %v3731
    %v3868 = vmul.f32 %v3732, %v3732
    %v3869 = vmul.f32 %v3733, %v3733
    %v3870 = vmul.f32 %v3734, %v3734
    %v3871 = vmul.f32 %v3735, %v3735
    %v3872 = vmul.f32 %v3736, %v3736
    %v3873 = vmul.f32 %v3737, %v3737
    %v3874 = vmul.f32 %v3738, %v3738
    %v3875 = vmul.f32 %v3739, %v3739
    %v3876 = vmul.f32 %v3740, %v3740
    %v3877 = vmul.f32 %v3741, %v3741
    %v3878 = vmul.f32 %v3742, %v3742
    %v3879 = vmul.f32 %v3743, %v3743
    %v3880 = vadd.f32 %v3816, %v3817
    %v3881 = vadd.f32 %v3880, %v3818
    %v3882 = vadd.f32 %v3881, %v3819
    %v3883 = vadd.f32 %v3882, %v3820
    %v3884 = vadd.f32 %v3883, %v3821
    %v3885 = vadd.f32 %v3884, %v3822
    %v3886 = vadd.f32 %v3885, %v3823
    %v3887 = vadd.f32 %v3886, %v3824
    %v3888 = vadd.f32 %v3887, %v3825
    %v3889 = vadd.f32 %v3888, %v3826
    %v3890 = vadd.f32 %v3889, %v3827
    %v3891 = vadd.f32 %v3890, %v3828
    %v3892 = vadd.f32 %v3891, %v3829
    %v3893 = vadd.f32 %v3892, %v3830
    %v3894 = vadd.f32 %v3893, %v3831
    %v3895 = vadd.f32 %v3894, %v3832
    %v3896 = vadd.f32 %v3895, %v3833
    %v3897 = vadd.f32 %v3896, %v3834
    %v3898 = vadd.f32 %v3897, %v3835
    %v3899 = vadd.f32 %v3898, %v3836
    %v3900 = vadd.f32 %v3899, %v3837
    %v3901 = vadd.f32 %v3900, %v3838
    %v3902 = vadd.f32 %v3901, %v3839
    %v3903 = vadd.f32 %v3902, %v3840
    %v3904 = vadd.f32 %v3903, %v3841
    %v3905 = vadd.f32 %v3904, %v3842
    %v3906 = vadd.f32 %v3905, %v3843
    %v3907 = vadd.f32 %v3906, %v3844
    %v3908 = vadd.f32 %v3907, %v3845
    %v3909 = vadd.f32 %v3908, %v3846
    %v3910 = vadd.f32 %v3909, %v3847
    %v3911 = vadd.f32 %v3910, %v3848
    %v3912 = vadd.f32 %v3911, %v3849
    %v3913 = vadd.f32 %v3912, %v3850
    %v3914 = vadd.f32 %v3913, %v3851
    %v3915 = vadd.f32 %v3914, %v3852
    %v3916 = vadd.f32 %v3915, %v3853
    %v3917 = vadd.f32 %v3916, %v3854
    %v3918 = vadd.f32 %v3917, %v3855
    %v3919 = vadd.f32 %v3918, %v3856
    %v3920 = vadd.f32 %v3919, %v3857
    %v3921 = vadd.f32 %v3920, %v3858
    %v3922 = vadd.f32 %v3921, %v3859
    %v3923 = vadd.f32 %v3922, %v3860
    %v3924 = vadd.f32 %v3923, %v3861
    %v3925 = vadd.f32 %v3924, %v3862
    %v3926 = vadd.f32 %v3925, %v3863
    %v3927 = vadd.f32 %v3926, %v3864
    %v3928 = vadd.f32 %v3927, %v3865
    %v3929 = vadd.f32 %v3928, %v3866
    %v3930 = vadd.f32 %v3929, %v3867
    %v3931 = vadd.f32 %v3930, %v3868
    %v3932 = vadd.f32 %v3931, %v3869
    %v3933 = vadd.f32 %v3932, %v3870
    %v3934 = vadd.f32 %v3933, %v3871
    %v3935 = vadd.f32 %v3934, %v3872
    %v3936 = vadd.f32 %v3935, %v3873
    %v3937 = vadd.f32 %v3936, %v3874
    %v3938 = vadd.f32 %v3937, %v3875
    %v3939 = vadd.f32 %v3938, %v3876
    %v3940 = vadd.f32 %v3939, %v3877
    %v3941 = vadd.f32 %v3940, %v3878
    %v3942 = vadd.f32 %v3941, %v3879
    %v3943 = vrot.slane %v3942, 4
    %v3944 = vadd.f32 %v3942, %v3943
    %v3945 = vrot.slane %v3944, 2
    %v3946 = vadd.f32 %v3944, %v3945
    %v3947 = vrot.slane %v3946, 1
    %v3948 = vadd.f32 %v3946, %v3947
    %v3949 = vmul.f32 %v3948, 0.001953125
    %v3950 = vmul.f32 %v3815, %v3815
    %v3951 = vsub.f32 %v3949, %v3950
    %v3952 = vsub.f32 %v3680, %v3815
    %v3953 = vsub.f32 %v3681, %v3815
    %v3954 = vsub.f32 %v3682, %v3815
    %v3955 = vsub.f32 %v3683, %v3815
    %v3956 = vsub.f32 %v3684, %v3815
    %v3957 = vsub.f32 %v3685, %v3815
    %v3958 = vsub.f32 %v3686, %v3815
    %v3959 = vsub.f32 %v3687, %v3815
    %v3960 = vsub.f32 %v3688, %v3815
    %v3961 = vsub.f32 %v3689, %v3815
    %v3962 = vsub.f32 %v3690, %v3815
    %v3963 = vsub.f32 %v3691, %v3815
    %v3964 = vsub.f32 %v3692, %v3815
    %v3965 = vsub.f32 %v3693, %v3815
    %v3966 = vsub.f32 %v3694, %v3815
    %v3967 = vsub.f32 %v3695, %v3815
    %v3968 = vsub.f32 %v3696, %v3815
    %v3969 = vsub.f32 %v3697, %v3815
    %v3970 = vsub.f32 %v3698, %v3815
    %v3971 = vsub.f32 %v3699, %v3815
    %v3972 = vsub.f32 %v3700, %v3815
    %v3973 = vsub.f32 %v3701, %v3815
    %v3974 = vsub.f32 %v3702, %v3815
    %v3975 = vsub.f32 %v3703, %v3815
    %v3976 = vsub.f32 %v3704, %v3815
    %v3977 = vsub.f32 %v3705, %v3815
    %v3978 = vsub.f32 %v3706, %v3815
    %v3979 = vsub.f32 %v3707, %v3815
    %v3980 = vsub.f32 %v3708, %v3815
    %v3981 = vsub.f32 %v3709, %v3815
    %v3982 = vsub.f32 %v3710, %v3815
    %v3983 = vsub.f32 %v3711, %v3815
    %v3984 = vsub.f32 %v3712, %v3815
    %v3985 = vsub.f32 %v3713, %v3815
    %v3986 = vsub.f32 %v3714, %v3815
    %v3987 = vsub.f32 %v3715, %v3815
    %v3988 = vsub.f32 %v3716, %v3815
    %v3989 = vsub.f32 %v3717, %v3815
    %v3990 = vsub.f32 %v3718, %v3815
    %v3991 = vsub.f32 %v3719, %v3815
    %v3992 = vsub.f32 %v3720, %v3815
    %v3993 = vsub.f32 %v3721, %v3815
    %v3994 = vsub.f32 %v3722, %v3815
    %v3995 = vsub.f32 %v3723, %v3815
    %v3996 = vsub.f32 %v3724, %v3815
    %v3997 = vsub.f32 %v3725, %v3815
    %v3998 = vsub.f32 %v3726, %v3815
    %v3999 = vsub.f32 %v3727, %v3815
    %v4000 = vsub.f32 %v3728, %v3815
    %v4001 = vsub.f32 %v3729, %v3815
    %v4002 = vsub.f32 %v3730, %v3815
    %v4003 = vsub.f32 %v3731, %v3815
    %v4004 = vsub.f32 %v3732, %v3815
    %v4005 = vsub.f32 %v3733, %v3815
    %v4006 = vsub.f32 %v3734, %v3815
    %v4007 = vsub.f32 %v3735, %v3815
    %v4008 = vsub.f32 %v3736, %v3815
    %v4009 = vsub.f32 %v3737, %v3815
    %v4010 = vsub.f32 %v3738, %v3815
    %v4011 = vsub.f32 %v3739, %v3815
    %v4012 = vsub.f32 %v3740, %v3815
    %v4013 = vsub.f32 %v3741, %v3815
    %v4014 = vsub.f32 %v3742, %v3815
    %v4015 = vsub.f32 %v3743, %v3815
    %v4016 = vadd.f32 %v3951, 1e-05
    %v4017 = vrsqrt.pop %v4016
    %v4018 = vmul.f32 %v4017, %v4016
    %v4019 = vmul.f32 %v4018, %v4017
    %v4020 = vmul.f32 0.5, %v4019
    %v4021 = vsub.f32 1.5, %v4020
    %v4022 = vmul.f32 %v4017, %v4021
    %vm4023 = vweird.f32 %v4016
    %vm4024 = vweird.f32 %v4017
    %vm4025 = vmor %vm4023, %vm4024
    %v4026 = vsel %vm4025, %v4017, %v4022
    %v4027 = vmul.f32 %v3952, %v4026
    %v4028 = vmul.f32 %v3953, %v4026
    %v4029 = vmul.f32 %v3954, %v4026
    %v4030 = vmul.f32 %v3955, %v4026
    %v4031 = vmul.f32 %v3956, %v4026
    %v4032 = vmul.f32 %v3957, %v4026
    %v4033 = vmul.f32 %v3958, %v4026
    %v4034 = vmul.f32 %v3959, %v4026
    %v4035 = vmul.f32 %v3960, %v4026
    %v4036 = vmul.f32 %v3961, %v4026
    %v4037 = vmul.f32 %v3962, %v4026
    %v4038 = vmul.f32 %v3963, %v4026
    %v4039 = vmul.f32 %v3964, %v4026
    %v4040 = vmul.f32 %v3965, %v4026
    %v4041 = vmul.f32 %v3966, %v4026
    %v4042 = vmul.f32 %v3967, %v4026
    %v4043 = vmul.f32 %v3968, %v4026
    %v4044 = vmul.f32 %v3969, %v4026
    %v4045 = vmul.f32 %v3970, %v4026
    %v4046 = vmul.f32 %v3971, %v4026
    %v4047 = vmul.f32 %v3972, %v4026
    %v4048 = vmul.f32 %v3973, %v4026
    %v4049 = vmul.f32 %v3974, %v4026
    %v4050 = vmul.f32 %v3975, %v4026
    %v4051 = vmul.f32 %v3976, %v4026
    %v4052 = vmul.f32 %v3977, %v4026
    %v4053 = vmul.f32 %v3978, %v4026
    %v4054 = vmul.f32 %v3979, %v4026
    %v4055 = vmul.f32 %v3980, %v4026
    %v4056 = vmul.f32 %v3981, %v4026
    %v4057 = vmul.f32 %v3982, %v4026
    %v4058 = vmul.f32 %v3983, %v4026
    %v4059 = vmul.f32 %v3984, %v4026
    %v4060 = vmul.f32 %v3985, %v4026
    %v4061 = vmul.f32 %v3986, %v4026
    %v4062 = vmul.f32 %v3987, %v4026
    %v4063 = vmul.f32 %v3988, %v4026
    %v4064 = vmul.f32 %v3989, %v4026
    %v4065 = vmul.f32 %v3990, %v4026
    %v4066 = vmul.f32 %v3991, %v4026
    %v4067 = vmul.f32 %v3992, %v4026
    %v4068 = vmul.f32 %v3993, %v4026
    %v4069 = vmul.f32 %v3994, %v4026
    %v4070 = vmul.f32 %v3995, %v4026
    %v4071 = vmul.f32 %v3996, %v4026
    %v4072 = vmul.f32 %v3997, %v4026
    %v4073 = vmul.f32 %v3998, %v4026
    %v4074 = vmul.f32 %v3999, %v4026
    %v4075 = vmul.f32 %v4000, %v4026
    %v4076 = vmul.f32 %v4001, %v4026
    %v4077 = vmul.f32 %v4002, %v4026
    %v4078 = vmul.f32 %v4003, %v4026
    %v4079 = vmul.f32 %v4004, %v4026
    %v4080 = vmul.f32 %v4005, %v4026
    %v4081 = vmul.f32 %v4006, %v4026
    %v4082 = vmul.f32 %v4007, %v4026
    %v4083 = vmul.f32 %v4008, %v4026
    %v4084 = vmul.f32 %v4009, %v4026
    %v4085 = vmul.f32 %v4010, %v4026
    %v4086 = vmul.f32 %v4011, %v4026
    %v4087 = vmul.f32 %v4012, %v4026
    %v4088 = vmul.f32 %v4013, %v4026
    %v4089 = vmul.f32 %v4014, %v4026
    %v4090 = vmul.f32 %v4015, %v4026
    %v4092 = vperm.slane %v3744, 0
    %v4094 = vmul.f32 %v4027, %v4092
    %v4095 = vmul.f32 %v4028, %v4092
    %v4096 = vmul.f32 %v4029, %v4092
    %v4097 = vmul.f32 %v4030, %v4092
    %v4098 = vmul.f32 %v4031, %v4092
    %v4099 = vmul.f32 %v4032, %v4092
    %v4100 = vmul.f32 %v4033, %v4092
    %v4101 = vmul.f32 %v4034, %v4092
    %v4102 = vmul.f32 %v4035, %v4092
    %v4103 = vmul.f32 %v4036, %v4092
    %v4104 = vmul.f32 %v4037, %v4092
    %v4105 = vmul.f32 %v4038, %v4092
    %v4106 = vmul.f32 %v4039, %v4092
    %v4107 = vmul.f32 %v4040, %v4092
    %v4108 = vmul.f32 %v4041, %v4092
    %v4109 = vmul.f32 %v4042, %v4092
    %v4110 = vmul.f32 %v4043, %v4092
    %v4111 = vmul.f32 %v4044, %v4092
    %v4112 = vmul.f32 %v4045, %v4092
    %v4113 = vmul.f32 %v4046, %v4092
    %v4114 = vmul.f32 %v4047, %v4092
    %v4115 = vmul.f32 %v4048, %v4092
    %v4116 = vmul.f32 %v4049, %v4092
    %v4117 = vmul.f32 %v4050, %v4092
    %v4118 = vmul.f32 %v4051, %v4092
    %v4119 = vmul.f32 %v4052, %v4092
    %v4120 = vmul.f32 %v4053, %v4092
    %v4121 = vmul.f32 %v4054, %v4092
    %v4122 = vmul.f32 %v4055, %v4092
    %v4123 = vmul.f32 %v4056, %v4092
    %v4124 = vmul.f32 %v4057, %v4092
    %v4125 = vmul.f32 %v4058, %v4092
    %v4126 = vmul.f32 %v4059, %v4092
    %v4127 = vmul.f32 %v4060, %v4092
    %v4128 = vmul.f32 %v4061, %v4092
    %v4129 = vmul.f32 %v4062, %v4092
    %v4130 = vmul.f32 %v4063, %v4092
    %v4131 = vmul.f32 %v4064, %v4092
    %v4132 = vmul.f32 %v4065, %v4092
    %v4133 = vmul.f32 %v4066, %v4092
    %v4134 = vmul.f32 %v4067, %v4092
    %v4135 = vmul.f32 %v4068, %v4092
    %v4136 = vmul.f32 %v4069, %v4092
    %v4137 = vmul.f32 %v4070, %v4092
    %v4138 = vmul.f32 %v4071, %v4092
    %v4139 = vmul.f32 %v4072, %v4092
    %v4140 = vmul.f32 %v4073, %v4092
    %v4141 = vmul.f32 %v4074, %v4092
    %v4142 = vmul.f32 %v4075, %v4092
    %v4143 = vmul.f32 %v4076, %v4092
    %v4144 = vmul.f32 %v4077, %v4092
    %v4145 = vmul.f32 %v4078, %v4092
    %v4146 = vmul.f32 %v4079, %v4092
    %v4147 = vmul.f32 %v4080, %v4092
    %v4148 = vmul.f32 %v4081, %v4092
    %v4149 = vmul.f32 %v4082, %v4092
    %v4150 = vmul.f32 %v4083, %v4092
    %v4151 = vmul.f32 %v4084, %v4092
    %v4152 = vmul.f32 %v4085, %v4092
    %v4153 = vmul.f32 %v4086, %v4092
    %v4154 = vmul.f32 %v4087, %v4092
    %v4155 = vmul.f32 %v4088, %v4092
    %v4156 = vmul.f32 %v4089, %v4092
    %v4157 = vmul.f32 %v4090, %v4092
    %v4159 = vperm.slane %v3745, 0
    %v4161 = vadd.f32 %v4094, %v4159
    %v4162 = vadd.f32 %v4095, %v4159
    %v4163 = vadd.f32 %v4096, %v4159
    %v4164 = vadd.f32 %v4097, %v4159
    %v4165 = vadd.f32 %v4098, %v4159
    %v4166 = vadd.f32 %v4099, %v4159
    %v4167 = vadd.f32 %v4100, %v4159
    %v4168 = vadd.f32 %v4101, %v4159
    %v4169 = vadd.f32 %v4102, %v4159
    %v4170 = vadd.f32 %v4103, %v4159
    %v4171 = vadd.f32 %v4104, %v4159
    %v4172 = vadd.f32 %v4105, %v4159
    %v4173 = vadd.f32 %v4106, %v4159
    %v4174 = vadd.f32 %v4107, %v4159
    %v4175 = vadd.f32 %v4108, %v4159
    %v4176 = vadd.f32 %v4109, %v4159
    %v4177 = vadd.f32 %v4110, %v4159
    %v4178 = vadd.f32 %v4111, %v4159
    %v4179 = vadd.f32 %v4112, %v4159
    %v4180 = vadd.f32 %v4113, %v4159
    %v4181 = vadd.f32 %v4114, %v4159
    %v4182 = vadd.f32 %v4115, %v4159
    %v4183 = vadd.f32 %v4116, %v4159
    %v4184 = vadd.f32 %v4117, %v4159
    %v4185 = vadd.f32 %v4118, %v4159
    %v4186 = vadd.f32 %v4119, %v4159
    %v4187 = vadd.f32 %v4120, %v4159
    %v4188 = vadd.f32 %v4121, %v4159
    %v4189 = vadd.f32 %v4122, %v4159
    %v4190 = vadd.f32 %v4123, %v4159
    %v4191 = vadd.f32 %v4124, %v4159
    %v4192 = vadd.f32 %v4125, %v4159
    %v4193 = vadd.f32 %v4126, %v4159
    %v4194 = vadd.f32 %v4127, %v4159
    %v4195 = vadd.f32 %v4128, %v4159
    %v4196 = vadd.f32 %v4129, %v4159
    %v4197 = vadd.f32 %v4130, %v4159
    %v4198 = vadd.f32 %v4131, %v4159
    %v4199 = vadd.f32 %v4132, %v4159
    %v4200 = vadd.f32 %v4133, %v4159
    %v4201 = vadd.f32 %v4134, %v4159
    %v4202 = vadd.f32 %v4135, %v4159
    %v4203 = vadd.f32 %v4136, %v4159
    %v4204 = vadd.f32 %v4137, %v4159
    %v4205 = vadd.f32 %v4138, %v4159
    %v4206 = vadd.f32 %v4139, %v4159
    %v4207 = vadd.f32 %v4140, %v4159
    %v4208 = vadd.f32 %v4141, %v4159
    %v4209 = vadd.f32 %v4142, %v4159
    %v4210 = vadd.f32 %v4143, %v4159
    %v4211 = vadd.f32 %v4144, %v4159
    %v4212 = vadd.f32 %v4145, %v4159
    %v4213 = vadd.f32 %v4146, %v4159
    %v4214 = vadd.f32 %v4147, %v4159
    %v4215 = vadd.f32 %v4148, %v4159
    %v4216 = vadd.f32 %v4149, %v4159
    %v4217 = vadd.f32 %v4150, %v4159
    %v4218 = vadd.f32 %v4151, %v4159
    %v4219 = vadd.f32 %v4152, %v4159
    %v4220 = vadd.f32 %v4153, %v4159
    %v4221 = vadd.f32 %v4154, %v4159
    %v4222 = vadd.f32 %v4155, %v4159
    %v4223 = vadd.f32 %v4156, %v4159
    %v4224 = vadd.f32 %v4157, %v4159
    %vm4225 = vcmp.gt.f32.partialorder %v4161, 0.0
    %vm4226 = vcmp.gt.f32.partialorder %v4162, 0.0
    %vm4227 = vcmp.gt.f32.partialorder %v4163, 0.0
    %vm4228 = vcmp.gt.f32.partialorder %v4164, 0.0
    %vm4229 = vcmp.gt.f32.partialorder %v4165, 0.0
    %vm4230 = vcmp.gt.f32.partialorder %v4166, 0.0
    %vm4231 = vcmp.gt.f32.partialorder %v4167, 0.0
    %vm4232 = vcmp.gt.f32.partialorder %v4168, 0.0
    %vm4233 = vcmp.gt.f32.partialorder %v4169, 0.0
    %vm4234 = vcmp.gt.f32.partialorder %v4170, 0.0
    %vm4235 = vcmp.gt.f32.partialorder %v4171, 0.0
    %vm4236 = vcmp.gt.f32.partialorder %v4172, 0.0
    %vm4237 = vcmp.gt.f32.partialorder %v4173, 0.0
    %vm4238 = vcmp.gt.f32.partialorder %v4174, 0.0
    %vm4239 = vcmp.gt.f32.partialorder %v4175, 0.0
    %vm4240 = vcmp.gt.f32.partialorder %v4176, 0.0
    %vm4241 = vcmp.gt.f32.partialorder %v4177, 0.0
    %vm4242 = vcmp.gt.f32.partialorder %v4178, 0.0
    %vm4243 = vcmp.gt.f32.partialorder %v4179, 0.0
    %vm4244 = vcmp.gt.f32.partialorder %v4180, 0.0
    %vm4245 = vcmp.gt.f32.partialorder %v4181, 0.0
    %vm4246 = vcmp.gt.f32.partialorder %v4182, 0.0
    %vm4247 = vcmp.gt.f32.partialorder %v4183, 0.0
    %vm4248 = vcmp.gt.f32.partialorder %v4184, 0.0
    %vm4249 = vcmp.gt.f32.partialorder %v4185, 0.0
    %vm4250 = vcmp.gt.f32.partialorder %v4186, 0.0
    %vm4251 = vcmp.gt.f32.partialorder %v4187, 0.0
    %vm4252 = vcmp.gt.f32.partialorder %v4188, 0.0
    %vm4253 = vcmp.gt.f32.partialorder %v4189, 0.0
    %vm4254 = vcmp.gt.f32.partialorder %v4190, 0.0
    %vm4255 = vcmp.gt.f32.partialorder %v4191, 0.0
    %vm4256 = vcmp.gt.f32.partialorder %v4192, 0.0
    %vm4257 = vcmp.gt.f32.partialorder %v4193, 0.0
    %vm4258 = vcmp.gt.f32.partialorder %v4194, 0.0
    %vm4259 = vcmp.gt.f32.partialorder %v4195, 0.0
    %vm4260 = vcmp.gt.f32.partialorder %v4196, 0.0
    %vm4261 = vcmp.gt.f32.partialorder %v4197, 0.0
    %vm4262 = vcmp.gt.f32.partialorder %v4198, 0.0
    %vm4263 = vcmp.gt.f32.partialorder %v4199, 0.0
    %vm4264 = vcmp.gt.f32.partialorder %v4200, 0.0
    %vm4265 = vcmp.gt.f32.partialorder %v4201, 0.0
    %vm4266 = vcmp.gt.f32.partialorder %v4202, 0.0
    %vm4267 = vcmp.gt.f32.partialorder %v4203, 0.0
    %vm4268 = vcmp.gt.f32.partialorder %v4204, 0.0
    %vm4269 = vcmp.gt.f32.partialorder %v4205, 0.0
    %vm4270 = vcmp.gt.f32.partialorder %v4206, 0.0
    %vm4271 = vcmp.gt.f32.partialorder %v4207, 0.0
    %vm4272 = vcmp.gt.f32.partialorder %v4208, 0.0
    %vm4273 = vcmp.gt.f32.partialorder %v4209, 0.0
    %vm4274 = vcmp.gt.f32.partialorder %v4210, 0.0
    %vm4275 = vcmp.gt.f32.partialorder %v4211, 0.0
    %vm4276 = vcmp.gt.f32.partialorder %v4212, 0.0
    %vm4277 = vcmp.gt.f32.partialorder %v4213, 0.0
    %vm4278 = vcmp.gt.f32.partialorder %v4214, 0.0
    %vm4279 = vcmp.gt.f32.partialorder %v4215, 0.0
    %vm4280 = vcmp.gt.f32.partialorder %v4216, 0.0
    %vm4281 = vcmp.gt.f32.partialorder %v4217, 0.0
    %vm4282 = vcmp.gt.f32.partialorder %v4218, 0.0
    %vm4283 = vcmp.gt.f32.partialorder %v4219, 0.0
    %vm4284 = vcmp.gt.f32.partialorder %v4220, 0.0
    %vm4285 = vcmp.gt.f32.partialorder %v4221, 0.0
    %vm4286 = vcmp.gt.f32.partialorder %v4222, 0.0
    %vm4287 = vcmp.gt.f32.partialorder %v4223, 0.0
    %vm4288 = vcmp.gt.f32.partialorder %v4224, 0.0
    %v4289 = vmul.f32 %v4161, 0.2
    %v4290 = vmul.f32 %v4162, 0.2
    %v4291 = vmul.f32 %v4163, 0.2
    %v4292 = vmul.f32 %v4164, 0.2
    %v4293 = vmul.f32 %v4165, 0.2
    %v4294 = vmul.f32 %v4166, 0.2
    %v4295 = vmul.f32 %v4167, 0.2
    %v4296 = vmul.f32 %v4168, 0.2
    %v4297 = vmul.f32 %v4169, 0.2
    %v4298 = vmul.f32 %v4170, 0.2
    %v4299 = vmul.f32 %v4171, 0.2
    %v4300 = vmul.f32 %v4172, 0.2
    %v4301 = vmul.f32 %v4173, 0.2
    %v4302 = vmul.f32 %v4174, 0.2
    %v4303 = vmul.f32 %v4175, 0.2
    %v4304 = vmul.f32 %v4176, 0.2
    %v4305 = vmul.f32 %v4177, 0.2
    %v4306 = vmul.f32 %v4178, 0.2
    %v4307 = vmul.f32 %v4179, 0.2
    %v4308 = vmul.f32 %v4180, 0.2
    %v4309 = vmul.f32 %v4181, 0.2
    %v4310 = vmul.f32 %v4182, 0.2
    %v4311 = vmul.f32 %v4183, 0.2
    %v4312 = vmul.f32 %v4184, 0.2
    %v4313 = vmul.f32 %v4185, 0.2
    %v4314 = vmul.f32 %v4186, 0.2
    %v4315 = vmul.f32 %v4187, 0.2
    %v4316 = vmul.f32 %v4188, 0.2
    %v4317 = vmul.f32 %v4189, 0.2
    %v4318 = vmul.f32 %v4190, 0.2
    %v4319 = vmul.f32 %v4191, 0.2
    %v4320 = vmul.f32 %v4192, 0.2
    %v4321 = vmul.f32 %v4193, 0.2
    %v4322 = vmul.f32 %v4194, 0.2
    %v4323 = vmul.f32 %v4195, 0.2
    %v4324 = vmul.f32 %v4196, 0.2
    %v4325 = vmul.f32 %v4197, 0.2
    %v4326 = vmul.f32 %v4198, 0.2
    %v4327 = vmul.f32 %v4199, 0.2
    %v4328 = vmul.f32 %v4200, 0.2
    %v4329 = vmul.f32 %v4201, 0.2
    %v4330 = vmul.f32 %v4202, 0.2
    %v4331 = vmul.f32 %v4203, 0.2
    %v4332 = vmul.f32 %v4204, 0.2
    %v4333 = vmul.f32 %v4205, 0.2
    %v4334 = vmul.f32 %v4206, 0.2
    %v4335 = vmul.f32 %v4207, 0.2
    %v4336 = vmul.f32 %v4208, 0.2
    %v4337 = vmul.f32 %v4209, 0.2
    %v4338 = vmul.f32 %v4210, 0.2
    %v4339 = vmul.f32 %v4211, 0.2
    %v4340 = vmul.f32 %v4212, 0.2
    %v4341 = vmul.f32 %v4213, 0.2
    %v4342 = vmul.f32 %v4214, 0.2
    %v4343 = vmul.f32 %v4215, 0.2
    %v4344 = vmul.f32 %v4216, 0.2
    %v4345 = vmul.f32 %v4217, 0.2
    %v4346 = vmul.f32 %v4218, 0.2
    %v4347 = vmul.f32 %v4219, 0.2
    %v4348 = vmul.f32 %v4220, 0.2
    %v4349 = vmul.f32 %v4221, 0.2
    %v4350 = vmul.f32 %v4222, 0.2
    %v4351 = vmul.f32 %v4223, 0.2
    %v4352 = vmul.f32 %v4224, 0.2
    %v4353 = vsel %vm4225, %v4161, %v4289
    %v4354 = vsel %vm4226, %v4162, %v4290
    %v4355 = vsel %vm4227, %v4163, %v4291
    %v4356 = vsel %vm4228, %v4164, %v4292
    %v4357 = vsel %vm4229, %v4165, %v4293
    %v4358 = vsel %vm4230, %v4166, %v4294
    %v4359 = vsel %vm4231, %v4167, %v4295
    %v4360 = vsel %vm4232, %v4168, %v4296
    %v4361 = vsel %vm4233, %v4169, %v4297
    %v4362 = vsel %vm4234, %v4170, %v4298
    %v4363 = vsel %vm4235, %v4171, %v4299
    %v4364 = vsel %vm4236, %v4172, %v4300
    %v4365 = vsel %vm4237, %v4173, %v4301
    %v4366 = vsel %vm4238, %v4174, %v4302
    %v4367 = vsel %vm4239, %v4175, %v4303
    %v4368 = vsel %vm4240, %v4176, %v4304
    %v4369 = vsel %vm4241, %v4177, %v4305
    %v4370 = vsel %vm4242, %v4178, %v4306
    %v4371 = vsel %vm4243, %v4179, %v4307
    %v4372 = vsel %vm4244, %v4180, %v4308
    %v4373 = vsel %vm4245, %v4181, %v4309
    %v4374 = vsel %vm4246, %v4182, %v4310
    %v4375 = vsel %vm4247, %v4183, %v4311
    %v4376 = vsel %vm4248, %v4184, %v4312
    %v4377 = vsel %vm4249, %v4185, %v4313
    %v4378 = vsel %vm4250, %v4186, %v4314
    %v4379 = vsel %vm4251, %v4187, %v4315
    %v4380 = vsel %vm4252, %v4188, %v4316
    %v4381 = vsel %vm4253, %v4189, %v4317
    %v4382 = vsel %vm4254, %v4190, %v4318
    %v4383 = vsel %vm4255, %v4191, %v4319
    %v4384 = vsel %vm4256, %v4192, %v4320
    %v4385 = vsel %vm4257, %v4193, %v4321
    %v4386 = vsel %vm4258, %v4194, %v4322
    %v4387 = vsel %vm4259, %v4195, %v4323
    %v4388 = vsel %vm4260, %v4196, %v4324
    %v4389 = vsel %vm4261, %v4197, %v4325
    %v4390 = vsel %vm4262, %v4198, %v4326
    %v4391 = vsel %vm4263, %v4199, %v4327
    %v4392 = vsel %vm4264, %v4200, %v4328
    %v4393 = vsel %vm4265, %v4201, %v4329
    %v4394 = vsel %vm4266, %v4202, %v4330
    %v4395 = vsel %vm4267, %v4203, %v4331
    %v4396 = vsel %vm4268, %v4204, %v4332
    %v4397 = vsel %vm4269, %v4205, %v4333
    %v4398 = vsel %vm4270, %v4206, %v4334
    %v4399 = vsel %vm4271, %v4207, %v4335
    %v4400 = vsel %vm4272, %v4208, %v4336
    %v4401 = vsel %vm4273, %v4209, %v4337
    %v4402 = vsel %vm4274, %v4210, %v4338
    %v4403 = vsel %vm4275, %v4211, %v4339
    %v4404 = vsel %vm4276, %v4212, %v4340
    %v4405 = vsel %vm4277, %v4213, %v4341
    %v4406 = vsel %vm4278, %v4214, %v4342
    %v4407 = vsel %vm4279, %v4215, %v4343
    %v4408 = vsel %vm4280, %v4216, %v4344
    %v4409 = vsel %vm4281, %v4217, %v4345
    %v4410 = vsel %vm4282, %v4218, %v4346
    %v4411 = vsel %vm4283, %v4219, %v4347
    %v4412 = vsel %vm4284, %v4220, %v4348
    %v4413 = vsel %vm4285, %v4221, %v4349
    %v4414 = vsel %vm4286, %v4222, %v4350
    %v4415 = vsel %vm4287, %v4223, %v4351
    %v4416 = vsel %vm4288, %v4224, %v4352
    %v4417 = vpack.c.bf16 %v4353, %v4353
    %v4418 = vpack.c.bf16 %v4354, %v4354
    %v4419 = vpack.c.bf16 %v4355, %v4355
    %v4420 = vpack.c.bf16 %v4356, %v4356
    %v4421 = vpack.c.bf16 %v4357, %v4357
    %v4422 = vpack.c.bf16 %v4358, %v4358
    %v4423 = vpack.c.bf16 %v4359, %v4359
    %v4424 = vpack.c.bf16 %v4360, %v4360
    %v4425 = vpack.c.bf16 %v4361, %v4361
    %v4426 = vpack.c.bf16 %v4362, %v4362
    %v4427 = vpack.c.bf16 %v4363, %v4363
    %v4428 = vpack.c.bf16 %v4364, %v4364
    %v4429 = vpack.c.bf16 %v4365, %v4365
    %v4430 = vpack.c.bf16 %v4366, %v4366
    %v4431 = vpack.c.bf16 %v4367, %v4367
    %v4432 = vpack.c.bf16 %v4368, %v4368
    %v4433 = vpack.c.bf16 %v4369, %v4369
    %v4434 = vpack.c.bf16 %v4370, %v4370
    %v4435 = vpack.c.bf16 %v4371, %v4371
    %v4436 = vpack.c.bf16 %v4372, %v4372
    %v4437 = vpack.c.bf16 %v4373, %v4373
    %v4438 = vpack.c.bf16 %v4374, %v4374
    %v4439 = vpack.c.bf16 %v4375, %v4375
    %v4440 = vpack.c.bf16 %v4376, %v4376
    %v4441 = vpack.c.bf16 %v4377, %v4377
    %v4442 = vpack.c.bf16 %v4378, %v4378
    %v4443 = vpack.c.bf16 %v4379, %v4379
    %v4444 = vpack.c.bf16 %v4380, %v4380
    %v4445 = vpack.c.bf16 %v4381, %v4381
    %v4446 = vpack.c.bf16 %v4382, %v4382
    %v4447 = vpack.c.bf16 %v4383, %v4383
    %v4448 = vpack.c.bf16 %v4384, %v4384
    %v4449 = vpack.c.bf16 %v4385, %v4385
    %v4450 = vpack.c.bf16 %v4386, %v4386
    %v4451 = vpack.c.bf16 %v4387, %v4387
    %v4452 = vpack.c.bf16 %v4388, %v4388
    %v4453 = vpack.c.bf16 %v4389, %v4389
    %v4454 = vpack.c.bf16 %v4390, %v4390
    %v4455 = vpack.c.bf16 %v4391, %v4391
    %v4456 = vpack.c.bf16 %v4392, %v4392
    %v4457 = vpack.c.bf16 %v4393, %v4393
    %v4458 = vpack.c.bf16 %v4394, %v4394
    %v4459 = vpack.c.bf16 %v4395, %v4395
    %v4460 = vpack.c.bf16 %v4396, %v4396
    %v4461 = vpack.c.bf16 %v4397, %v4397
    %v4462 = vpack.c.bf16 %v4398, %v4398
    %v4463 = vpack.c.bf16 %v4399, %v4399
    %v4464 = vpack.c.bf16 %v4400, %v4400
    %v4465 = vpack.c.bf16 %v4401, %v4401
    %v4466 = vpack.c.bf16 %v4402, %v4402
    %v4467 = vpack.c.bf16 %v4403, %v4403
    %v4468 = vpack.c.bf16 %v4404, %v4404
    %v4469 = vpack.c.bf16 %v4405, %v4405
    %v4470 = vpack.c.bf16 %v4406, %v4406
    %v4471 = vpack.c.bf16 %v4407, %v4407
    %v4472 = vpack.c.bf16 %v4408, %v4408
    %v4473 = vpack.c.bf16 %v4409, %v4409
    %v4474 = vpack.c.bf16 %v4410, %v4410
    %v4475 = vpack.c.bf16 %v4411, %v4411
    %v4476 = vpack.c.bf16 %v4412, %v4412
    %v4477 = vpack.c.bf16 %v4413, %v4413
    %v4478 = vpack.c.bf16 %v4414, %v4414
    %v4479 = vpack.c.bf16 %v4415, %v4415
    %v4480 = vpack.c.bf16 %v4416, %v4416
    %4481 = vst [vmem:[%s4] sm:$0xf] %v4417
    %4482 = vst [vmem:[%s4 + $0x4] sm:$0xf] %v4418
    %4483 = vst [vmem:[%s4 + $0x8] sm:$0xf] %v4419
    %4484 = vst [vmem:[%s4 + $0xc] sm:$0xf] %v4420
    %4485 = vst [vmem:[%s4 + $0x10] sm:$0xf] %v4421
    %4486 = vst [vmem:[%s4 + $0x14] sm:$0xf] %v4422
    %4487 = vst [vmem:[%s4 + $0x18] sm:$0xf] %v4423
    %4488 = vst [vmem:[%s4 + $0x1c] sm:$0xf] %v4424
    %4489 = vst [vmem:[%s4 + $0x20] sm:$0xf] %v4425
    %4490 = vst [vmem:[%s4 + $0x24] sm:$0xf] %v4426
    %4491 = vst [vmem:[%s4 + $0x28] sm:$0xf] %v4427
    %4492 = vst [vmem:[%s4 + $0x2c] sm:$0xf] %v4428
    %4493 = vst [vmem:[%s4 + $0x30] sm:$0xf] %v4429
    %4494 = vst [vmem:[%s4 + $0x34] sm:$0xf] %v4430
    %4495 = vst [vmem:[%s4 + $0x38] sm:$0xf] %v4431
    %4496 = vst [vmem:[%s4 + $0x3c] sm:$0xf] %v4432
    %4497 = vst [vmem:[%s4 + $0x40] sm:$0xf] %v4433
    %4498 = vst [vmem:[%s4 + $0x44] sm:$0xf] %v4434
    %4499 = vst [vmem:[%s4 + $0x48] sm:$0xf] %v4435
    %4500 = vst [vmem:[%s4 + $0x4c] sm:$0xf] %v4436
    %4501 = vst [vmem:[%s4 + $0x50] sm:$0xf] %v4437
    %4502 = vst [vmem:[%s4 + $0x54] sm:$0xf] %v4438
    %4503 = vst [vmem:[%s4 + $0x58] sm:$0xf] %v4439
    %4504 = vst [vmem:[%s4 + $0x5c] sm:$0xf] %v4440
    %4505 = vst [vmem:[%s4 + $0x60] sm:$0xf] %v4441
    %4506 = vst [vmem:[%s4 + $0x64] sm:$0xf] %v4442
    %4507 = vst [vmem:[%s4 + $0x68] sm:$0xf] %v4443
    %4508 = vst [vmem:[%s4 + $0x6c] sm:$0xf] %v4444
    %4509 = vst [vmem:[%s4 + $0x70] sm:$0xf] %v4445
    %4510 = vst [vmem:[%s4 + $0x74] sm:$0xf] %v4446
    %4511 = vst [vmem:[%s4 + $0x78] sm:$0xf] %v4447
    %4512 = vst [vmem:[%s4 + $0x7c] sm:$0xf] %v4448
    %4513 = vst [vmem:[%s4 + $0x80] sm:$0xf] %v4449
    %4514 = vst [vmem:[%s4 + $0x84] sm:$0xf] %v4450
    %4515 = vst [vmem:[%s4 + $0x88] sm:$0xf] %v4451
    %4516 = vst [vmem:[%s4 + $0x8c] sm:$0xf] %v4452
    %4517 = vst [vmem:[%s4 + $0x90] sm:$0xf] %v4453
    %4518 = vst [vmem:[%s4 + $0x94] sm:$0xf] %v4454
    %4519 = vst [vmem:[%s4 + $0x98] sm:$0xf] %v4455
    %4520 = vst [vmem:[%s4 + $0x9c] sm:$0xf] %v4456
    %4521 = vst [vmem:[%s4 + $0xa0] sm:$0xf] %v4457
    %4522 = vst [vmem:[%s4 + $0xa4] sm:$0xf] %v4458
    %4523 = vst [vmem:[%s4 + $0xa8] sm:$0xf] %v4459
    %4524 = vst [vmem:[%s4 + $0xac] sm:$0xf] %v4460
    %4525 = vst [vmem:[%s4 + $0xb0] sm:$0xf] %v4461
    %4526 = vst [vmem:[%s4 + $0xb4] sm:$0xf] %v4462
    %4527 = vst [vmem:[%s4 + $0xb8] sm:$0xf] %v4463
    %4528 = vst [vmem:[%s4 + $0xbc] sm:$0xf] %v4464
    %4529 = vst [vmem:[%s4 + $0xc0] sm:$0xf] %v4465
    %4530 = vst [vmem:[%s4 + $0xc4] sm:$0xf] %v4466
    %4531 = vst [vmem:[%s4 + $0xc8] sm:$0xf] %v4467
    %4532 = vst [vmem:[%s4 + $0xcc] sm:$0xf] %v4468
    %4533 = vst [vmem:[%s4 + $0xd0] sm:$0xf] %v4469
    %4534 = vst [vmem:[%s4 + $0xd4] sm:$0xf] %v4470
    %4535 = vst [vmem:[%s4 + $0xd8] sm:$0xf] %v4471
    %4536 = vst [vmem:[%s4 + $0xdc] sm:$0xf] %v4472
    %4537 = vst [vmem:[%s4 + $0xe0] sm:$0xf] %v4473
    %4538 = vst [vmem:[%s4 + $0xe4] sm:$0xf] %v4474
    %4539 = vst [vmem:[%s4 + $0xe8] sm:$0xf] %v4475
    %4540 = vst [vmem:[%s4 + $0xec] sm:$0xf] %v4476
    %4541 = vst [vmem:[%s4 + $0xf0] sm:$0xf] %v4477
    %4542 = vst [vmem:[%s4 + $0xf4] sm:$0xf] %v4478
    %4543 = vst [vmem:[%s4 + $0xf8] sm:$0xf] %v4479
    %4544 = vst [vmem:[%s4 + $0xfc] sm:$0xf] %v4480
  $region25: #{discriminator_forward.5} parent=0 // pred_fallthru
    _
  // Predicated region
  $region26: #{discriminator_forward.5} parent=0 // pred_check
    _
  $region27: #{discriminator_forward.5} parent=0 // pred_check_branch
    %4546 = sbr.rel (0) target = $region29
  $region28: #{discriminator_forward.5} parent=0 // pred_region
    _
  $region29: #{discriminator_forward.5} parent=0 // pred_fallthru
    _
  // Predicated region
  $region30: #{discriminator_forward.5} parent=0 // pred_check
    _
  $region31: #{discriminator_forward.5} parent=0 // pred_check_branch
    %4548 = sbr.rel (0) target = $region33
  $region32: #{discriminator_forward.5} parent=0 // pred_region
    _
  $region33: #{discriminator_forward.5} parent=0 // pred_fallthru
    _

// kernel: discriminator_forward.7
$region0: #{discriminator_forward.7}
  #allocation0 [shape = 'u32[]', space=smem, size = 0x4, offset = 0x4, fixed_abs, tag = 'smem constant byte address 0x4 - core index']
  #allocation1 [shape = 'u32[72,128]{1,0:T(1,128)}', space=vmem, size = 0x9000, scoped, tag = 'internal scratch']
  #allocation2 [shape = 'f32[32,512]{1,0:T(8,128)}', space=vmem, size = 0x10000, scoped, tag = 'scratch operand']
  #allocation3 [shape = 'f32[1,1]{1,0:T(1,128)S(1)}', space=vmem, size = 0x200, scoped, tag = 'scoped memory for discriminator_forward.7']
  %s0 = inlined_call_operand.vmem [shape: bf16[32,4096], index: 0, kind: input, shape index: {}]
  %s1 = inlined_call_operand.vmem [shape: bf16[4096,512], index: 1, kind: input, shape index: {}]
  %s2 = inlined_call_operand.vmem [shape: f32[1,512], index: 2, kind: input, shape index: {}]
  %s3 = inlined_call_operand.vmem [shape: f32[1,512], index: 3, kind: input, shape index: {}]
  %s4 = inlined_call_operand.vmem [shape: f32[16,512], index: 4, kind: input, shape index: {}]
  %s5 = inlined_call_operand.<no memory space> [shape: f32[1,1], index: 5, kind: input, shape index: {}]
  %s6 = inlined_call_operand.vmem [shape: f32[2,1], index: 6, kind: output, shape index: {}]
  %s7 = sld [smem:[#allocation0]]
  $region88: #{discriminator_forward.7} parent=0
    _
  %s9 = ssub.s32 1, %s7
  %s10 = scalar_select 0, %s9, %s7
  %v11 = vstv %s5
  %12 = vst [vmem:[#allocation3] sm:$0x1] %v11
  $region1: #{discriminator_forward.7} parent=0
    #allocation4 [shape = 'u8[131072]{0}', space=vmem, size = 0x20000, scoped, tag = 'input window, operand 0']
    loop: start=0, step=1, limit=6
    $region2: #{discriminator_forward.7} parent=1 // loop_pre_header
      _
    $region3: #{discriminator_forward.7} parent=1 // loop_header
      %s14 = sphi 0, %s18
      %p15 = scmp.ge.s32.totalorder %s14, 6
      %s24 = sphi 0, %s26
      %s27 = sphi 0, %s24
      %s28 = sphi 0, %s27
      %s44 = sphi 0, %s28
      %s50 = sphi 0, %s52
      %s53 = sphi 0, %s50
      %s54 = sphi 0, %s53
      %s70 = sphi 0, %s54
      %s74 = sphi 0, %s74
      %s76 = sphi 0, %s74
      %s77 = sphi 0, %s76
      %s91 = sphi 0, %s77
      %s95 = sphi 0, %s95
      %s97 = sphi 0, %s95
      %s98 = sphi 0, %s97
      %s112 = sphi 0, %s98
      %s116 = sphi 0, %s116
      %s118 = sphi 0, %s116
      %s119 = sphi 0, %s118
      %s133 = sphi 0, %s119
      %s137 = sphi 0, %s137
      %s139 = sphi 0, %s137
      %s140 = sphi 0, %s139
      %s154 = sphi 0, %s140
      %s158 = sphi 0, %s158
      %s160 = sphi 0, %s158
      %s161 = sphi 0, %s160
      %s175 = sphi 0, %s161
    $region4: #{discriminator_forward.7} parent=1 // loop_header_branch
      %17 = sbr.rel (%p15) target = $region8
    $region5: #{discriminator_forward.7} parent=1 // loop_body
      %s19 = ssub.s32 %s14, 1
      %s20 = ssub.s32 %s14, 2
      %s21 = sadd.s32 %s14, 1
      %s22 = ssub.s32 %s14, %s21
      %p23 = scmp.eq.s32.totalorder %s22, 0
      %s25 = sadd.s32 %s24, 1
      %s26 = scalar_select %p23, %s24, %s25
      %p29 = pneg %p23
      %p30 = scmp.eq.s32.totalorder %s14, 3
      %p31 = por %p29, %p30
      %p32 = scmp.ne.s32.totalorder %s24, %s27
      %p33 = scmp.eq.s32.totalorder %s14, 0
      %p34 = por %p32, %p33
      %p35 = scmp.ne.s32.totalorder %s24, %s27
      %p36 = scmp.eq.s32.totalorder %s19, 3
      %p37 = por %p35, %p36
      %p38 = scmp.ne.s32.totalorder %s27, %s28
      %p39 = scmp.eq.s32.totalorder %s19, 0
      %p40 = por %p38, %p39
      %p41 = scmp.ne.s32.totalorder %s27, %s28
      %p42 = scmp.eq.s32.totalorder %s20, 3
      %p43 = por %p41, %p42
      %p45 = scmp.ne.s32.totalorder %s28, %s44
      %p46 = scmp.eq.s32.totalorder %s20, 0
      %p47 = por %p45, %p46
      %s48 = ssub.s32 %s14, %s21
      %p49 = scmp.eq.s32.totalorder %s48, 0
      %s51 = sadd.s32 %s50, 1
      %s52 = scalar_select %p49, %s50, %s51
      %p55 = pneg %p49
      %p56 = scmp.eq.s32.totalorder %s14, 3
      %p57 = por %p55, %p56
      %p58 = scmp.ne.s32.totalorder %s50, %s53
      %p59 = scmp.eq.s32.totalorder %s14, 0
      %p60 = por %p58, %p59
      %p61 = scmp.ne.s32.totalorder %s50, %s53
      %p62 = scmp.eq.s32.totalorder %s19, 3
      %p63 = por %p61, %p62
      %p64 = scmp.ne.s32.totalorder %s53, %s54
      %p65 = scmp.eq.s32.totalorder %s19, 0
      %p66 = por %p64, %p65
      %p67 = scmp.ne.s32.totalorder %s53, %s54
      %p68 = scmp.eq.s32.totalorder %s20, 3
      %p69 = por %p67, %p68
      %p71 = scmp.ne.s32.totalorder %s54, %s70
      %p72 = scmp.eq.s32.totalorder %s20, 0
      %p73 = por %p71, %p72
      %s75 = sadd.s32 %s74, 1
      %p78 = scmp.eq.s32.totalorder %s14, 3
      %p79 = scmp.ne.s32.totalorder %s74, %s76
      %p80 = scmp.eq.s32.totalorder %s14, 0
      %p81 = por %p79, %p80
      %p82 = scmp.ne.s32.totalorder %s74, %s76
      %p83 = scmp.eq.s32.totalorder %s19, 3
      %p84 = por %p82, %p83
      %p85 = scmp.ne.s32.totalorder %s76, %s77
      %p86 = scmp.eq.s32.totalorder %s19, 0
      %p87 = por %p85, %p86
      %p88 = scmp.ne.s32.totalorder %s76, %s77
      %p89 = scmp.eq.s32.totalorder %s20, 3
      %p90 = por %p88, %p89
      %p92 = scmp.ne.s32.totalorder %s77, %s91
      %p93 = scmp.eq.s32.totalorder %s20, 0
      %p94 = por %p92, %p93
      %s96 = sadd.s32 %s95, 1
      %p99 = scmp.eq.s32.totalorder %s14, 3
      %p100 = scmp.ne.s32.totalorder %s95, %s97
      %p101 = scmp.eq.s32.totalorder %s14, 0
      %p102 = por %p100, %p101
      %p103 = scmp.ne.s32.totalorder %s95, %s97
      %p104 = scmp.eq.s32.totalorder %s19, 3
      %p105 = por %p103, %p104
      %p106 = scmp.ne.s32.totalorder %s97, %s98
      %p107 = scmp.eq.s32.totalorder %s19, 0
      %p108 = por %p106, %p107
      %p109 = scmp.ne.s32.totalorder %s97, %s98
      %p110 = scmp.eq.s32.totalorder %s20, 3
      %p111 = por %p109, %p110
      %p113 = scmp.ne.s32.totalorder %s98, %s112
      %p114 = scmp.eq.s32.totalorder %s20, 0
      %p115 = por %p113, %p114
      %s117 = sadd.s32 %s116, 1
      %p120 = scmp.eq.s32.totalorder %s14, 3
      %p121 = scmp.ne.s32.totalorder %s116, %s118
      %p122 = scmp.eq.s32.totalorder %s14, 0
      %p123 = por %p121, %p122
      %p124 = scmp.ne.s32.totalorder %s116, %s118
      %p125 = scmp.eq.s32.totalorder %s19, 3
      %p126 = por %p124, %p125
      %p127 = scmp.ne.s32.totalorder %s118, %s119
      %p128 = scmp.eq.s32.totalorder %s19, 0
      %p129 = por %p127, %p128
      %p130 = scmp.ne.s32.totalorder %s118, %s119
      %p131 = scmp.eq.s32.totalorder %s20, 3
      %p132 = por %p130, %p131
      %p134 = scmp.ne.s32.totalorder %s119, %s133
      %p135 = scmp.eq.s32.totalorder %s20, 0
      %p136 = por %p134, %p135
      %s138 = sadd.s32 %s137, 1
      %p141 = scmp.eq.s32.totalorder %s14, 3
      %p142 = scmp.ne.s32.totalorder %s137, %s139
      %p143 = scmp.eq.s32.totalorder %s14, 0
      %p144 = por %p142, %p143
      %p145 = scmp.ne.s32.totalorder %s137, %s139
      %p146 = scmp.eq.s32.totalorder %s19, 3
      %p147 = por %p145, %p146
      %p148 = scmp.ne.s32.totalorder %s139, %s140
      %p149 = scmp.eq.s32.totalorder %s19, 0
      %p150 = por %p148, %p149
      %p151 = scmp.ne.s32.totalorder %s139, %s140
      %p152 = scmp.eq.s32.totalorder %s20, 3
      %p153 = por %p151, %p152
      %p155 = scmp.ne.s32.totalorder %s140, %s154
      %p156 = scmp.eq.s32.totalorder %s20, 0
      %p157 = por %p155, %p156
      %s159 = sadd.s32 %s158, 1
      %p162 = scmp.eq.s32.totalorder %s14, 3
      %p163 = scmp.ne.s32.totalorder %s158, %s160
      %p164 = scmp.eq.s32.totalorder %s14, 0
      %p165 = por %p163, %p164
      %p166 = scmp.ne.s32.totalorder %s158, %s160
      %p167 = scmp.eq.s32.totalorder %s19, 3
      %p168 = por %p166, %p167
      %p169 = scmp.ne.s32.totalorder %s160, %s161
      %p170 = scmp.eq.s32.totalorder %s19, 0
      %p171 = por %p169, %p170
      %p172 = scmp.ne.s32.totalorder %s160, %s161
      %p173 = scmp.eq.s32.totalorder %s20, 3
      %p174 = por %p172, %p173
      %p176 = scmp.ne.s32.totalorder %s161, %s175
      %p177 = scmp.eq.s32.totalorder %s20, 0
      %p178 = por %p176, %p177
      %p179 = scmp.le.s32.totalorder 1, %s14
      %p180 = scmp.lt.s32.totalorder %s14, 5
      %p181 = pnand %p179, %p180
      %p182 = pneg %p181
      // Predicated region
      $region9: #{discriminator_forward.7} parent=5 // pred_check
        _
      $region10: #{discriminator_forward.7} parent=5 // pred_check_branch
        %184 = sbr.rel (%p181) target = $region12
      $region11: #{discriminator_forward.7} parent=5 // pred_region
        %s185 = ssub.s32 %s14, 1
        // Predicated region
        $region13: #{discriminator_forward.7} parent=11 // pred_check
          %p186 = pneg %p87
        $region14: #{discriminator_forward.7} parent=11 // pred_check_branch
          %188 = sbr.rel (%p186) target = $region16
        $region15: #{discriminator_forward.7} parent=11 // pred_region
          _
        $region16: #{discriminator_forward.7} parent=11 // pred_fallthru
          _
        // Predicated region
        $region17: #{discriminator_forward.7} parent=11 // pred_check
          %p189 = pneg %p108
        $region18: #{discriminator_forward.7} parent=11 // pred_check_branch
          %191 = sbr.rel (%p189) target = $region20
        $region19: #{discriminator_forward.7} parent=11 // pred_region
          _
        $region20: #{discriminator_forward.7} parent=11 // pred_fallthru
          _
        // Predicated region
        $region21: #{discriminator_forward.7} parent=11 // pred_check
          %p192 = pneg %p129
        $region22: #{discriminator_forward.7} parent=11 // pred_check_branch
          %194 = sbr.rel (%p192) target = $region24
        $region23: #{discriminator_forward.7} parent=11 // pred_region
          _
        $region24: #{discriminator_forward.7} parent=11 // pred_fallthru
          _
        // Predicated region
        $region25: #{discriminator_forward.7} parent=11 // pred_check
          %p195 = pneg %p150
        $region26: #{discriminator_forward.7} parent=11 // pred_check_branch
          %197 = sbr.rel (%p195) target = $region28
        $region27: #{discriminator_forward.7} parent=11 // pred_region
          _
        $region28: #{discriminator_forward.7} parent=11 // pred_fallthru
          _
      $region12: #{discriminator_forward.7} parent=5 // pred_fallthru
        _
      %p198 = scmp.lt.s32.totalorder %s14, 4
      // Predicated region
      $region29: #{discriminator_forward.7} parent=5 // pred_check
        %p199 = pneg %p198
      $region30: #{discriminator_forward.7} parent=5 // pred_check_branch
        %201 = sbr.rel (%p199) target = $region32
      $region31: #{discriminator_forward.7} parent=5 // pred_region
        // Predicated region
        $region33: #{discriminator_forward.7} parent=31 // pred_check
          %p202 = pneg %p34
        $region34: #{discriminator_forward.7} parent=31 // pred_check_branch
          %204 = sbr.rel (%p202) target = $region36
        $region35: #{discriminator_forward.7} parent=31 // pred_region
          %s205 = sand.u32 %s24, 1
          %s206 = sand.u32 %s24, 1
          %s207 = smul.addr %s206, 128
          %s208 = scalar_lea.vmem [#allocation4], %s207
          %s209 = smul.u32 8, %s14
          %s210 = smul.addr %s209, 4
          %s211 = scalar_lea.vmem %s0, %s210
          // Predicated region
          $region37: #{discriminator_forward.7} parent=35 // pred_check
            _
          $region38: #{discriminator_forward.7} parent=35 // pred_check_branch
            %213 = sbr.rel (0) target = $region40
          $region39: #{discriminator_forward.7} parent=35 // pred_region
            // Predicated region
            $region41: #{discriminator_forward.7} parent=39 // pred_check
              _
            $region42: #{discriminator_forward.7} parent=39 // pred_check_branch
              %215 = sbr.rel (0) target = $region44
            $region43: #{discriminator_forward.7} parent=39 // pred_region
              loop: start=0, step=1, limit=1
              $region45: #{discriminator_forward.7} parent=43 // loop_pre_header
                _
              $region46: #{discriminator_forward.7} parent=43 // loop_header
                %s217 = sphi 0, %s221
                %p218 = scmp.ge.s32.totalorder %s217, 1
                %s222 = sphi %s211, %s211
                %s223 = sphi %s208, %s208
              $region47: #{discriminator_forward.7} parent=43 // loop_header_branch
                %220 = sbr.rel (%p218) target = $region51
              $region48: #{discriminator_forward.7} parent=43 // loop_body
                %v224 = vld [vmem:[%s222] sm:$0xff]
                %225 = vst [vmem:[%s223] sm:$0xff] %v224
                %v226 = vld [vmem:[%s222 + $0x8] sm:$0xff]
                %227 = vst [vmem:[%s223 + $0x8] sm:$0xff] %v226
                %v228 = vld [vmem:[%s222 + $0x10] sm:$0xff]
                %229 = vst [vmem:[%s223 + $0x10] sm:$0xff] %v228
                %v230 = vld [vmem:[%s222 + $0x18] sm:$0xff]
                %231 = vst [vmem:[%s223 + $0x18] sm:$0xff] %v230
                %v232 = vld [vmem:[%s222 + $0x80] sm:$0xff]
                %233 = vst [vmem:[%s223 + $0x20] sm:$0xff] %v232
                %v234 = vld [vmem:[%s222 + $0x88] sm:$0xff]
                %235 = vst [vmem:[%s223 + $0x28] sm:$0xff] %v234
                %v236 = vld [vmem:[%s222 + $0x90] sm:$0xff]
                %237 = vst [vmem:[%s223 + $0x30] sm:$0xff] %v236
                %v238 = vld [vmem:[%s222 + $0x98] sm:$0xff]
                %239 = vst [vmem:[%s223 + $0x38] sm:$0xff] %v238
                %v240 = vld [vmem:[%s222 + $0x100] sm:$0xff]
                %241 = vst [vmem:[%s223 + $0x40] sm:$0xff] %v240
                %v242 = vld [vmem:[%s222 + $0x108] sm:$0xff]
                %243 = vst [vmem:[%s223 + $0x48] sm:$0xff] %v242
                %v244 = vld [vmem:[%s222 + $0x110] sm:$0xff]
                %245 = vst [vmem:[%s223 + $0x50] sm:$0xff] %v244
                %v246 = vld [vmem:[%s222 + $0x118] sm:$0xff]
                %247 = vst [vmem:[%s223 + $0x58] sm:$0xff] %v246
                %v248 = vld [vmem:[%s222 + $0x180] sm:$0xff]
                %249 = vst [vmem:[%s223 + $0x60] sm:$0xff] %v248
                %v250 = vld [vmem:[%s222 + $0x188] sm:$0xff]
                %251 = vst [vmem:[%s223 + $0x68] sm:$0xff] %v250
                %v252 = vld [vmem:[%s222 + $0x190] sm:$0xff]
                %253 = vst [vmem:[%s223 + $0x70] sm:$0xff] %v252
                %v254 = vld [vmem:[%s222 + $0x198] sm:$0xff]
                %255 = vst [vmem:[%s223 + $0x78] sm:$0xff] %v254
              $region49: #{discriminator_forward.7} parent=43 // loop_footer
                %s221 = sadd.s32 1, %s217
              $region50: #{discriminator_forward.7} parent=43 // loop_footer_branch
                %216 = sbr.rel target = $region46
              $region51: #{discriminator_forward.7} parent=43 // loop_exit
                _
            $region44: #{discriminator_forward.7} parent=39 // pred_fallthru
              _
            // Predicated region
            $region52: #{discriminator_forward.7} parent=39 // pred_check
              _
            $region53: #{discriminator_forward.7} parent=39 // pred_check_branch
              %257 = sbr.rel target = $region55
            $region54: #{discriminator_forward.7} parent=39 // pred_region
              _
            $region55: #{discriminator_forward.7} parent=39 // pred_fallthru
              _
          $region40: #{discriminator_forward.7} parent=35 // pred_fallthru
            _
          %258 = vnop
        $region36: #{discriminator_forward.7} parent=31 // pred_fallthru
          _
        // Predicated region
        $region56: #{discriminator_forward.7} parent=31 // pred_check
          %p259 = pneg %p60
        $region57: #{discriminator_forward.7} parent=31 // pred_check_branch
          %261 = sbr.rel (%p259) target = $region59
        $region58: #{discriminator_forward.7} parent=31 // pred_region
          %s262 = smul.u32 128, %s14
          %p263 = scmp.lt.s32.totalorder %s262, 511
          %s264 = scalar_select %p263, %s262, 511
          %s265 = smul.addr %s264, 4
          %s266 = smul.addr %s265, 4
          %s267 = scalar_lea.vmem %s1, %s266
          %s268 = smul.u32 128, %s14
        $region59: #{discriminator_forward.7} parent=31 // pred_fallthru
          _
      $region32: #{discriminator_forward.7} parent=5 // pred_fallthru
        _
      %p269 = scmp.le.s32.totalorder 1, %s14
      %p270 = scmp.lt.s32.totalorder %s14, 5
      %p271 = pnand %p269, %p270
      %p272 = pneg %p271
      // Predicated region
      $region60: #{discriminator_forward.7} parent=5 // pred_check
        _
      $region61: #{discriminator_forward.7} parent=5 // pred_check_branch
        %274 = sbr.rel (%p271) target = $region63
      $region62: #{discriminator_forward.7} parent=5 // pred_region
        %s275 = ssub.s32 %s14, 1
        %s276 = sand.u32 %s27, 1
        %s277 = sand.u32 %s27, 1
        %s278 = smul.addr %s277, 128
        %s279 = scalar_lea.vmem [#allocation4], %s278
        // Predicated region
        $region64: #{discriminator_forward.7} parent=62 // pred_check
          %p280 = pneg %p40
        $region65: #{discriminator_forward.7} parent=62 // pred_check_branch
          %282 = sbr.rel (%p280) target = $region67
        $region66: #{discriminator_forward.7} parent=62 // pred_region
          _
        $region67: #{discriminator_forward.7} parent=62 // pred_fallthru
          _
        %s283 = sand.u32 %s27, 1
        %s284 = sand.u32 %s27, 1
        %s285 = smul.addr %s284, 128
        %s286 = scalar_lea.vmem [#allocation4], %s285
        %p287 = pneg %p40
        %p288 = pneg %p37
        %s289 = smul.u32 128, %s19
        %p290 = scmp.lt.s32.totalorder %s289, 511
        %s291 = scalar_select %p290, %s289, 511
        %s292 = smul.addr %s291, 4
        %s293 = smul.addr %s292, 4
        %s294 = scalar_lea.vmem %s1, %s293
        %p295 = pneg %p66
        %p296 = pneg %p63
        %p297 = pneg %p87
        %p298 = pneg %p84
        %p299 = pneg %p108
        %p300 = pneg %p105
        %p301 = pneg %p129
        %p302 = pneg %p126
        %p303 = pneg %p150
        %p304 = pneg %p147
        %p305 = pneg %p171
        %p306 = pneg %p168
        %s307 = smul.u32 8, %s19
        %s308 = smul.u32 128, %s19
        %p309 = scmp.lt.s32.totalorder %s308, 511
        %s310 = scalar_select %p309, %s308, 511
        %s311 = smul.addr %s310, 4
        %s312 = smul.addr %s311, 4
        %s313 = scalar_lea.vmem %s1, %s312
        %s314 = smul.u32 128, %s19
        %p315 = scmp.eq.s32.totalorder %s19, 0
        // Predicated region
        $region68: #{discriminator_forward.7} parent=62 // pred_check
          %p316 = pneg %p315
        $region69: #{discriminator_forward.7} parent=62 // pred_check_branch
          %318 = sbr.rel (%p316) target = $region71
        $region70: #{discriminator_forward.7} parent=62 // pred_region
          %319 = vst [vmem:[#allocation2] sm:$0xff] 0.0
          %320 = vst [vmem:[#allocation2 + $0x8] sm:$0xff] 0.0
          %321 = vst [vmem:[#allocation2 + $0x10] sm:$0xff] 0.0
          %322 = vst [vmem:[#allocation2 + $0x18] sm:$0xff] 0.0
          %323 = vst [vmem:[#allocation2 + $0x20] sm:$0xff] 0.0
          %324 = vst [vmem:[#allocation2 + $0x28] sm:$0xff] 0.0
          %325 = vst [vmem:[#allocation2 + $0x30] sm:$0xff] 0.0
          %326 = vst [vmem:[#allocation2 + $0x38] sm:$0xff] 0.0
          %327 = vst [vmem:[#allocation2 + $0x40] sm:$0xff] 0.0
          %328 = vst [vmem:[#allocation2 + $0x48] sm:$0xff] 0.0
          %329 = vst [vmem:[#allocation2 + $0x50] sm:$0xff] 0.0
          %330 = vst [vmem:[#allocation2 + $0x58] sm:$0xff] 0.0
          %331 = vst [vmem:[#allocation2 + $0x60] sm:$0xff] 0.0
          %332 = vst [vmem:[#allocation2 + $0x68] sm:$0xff] 0.0
          %333 = vst [vmem:[#allocation2 + $0x70] sm:$0xff] 0.0
          %334 = vst [vmem:[#allocation2 + $0x78] sm:$0xff] 0.0
        $region71: #{discriminator_forward.7} parent=62 // pred_fallthru
          _
        %v335 = vld [vmem:[#allocation2] sm:$0xff]
        %v336 = vld [vmem:[#allocation2 + $0x8] sm:$0xff]
        %v337 = vld [vmem:[#allocation2 + $0x10] sm:$0xff]
        %v338 = vld [vmem:[#allocation2 + $0x18] sm:$0xff]
        %v339 = vld [vmem:[#allocation2 + $0x20] sm:$0xff]
        %v340 = vld [vmem:[#allocation2 + $0x28] sm:$0xff]
        %v341 = vld [vmem:[#allocation2 + $0x30] sm:$0xff]
        %v342 = vld [vmem:[#allocation2 + $0x38] sm:$0xff]
        %v343 = vld [vmem:[#allocation2 + $0x40] sm:$0xff]
        %v344 = vld [vmem:[#allocation2 + $0x48] sm:$0xff]
        %v345 = vld [vmem:[#allocation2 + $0x50] sm:$0xff]
        %v346 = vld [vmem:[#allocation2 + $0x58] sm:$0xff]
        %v347 = vld [vmem:[#allocation2 + $0x60] sm:$0xff]
        %v348 = vld [vmem:[#allocation2 + $0x68] sm:$0xff]
        %v349 = vld [vmem:[#allocation2 + $0x70] sm:$0xff]
        %v350 = vld [vmem:[#allocation2 + $0x78] sm:$0xff]
        %v351 = vld [vmem:[%s279] sm:$0xff]
        %v352 = vld [vmem:[%s279 + $0x8] sm:$0xff]
        %v353 = vld [vmem:[%s279 + $0x10] sm:$0xff]
        %v354 = vld [vmem:[%s279 + $0x18] sm:$0xff]
        %v355 = vld [vmem:[%s279 + $0x20] sm:$0xff]
        %v356 = vld [vmem:[%s279 + $0x28] sm:$0xff]
        %v357 = vld [vmem:[%s279 + $0x30] sm:$0xff]
        %v358 = vld [vmem:[%s279 + $0x38] sm:$0xff]
        %v359 = vld [vmem:[%s279 + $0x40] sm:$0xff]
        %v360 = vld [vmem:[%s279 + $0x48] sm:$0xff]
        %v361 = vld [vmem:[%s279 + $0x50] sm:$0xff]
        %v362 = vld [vmem:[%s279 + $0x58] sm:$0xff]
        %v363 = vld [vmem:[%s279 + $0x60] sm:$0xff]
        %v364 = vld [vmem:[%s279 + $0x68] sm:$0xff]
        %v365 = vld [vmem:[%s279 + $0x70] sm:$0xff]
        %v366 = vld [vmem:[%s279 + $0x78] sm:$0xff]
        %v367 = vld [vmem:[%s313] sm:$0xff]
        %v368 = vld [vmem:[%s313 + $0x8] sm:$0xff]
        %v369 = vld [vmem:[%s313 + $0x10] sm:$0xff]
        %v370 = vld [vmem:[%s313 + $0x18] sm:$0xff]
        %v371 = vld [vmem:[%s313 + $0x20] sm:$0xff]
        %v372 = vld [vmem:[%s313 + $0x28] sm:$0xff]
        %v373 = vld [vmem:[%s313 + $0x30] sm:$0xff]
        %v374 = vld [vmem:[%s313 + $0x38] sm:$0xff]
        %v375 = vld [vmem:[%s313 + $0x40] sm:$0xff]
        %v376 = vld [vmem:[%s313 + $0x48] sm:$0xff]
        %v377 = vld [vmem:[%s313 + $0x50] sm:$0xff]
        %v378 = vld [vmem:[%s313 + $0x58] sm:$0xff]
        %v379 = vld [vmem:[%s313 + $0x60] sm:$0xff]
        %v380 = vld [vmem:[%s313 + $0x68] sm:$0xff]
        %v381 = vld [vmem:[%s313 + $0x70] sm:$0xff]
        %v382 = vld [vmem:[%s313 + $0x78] sm:$0xff]
        %v383 = vld [vmem:[%s313 + $0x80] sm:$0xff]
        %v384 = vld [vmem:[%s313 + $0x88] sm:$0xff]
        %v385 = vld [vmem:[%s313 + $0x90] sm:$0xff]
        %v386 = vld [vmem:[%s313 + $0x98] sm:$0xff]
        %v387 = vld [vmem:[%s313 + $0xa0] sm:$0xff]
        %v388 = vld [vmem:[%s313 + $0xa8] sm:$0xff]
        %v389 = vld [vmem:[%s313 + $0xb0] sm:$0xff]
        %v390 = vld [vmem:[%s313 + $0xb8] sm:$0xff]
        %v391 = vld [vmem:[%s313 + $0xc0] sm:$0xff]
        %v392 = vld [vmem:[%s313 + $0xc8] sm:$0xff]
        %v393 = vld [vmem:[%s313 + $0xd0] sm:$0xff]
        %v394 = vld [vmem:[%s313 + $0xd8] sm:$0xff]
        %v395 = vld [vmem:[%s313 + $0xe0] sm:$0xff]
        %v396 = vld [vmem:[%s313 + $0xe8] sm:$0xff]
        %v397 = vld [vmem:[%s313 + $0xf0] sm:$0xff]
        %v398 = vld [vmem:[%s313 + $0xf8] sm:$0xff]
        %v399 = vld [vmem:[%s313 + $0x100] sm:$0xff]
        %v400 = vld [vmem:[%s313 + $0x108] sm:$0xff]
        %v401 = vld [vmem:[%s313 + $0x110] sm:$0xff]
        %v402 = vld [vmem:[%s313 + $0x118] sm:$0xff]
        %v403 = vld [vmem:[%s313 + $0x120] sm:$0xff]
        %v404 = vld [vmem:[%s313 + $0x128] sm:$0xff]
        %v405 = vld [vmem:[%s313 + $0x130] sm:$0xff]
        %v406 = vld [vmem:[%s313 + $0x138] sm:$0xff]
        %v407 = vld [vmem:[%s313 + $0x140] sm:$0xff]
        %v408 = vld [vmem:[%s313 + $0x148] sm:$0xff]
        %v409 = vld [vmem:[%s313 + $0x150] sm:$0xff]
        %v410 = vld [vmem:[%s313 + $0x158] sm:$0xff]
        %v411 = vld [vmem:[%s313 + $0x160] sm:$0xff]
        %v412 = vld [vmem:[%s313 + $0x168] sm:$0xff]
        %v413 = vld [vmem:[%s313 + $0x170] sm:$0xff]
        %v414 = vld [vmem:[%s313 + $0x178] sm:$0xff]
        %v415 = vld [vmem:[%s313 + $0x180] sm:$0xff]
        %v416 = vld [vmem:[%s313 + $0x188] sm:$0xff]
        %v417 = vld [vmem:[%s313 + $0x190] sm:$0xff]
        %v418 = vld [vmem:[%s313 + $0x198] sm:$0xff]
        %v419 = vld [vmem:[%s313 + $0x1a0] sm:$0xff]
        %v420 = vld [vmem:[%s313 + $0x1a8] sm:$0xff]
        %v421 = vld [vmem:[%s313 + $0x1b0] sm:$0xff]
        %v422 = vld [vmem:[%s313 + $0x1b8] sm:$0xff]
        %v423 = vld [vmem:[%s313 + $0x1c0] sm:$0xff]
        %v424 = vld [vmem:[%s313 + $0x1c8] sm:$0xff]
        %v425 = vld [vmem:[%s313 + $0x1d0] sm:$0xff]
        %v426 = vld [vmem:[%s313 + $0x1d8] sm:$0xff]
        %v427 = vld [vmem:[%s313 + $0x1e0] sm:$0xff]
        %v428 = vld [vmem:[%s313 + $0x1e8] sm:$0xff]
        %v429 = vld [vmem:[%s313 + $0x1f0] sm:$0xff]
        %v430 = vld [vmem:[%s313 + $0x1f8] sm:$0xff]
        %v431 = vld [vmem:[%s313 + $0x200] sm:$0xff]
        %v432 = vld [vmem:[%s313 + $0x208] sm:$0xff]
        %v433 = vld [vmem:[%s313 + $0x210] sm:$0xff]
        %v434 = vld [vmem:[%s313 + $0x218] sm:$0xff]
        %v435 = vld [vmem:[%s313 + $0x220] sm:$0xff]
        %v436 = vld [vmem:[%s313 + $0x228] sm:$0xff]
        %v437 = vld [vmem:[%s313 + $0x230] sm:$0xff]
        %v438 = vld [vmem:[%s313 + $0x238] sm:$0xff]
        %v439 = vld [vmem:[%s313 + $0x240] sm:$0xff]
        %v440 = vld [vmem:[%s313 + $0x248] sm:$0xff]
        %v441 = vld [vmem:[%s313 + $0x250] sm:$0xff]
        %v442 = vld [vmem:[%s313 + $0x258] sm:$0xff]
        %v443 = vld [vmem:[%s313 + $0x260] sm:$0xff]
        %v444 = vld [vmem:[%s313 + $0x268] sm:$0xff]
        %v445 = vld [vmem:[%s313 + $0x270] sm:$0xff]
        %v446 = vld [vmem:[%s313 + $0x278] sm:$0xff]
        %v447 = vld [vmem:[%s313 + $0x280] sm:$0xff]
        %v448 = vld [vmem:[%s313 + $0x288] sm:$0xff]
        %v449 = vld [vmem:[%s313 + $0x290] sm:$0xff]
        %v450 = vld [vmem:[%s313 + $0x298] sm:$0xff]
        %v451 = vld [vmem:[%s313 + $0x2a0] sm:$0xff]
        %v452 = vld [vmem:[%s313 + $0x2a8] sm:$0xff]
        %v453 = vld [vmem:[%s313 + $0x2b0] sm:$0xff]
        %v454 = vld [vmem:[%s313 + $0x2b8] sm:$0xff]
        %v455 = vld [vmem:[%s313 + $0x2c0] sm:$0xff]
        %v456 = vld [vmem:[%s313 + $0x2c8] sm:$0xff]
        %v457 = vld [vmem:[%s313 + $0x2d0] sm:$0xff]
        %v458 = vld [vmem:[%s313 + $0x2d8] sm:$0xff]
        %v459 = vld [vmem:[%s313 + $0x2e0] sm:$0xff]
        %v460 = vld [vmem:[%s313 + $0x2e8] sm:$0xff]
        %v461 = vld [vmem:[%s313 + $0x2f0] sm:$0xff]
        %v462 = vld [vmem:[%s313 + $0x2f8] sm:$0xff]
        %v463 = vld [vmem:[%s313 + $0x300] sm:$0xff]
        %v464 = vld [vmem:[%s313 + $0x308] sm:$0xff]
        %v465 = vld [vmem:[%s313 + $0x310] sm:$0xff]
        %v466 = vld [vmem:[%s313 + $0x318] sm:$0xff]
        %v467 = vld [vmem:[%s313 + $0x320] sm:$0xff]
        %v468 = vld [vmem:[%s313 + $0x328] sm:$0xff]
        %v469 = vld [vmem:[%s313 + $0x330] sm:$0xff]
        %v470 = vld [vmem:[%s313 + $0x338] sm:$0xff]
        %v471 = vld [vmem:[%s313 + $0x340] sm:$0xff]
        %v472 = vld [vmem:[%s313 + $0x348] sm:$0xff]
        %v473 = vld [vmem:[%s313 + $0x350] sm:$0xff]
        %v474 = vld [vmem:[%s313 + $0x358] sm:$0xff]
        %v475 = vld [vmem:[%s313 + $0x360] sm:$0xff]
        %v476 = vld [vmem:[%s313 + $0x368] sm:$0xff]
        %v477 = vld [vmem:[%s313 + $0x370] sm:$0xff]
        %v478 = vld [vmem:[%s313 + $0x378] sm:$0xff]
        %v479 = vld [vmem:[%s313 + $0x380] sm:$0xff]
        %v480 = vld [vmem:[%s313 + $0x388] sm:$0xff]
        %v481 = vld [vmem:[%s313 + $0x390] sm:$0xff]
        %v482 = vld [vmem:[%s313 + $0x398] sm:$0xff]
        %v483 = vld [vmem:[%s313 + $0x3a0] sm:$0xff]
        %v484 = vld [vmem:[%s313 + $0x3a8] sm:$0xff]
        %v485 = vld [vmem:[%s313 + $0x3b0] sm:$0xff]
        %v486 = vld [vmem:[%s313 + $0x3b8] sm:$0xff]
        %v487 = vld [vmem:[%s313 + $0x3c0] sm:$0xff]
        %v488 = vld [vmem:[%s313 + $0x3c8] sm:$0xff]
        %v489 = vld [vmem:[%s313 + $0x3d0] sm:$0xff]
        %v490 = vld [vmem:[%s313 + $0x3d8] sm:$0xff]
        %v491 = vld [vmem:[%s313 + $0x3e0] sm:$0xff]
        %v492 = vld [vmem:[%s313 + $0x3e8] sm:$0xff]
        %v493 = vld [vmem:[%s313 + $0x3f0] sm:$0xff]
        %v494 = vld [vmem:[%s313 + $0x3f8] sm:$0xff]
        %v495 = vld [vmem:[%s313 + $0x400] sm:$0xff]
        %v496 = vld [vmem:[%s313 + $0x408] sm:$0xff]
        %v497 = vld [vmem:[%s313 + $0x410] sm:$0xff]
        %v498 = vld [vmem:[%s313 + $0x418] sm:$0xff]
        %v499 = vld [vmem:[%s313 + $0x420] sm:$0xff]
        %v500 = vld [vmem:[%s313 + $0x428] sm:$0xff]
        %v501 = vld [vmem:[%s313 + $0x430] sm:$0xff]
        %v502 = vld [vmem:[%s313 + $0x438] sm:$0xff]
        %v503 = vld [vmem:[%s313 + $0x440] sm:$0xff]
        %v504 = vld [vmem:[%s313 + $0x448] sm:$0xff]
        %v505 = vld [vmem:[%s313 + $0x450] sm:$0xff]
        %v506 = vld [vmem:[%s313 + $0x458] sm:$0xff]
        %v507 = vld [vmem:[%s313 + $0x460] sm:$0xff]
        %v508 = vld [vmem:[%s313 + $0x468] sm:$0xff]
        %v509 = vld [vmem:[%s313 + $0x470] sm:$0xff]
        %v510 = vld [vmem:[%s313 + $0x478] sm:$0xff]
        %v511 = vld [vmem:[%s313 + $0x480] sm:$0xff]
        %v512 = vld [vmem:[%s313 + $0x488] sm:$0xff]
        %v513 = vld [vmem:[%s313 + $0x490] sm:$0xff]
        %v514 = vld [vmem:[%s313 + $0x498] sm:$0xff]
        %v515 = vld [vmem:[%s313 + $0x4a0] sm:$0xff]
        %v516 = vld [vmem:[%s313 + $0x4a8] sm:$0xff]
        %v517 = vld [vmem:[%s313 + $0x4b0] sm:$0xff]
        %v518 = vld [vmem:[%s313 + $0x4b8] sm:$0xff]
        %v519 = vld [vmem:[%s313 + $0x4c0] sm:$0xff]
        %v520 = vld [vmem:[%s313 + $0x4c8] sm:$0xff]
        %v521 = vld [vmem:[%s313 + $0x4d0] sm:$0xff]
        %v522 = vld [vmem:[%s313 + $0x4d8] sm:$0xff]
        %v523 = vld [vmem:[%s313 + $0x4e0] sm:$0xff]
        %v524 = vld [vmem:[%s313 + $0x4e8] sm:$0xff]
        %v525 = vld [vmem:[%s313 + $0x4f0] sm:$0xff]
        %v526 = vld [vmem:[%s313 + $0x4f8] sm:$0xff]
        %v527 = vld [vmem:[%s313 + $0x500] sm:$0xff]
        %v528 = vld [vmem:[%s313 + $0x508] sm:$0xff]
        %v529 = vld [vmem:[%s313 + $0x510] sm:$0xff]
        %v530 = vld [vmem:[%s313 + $0x518] sm:$0xff]
        %v531 = vld [vmem:[%s313 + $0x520] sm:$0xff]
        %v532 = vld [vmem:[%s313 + $0x528] sm:$0xff]
        %v533 = vld [vmem:[%s313 + $0x530] sm:$0xff]
        %v534 = vld [vmem:[%s313 + $0x538] sm:$0xff]
        %v535 = vld [vmem:[%s313 + $0x540] sm:$0xff]
        %v536 = vld [vmem:[%s313 + $0x548] sm:$0xff]
        %v537 = vld [vmem:[%s313 + $0x550] sm:$0xff]
        %v538 = vld [vmem:[%s313 + $0x558] sm:$0xff]
        %v539 = vld [vmem:[%s313 + $0x560] sm:$0xff]
        %v540 = vld [vmem:[%s313 + $0x568] sm:$0xff]
        %v541 = vld [vmem:[%s313 + $0x570] sm:$0xff]
        %v542 = vld [vmem:[%s313 + $0x578] sm:$0xff]
        %v543 = vld [vmem:[%s313 + $0x580] sm:$0xff]
        %v544 = vld [vmem:[%s313 + $0x588] sm:$0xff]
        %v545 = vld [vmem:[%s313 + $0x590] sm:$0xff]
        %v546 = vld [vmem:[%s313 + $0x598] sm:$0xff]
        %v547 = vld [vmem:[%s313 + $0x5a0] sm:$0xff]
        %v548 = vld [vmem:[%s313 + $0x5a8] sm:$0xff]
        %v549 = vld [vmem:[%s313 + $0x5b0] sm:$0xff]
        %v550 = vld [vmem:[%s313 + $0x5b8] sm:$0xff]
        %v551 = vld [vmem:[%s313 + $0x5c0] sm:$0xff]
        %v552 = vld [vmem:[%s313 + $0x5c8] sm:$0xff]
        %v553 = vld [vmem:[%s313 + $0x5d0] sm:$0xff]
        %v554 = vld [vmem:[%s313 + $0x5d8] sm:$0xff]
        %v555 = vld [vmem:[%s313 + $0x5e0] sm:$0xff]
        %v556 = vld [vmem:[%s313 + $0x5e8] sm:$0xff]
        %v557 = vld [vmem:[%s313 + $0x5f0] sm:$0xff]
        %v558 = vld [vmem:[%s313 + $0x5f8] sm:$0xff]
        %v559 = vld [vmem:[%s313 + $0x600] sm:$0xff]
        %v560 = vld [vmem:[%s313 + $0x608] sm:$0xff]
        %v561 = vld [vmem:[%s313 + $0x610] sm:$0xff]
        %v562 = vld [vmem:[%s313 + $0x618] sm:$0xff]
        %v563 = vld [vmem:[%s313 + $0x620] sm:$0xff]
        %v564 = vld [vmem:[%s313 + $0x628] sm:$0xff]
        %v565 = vld [vmem:[%s313 + $0x630] sm:$0xff]
        %v566 = vld [vmem:[%s313 + $0x638] sm:$0xff]
        %v567 = vld [vmem:[%s313 + $0x640] sm:$0xff]
        %v568 = vld [vmem:[%s313 + $0x648] sm:$0xff]
        %v569 = vld [vmem:[%s313 + $0x650] sm:$0xff]
        %v570 = vld [vmem:[%s313 + $0x658] sm:$0xff]
        %v571 = vld [vmem:[%s313 + $0x660] sm:$0xff]
        %v572 = vld [vmem:[%s313 + $0x668] sm:$0xff]
        %v573 = vld [vmem:[%s313 + $0x670] sm:$0xff]
        %v574 = vld [vmem:[%s313 + $0x678] sm:$0xff]
        %v575 = vld [vmem:[%s313 + $0x680] sm:$0xff]
        %v576 = vld [vmem:[%s313 + $0x688] sm:$0xff]
        %v577 = vld [vmem:[%s313 + $0x690] sm:$0xff]
        %v578 = vld [vmem:[%s313 + $0x698] sm:$0xff]
        %v579 = vld [vmem:[%s313 + $0x6a0] sm:$0xff]
        %v580 = vld [vmem:[%s313 + $0x6a8] sm:$0xff]
        %v581 = vld [vmem:[%s313 + $0x6b0] sm:$0xff]
        %v582 = vld [vmem:[%s313 + $0x6b8] sm:$0xff]
        %v583 = vld [vmem:[%s313 + $0x6c0] sm:$0xff]
        %v584 = vld [vmem:[%s313 + $0x6c8] sm:$0xff]
        %v585 = vld [vmem:[%s313 + $0x6d0] sm:$0xff]
        %v586 = vld [vmem:[%s313 + $0x6d8] sm:$0xff]
        %v587 = vld [vmem:[%s313 + $0x6e0] sm:$0xff]
        %v588 = vld [vmem:[%s313 + $0x6e8] sm:$0xff]
        %v589 = vld [vmem:[%s313 + $0x6f0] sm:$0xff]
        %v590 = vld [vmem:[%s313 + $0x6f8] sm:$0xff]
        %v591 = vld [vmem:[%s313 + $0x700] sm:$0xff]
        %v592 = vld [vmem:[%s313 + $0x708] sm:$0xff]
        %v593 = vld [vmem:[%s313 + $0x710] sm:$0xff]
        %v594 = vld [vmem:[%s313 + $0x718] sm:$0xff]
        %v595 = vld [vmem:[%s313 + $0x720] sm:$0xff]
        %v596 = vld [vmem:[%s313 + $0x728] sm:$0xff]
        %v597 = vld [vmem:[%s313 + $0x730] sm:$0xff]
        %v598 = vld [vmem:[%s313 + $0x738] sm:$0xff]
        %v599 = vld [vmem:[%s313 + $0x740] sm:$0xff]
        %v600 = vld [vmem:[%s313 + $0x748] sm:$0xff]
        %v601 = vld [vmem:[%s313 + $0x750] sm:$0xff]
        %v602 = vld [vmem:[%s313 + $0x758] sm:$0xff]
        %v603 = vld [vmem:[%s313 + $0x760] sm:$0xff]
        %v604 = vld [vmem:[%s313 + $0x768] sm:$0xff]
        %v605 = vld [vmem:[%s313 + $0x770] sm:$0xff]
        %v606 = vld [vmem:[%s313 + $0x778] sm:$0xff]
        %v607 = vld [vmem:[%s313 + $0x780] sm:$0xff]
        %v608 = vld [vmem:[%s313 + $0x788] sm:$0xff]
        %v609 = vld [vmem:[%s313 + $0x790] sm:$0xff]
        %v610 = vld [vmem:[%s313 + $0x798] sm:$0xff]
        %v611 = vld [vmem:[%s313 + $0x7a0] sm:$0xff]
        %v612 = vld [vmem:[%s313 + $0x7a8] sm:$0xff]
        %v613 = vld [vmem:[%s313 + $0x7b0] sm:$0xff]
        %v614 = vld [vmem:[%s313 + $0x7b8] sm:$0xff]
        %v615 = vld [vmem:[%s313 + $0x7c0] sm:$0xff]
        %v616 = vld [vmem:[%s313 + $0x7c8] sm:$0xff]
        %v617 = vld [vmem:[%s313 + $0x7d0] sm:$0xff]
        %v618 = vld [vmem:[%s313 + $0x7d8] sm:$0xff]
        %v619 = vld [vmem:[%s313 + $0x7e0] sm:$0xff]
        %v620 = vld [vmem:[%s313 + $0x7e8] sm:$0xff]
        %v621 = vld [vmem:[%s313 + $0x7f0] sm:$0xff]
        %v622 = vld [vmem:[%s313 + $0x7f8] sm:$0xff]
        %v639 = vunpack.c.l.b16 %v351
        %v640 = vunpack.c.h.b16 %v351
        %v641 = vunpack.c.l.b16 %v352
        %v642 = vunpack.c.h.b16 %v352
        %v643 = vunpack.c.l.b16 %v353
        %v644 = vunpack.c.h.b16 %v353
        %v645 = vunpack.c.l.b16 %v354
        %v646 = vunpack.c.h.b16 %v354
        %v647 = vunpack.c.l.b16 %v355
        %v648 = vunpack.c.h.b16 %v355
        %v649 = vunpack.c.l.b16 %v356
        %v650 = vunpack.c.h.b16 %v356
        %v651 = vunpack.c.l.b16 %v357
        %v652 = vunpack.c.h.b16 %v357
        %v653 = vunpack.c.l.b16 %v358
        %v654 = vunpack.c.h.b16 %v358
        %v655 = vunpack.c.l.b16 %v359
        %v656 = vunpack.c.h.b16 %v359
        %v657 = vunpack.c.l.b16 %v360
        %v658 = vunpack.c.h.b16 %v360
        %v659 = vunpack.c.l.b16 %v361
        %v660 = vunpack.c.h.b16 %v361
        %v661 = vunpack.c.l.b16 %v362
        %v662 = vunpack.c.h.b16 %v362
        %v663 = vunpack.c.l.b16 %v363
        %v664 = vunpack.c.h.b16 %v363
        %v665 = vunpack.c.l.b16 %v364
        %v666 = vunpack.c.h.b16 %v364
        %v667 = vunpack.c.l.b16 %v365
        %v668 = vunpack.c.h.b16 %v365
        %v669 = vunpack.c.l.b16 %v366
        %v670 = vunpack.c.h.b16 %v366
        %v671 = vpack.c.b16 %v647, %v639
        %v672 = vpack.c.b16 %v648, %v640
        %v673 = vpack.c.b16 %v649, %v641
        %v674 = vpack.c.b16 %v650, %v642
        %v675 = vpack.c.b16 %v651, %v643
        %v676 = vpack.c.b16 %v652, %v644
        %v677 = vpack.c.b16 %v653, %v645
        %v678 = vpack.c.b16 %v654, %v646
        %v679 = vpack.c.b16 %v663, %v655
        %v680 = vpack.c.b16 %v664, %v656
        %v681 = vpack.c.b16 %v665, %v657
        %v682 = vpack.c.b16 %v666, %v658
        %v683 = vpack.c.b16 %v667, %v659
        %v684 = vpack.c.b16 %v668, %v660
        %v685 = vpack.c.b16 %v669, %v661
        %v686 = vpack.c.b16 %v670, %v662
        %v959 = vunpack.c.l.b16 %v367
        %v960 = vunpack.c.h.b16 %v367
        %v961 = vunpack.c.l.b16 %v368
        %v962 = vunpack.c.h.b16 %v368
        %v963 = vunpack.c.l.b16 %v369
        %v964 = vunpack.c.h.b16 %v369
        %v965 = vunpack.c.l.b16 %v370
        %v966 = vunpack.c.h.b16 %v370
        %v967 = vunpack.c.l.b16 %v371
        %v968 = vunpack.c.h.b16 %v371
        %v969 = vunpack.c.l.b16 %v372
        %v970 = vunpack.c.h.b16 %v372
        %v971 = vunpack.c.l.b16 %v373
        %v972 = vunpack.c.h.b16 %v373
        %v973 = vunpack.c.l.b16 %v374
        %v974 = vunpack.c.h.b16 %v374
        %v975 = vunpack.c.l.b16 %v375
        %v976 = vunpack.c.h.b16 %v375
        %v977 = vunpack.c.l.b16 %v376
        %v978 = vunpack.c.h.b16 %v376
        %v979 = vunpack.c.l.b16 %v377
        %v980 = vunpack.c.h.b16 %v377
        %v981 = vunpack.c.l.b16 %v378
        %v982 = vunpack.c.h.b16 %v378
        %v983 = vunpack.c.l.b16 %v379
        %v984 = vunpack.c.h.b16 %v379
        %v985 = vunpack.c.l.b16 %v380
        %v986 = vunpack.c.h.b16 %v380
        %v987 = vunpack.c.l.b16 %v381
        %v988 = vunpack.c.h.b16 %v381
        %v989 = vunpack.c.l.b16 %v382
        %v990 = vunpack.c.h.b16 %v382
        %v991 = vunpack.c.l.b16 %v383
        %v992 = vunpack.c.h.b16 %v383
        %v993 = vunpack.c.l.b16 %v384
        %v994 = vunpack.c.h.b16 %v384
        %v995 = vunpack.c.l.b16 %v385
        %v996 = vunpack.c.h.b16 %v385
        %v997 = vunpack.c.l.b16 %v386
        %v998 = vunpack.c.h.b16 %v386
        %v999 = vunpack.c.l.b16 %v387
        %v1000 = vunpack.c.h.b16 %v387
        %v1001 = vunpack.c.l.b16 %v388
        %v1002 = vunpack.c.h.b16 %v388
        %v1003 = vunpack.c.l.b16 %v389
        %v1004 = vunpack.c.h.b16 %v389
        %v1005 = vunpack.c.l.b16 %v390
        %v1006 = vunpack.c.h.b16 %v390
        %v1007 = vunpack.c.l.b16 %v391
        %v1008 = vunpack.c.h.b16 %v391
        %v1009 = vunpack.c.l.b16 %v392
        %v1010 = vunpack.c.h.b16 %v392
        %v1011 = vunpack.c.l.b16 %v393
        %v1012 = vunpack.c.h.b16 %v393
        %v1013 = vunpack.c.l.b16 %v394
        %v1014 = vunpack.c.h.b16 %v394
        %v1015 = vunpack.c.l.b16 %v395
        %v1016 = vunpack.c.h.b16 %v395
        %v1017 = vunpack.c.l.b16 %v396
        %v1018 = vunpack.c.h.b16 %v396
        %v1019 = vunpack.c.l.b16 %v397
        %v1020 = vunpack.c.h.b16 %v397
        %v1021 = vunpack.c.l.b16 %v398
        %v1022 = vunpack.c.h.b16 %v398
        %v1023 = vunpack.c.l.b16 %v399
        %v1024 = vunpack.c.h.b16 %v399
        %v1025 = vunpack.c.l.b16 %v400
        %v1026 = vunpack.c.h.b16 %v400
        %v1027 = vunpack.c.l.b16 %v401
        %v1028 = vunpack.c.h.b16 %v401
        %v1029 = vunpack.c.l.b16 %v402
        %v1030 = vunpack.c.h.b16 %v402
        %v1031 = vunpack.c.l.b16 %v403
        %v1032 = vunpack.c.h.b16 %v403
        %v1033 = vunpack.c.l.b16 %v404
        %v1034 = vunpack.c.h.b16 %v404
        %v1035 = vunpack.c.l.b16 %v405
        %v1036 = vunpack.c.h.b16 %v405
        %v1037 = vunpack.c.l.b16 %v406
        %v1038 = vunpack.c.h.b16 %v406
        %v1039 = vunpack.c.l.b16 %v407
        %v1040 = vunpack.c.h.b16 %v407
        %v1041 = vunpack.c.l.b16 %v408
        %v1042 = vunpack.c.h.b16 %v408
        %v1043 = vunpack.c.l.b16 %v409
        %v1044 = vunpack.c.h.b16 %v409
        %v1045 = vunpack.c.l.b16 %v410
        %v1046 = vunpack.c.h.b16 %v410
        %v1047 = vunpack.c.l.b16 %v411
        %v1048 = vunpack.c.h.b16 %v411
        %v1049 = vunpack.c.l.b16 %v412
        %v1050 = vunpack.c.h.b16 %v412
        %v1051 = vunpack.c.l.b16 %v413
        %v1052 = vunpack.c.h.b16 %v413
        %v1053 = vunpack.c.l.b16 %v414
        %v1054 = vunpack.c.h.b16 %v414
        %v1055 = vunpack.c.l.b16 %v415
        %v1056 = vunpack.c.h.b16 %v415
        %v1057 = vunpack.c.l.b16 %v416
        %v1058 = vunpack.c.h.b16 %v416
        %v1059 = vunpack.c.l.b16 %v417
        %v1060 = vunpack.c.h.b16 %v417
        %v1061 = vunpack.c.l.b16 %v418
        %v1062 = vunpack.c.h.b16 %v418
        %v1063 = vunpack.c.l.b16 %v419
        %v1064 = vunpack.c.h.b16 %v419
        %v1065 = vunpack.c.l.b16 %v420
        %v1066 = vunpack.c.h.b16 %v420
        %v1067 = vunpack.c.l.b16 %v421
        %v1068 = vunpack.c.h.b16 %v421
        %v1069 = vunpack.c.l.b16 %v422
        %v1070 = vunpack.c.h.b16 %v422
        %v1071 = vunpack.c.l.b16 %v423
        %v1072 = vunpack.c.h.b16 %v423
        %v1073 = vunpack.c.l.b16 %v424
        %v1074 = vunpack.c.h.b16 %v424
        %v1075 = vunpack.c.l.b16 %v425
        %v1076 = vunpack.c.h.b16 %v425
        %v1077 = vunpack.c.l.b16 %v426
        %v1078 = vunpack.c.h.b16 %v426
        %v1079 = vunpack.c.l.b16 %v427
        %v1080 = vunpack.c.h.b16 %v427
        %v1081 = vunpack.c.l.b16 %v428
        %v1082 = vunpack.c.h.b16 %v428
        %v1083 = vunpack.c.l.b16 %v429
        %v1084 = vunpack.c.h.b16 %v429
        %v1085 = vunpack.c.l.b16 %v430
        %v1086 = vunpack.c.h.b16 %v430
        %v1087 = vunpack.c.l.b16 %v431
        %v1088 = vunpack.c.h.b16 %v431
        %v1089 = vunpack.c.l.b16 %v432
        %v1090 = vunpack.c.h.b16 %v432
        %v1091 = vunpack.c.l.b16 %v433
        %v1092 = vunpack.c.h.b16 %v433
        %v1093 = vunpack.c.l.b16 %v434
        %v1094 = vunpack.c.h.b16 %v434
        %v1095 = vunpack.c.l.b16 %v435
        %v1096 = vunpack.c.h.b16 %v435
        %v1097 = vunpack.c.l.b16 %v436
        %v1098 = vunpack.c.h.b16 %v436
        %v1099 = vunpack.c.l.b16 %v437
        %v1100 = vunpack.c.h.b16 %v437
        %v1101 = vunpack.c.l.b16 %v438
        %v1102 = vunpack.c.h.b16 %v438
        %v1103 = vunpack.c.l.b16 %v439
        %v1104 = vunpack.c.h.b16 %v439
        %v1105 = vunpack.c.l.b16 %v440
        %v1106 = vunpack.c.h.b16 %v440
        %v1107 = vunpack.c.l.b16 %v441
        %v1108 = vunpack.c.h.b16 %v441
        %v1109 = vunpack.c.l.b16 %v442
        %v1110 = vunpack.c.h.b16 %v442
        %v1111 = vunpack.c.l.b16 %v443
        %v1112 = vunpack.c.h.b16 %v443
        %v1113 = vunpack.c.l.b16 %v444
        %v1114 = vunpack.c.h.b16 %v444
        %v1115 = vunpack.c.l.b16 %v445
        %v1116 = vunpack.c.h.b16 %v445
        %v1117 = vunpack.c.l.b16 %v446
        %v1118 = vunpack.c.h.b16 %v446
        %v1119 = vunpack.c.l.b16 %v447
        %v1120 = vunpack.c.h.b16 %v447
        %v1121 = vunpack.c.l.b16 %v448
        %v1122 = vunpack.c.h.b16 %v448
        %v1123 = vunpack.c.l.b16 %v449
        %v1124 = vunpack.c.h.b16 %v449
        %v1125 = vunpack.c.l.b16 %v450
        %v1126 = vunpack.c.h.b16 %v450
        %v1127 = vunpack.c.l.b16 %v451
        %v1128 = vunpack.c.h.b16 %v451
        %v1129 = vunpack.c.l.b16 %v452
        %v1130 = vunpack.c.h.b16 %v452
        %v1131 = vunpack.c.l.b16 %v453
        %v1132 = vunpack.c.h.b16 %v453
        %v1133 = vunpack.c.l.b16 %v454
        %v1134 = vunpack.c.h.b16 %v454
        %v1135 = vunpack.c.l.b16 %v455
        %v1136 = vunpack.c.h.b16 %v455
        %v1137 = vunpack.c.l.b16 %v456
        %v1138 = vunpack.c.h.b16 %v456
        %v1139 = vunpack.c.l.b16 %v457
        %v1140 = vunpack.c.h.b16 %v457
        %v1141 = vunpack.c.l.b16 %v458
        %v1142 = vunpack.c.h.b16 %v458
        %v1143 = vunpack.c.l.b16 %v459
        %v1144 = vunpack.c.h.b16 %v459
        %v1145 = vunpack.c.l.b16 %v460
        %v1146 = vunpack.c.h.b16 %v460
        %v1147 = vunpack.c.l.b16 %v461
        %v1148 = vunpack.c.h.b16 %v461
        %v1149 = vunpack.c.l.b16 %v462
        %v1150 = vunpack.c.h.b16 %v462
        %v1151 = vunpack.c.l.b16 %v463
        %v1152 = vunpack.c.h.b16 %v463
        %v1153 = vunpack.c.l.b16 %v464
        %v1154 = vunpack.c.h.b16 %v464
        %v1155 = vunpack.c.l.b16 %v465
        %v1156 = vunpack.c.h.b16 %v465
        %v1157 = vunpack.c.l.b16 %v466
        %v1158 = vunpack.c.h.b16 %v466
        %v1159 = vunpack.c.l.b16 %v467
        %v1160 = vunpack.c.h.b16 %v467
        %v1161 = vunpack.c.l.b16 %v468
        %v1162 = vunpack.c.h.b16 %v468
        %v1163 = vunpack.c.l.b16 %v469
        %v1164 = vunpack.c.h.b16 %v469
        %v1165 = vunpack.c.l.b16 %v470
        %v1166 = vunpack.c.h.b16 %v470
        %v1167 = vunpack.c.l.b16 %v471
        %v1168 = vunpack.c.h.b16 %v471
        %v1169 = vunpack.c.l.b16 %v472
        %v1170 = vunpack.c.h.b16 %v472
        %v1171 = vunpack.c.l.b16 %v473
        %v1172 = vunpack.c.h.b16 %v473
        %v1173 = vunpack.c.l.b16 %v474
        %v1174 = vunpack.c.h.b16 %v474
        %v1175 = vunpack.c.l.b16 %v475
        %v1176 = vunpack.c.h.b16 %v475
        %v1177 = vunpack.c.l.b16 %v476
        %v1178 = vunpack.c.h.b16 %v476
        %v1179 = vunpack.c.l.b16 %v477
        %v1180 = vunpack.c.h.b16 %v477
        %v1181 = vunpack.c.l.b16 %v478
        %v1182 = vunpack.c.h.b16 %v478
        %v1183 = vunpack.c.l.b16 %v479
        %v1184 = vunpack.c.h.b16 %v479
        %v1185 = vunpack.c.l.b16 %v480
        %v1186 = vunpack.c.h.b16 %v480
        %v1187 = vunpack.c.l.b16 %v481
        %v1188 = vunpack.c.h.b16 %v481
        %v1189 = vunpack.c.l.b16 %v482
        %v1190 = vunpack.c.h.b16 %v482
        %v1191 = vunpack.c.l.b16 %v483
        %v1192 = vunpack.c.h.b16 %v483
        %v1193 = vunpack.c.l.b16 %v484
        %v1194 = vunpack.c.h.b16 %v484
        %v1195 = vunpack.c.l.b16 %v485
        %v1196 = vunpack.c.h.b16 %v485
        %v1197 = vunpack.c.l.b16 %v486
        %v1198 = vunpack.c.h.b16 %v486
        %v1199 = vunpack.c.l.b16 %v487
        %v1200 = vunpack.c.h.b16 %v487
        %v1201 = vunpack.c.l.b16 %v488
        %v1202 = vunpack.c.h.b16 %v488
        %v1203 = vunpack.c.l.b16 %v489
        %v1204 = vunpack.c.h.b16 %v489
        %v1205 = vunpack.c.l.b16 %v490
        %v1206 = vunpack.c.h.b16 %v490
        %v1207 = vunpack.c.l.b16 %v491
        %v1208 = vunpack.c.h.b16 %v491
        %v1209 = vunpack.c.l.b16 %v492
        %v1210 = vunpack.c.h.b16 %v492
        %v1211 = vunpack.c.l.b16 %v493
        %v1212 = vunpack.c.h.b16 %v493
        %v1213 = vunpack.c.l.b16 %v494
        %v1214 = vunpack.c.h.b16 %v494
        %v1215 = vunpack.c.l.b16 %v495
        %v1216 = vunpack.c.h.b16 %v495
        %v1217 = vunpack.c.l.b16 %v496
        %v1218 = vunpack.c.h.b16 %v496
        %v1219 = vunpack.c.l.b16 %v497
        %v1220 = vunpack.c.h.b16 %v497
        %v1221 = vunpack.c.l.b16 %v498
        %v1222 = vunpack.c.h.b16 %v498
        %v1223 = vunpack.c.l.b16 %v499
        %v1224 = vunpack.c.h.b16 %v499
        %v1225 = vunpack.c.l.b16 %v500
        %v1226 = vunpack.c.h.b16 %v500
        %v1227 = vunpack.c.l.b16 %v501
        %v1228 = vunpack.c.h.b16 %v501
        %v1229 = vunpack.c.l.b16 %v502
        %v1230 = vunpack.c.h.b16 %v502
        %v1231 = vunpack.c.l.b16 %v503
        %v1232 = vunpack.c.h.b16 %v503
        %v1233 = vunpack.c.l.b16 %v504
        %v1234 = vunpack.c.h.b16 %v504
        %v1235 = vunpack.c.l.b16 %v505
        %v1236 = vunpack.c.h.b16 %v505
        %v1237 = vunpack.c.l.b16 %v506
        %v1238 = vunpack.c.h.b16 %v506
        %v1239 = vunpack.c.l.b16 %v507
        %v1240 = vunpack.c.h.b16 %v507
        %v1241 = vunpack.c.l.b16 %v508
        %v1242 = vunpack.c.h.b16 %v508
        %v1243 = vunpack.c.l.b16 %v509
        %v1244 = vunpack.c.h.b16 %v509
        %v1245 = vunpack.c.l.b16 %v510
        %v1246 = vunpack.c.h.b16 %v510
        %v1247 = vunpack.c.l.b16 %v511
        %v1248 = vunpack.c.h.b16 %v511
        %v1249 = vunpack.c.l.b16 %v512
        %v1250 = vunpack.c.h.b16 %v512
        %v1251 = vunpack.c.l.b16 %v513
        %v1252 = vunpack.c.h.b16 %v513
        %v1253 = vunpack.c.l.b16 %v514
        %v1254 = vunpack.c.h.b16 %v514
        %v1255 = vunpack.c.l.b16 %v515
        %v1256 = vunpack.c.h.b16 %v515
        %v1257 = vunpack.c.l.b16 %v516
        %v1258 = vunpack.c.h.b16 %v516
        %v1259 = vunpack.c.l.b16 %v517
        %v1260 = vunpack.c.h.b16 %v517
        %v1261 = vunpack.c.l.b16 %v518
        %v1262 = vunpack.c.h.b16 %v518
        %v1263 = vunpack.c.l.b16 %v519
        %v1264 = vunpack.c.h.b16 %v519
        %v1265 = vunpack.c.l.b16 %v520
        %v1266 = vunpack.c.h.b16 %v520
        %v1267 = vunpack.c.l.b16 %v521
        %v1268 = vunpack.c.h.b16 %v521
        %v1269 = vunpack.c.l.b16 %v522
        %v1270 = vunpack.c.h.b16 %v522
        %v1271 = vunpack.c.l.b16 %v523
        %v1272 = vunpack.c.h.b16 %v523
        %v1273 = vunpack.c.l.b16 %v524
        %v1274 = vunpack.c.h.b16 %v524
        %v1275 = vunpack.c.l.b16 %v525
        %v1276 = vunpack.c.h.b16 %v525
        %v1277 = vunpack.c.l.b16 %v526
        %v1278 = vunpack.c.h.b16 %v526
        %v1279 = vunpack.c.l.b16 %v527
        %v1280 = vunpack.c.h.b16 %v527
        %v1281 = vunpack.c.l.b16 %v528
        %v1282 = vunpack.c.h.b16 %v528
        %v1283 = vunpack.c.l.b16 %v529
        %v1284 = vunpack.c.h.b16 %v529
        %v1285 = vunpack.c.l.b16 %v530
        %v1286 = vunpack.c.h.b16 %v530
        %v1287 = vunpack.c.l.b16 %v531
        %v1288 = vunpack.c.h.b16 %v531
        %v1289 = vunpack.c.l.b16 %v532
        %v1290 = vunpack.c.h.b16 %v532
        %v1291 = vunpack.c.l.b16 %v533
        %v1292 = vunpack.c.h.b16 %v533
        %v1293 = vunpack.c.l.b16 %v534
        %v1294 = vunpack.c.h.b16 %v534
        %v1295 = vunpack.c.l.b16 %v535
        %v1296 = vunpack.c.h.b16 %v535
        %v1297 = vunpack.c.l.b16 %v536
        %v1298 = vunpack.c.h.b16 %v536
        %v1299 = vunpack.c.l.b16 %v537
        %v1300 = vunpack.c.h.b16 %v537
        %v1301 = vunpack.c.l.b16 %v538
        %v1302 = vunpack.c.h.b16 %v538
        %v1303 = vunpack.c.l.b16 %v539
        %v1304 = vunpack.c.h.b16 %v539
        %v1305 = vunpack.c.l.b16 %v540
        %v1306 = vunpack.c.h.b16 %v540
        %v1307 = vunpack.c.l.b16 %v541
        %v1308 = vunpack.c.h.b16 %v541
        %v1309 = vunpack.c.l.b16 %v542
        %v1310 = vunpack.c.h.b16 %v542
        %v1311 = vunpack.c.l.b16 %v543
        %v1312 = vunpack.c.h.b16 %v543
        %v1313 = vunpack.c.l.b16 %v544
        %v1314 = vunpack.c.h.b16 %v544
        %v1315 = vunpack.c.l.b16 %v545
        %v1316 = vunpack.c.h.b16 %v545
        %v1317 = vunpack.c.l.b16 %v546
        %v1318 = vunpack.c.h.b16 %v546
        %v1319 = vunpack.c.l.b16 %v547
        %v1320 = vunpack.c.h.b16 %v547
        %v1321 = vunpack.c.l.b16 %v548
        %v1322 = vunpack.c.h.b16 %v548
        %v1323 = vunpack.c.l.b16 %v549
        %v1324 = vunpack.c.h.b16 %v549
        %v1325 = vunpack.c.l.b16 %v550
        %v1326 = vunpack.c.h.b16 %v550
        %v1327 = vunpack.c.l.b16 %v551
        %v1328 = vunpack.c.h.b16 %v551
        %v1329 = vunpack.c.l.b16 %v552
        %v1330 = vunpack.c.h.b16 %v552
        %v1331 = vunpack.c.l.b16 %v553
        %v1332 = vunpack.c.h.b16 %v553
        %v1333 = vunpack.c.l.b16 %v554
        %v1334 = vunpack.c.h.b16 %v554
        %v1335 = vunpack.c.l.b16 %v555
        %v1336 = vunpack.c.h.b16 %v555
        %v1337 = vunpack.c.l.b16 %v556
        %v1338 = vunpack.c.h.b16 %v556
        %v1339 = vunpack.c.l.b16 %v557
        %v1340 = vunpack.c.h.b16 %v557
        %v1341 = vunpack.c.l.b16 %v558
        %v1342 = vunpack.c.h.b16 %v558
        %v1343 = vunpack.c.l.b16 %v559
        %v1344 = vunpack.c.h.b16 %v559
        %v1345 = vunpack.c.l.b16 %v560
        %v1346 = vunpack.c.h.b16 %v560
        %v1347 = vunpack.c.l.b16 %v561
        %v1348 = vunpack.c.h.b16 %v561
        %v1349 = vunpack.c.l.b16 %v562
        %v1350 = vunpack.c.h.b16 %v562
        %v1351 = vunpack.c.l.b16 %v563
        %v1352 = vunpack.c.h.b16 %v563
        %v1353 = vunpack.c.l.b16 %v564
        %v1354 = vunpack.c.h.b16 %v564
        %v1355 = vunpack.c.l.b16 %v565
        %v1356 = vunpack.c.h.b16 %v565
        %v1357 = vunpack.c.l.b16 %v566
        %v1358 = vunpack.c.h.b16 %v566
        %v1359 = vunpack.c.l.b16 %v567
        %v1360 = vunpack.c.h.b16 %v567
        %v1361 = vunpack.c.l.b16 %v568
        %v1362 = vunpack.c.h.b16 %v568
        %v1363 = vunpack.c.l.b16 %v569
        %v1364 = vunpack.c.h.b16 %v569
        %v1365 = vunpack.c.l.b16 %v570
        %v1366 = vunpack.c.h.b16 %v570
        %v1367 = vunpack.c.l.b16 %v571
        %v1368 = vunpack.c.h.b16 %v571
        %v1369 = vunpack.c.l.b16 %v572
        %v1370 = vunpack.c.h.b16 %v572
        %v1371 = vunpack.c.l.b16 %v573
        %v1372 = vunpack.c.h.b16 %v573
        %v1373 = vunpack.c.l.b16 %v574
        %v1374 = vunpack.c.h.b16 %v574
        %v1375 = vunpack.c.l.b16 %v575
        %v1376 = vunpack.c.h.b16 %v575
        %v1377 = vunpack.c.l.b16 %v576
        %v1378 = vunpack.c.h.b16 %v576
        %v1379 = vunpack.c.l.b16 %v577
        %v1380 = vunpack.c.h.b16 %v577
        %v1381 = vunpack.c.l.b16 %v578
        %v1382 = vunpack.c.h.b16 %v578
        %v1383 = vunpack.c.l.b16 %v579
        %v1384 = vunpack.c.h.b16 %v579
        %v1385 = vunpack.c.l.b16 %v580
        %v1386 = vunpack.c.h.b16 %v580
        %v1387 = vunpack.c.l.b16 %v581
        %v1388 = vunpack.c.h.b16 %v581
        %v1389 = vunpack.c.l.b16 %v582
        %v1390 = vunpack.c.h.b16 %v582
        %v1391 = vunpack.c.l.b16 %v583
        %v1392 = vunpack.c.h.b16 %v583
        %v1393 = vunpack.c.l.b16 %v584
        %v1394 = vunpack.c.h.b16 %v584
        %v1395 = vunpack.c.l.b16 %v585
        %v1396 = vunpack.c.h.b16 %v585
        %v1397 = vunpack.c.l.b16 %v586
        %v1398 = vunpack.c.h.b16 %v586
        %v1399 = vunpack.c.l.b16 %v587
        %v1400 = vunpack.c.h.b16 %v587
        %v1401 = vunpack.c.l.b16 %v588
        %v1402 = vunpack.c.h.b16 %v588
        %v1403 = vunpack.c.l.b16 %v589
        %v1404 = vunpack.c.h.b16 %v589
        %v1405 = vunpack.c.l.b16 %v590
        %v1406 = vunpack.c.h.b16 %v590
        %v1407 = vunpack.c.l.b16 %v591
        %v1408 = vunpack.c.h.b16 %v591
        %v1409 = vunpack.c.l.b16 %v592
        %v1410 = vunpack.c.h.b16 %v592
        %v1411 = vunpack.c.l.b16 %v593
        %v1412 = vunpack.c.h.b16 %v593
        %v1413 = vunpack.c.l.b16 %v594
        %v1414 = vunpack.c.h.b16 %v594
        %v1415 = vunpack.c.l.b16 %v595
        %v1416 = vunpack.c.h.b16 %v595
        %v1417 = vunpack.c.l.b16 %v596
        %v1418 = vunpack.c.h.b16 %v596
        %v1419 = vunpack.c.l.b16 %v597
        %v1420 = vunpack.c.h.b16 %v597
        %v1421 = vunpack.c.l.b16 %v598
        %v1422 = vunpack.c.h.b16 %v598
        %v1423 = vunpack.c.l.b16 %v599
        %v1424 = vunpack.c.h.b16 %v599
        %v1425 = vunpack.c.l.b16 %v600
        %v1426 = vunpack.c.h.b16 %v600
        %v1427 = vunpack.c.l.b16 %v601
        %v1428 = vunpack.c.h.b16 %v601
        %v1429 = vunpack.c.l.b16 %v602
        %v1430 = vunpack.c.h.b16 %v602
        %v1431 = vunpack.c.l.b16 %v603
        %v1432 = vunpack.c.h.b16 %v603
        %v1433 = vunpack.c.l.b16 %v604
        %v1434 = vunpack.c.h.b16 %v604
        %v1435 = vunpack.c.l.b16 %v605
        %v1436 = vunpack.c.h.b16 %v605
        %v1437 = vunpack.c.l.b16 %v606
        %v1438 = vunpack.c.h.b16 %v606
        %v1439 = vunpack.c.l.b16 %v607
        %v1440 = vunpack.c.h.b16 %v607
        %v1441 = vunpack.c.l.b16 %v608
        %v1442 = vunpack.c.h.b16 %v608
        %v1443 = vunpack.c.l.b16 %v609
        %v1444 = vunpack.c.h.b16 %v609
        %v1445 = vunpack.c.l.b16 %v610
        %v1446 = vunpack.c.h.b16 %v610
        %v1447 = vunpack.c.l.b16 %v611
        %v1448 = vunpack.c.h.b16 %v611
        %v1449 = vunpack.c.l.b16 %v612
        %v1450 = vunpack.c.h.b16 %v612
        %v1451 = vunpack.c.l.b16 %v613
        %v1452 = vunpack.c.h.b16 %v613
        %v1453 = vunpack.c.l.b16 %v614
        %v1454 = vunpack.c.h.b16 %v614
        %v1455 = vunpack.c.l.b16 %v615
        %v1456 = vunpack.c.h.b16 %v615
        %v1457 = vunpack.c.l.b16 %v616
        %v1458 = vunpack.c.h.b16 %v616
        %v1459 = vunpack.c.l.b16 %v617
        %v1460 = vunpack.c.h.b16 %v617
        %v1461 = vunpack.c.l.b16 %v618
        %v1462 = vunpack.c.h.b16 %v618
        %v1463 = vunpack.c.l.b16 %v619
        %v1464 = vunpack.c.h.b16 %v619
        %v1465 = vunpack.c.l.b16 %v620
        %v1466 = vunpack.c.h.b16 %v620
        %v1467 = vunpack.c.l.b16 %v621
        %v1468 = vunpack.c.h.b16 %v621
        %v1469 = vunpack.c.l.b16 %v622
        %v1470 = vunpack.c.h.b16 %v622
        %v1471 = vpack.c.b16 %v963, %v959
        %v1472 = vpack.c.b16 %v964, %v960
        %v1473 = vpack.c.b16 %v965, %v961
        %v1474 = vpack.c.b16 %v966, %v962
        %v1475 = vpack.c.b16 %v971, %v967
        %v1476 = vpack.c.b16 %v972, %v968
        %v1477 = vpack.c.b16 %v973, %v969
        %v1478 = vpack.c.b16 %v974, %v970
        %v1479 = vpack.c.b16 %v979, %v975
        %v1480 = vpack.c.b16 %v980, %v976
        %v1481 = vpack.c.b16 %v981, %v977
        %v1482 = vpack.c.b16 %v982, %v978
        %v1483 = vpack.c.b16 %v987, %v983
        %v1484 = vpack.c.b16 %v988, %v984
        %v1485 = vpack.c.b16 %v989, %v985
        %v1486 = vpack.c.b16 %v990, %v986
        %v1487 = vpack.c.b16 %v995, %v991
        %v1488 = vpack.c.b16 %v996, %v992
        %v1489 = vpack.c.b16 %v997, %v993
        %v1490 = vpack.c.b16 %v998, %v994
        %v1491 = vpack.c.b16 %v1003, %v999
        %v1492 = vpack.c.b16 %v1004, %v1000
        %v1493 = vpack.c.b16 %v1005, %v1001
        %v1494 = vpack.c.b16 %v1006, %v1002
        %v1495 = vpack.c.b16 %v1011, %v1007
        %v1496 = vpack.c.b16 %v1012, %v1008
        %v1497 = vpack.c.b16 %v1013, %v1009
        %v1498 = vpack.c.b16 %v1014, %v1010
        %v1499 = vpack.c.b16 %v1019, %v1015
        %v1500 = vpack.c.b16 %v1020, %v1016
        %v1501 = vpack.c.b16 %v1021, %v1017
        %v1502 = vpack.c.b16 %v1022, %v1018
        %v1503 = vpack.c.b16 %v1027, %v1023
        %v1504 = vpack.c.b16 %v1028, %v1024
        %v1505 = vpack.c.b16 %v1029, %v1025
        %v1506 = vpack.c.b16 %v1030, %v1026
        %v1507 = vpack.c.b16 %v1035, %v1031
        %v1508 = vpack.c.b16 %v1036, %v1032
        %v1509 = vpack.c.b16 %v1037, %v1033
        %v1510 = vpack.c.b16 %v1038, %v1034
        %v1511 = vpack.c.b16 %v1043, %v1039
        %v1512 = vpack.c.b16 %v1044, %v1040
        %v1513 = vpack.c.b16 %v1045, %v1041
        %v1514 = vpack.c.b16 %v1046, %v1042
        %v1515 = vpack.c.b16 %v1051, %v1047
        %v1516 = vpack.c.b16 %v1052, %v1048
        %v1517 = vpack.c.b16 %v1053, %v1049
        %v1518 = vpack.c.b16 %v1054, %v1050
        %v1519 = vpack.c.b16 %v1059, %v1055
        %v1520 = vpack.c.b16 %v1060, %v1056
        %v1521 = vpack.c.b16 %v1061, %v1057
        %v1522 = vpack.c.b16 %v1062, %v1058
        %v1523 = vpack.c.b16 %v1067, %v1063
        %v1524 = vpack.c.b16 %v1068, %v1064
        %v1525 = vpack.c.b16 %v1069, %v1065
        %v1526 = vpack.c.b16 %v1070, %v1066
        %v1527 = vpack.c.b16 %v1075, %v1071
        %v1528 = vpack.c.b16 %v1076, %v1072
        %v1529 = vpack.c.b16 %v1077, %v1073
        %v1530 = vpack.c.b16 %v1078, %v1074
        %v1531 = vpack.c.b16 %v1083, %v1079
        %v1532 = vpack.c.b16 %v1084, %v1080
        %v1533 = vpack.c.b16 %v1085, %v1081
        %v1534 = vpack.c.b16 %v1086, %v1082
        %v1535 = vpack.c.b16 %v1091, %v1087
        %v1536 = vpack.c.b16 %v1092, %v1088
        %v1537 = vpack.c.b16 %v1093, %v1089
        %v1538 = vpack.c.b16 %v1094, %v1090
        %v1539 = vpack.c.b16 %v1099, %v1095
        %v1540 = vpack.c.b16 %v1100, %v1096
        %v1541 = vpack.c.b16 %v1101, %v1097
        %v1542 = vpack.c.b16 %v1102, %v1098
        %v1543 = vpack.c.b16 %v1107, %v1103
        %v1544 = vpack.c.b16 %v1108, %v1104
        %v1545 = vpack.c.b16 %v1109, %v1105
        %v1546 = vpack.c.b16 %v1110, %v1106
        %v1547 = vpack.c.b16 %v1115, %v1111
        %v1548 = vpack.c.b16 %v1116, %v1112
        %v1549 = vpack.c.b16 %v1117, %v1113
        %v1550 = vpack.c.b16 %v1118, %v1114
        %v1551 = vpack.c.b16 %v1123, %v1119
        %v1552 = vpack.c.b16 %v1124, %v1120
        %v1553 = vpack.c.b16 %v1125, %v1121
        %v1554 = vpack.c.b16 %v1126, %v1122
        %v1555 = vpack.c.b16 %v1131, %v1127
        %v1556 = vpack.c.b16 %v1132, %v1128
        %v1557 = vpack.c.b16 %v1133, %v1129
        %v1558 = vpack.c.b16 %v1134, %v1130
        %v1559 = vpack.c.b16 %v1139, %v1135
        %v1560 = vpack.c.b16 %v1140, %v1136
        %v1561 = vpack.c.b16 %v1141, %v1137
        %v1562 = vpack.c.b16 %v1142, %v1138
        %v1563 = vpack.c.b16 %v1147, %v1143
        %v1564 = vpack.c.b16 %v1148, %v1144
        %v1565 = vpack.c.b16 %v1149, %v1145
        %v1566 = vpack.c.b16 %v1150, %v1146
        %v1567 = vpack.c.b16 %v1155, %v1151
        %v1568 = vpack.c.b16 %v1156, %v1152
        %v1569 = vpack.c.b16 %v1157, %v1153
        %v1570 = vpack.c.b16 %v1158, %v1154
        %v1571 = vpack.c.b16 %v1163, %v1159
        %v1572 = vpack.c.b16 %v1164, %v1160
        %v1573 = vpack.c.b16 %v1165, %v1161
        %v1574 = vpack.c.b16 %v1166, %v1162
        %v1575 = vpack.c.b16 %v1171, %v1167
        %v1576 = vpack.c.b16 %v1172, %v1168
        %v1577 = vpack.c.b16 %v1173, %v1169
        %v1578 = vpack.c.b16 %v1174, %v1170
        %v1579 = vpack.c.b16 %v1179, %v1175
        %v1580 = vpack.c.b16 %v1180, %v1176
        %v1581 = vpack.c.b16 %v1181, %v1177
        %v1582 = vpack.c.b16 %v1182, %v1178
        %v1583 = vpack.c.b16 %v1187, %v1183
        %v1584 = vpack.c.b16 %v1188, %v1184
        %v1585 = vpack.c.b16 %v1189, %v1185
        %v1586 = vpack.c.b16 %v1190, %v1186
        %v1587 = vpack.c.b16 %v1195, %v1191
        %v1588 = vpack.c.b16 %v1196, %v1192
        %v1589 = vpack.c.b16 %v1197, %v1193
        %v1590 = vpack.c.b16 %v1198, %v1194
        %v1591 = vpack.c.b16 %v1203, %v1199
        %v1592 = vpack.c.b16 %v1204, %v1200
        %v1593 = vpack.c.b16 %v1205, %v1201
        %v1594 = vpack.c.b16 %v1206, %v1202
        %v1595 = vpack.c.b16 %v1211, %v1207
        %v1596 = vpack.c.b16 %v1212, %v1208
        %v1597 = vpack.c.b16 %v1213, %v1209
        %v1598 = vpack.c.b16 %v1214, %v1210
        %v1599 = vpack.c.b16 %v1219, %v1215
        %v1600 = vpack.c.b16 %v1220, %v1216
        %v1601 = vpack.c.b16 %v1221, %v1217
        %v1602 = vpack.c.b16 %v1222, %v1218
        %v1603 = vpack.c.b16 %v1227, %v1223
        %v1604 = vpack.c.b16 %v1228, %v1224
        %v1605 = vpack.c.b16 %v1229, %v1225
        %v1606 = vpack.c.b16 %v1230, %v1226
        %v1607 = vpack.c.b16 %v1235, %v1231
        %v1608 = vpack.c.b16 %v1236, %v1232
        %v1609 = vpack.c.b16 %v1237, %v1233
        %v1610 = vpack.c.b16 %v1238, %v1234
        %v1611 = vpack.c.b16 %v1243, %v1239
        %v1612 = vpack.c.b16 %v1244, %v1240
        %v1613 = vpack.c.b16 %v1245, %v1241
        %v1614 = vpack.c.b16 %v1246, %v1242
        %v1615 = vpack.c.b16 %v1251, %v1247
        %v1616 = vpack.c.b16 %v1252, %v1248
        %v1617 = vpack.c.b16 %v1253, %v1249
        %v1618 = vpack.c.b16 %v1254, %v1250
        %v1619 = vpack.c.b16 %v1259, %v1255
        %v1620 = vpack.c.b16 %v1260, %v1256
        %v1621 = vpack.c.b16 %v1261, %v1257
        %v1622 = vpack.c.b16 %v1262, %v1258
        %v1623 = vpack.c.b16 %v1267, %v1263
        %v1624 = vpack.c.b16 %v1268, %v1264
        %v1625 = vpack.c.b16 %v1269, %v1265
        %v1626 = vpack.c.b16 %v1270, %v1266
        %v1627 = vpack.c.b16 %v1275, %v1271
        %v1628 = vpack.c.b16 %v1276, %v1272
        %v1629 = vpack.c.b16 %v1277, %v1273
        %v1630 = vpack.c.b16 %v1278, %v1274
        %v1631 = vpack.c.b16 %v1283, %v1279
        %v1632 = vpack.c.b16 %v1284, %v1280
        %v1633 = vpack.c.b16 %v1285, %v1281
        %v1634 = vpack.c.b16 %v1286, %v1282
        %v1635 = vpack.c.b16 %v1291, %v1287
        %v1636 = vpack.c.b16 %v1292, %v1288
        %v1637 = vpack.c.b16 %v1293, %v1289
        %v1638 = vpack.c.b16 %v1294, %v1290
        %v1639 = vpack.c.b16 %v1299, %v1295
        %v1640 = vpack.c.b16 %v1300, %v1296
        %v1641 = vpack.c.b16 %v1301, %v1297
        %v1642 = vpack.c.b16 %v1302, %v1298
        %v1643 = vpack.c.b16 %v1307, %v1303
        %v1644 = vpack.c.b16 %v1308, %v1304
        %v1645 = vpack.c.b16 %v1309, %v1305
        %v1646 = vpack.c.b16 %v1310, %v1306
        %v1647 = vpack.c.b16 %v1315, %v1311
        %v1648 = vpack.c.b16 %v1316, %v1312
        %v1649 = vpack.c.b16 %v1317, %v1313
        %v1650 = vpack.c.b16 %v1318, %v1314
        %v1651 = vpack.c.b16 %v1323, %v1319
        %v1652 = vpack.c.b16 %v1324, %v1320
        %v1653 = vpack.c.b16 %v1325, %v1321
        %v1654 = vpack.c.b16 %v1326, %v1322
        %v1655 = vpack.c.b16 %v1331, %v1327
        %v1656 = vpack.c.b16 %v1332, %v1328
        %v1657 = vpack.c.b16 %v1333, %v1329
        %v1658 = vpack.c.b16 %v1334, %v1330
        %v1659 = vpack.c.b16 %v1339, %v1335
        %v1660 = vpack.c.b16 %v1340, %v1336
        %v1661 = vpack.c.b16 %v1341, %v1337
        %v1662 = vpack.c.b16 %v1342, %v1338
        %v1663 = vpack.c.b16 %v1347, %v1343
        %v1664 = vpack.c.b16 %v1348, %v1344
        %v1665 = vpack.c.b16 %v1349, %v1345
        %v1666 = vpack.c.b16 %v1350, %v1346
        %v1667 = vpack.c.b16 %v1355, %v1351
        %v1668 = vpack.c.b16 %v1356, %v1352
        %v1669 = vpack.c.b16 %v1357, %v1353
        %v1670 = vpack.c.b16 %v1358, %v1354
        %v1671 = vpack.c.b16 %v1363, %v1359
        %v1672 = vpack.c.b16 %v1364, %v1360
        %v1673 = vpack.c.b16 %v1365, %v1361
        %v1674 = vpack.c.b16 %v1366, %v1362
        %v1675 = vpack.c.b16 %v1371, %v1367
        %v1676 = vpack.c.b16 %v1372, %v1368
        %v1677 = vpack.c.b16 %v1373, %v1369
        %v1678 = vpack.c.b16 %v1374, %v1370
        %v1679 = vpack.c.b16 %v1379, %v1375
        %v1680 = vpack.c.b16 %v1380, %v1376
        %v1681 = vpack.c.b16 %v1381, %v1377
        %v1682 = vpack.c.b16 %v1382, %v1378
        %v1683 = vpack.c.b16 %v1387, %v1383
        %v1684 = vpack.c.b16 %v1388, %v1384
        %v1685 = vpack.c.b16 %v1389, %v1385
        %v1686 = vpack.c.b16 %v1390, %v1386
        %v1687 = vpack.c.b16 %v1395, %v1391
        %v1688 = vpack.c.b16 %v1396, %v1392
        %v1689 = vpack.c.b16 %v1397, %v1393
        %v1690 = vpack.c.b16 %v1398, %v1394
        %v1691 = vpack.c.b16 %v1403, %v1399
        %v1692 = vpack.c.b16 %v1404, %v1400
        %v1693 = vpack.c.b16 %v1405, %v1401
        %v1694 = vpack.c.b16 %v1406, %v1402
        %v1695 = vpack.c.b16 %v1411, %v1407
        %v1696 = vpack.c.b16 %v1412, %v1408
        %v1697 = vpack.c.b16 %v1413, %v1409
        %v1698 = vpack.c.b16 %v1414, %v1410
        %v1699 = vpack.c.b16 %v1419, %v1415
        %v1700 = vpack.c.b16 %v1420, %v1416
        %v1701 = vpack.c.b16 %v1421, %v1417
        %v1702 = vpack.c.b16 %v1422, %v1418
        %v1703 = vpack.c.b16 %v1427, %v1423
        %v1704 = vpack.c.b16 %v1428, %v1424
        %v1705 = vpack.c.b16 %v1429, %v1425
        %v1706 = vpack.c.b16 %v1430, %v1426
        %v1707 = vpack.c.b16 %v1435, %v1431
        %v1708 = vpack.c.b16 %v1436, %v1432
        %v1709 = vpack.c.b16 %v1437, %v1433
        %v1710 = vpack.c.b16 %v1438, %v1434
        %v1711 = vpack.c.b16 %v1443, %v1439
        %v1712 = vpack.c.b16 %v1444, %v1440
        %v1713 = vpack.c.b16 %v1445, %v1441
        %v1714 = vpack.c.b16 %v1446, %v1442
        %v1715 = vpack.c.b16 %v1451, %v1447
        %v1716 = vpack.c.b16 %v1452, %v1448
        %v1717 = vpack.c.b16 %v1453, %v1449
        %v1718 = vpack.c.b16 %v1454, %v1450
        %v1719 = vpack.c.b16 %v1459, %v1455
        %v1720 = vpack.c.b16 %v1460, %v1456
        %v1721 = vpack.c.b16 %v1461, %v1457
        %v1722 = vpack.c.b16 %v1462, %v1458
        %v1723 = vpack.c.b16 %v1467, %v1463
        %v1724 = vpack.c.b16 %v1468, %v1464
        %v1725 = vpack.c.b16 %v1469, %v1465
        %v1726 = vpack.c.b16 %v1470, %v1466
        %1983 = vmatpush.bf16.msra.mxu0 %v1499
        %1984 = vmatpush.bf16.msra.mxu0 %v1495
        %1985 = vmatpush.bf16.msra.mxu0 %v1491
        %1986 = vmatpush.bf16.msra.mxu0 %v1487
        %1987 = vmatpush.bf16.msra.mxu0 %v1483
        %1988 = vmatpush.bf16.msra.mxu0 %v1479
        %1989 = vmatpush.bf16.msra.mxu0 %v1475
        %1990 = vmatpush.bf16.msra.mxu0 %v1471
        %1991 = vmatmul.bf16.gmra.mxu0 %v671
        %v1992 = vpop.f32.mrf.mxu0
        %v1993 = vadd.f32 0.0, %v1992
        %v1994 = vpop.f32.mrf.mxu0
        %v1995 = vadd.f32 0.0, %v1994
        %1996 = vmatmul.bf16.gmra.mxu0 %v679
        %v1997 = vpop.f32.mrf.mxu0
        %v1998 = vadd.f32 0.0, %v1997
        %v1999 = vpop.f32.mrf.mxu0
        %v2000 = vadd.f32 0.0, %v1999
        %2001 = vdwg.mxu0
        %2002 = vmatpush.bf16.msra.mxu0 %v1531
        %2003 = vmatpush.bf16.msra.mxu0 %v1527
        %2004 = vmatpush.bf16.msra.mxu0 %v1523
        %2005 = vmatpush.bf16.msra.mxu0 %v1519
        %2006 = vmatpush.bf16.msra.mxu0 %v1515
        %2007 = vmatpush.bf16.msra.mxu0 %v1511
        %2008 = vmatpush.bf16.msra.mxu0 %v1507
        %2009 = vmatpush.bf16.msra.mxu0 %v1503
        %2010 = vmatmul.bf16.gmra.mxu0 %v672
        %v2011 = vpop.f32.mrf.mxu0
        %v2012 = vadd.f32 %v1993, %v2011
        %v2013 = vpop.f32.mrf.mxu0
        %v2014 = vadd.f32 %v1995, %v2013
        %2015 = vmatmul.bf16.gmra.mxu0 %v680
        %v2016 = vpop.f32.mrf.mxu0
        %v2017 = vadd.f32 %v1998, %v2016
        %v2018 = vpop.f32.mrf.mxu0
        %v2019 = vadd.f32 %v2000, %v2018
        %2020 = vdwg.mxu0
        %2021 = vmatpush.bf16.msra.mxu0 %v1563
        %2022 = vmatpush.bf16.msra.mxu0 %v1559
        %2023 = vmatpush.bf16.msra.mxu0 %v1555
        %2024 = vmatpush.bf16.msra.mxu0 %v1551
        %2025 = vmatpush.bf16.msra.mxu0 %v1547
        %2026 = vmatpush.bf16.msra.mxu0 %v1543
        %2027 = vmatpush.bf16.msra.mxu0 %v1539
        %2028 = vmatpush.bf16.msra.mxu0 %v1535
        %2029 = vmatmul.bf16.gmra.mxu0 %v673
        %v2030 = vpop.f32.mrf.mxu0
        %v2031 = vadd.f32 %v2012, %v2030
        %v2032 = vpop.f32.mrf.mxu0
        %v2033 = vadd.f32 %v2014, %v2032
        %2034 = vmatmul.bf16.gmra.mxu0 %v681
        %v2035 = vpop.f32.mrf.mxu0
        %v2036 = vadd.f32 %v2017, %v2035
        %v2037 = vpop.f32.mrf.mxu0
        %v2038 = vadd.f32 %v2019, %v2037
        %2039 = vdwg.mxu0
        %2040 = vmatpush.bf16.msra.mxu0 %v1595
        %2041 = vmatpush.bf16.msra.mxu0 %v1591
        %2042 = vmatpush.bf16.msra.mxu0 %v1587
        %2043 = vmatpush.bf16.msra.mxu0 %v1583
        %2044 = vmatpush.bf16.msra.mxu0 %v1579
        %2045 = vmatpush.bf16.msra.mxu0 %v1575
        %2046 = vmatpush.bf16.msra.mxu0 %v1571
        %2047 = vmatpush.bf16.msra.mxu0 %v1567
        %2048 = vmatmul.bf16.gmra.mxu0 %v674
        %v2049 = vpop.f32.mrf.mxu0
        %v2050 = vadd.f32 %v2031, %v2049
        %v2051 = vpop.f32.mrf.mxu0
        %v2052 = vadd.f32 %v2033, %v2051
        %2053 = vmatmul.bf16.gmra.mxu0 %v682
        %v2054 = vpop.f32.mrf.mxu0
        %v2055 = vadd.f32 %v2036, %v2054
        %v2056 = vpop.f32.mrf.mxu0
        %v2057 = vadd.f32 %v2038, %v2056
        %2058 = vdwg.mxu0
        %2059 = vmatpush.bf16.msra.mxu0 %v1627
        %2060 = vmatpush.bf16.msra.mxu0 %v1623
        %2061 = vmatpush.bf16.msra.mxu0 %v1619
        %2062 = vmatpush.bf16.msra.mxu0 %v1615
        %2063 = vmatpush.bf16.msra.mxu0 %v1611
        %2064 = vmatpush.bf16.msra.mxu0 %v1607
        %2065 = vmatpush.bf16.msra.mxu0 %v1603
        %2066 = vmatpush.bf16.msra.mxu0 %v1599
        %2067 = vmatmul.bf16.gmra.mxu0 %v675
        %v2068 = vpop.f32.mrf.mxu0
        %v2069 = vadd.f32 %v2050, %v2068
        %v2070 = vpop.f32.mrf.mxu0
        %v2071 = vadd.f32 %v2052, %v2070
        %2072 = vmatmul.bf16.gmra.mxu0 %v683
        %v2073 = vpop.f32.mrf.mxu0
        %v2074 = vadd.f32 %v2055, %v2073
        %v2075 = vpop.f32.mrf.mxu0
        %v2076 = vadd.f32 %v2057, %v2075
        %2077 = vdwg.mxu0
        %2078 = vmatpush.bf16.msra.mxu0 %v1659
        %2079 = vmatpush.bf16.msra.mxu0 %v1655
        %2080 = vmatpush.bf16.msra.mxu0 %v1651
        %2081 = vmatpush.bf16.msra.mxu0 %v1647
        %2082 = vmatpush.bf16.msra.mxu0 %v1643
        %2083 = vmatpush.bf16.msra.mxu0 %v1639
        %2084 = vmatpush.bf16.msra.mxu0 %v1635
        %2085 = vmatpush.bf16.msra.mxu0 %v1631
        %2086 = vmatmul.bf16.gmra.mxu0 %v676
        %v2087 = vpop.f32.mrf.mxu0
        %v2088 = vadd.f32 %v2069, %v2087
        %v2089 = vpop.f32.mrf.mxu0
        %v2090 = vadd.f32 %v2071, %v2089
        %2091 = vmatmul.bf16.gmra.mxu0 %v684
        %v2092 = vpop.f32.mrf.mxu0
        %v2093 = vadd.f32 %v2074, %v2092
        %v2094 = vpop.f32.mrf.mxu0
        %v2095 = vadd.f32 %v2076, %v2094
        %2096 = vdwg.mxu0
        %2097 = vmatpush.bf16.msra.mxu0 %v1691
        %2098 = vmatpush.bf16.msra.mxu0 %v1687
        %2099 = vmatpush.bf16.msra.mxu0 %v1683
        %2100 = vmatpush.bf16.msra.mxu0 %v1679
        %2101 = vmatpush.bf16.msra.mxu0 %v1675
        %2102 = vmatpush.bf16.msra.mxu0 %v1671
        %2103 = vmatpush.bf16.msra.mxu0 %v1667
        %2104 = vmatpush.bf16.msra.mxu0 %v1663
        %2105 = vmatmul.bf16.gmra.mxu0 %v677
        %v2106 = vpop.f32.mrf.mxu0
        %v2107 = vadd.f32 %v2088, %v2106
        %v2108 = vpop.f32.mrf.mxu0
        %v2109 = vadd.f32 %v2090, %v2108
        %2110 = vmatmul.bf16.gmra.mxu0 %v685
        %v2111 = vpop.f32.mrf.mxu0
        %v2112 = vadd.f32 %v2093, %v2111
        %v2113 = vpop.f32.mrf.mxu0
        %v2114 = vadd.f32 %v2095, %v2113
        %2115 = vdwg.mxu0
        %2116 = vmatpush.bf16.msra.mxu0 %v1723
        %2117 = vmatpush.bf16.msra.mxu0 %v1719
        %2118 = vmatpush.bf16.msra.mxu0 %v1715
        %2119 = vmatpush.bf16.msra.mxu0 %v1711
        %2120 = vmatpush.bf16.msra.mxu0 %v1707
        %2121 = vmatpush.bf16.msra.mxu0 %v1703
        %2122 = vmatpush.bf16.msra.mxu0 %v1699
        %2123 = vmatpush.bf16.msra.mxu0 %v1695
        %2124 = vmatmul.bf16.gmra.mxu0 %v678
        %v2125 = vpop.f32.mrf.mxu0
        %v2126 = vadd.f32 %v2107, %v2125
        %v2127 = vpop.f32.mrf.mxu0
        %v2128 = vadd.f32 %v2109, %v2127
        %2129 = vmatmul.bf16.gmra.mxu0 %v686
        %v2130 = vpop.f32.mrf.mxu0
        %v2131 = vadd.f32 %v2112, %v2130
        %v2132 = vpop.f32.mrf.mxu0
        %v2133 = vadd.f32 %v2114, %v2132
        %2134 = vdwg.mxu0
        %2135 = vmatpush.bf16.msra.mxu0 %v1500
        %2136 = vmatpush.bf16.msra.mxu0 %v1496
        %2137 = vmatpush.bf16.msra.mxu0 %v1492
        %2138 = vmatpush.bf16.msra.mxu0 %v1488
        %2139 = vmatpush.bf16.msra.mxu0 %v1484
        %2140 = vmatpush.bf16.msra.mxu0 %v1480
        %2141 = vmatpush.bf16.msra.mxu0 %v1476
        %2142 = vmatpush.bf16.msra.mxu0 %v1472
        %2143 = vmatmul.bf16.gmra.mxu0 %v671
        %v2144 = vpop.f32.mrf.mxu0
        %v2145 = vadd.f32 0.0, %v2144
        %v2146 = vpop.f32.mrf.mxu0
        %v2147 = vadd.f32 0.0, %v2146
        %2148 = vmatmul.bf16.gmra.mxu0 %v679
        %v2149 = vpop.f32.mrf.mxu0
        %v2150 = vadd.f32 0.0, %v2149
        %v2151 = vpop.f32.mrf.mxu0
        %v2152 = vadd.f32 0.0, %v2151
        %2153 = vdwg.mxu0
        %2154 = vmatpush.bf16.msra.mxu0 %v1532
        %2155 = vmatpush.bf16.msra.mxu0 %v1528
        %2156 = vmatpush.bf16.msra.mxu0 %v1524
        %2157 = vmatpush.bf16.msra.mxu0 %v1520
        %2158 = vmatpush.bf16.msra.mxu0 %v1516
        %2159 = vmatpush.bf16.msra.mxu0 %v1512
        %2160 = vmatpush.bf16.msra.mxu0 %v1508
        %2161 = vmatpush.bf16.msra.mxu0 %v1504
        %2162 = vmatmul.bf16.gmra.mxu0 %v672
        %v2163 = vpop.f32.mrf.mxu0
        %v2164 = vadd.f32 %v2145, %v2163
        %v2165 = vpop.f32.mrf.mxu0
        %v2166 = vadd.f32 %v2147, %v2165
        %2167 = vmatmul.bf16.gmra.mxu0 %v680
        %v2168 = vpop.f32.mrf.mxu0
        %v2169 = vadd.f32 %v2150, %v2168
        %v2170 = vpop.f32.mrf.mxu0
        %v2171 = vadd.f32 %v2152, %v2170
        %2172 = vdwg.mxu0
        %2173 = vmatpush.bf16.msra.mxu0 %v1564
        %2174 = vmatpush.bf16.msra.mxu0 %v1560
        %2175 = vmatpush.bf16.msra.mxu0 %v1556
        %2176 = vmatpush.bf16.msra.mxu0 %v1552
        %2177 = vmatpush.bf16.msra.mxu0 %v1548
        %2178 = vmatpush.bf16.msra.mxu0 %v1544
        %2179 = vmatpush.bf16.msra.mxu0 %v1540
        %2180 = vmatpush.bf16.msra.mxu0 %v1536
        %2181 = vmatmul.bf16.gmra.mxu0 %v673
        %v2182 = vpop.f32.mrf.mxu0
        %v2183 = vadd.f32 %v2164, %v2182
        %v2184 = vpop.f32.mrf.mxu0
        %v2185 = vadd.f32 %v2166, %v2184
        %2186 = vmatmul.bf16.gmra.mxu0 %v681
        %v2187 = vpop.f32.mrf.mxu0
        %v2188 = vadd.f32 %v2169, %v2187
        %v2189 = vpop.f32.mrf.mxu0
        %v2190 = vadd.f32 %v2171, %v2189
        %2191 = vdwg.mxu0
        %2192 = vmatpush.bf16.msra.mxu0 %v1596
        %2193 = vmatpush.bf16.msra.mxu0 %v1592
        %2194 = vmatpush.bf16.msra.mxu0 %v1588
        %2195 = vmatpush.bf16.msra.mxu0 %v1584
        %2196 = vmatpush.bf16.msra.mxu0 %v1580
        %2197 = vmatpush.bf16.msra.mxu0 %v1576
        %2198 = vmatpush.bf16.msra.mxu0 %v1572
        %2199 = vmatpush.bf16.msra.mxu0 %v1568
        %2200 = vmatmul.bf16.gmra.mxu0 %v674
        %v2201 = vpop.f32.mrf.mxu0
        %v2202 = vadd.f32 %v2183, %v2201
        %v2203 = vpop.f32.mrf.mxu0
        %v2204 = vadd.f32 %v2185, %v2203
        %2205 = vmatmul.bf16.gmra.mxu0 %v682
        %v2206 = vpop.f32.mrf.mxu0
        %v2207 = vadd.f32 %v2188, %v2206
        %v2208 = vpop.f32.mrf.mxu0
        %v2209 = vadd.f32 %v2190, %v2208
        %2210 = vdwg.mxu0
        %2211 = vmatpush.bf16.msra.mxu0 %v1628
        %2212 = vmatpush.bf16.msra.mxu0 %v1624
        %2213 = vmatpush.bf16.msra.mxu0 %v1620
        %2214 = vmatpush.bf16.msra.mxu0 %v1616
        %2215 = vmatpush.bf16.msra.mxu0 %v1612
        %2216 = vmatpush.bf16.msra.mxu0 %v1608
        %2217 = vmatpush.bf16.msra.mxu0 %v1604
        %2218 = vmatpush.bf16.msra.mxu0 %v1600
        %2219 = vmatmul.bf16.gmra.mxu0 %v675
        %v2220 = vpop.f32.mrf.mxu0
        %v2221 = vadd.f32 %v2202, %v2220
        %v2222 = vpop.f32.mrf.mxu0
        %v2223 = vadd.f32 %v2204, %v2222
        %2224 = vmatmul.bf16.gmra.mxu0 %v683
        %v2225 = vpop.f32.mrf.mxu0
        %v2226 = vadd.f32 %v2207, %v2225
        %v2227 = vpop.f32.mrf.mxu0
        %v2228 = vadd.f32 %v2209, %v2227
        %2229 = vdwg.mxu0
        %2230 = vmatpush.bf16.msra.mxu0 %v1660
        %2231 = vmatpush.bf16.msra.mxu0 %v1656
        %2232 = vmatpush.bf16.msra.mxu0 %v1652
        %2233 = vmatpush.bf16.msra.mxu0 %v1648
        %2234 = vmatpush.bf16.msra.mxu0 %v1644
        %2235 = vmatpush.bf16.msra.mxu0 %v1640
        %2236 = vmatpush.bf16.msra.mxu0 %v1636
        %2237 = vmatpush.bf16.msra.mxu0 %v1632
        %2238 = vmatmul.bf16.gmra.mxu0 %v676
        %v2239 = vpop.f32.mrf.mxu0
        %v2240 = vadd.f32 %v2221, %v2239
        %v2241 = vpop.f32.mrf.mxu0
        %v2242 = vadd.f32 %v2223, %v2241
        %2243 = vmatmul.bf16.gmra.mxu0 %v684
        %v2244 = vpop.f32.mrf.mxu0
        %v2245 = vadd.f32 %v2226, %v2244
        %v2246 = vpop.f32.mrf.mxu0
        %v2247 = vadd.f32 %v2228, %v2246
        %2248 = vdwg.mxu0
        %2249 = vmatpush.bf16.msra.mxu0 %v1692
        %2250 = vmatpush.bf16.msra.mxu0 %v1688
        %2251 = vmatpush.bf16.msra.mxu0 %v1684
        %2252 = vmatpush.bf16.msra.mxu0 %v1680
        %2253 = vmatpush.bf16.msra.mxu0 %v1676
        %2254 = vmatpush.bf16.msra.mxu0 %v1672
        %2255 = vmatpush.bf16.msra.mxu0 %v1668
        %2256 = vmatpush.bf16.msra.mxu0 %v1664
        %2257 = vmatmul.bf16.gmra.mxu0 %v677
        %v2258 = vpop.f32.mrf.mxu0
        %v2259 = vadd.f32 %v2240, %v2258
        %v2260 = vpop.f32.mrf.mxu0
        %v2261 = vadd.f32 %v2242, %v2260
        %2262 = vmatmul.bf16.gmra.mxu0 %v685
        %v2263 = vpop.f32.mrf.mxu0
        %v2264 = vadd.f32 %v2245, %v2263
        %v2265 = vpop.f32.mrf.mxu0
        %v2266 = vadd.f32 %v2247, %v2265
        %2267 = vdwg.mxu0
        %2268 = vmatpush.bf16.msra.mxu0 %v1724
        %2269 = vmatpush.bf16.msra.mxu0 %v1720
        %2270 = vmatpush.bf16.msra.mxu0 %v1716
        %2271 = vmatpush.bf16.msra.mxu0 %v1712
        %2272 = vmatpush.bf16.msra.mxu0 %v1708
        %2273 = vmatpush.bf16.msra.mxu0 %v1704
        %2274 = vmatpush.bf16.msra.mxu0 %v1700
        %2275 = vmatpush.bf16.msra.mxu0 %v1696
        %2276 = vmatmul.bf16.gmra.mxu0 %v678
        %v2277 = vpop.f32.mrf.mxu0
        %v2278 = vadd.f32 %v2259, %v2277
        %v2279 = vpop.f32.mrf.mxu0
        %v2280 = vadd.f32 %v2261, %v2279
        %2281 = vmatmul.bf16.gmra.mxu0 %v686
        %v2282 = vpop.f32.mrf.mxu0
        %v2283 = vadd.f32 %v2264, %v2282
        %v2284 = vpop.f32.mrf.mxu0
        %v2285 = vadd.f32 %v2266, %v2284
        %2286 = vdwg.mxu0
        %2287 = vmatpush.bf16.msra.mxu0 %v1501
        %2288 = vmatpush.bf16.msra.mxu0 %v1497
        %2289 = vmatpush.bf16.msra.mxu0 %v1493
        %2290 = vmatpush.bf16.msra.mxu0 %v1489
        %2291 = vmatpush.bf16.msra.mxu0 %v1485
        %2292 = vmatpush.bf16.msra.mxu0 %v1481
        %2293 = vmatpush.bf16.msra.mxu0 %v1477
        %2294 = vmatpush.bf16.msra.mxu0 %v1473
        %2295 = vmatmul.bf16.gmra.mxu0 %v671
        %v2296 = vpop.f32.mrf.mxu0
        %v2297 = vadd.f32 0.0, %v2296
        %v2298 = vpop.f32.mrf.mxu0
        %v2299 = vadd.f32 0.0, %v2298
        %2300 = vmatmul.bf16.gmra.mxu0 %v679
        %v2301 = vpop.f32.mrf.mxu0
        %v2302 = vadd.f32 0.0, %v2301
        %v2303 = vpop.f32.mrf.mxu0
        %v2304 = vadd.f32 0.0, %v2303
        %2305 = vdwg.mxu0
        %2306 = vmatpush.bf16.msra.mxu0 %v1533
        %2307 = vmatpush.bf16.msra.mxu0 %v1529
        %2308 = vmatpush.bf16.msra.mxu0 %v1525
        %2309 = vmatpush.bf16.msra.mxu0 %v1521
        %2310 = vmatpush.bf16.msra.mxu0 %v1517
        %2311 = vmatpush.bf16.msra.mxu0 %v1513
        %2312 = vmatpush.bf16.msra.mxu0 %v1509
        %2313 = vmatpush.bf16.msra.mxu0 %v1505
        %2314 = vmatmul.bf16.gmra.mxu0 %v672
        %v2315 = vpop.f32.mrf.mxu0
        %v2316 = vadd.f32 %v2297, %v2315
        %v2317 = vpop.f32.mrf.mxu0
        %v2318 = vadd.f32 %v2299, %v2317
        %2319 = vmatmul.bf16.gmra.mxu0 %v680
        %v2320 = vpop.f32.mrf.mxu0
        %v2321 = vadd.f32 %v2302, %v2320
        %v2322 = vpop.f32.mrf.mxu0
        %v2323 = vadd.f32 %v2304, %v2322
        %2324 = vdwg.mxu0
        %2325 = vmatpush.bf16.msra.mxu0 %v1565
        %2326 = vmatpush.bf16.msra.mxu0 %v1561
        %2327 = vmatpush.bf16.msra.mxu0 %v1557
        %2328 = vmatpush.bf16.msra.mxu0 %v1553
        %2329 = vmatpush.bf16.msra.mxu0 %v1549
        %2330 = vmatpush.bf16.msra.mxu0 %v1545
        %2331 = vmatpush.bf16.msra.mxu0 %v1541
        %2332 = vmatpush.bf16.msra.mxu0 %v1537
        %2333 = vmatmul.bf16.gmra.mxu0 %v673
        %v2334 = vpop.f32.mrf.mxu0
        %v2335 = vadd.f32 %v2316, %v2334
        %v2336 = vpop.f32.mrf.mxu0
        %v2337 = vadd.f32 %v2318, %v2336
        %2338 = vmatmul.bf16.gmra.mxu0 %v681
        %v2339 = vpop.f32.mrf.mxu0
        %v2340 = vadd.f32 %v2321, %v2339
        %v2341 = vpop.f32.mrf.mxu0
        %v2342 = vadd.f32 %v2323, %v2341
        %2343 = vdwg.mxu0
        %2344 = vmatpush.bf16.msra.mxu0 %v1597
        %2345 = vmatpush.bf16.msra.mxu0 %v1593
        %2346 = vmatpush.bf16.msra.mxu0 %v1589
        %2347 = vmatpush.bf16.msra.mxu0 %v1585
        %2348 = vmatpush.bf16.msra.mxu0 %v1581
        %2349 = vmatpush.bf16.msra.mxu0 %v1577
        %2350 = vmatpush.bf16.msra.mxu0 %v1573
        %2351 = vmatpush.bf16.msra.mxu0 %v1569
        %2352 = vmatmul.bf16.gmra.mxu0 %v674
        %v2353 = vpop.f32.mrf.mxu0
        %v2354 = vadd.f32 %v2335, %v2353
        %v2355 = vpop.f32.mrf.mxu0
        %v2356 = vadd.f32 %v2337, %v2355
        %2357 = vmatmul.bf16.gmra.mxu0 %v682
        %v2358 = vpop.f32.mrf.mxu0
        %v2359 = vadd.f32 %v2340, %v2358
        %v2360 = vpop.f32.mrf.mxu0
        %v2361 = vadd.f32 %v2342, %v2360
        %2362 = vdwg.mxu0
        %2363 = vmatpush.bf16.msra.mxu0 %v1629
        %2364 = vmatpush.bf16.msra.mxu0 %v1625
        %2365 = vmatpush.bf16.msra.mxu0 %v1621
        %2366 = vmatpush.bf16.msra.mxu0 %v1617
        %2367 = vmatpush.bf16.msra.mxu0 %v1613
        %2368 = vmatpush.bf16.msra.mxu0 %v1609
        %2369 = vmatpush.bf16.msra.mxu0 %v1605
        %2370 = vmatpush.bf16.msra.mxu0 %v1601
        %2371 = vmatmul.bf16.gmra.mxu0 %v675
        %v2372 = vpop.f32.mrf.mxu0
        %v2373 = vadd.f32 %v2354, %v2372
        %v2374 = vpop.f32.mrf.mxu0
        %v2375 = vadd.f32 %v2356, %v2374
        %2376 = vmatmul.bf16.gmra.mxu0 %v683
        %v2377 = vpop.f32.mrf.mxu0
        %v2378 = vadd.f32 %v2359, %v2377
        %v2379 = vpop.f32.mrf.mxu0
        %v2380 = vadd.f32 %v2361, %v2379
        %2381 = vdwg.mxu0
        %2382 = vmatpush.bf16.msra.mxu0 %v1661
        %2383 = vmatpush.bf16.msra.mxu0 %v1657
        %2384 = vmatpush.bf16.msra.mxu0 %v1653
        %2385 = vmatpush.bf16.msra.mxu0 %v1649
        %2386 = vmatpush.bf16.msra.mxu0 %v1645
        %2387 = vmatpush.bf16.msra.mxu0 %v1641
        %2388 = vmatpush.bf16.msra.mxu0 %v1637
        %2389 = vmatpush.bf16.msra.mxu0 %v1633
        %2390 = vmatmul.bf16.gmra.mxu0 %v676
        %v2391 = vpop.f32.mrf.mxu0
        %v2392 = vadd.f32 %v2373, %v2391
        %v2393 = vpop.f32.mrf.mxu0
        %v2394 = vadd.f32 %v2375, %v2393
        %2395 = vmatmul.bf16.gmra.mxu0 %v684
        %v2396 = vpop.f32.mrf.mxu0
        %v2397 = vadd.f32 %v2378, %v2396
        %v2398 = vpop.f32.mrf.mxu0
        %v2399 = vadd.f32 %v2380, %v2398
        %2400 = vdwg.mxu0
        %2401 = vmatpush.bf16.msra.mxu0 %v1693
        %2402 = vmatpush.bf16.msra.mxu0 %v1689
        %2403 = vmatpush.bf16.msra.mxu0 %v1685
        %2404 = vmatpush.bf16.msra.mxu0 %v1681
        %2405 = vmatpush.bf16.msra.mxu0 %v1677
        %2406 = vmatpush.bf16.msra.mxu0 %v1673
        %2407 = vmatpush.bf16.msra.mxu0 %v1669
        %2408 = vmatpush.bf16.msra.mxu0 %v1665
        %2409 = vmatmul.bf16.gmra.mxu0 %v677
        %v2410 = vpop.f32.mrf.mxu0
        %v2411 = vadd.f32 %v2392, %v2410
        %v2412 = vpop.f32.mrf.mxu0
        %v2413 = vadd.f32 %v2394, %v2412
        %2414 = vmatmul.bf16.gmra.mxu0 %v685
        %v2415 = vpop.f32.mrf.mxu0
        %v2416 = vadd.f32 %v2397, %v2415
        %v2417 = vpop.f32.mrf.mxu0
        %v2418 = vadd.f32 %v2399, %v2417
        %2419 = vdwg.mxu0
        %2420 = vmatpush.bf16.msra.mxu0 %v1725
        %2421 = vmatpush.bf16.msra.mxu0 %v1721
        %2422 = vmatpush.bf16.msra.mxu0 %v1717
        %2423 = vmatpush.bf16.msra.mxu0 %v1713
        %2424 = vmatpush.bf16.msra.mxu0 %v1709
        %2425 = vmatpush.bf16.msra.mxu0 %v1705
        %2426 = vmatpush.bf16.msra.mxu0 %v1701
        %2427 = vmatpush.bf16.msra.mxu0 %v1697
        %2428 = vmatmul.bf16.gmra.mxu0 %v678
        %v2429 = vpop.f32.mrf.mxu0
        %v2430 = vadd.f32 %v2411, %v2429
        %v2431 = vpop.f32.mrf.mxu0
        %v2432 = vadd.f32 %v2413, %v2431
        %2433 = vmatmul.bf16.gmra.mxu0 %v686
        %v2434 = vpop.f32.mrf.mxu0
        %v2435 = vadd.f32 %v2416, %v2434
        %v2436 = vpop.f32.mrf.mxu0
        %v2437 = vadd.f32 %v2418, %v2436
        %2438 = vdwg.mxu0
        %2439 = vmatpush.bf16.msra.mxu0 %v1502
        %2440 = vmatpush.bf16.msra.mxu0 %v1498
        %2441 = vmatpush.bf16.msra.mxu0 %v1494
        %2442 = vmatpush.bf16.msra.mxu0 %v1490
        %2443 = vmatpush.bf16.msra.mxu0 %v1486
        %2444 = vmatpush.bf16.msra.mxu0 %v1482
        %2445 = vmatpush.bf16.msra.mxu0 %v1478
        %2446 = vmatpush.bf16.msra.mxu0 %v1474
        %2447 = vmatmul.bf16.gmra.mxu0 %v671
        %v2448 = vpop.f32.mrf.mxu0
        %v2449 = vadd.f32 0.0, %v2448
        %v2450 = vpop.f32.mrf.mxu0
        %v2451 = vadd.f32 0.0, %v2450
        %2452 = vmatmul.bf16.gmra.mxu0 %v679
        %v2453 = vpop.f32.mrf.mxu0
        %v2454 = vadd.f32 0.0, %v2453
        %v2455 = vpop.f32.mrf.mxu0
        %v2456 = vadd.f32 0.0, %v2455
        %2457 = vdwg.mxu0
        %2458 = vmatpush.bf16.msra.mxu0 %v1534
        %2459 = vmatpush.bf16.msra.mxu0 %v1530
        %2460 = vmatpush.bf16.msra.mxu0 %v1526
        %2461 = vmatpush.bf16.msra.mxu0 %v1522
        %2462 = vmatpush.bf16.msra.mxu0 %v1518
        %2463 = vmatpush.bf16.msra.mxu0 %v1514
        %2464 = vmatpush.bf16.msra.mxu0 %v1510
        %2465 = vmatpush.bf16.msra.mxu0 %v1506
        %2466 = vmatmul.bf16.gmra.mxu0 %v672
        %v2467 = vpop.f32.mrf.mxu0
        %v2468 = vadd.f32 %v2449, %v2467
        %v2469 = vpop.f32.mrf.mxu0
        %v2470 = vadd.f32 %v2451, %v2469
        %2471 = vmatmul.bf16.gmra.mxu0 %v680
        %v2472 = vpop.f32.mrf.mxu0
        %v2473 = vadd.f32 %v2454, %v2472
        %v2474 = vpop.f32.mrf.mxu0
        %v2475 = vadd.f32 %v2456, %v2474
        %2476 = vdwg.mxu0
        %2477 = vmatpush.bf16.msra.mxu0 %v1566
        %2478 = vmatpush.bf16.msra.mxu0 %v1562
        %2479 = vmatpush.bf16.msra.mxu0 %v1558
        %2480 = vmatpush.bf16.msra.mxu0 %v1554
        %2481 = vmatpush.bf16.msra.mxu0 %v1550
        %2482 = vmatpush.bf16.msra.mxu0 %v1546
        %2483 = vmatpush.bf16.msra.mxu0 %v1542
        %2484 = vmatpush.bf16.msra.mxu0 %v1538
        %2485 = vmatmul.bf16.gmra.mxu0 %v673
        %v2486 = vpop.f32.mrf.mxu0
        %v2487 = vadd.f32 %v2468, %v2486
        %v2488 = vpop.f32.mrf.mxu0
        %v2489 = vadd.f32 %v2470, %v2488
        %2490 = vmatmul.bf16.gmra.mxu0 %v681
        %v2491 = vpop.f32.mrf.mxu0
        %v2492 = vadd.f32 %v2473, %v2491
        %v2493 = vpop.f32.mrf.mxu0
        %v2494 = vadd.f32 %v2475, %v2493
        %2495 = vdwg.mxu0
        %2496 = vmatpush.bf16.msra.mxu0 %v1598
        %2497 = vmatpush.bf16.msra.mxu0 %v1594
        %2498 = vmatpush.bf16.msra.mxu0 %v1590
        %2499 = vmatpush.bf16.msra.mxu0 %v1586
        %2500 = vmatpush.bf16.msra.mxu0 %v1582
        %2501 = vmatpush.bf16.msra.mxu0 %v1578
        %2502 = vmatpush.bf16.msra.mxu0 %v1574
        %2503 = vmatpush.bf16.msra.mxu0 %v1570
        %2504 = vmatmul.bf16.gmra.mxu0 %v674
        %v2505 = vpop.f32.mrf.mxu0
        %v2506 = vadd.f32 %v2487, %v2505
        %v2507 = vpop.f32.mrf.mxu0
        %v2508 = vadd.f32 %v2489, %v2507
        %2509 = vmatmul.bf16.gmra.mxu0 %v682
        %v2510 = vpop.f32.mrf.mxu0
        %v2511 = vadd.f32 %v2492, %v2510
        %v2512 = vpop.f32.mrf.mxu0
        %v2513 = vadd.f32 %v2494, %v2512
        %2514 = vdwg.mxu0
        %2515 = vmatpush.bf16.msra.mxu0 %v1630
        %2516 = vmatpush.bf16.msra.mxu0 %v1626
        %2517 = vmatpush.bf16.msra.mxu0 %v1622
        %2518 = vmatpush.bf16.msra.mxu0 %v1618
        %2519 = vmatpush.bf16.msra.mxu0 %v1614
        %2520 = vmatpush.bf16.msra.mxu0 %v1610
        %2521 = vmatpush.bf16.msra.mxu0 %v1606
        %2522 = vmatpush.bf16.msra.mxu0 %v1602
        %2523 = vmatmul.bf16.gmra.mxu0 %v675
        %v2524 = vpop.f32.mrf.mxu0
        %v2525 = vadd.f32 %v2506, %v2524
        %v2526 = vpop.f32.mrf.mxu0
        %v2527 = vadd.f32 %v2508, %v2526
        %2528 = vmatmul.bf16.gmra.mxu0 %v683
        %v2529 = vpop.f32.mrf.mxu0
        %v2530 = vadd.f32 %v2511, %v2529
        %v2531 = vpop.f32.mrf.mxu0
        %v2532 = vadd.f32 %v2513, %v2531
        %2533 = vdwg.mxu0
        %2534 = vmatpush.bf16.msra.mxu0 %v1662
        %2535 = vmatpush.bf16.msra.mxu0 %v1658
        %2536 = vmatpush.bf16.msra.mxu0 %v1654
        %2537 = vmatpush.bf16.msra.mxu0 %v1650
        %2538 = vmatpush.bf16.msra.mxu0 %v1646
        %2539 = vmatpush.bf16.msra.mxu0 %v1642
        %2540 = vmatpush.bf16.msra.mxu0 %v1638
        %2541 = vmatpush.bf16.msra.mxu0 %v1634
        %2542 = vmatmul.bf16.gmra.mxu0 %v676
        %v2543 = vpop.f32.mrf.mxu0
        %v2544 = vadd.f32 %v2525, %v2543
        %v2545 = vpop.f32.mrf.mxu0
        %v2546 = vadd.f32 %v2527, %v2545
        %2547 = vmatmul.bf16.gmra.mxu0 %v684
        %v2548 = vpop.f32.mrf.mxu0
        %v2549 = vadd.f32 %v2530, %v2548
        %v2550 = vpop.f32.mrf.mxu0
        %v2551 = vadd.f32 %v2532, %v2550
        %2552 = vdwg.mxu0
        %2553 = vmatpush.bf16.msra.mxu0 %v1694
        %2554 = vmatpush.bf16.msra.mxu0 %v1690
        %2555 = vmatpush.bf16.msra.mxu0 %v1686
        %2556 = vmatpush.bf16.msra.mxu0 %v1682
        %2557 = vmatpush.bf16.msra.mxu0 %v1678
        %2558 = vmatpush.bf16.msra.mxu0 %v1674
        %2559 = vmatpush.bf16.msra.mxu0 %v1670
        %2560 = vmatpush.bf16.msra.mxu0 %v1666
        %2561 = vmatmul.bf16.gmra.mxu0 %v677
        %v2562 = vpop.f32.mrf.mxu0
        %v2563 = vadd.f32 %v2544, %v2562
        %v2564 = vpop.f32.mrf.mxu0
        %v2565 = vadd.f32 %v2546, %v2564
        %2566 = vmatmul.bf16.gmra.mxu0 %v685
        %v2567 = vpop.f32.mrf.mxu0
        %v2568 = vadd.f32 %v2549, %v2567
        %v2569 = vpop.f32.mrf.mxu0
        %v2570 = vadd.f32 %v2551, %v2569
        %2571 = vdwg.mxu0
        %2572 = vmatpush.bf16.msra.mxu0 %v1726
        %2573 = vmatpush.bf16.msra.mxu0 %v1722
        %2574 = vmatpush.bf16.msra.mxu0 %v1718
        %2575 = vmatpush.bf16.msra.mxu0 %v1714
        %2576 = vmatpush.bf16.msra.mxu0 %v1710
        %2577 = vmatpush.bf16.msra.mxu0 %v1706
        %2578 = vmatpush.bf16.msra.mxu0 %v1702
        %2579 = vmatpush.bf16.msra.mxu0 %v1698
        %2580 = vmatmul.bf16.gmra.mxu0 %v678
        %v2581 = vpop.f32.mrf.mxu0
        %v2582 = vadd.f32 %v2563, %v2581
        %v2583 = vpop.f32.mrf.mxu0
        %v2584 = vadd.f32 %v2565, %v2583
        %2585 = vmatmul.bf16.gmra.mxu0 %v686
        %v2586 = vpop.f32.mrf.mxu0
        %v2587 = vadd.f32 %v2568, %v2586
        %v2588 = vpop.f32.mrf.mxu0
        %v2589 = vadd.f32 %v2570, %v2588
        %2590 = vdwg.mxu0
        %v2591 = vadd.f32 %v335, %v2126
        %v2592 = vadd.f32 %v336, %v2278
        %v2593 = vadd.f32 %v337, %v2430
        %v2594 = vadd.f32 %v338, %v2582
        %v2595 = vadd.f32 %v339, %v2128
        %v2596 = vadd.f32 %v340, %v2280
        %v2597 = vadd.f32 %v341, %v2432
        %v2598 = vadd.f32 %v342, %v2584
        %v2599 = vadd.f32 %v343, %v2131
        %v2600 = vadd.f32 %v344, %v2283
        %v2601 = vadd.f32 %v345, %v2435
        %v2602 = vadd.f32 %v346, %v2587
        %v2603 = vadd.f32 %v347, %v2133
        %v2604 = vadd.f32 %v348, %v2285
        %v2605 = vadd.f32 %v349, %v2437
        %v2606 = vadd.f32 %v350, %v2589
        %2607 = vst [vmem:[#allocation2] sm:$0xff] %v2591
        %2608 = vst [vmem:[#allocation2 + $0x8] sm:$0xff] %v2592
        %2609 = vst [vmem:[#allocation2 + $0x10] sm:$0xff] %v2593
        %2610 = vst [vmem:[#allocation2 + $0x18] sm:$0xff] %v2594
        %2611 = vst [vmem:[#allocation2 + $0x20] sm:$0xff] %v2595
        %2612 = vst [vmem:[#allocation2 + $0x28] sm:$0xff] %v2596
        %2613 = vst [vmem:[#allocation2 + $0x30] sm:$0xff] %v2597
        %2614 = vst [vmem:[#allocation2 + $0x38] sm:$0xff] %v2598
        %2615 = vst [vmem:[#allocation2 + $0x40] sm:$0xff] %v2599
        %2616 = vst [vmem:[#allocation2 + $0x48] sm:$0xff] %v2600
        %2617 = vst [vmem:[#allocation2 + $0x50] sm:$0xff] %v2601
        %2618 = vst [vmem:[#allocation2 + $0x58] sm:$0xff] %v2602
        %2619 = vst [vmem:[#allocation2 + $0x60] sm:$0xff] %v2603
        %2620 = vst [vmem:[#allocation2 + $0x68] sm:$0xff] %v2604
        %2621 = vst [vmem:[#allocation2 + $0x70] sm:$0xff] %v2605
        %2622 = vst [vmem:[#allocation2 + $0x78] sm:$0xff] %v2606
        %p2623 = scmp.eq.s32.totalorder %s19, 3
        // Predicated region
        $region72: #{discriminator_forward.7} parent=62 // pred_check
          %p2624 = pneg %p2623
        $region73: #{discriminator_forward.7} parent=62 // pred_check_branch
          %2626 = sbr.rel (%p2624) target = $region75
        $region74: #{discriminator_forward.7} parent=62 // pred_region
          %v2627 = vld [vmem:[#allocation2] sm:$0xff]
          %v2628 = vld [vmem:[#allocation2 + $0x8] sm:$0xff]
          %v2629 = vld [vmem:[#allocation2 + $0x10] sm:$0xff]
          %v2630 = vld [vmem:[#allocation2 + $0x18] sm:$0xff]
          %v2631 = vld [vmem:[#allocation2 + $0x20] sm:$0xff]
          %v2632 = vld [vmem:[#allocation2 + $0x28] sm:$0xff]
          %v2633 = vld [vmem:[#allocation2 + $0x30] sm:$0xff]
          %v2634 = vld [vmem:[#allocation2 + $0x38] sm:$0xff]
          %v2635 = vld [vmem:[#allocation2 + $0x40] sm:$0xff]
          %v2636 = vld [vmem:[#allocation2 + $0x48] sm:$0xff]
          %v2637 = vld [vmem:[#allocation2 + $0x50] sm:$0xff]
          %v2638 = vld [vmem:[#allocation2 + $0x58] sm:$0xff]
          %v2639 = vld [vmem:[#allocation2 + $0x60] sm:$0xff]
          %v2640 = vld [vmem:[#allocation2 + $0x68] sm:$0xff]
          %v2641 = vld [vmem:[#allocation2 + $0x70] sm:$0xff]
          %v2642 = vld [vmem:[#allocation2 + $0x78] sm:$0xff]
          %v2643 = vld [vmem:[%s2] sm:$0xf]
          %v2644 = vld [vmem:[%s3] sm:$0xf]
          %v2645 = vadd.f32 %v2627, %v2631
          %v2646 = vadd.f32 %v2645, %v2635
          %v2647 = vadd.f32 %v2646, %v2639
          %v2648 = vrot.slane %v2647, 4
          %v2649 = vadd.f32 %v2647, %v2648
          %v2650 = vrot.slane %v2649, 2
          %v2651 = vadd.f32 %v2649, %v2650
          %v2652 = vrot.slane %v2651, 1
          %v2653 = vadd.f32 %v2651, %v2652
          %v2654 = vadd.f32 %v2628, %v2632
          %v2655 = vadd.f32 %v2654, %v2636
          %v2656 = vadd.f32 %v2655, %v2640
          %v2657 = vrot.slane %v2656, 4
          %v2658 = vadd.f32 %v2656, %v2657
          %v2659 = vrot.slane %v2658, 2
          %v2660 = vadd.f32 %v2658, %v2659
          %v2661 = vrot.slane %v2660, 1
          %v2662 = vadd.f32 %v2660, %v2661
          %v2663 = vadd.f32 %v2629, %v2633
          %v2664 = vadd.f32 %v2663, %v2637
          %v2665 = vadd.f32 %v2664, %v2641
          %v2666 = vrot.slane %v2665, 4
          %v2667 = vadd.f32 %v2665, %v2666
          %v2668 = vrot.slane %v2667, 2
          %v2669 = vadd.f32 %v2667, %v2668
          %v2670 = vrot.slane %v2669, 1
          %v2671 = vadd.f32 %v2669, %v2670
          %v2672 = vadd.f32 %v2630, %v2634
          %v2673 = vadd.f32 %v2672, %v2638
          %v2674 = vadd.f32 %v2673, %v2642
          %v2675 = vrot.slane %v2674, 4
          %v2676 = vadd.f32 %v2674, %v2675
          %v2677 = vrot.slane %v2676, 2
          %v2678 = vadd.f32 %v2676, %v2677
          %v2679 = vrot.slane %v2678, 1
          %v2680 = vadd.f32 %v2678, %v2679
          %v2681 = vmul.f32 %v2653, 0.03125
          %v2682 = vmul.f32 %v2662, 0.03125
          %v2683 = vmul.f32 %v2671, 0.03125
          %v2684 = vmul.f32 %v2680, 0.03125
          %v2685 = vmul.f32 %v2627, %v2627
          %v2686 = vmul.f32 %v2628, %v2628
          %v2687 = vmul.f32 %v2629, %v2629
          %v2688 = vmul.f32 %v2630, %v2630
          %v2689 = vmul.f32 %v2631, %v2631
          %v2690 = vmul.f32 %v2632, %v2632
          %v2691 = vmul.f32 %v2633, %v2633
          %v2692 = vmul.f32 %v2634, %v2634
          %v2693 = vmul.f32 %v2635, %v2635
          %v2694 = vmul.f32 %v2636, %v2636
          %v2695 = vmul.f32 %v2637, %v2637
          %v2696 = vmul.f32 %v2638, %v2638
          %v2697 = vmul.f32 %v2639, %v2639
          %v2698 = vmul.f32 %v2640, %v2640
          %v2699 = vmul.f32 %v2641, %v2641
          %v2700 = vmul.f32 %v2642, %v2642
          %v2701 = vadd.f32 %v2685, %v2689
          %v2702 = vadd.f32 %v2701, %v2693
          %v2703 = vadd.f32 %v2702, %v2697
          %v2704 = vrot.slane %v2703, 4
          %v2705 = vadd.f32 %v2703, %v2704
          %v2706 = vrot.slane %v2705, 2
          %v2707 = vadd.f32 %v2705, %v2706
          %v2708 = vrot.slane %v2707, 1
          %v2709 = vadd.f32 %v2707, %v2708
          %v2710 = vadd.f32 %v2686, %v2690
          %v2711 = vadd.f32 %v2710, %v2694
          %v2712 = vadd.f32 %v2711, %v2698
          %v2713 = vrot.slane %v2712, 4
          %v2714 = vadd.f32 %v2712, %v2713
          %v2715 = vrot.slane %v2714, 2
          %v2716 = vadd.f32 %v2714, %v2715
          %v2717 = vrot.slane %v2716, 1
          %v2718 = vadd.f32 %v2716, %v2717
          %v2719 = vadd.f32 %v2687, %v2691
          %v2720 = vadd.f32 %v2719, %v2695
          %v2721 = vadd.f32 %v2720, %v2699
          %v2722 = vrot.slane %v2721, 4
          %v2723 = vadd.f32 %v2721, %v2722
          %v2724 = vrot.slane %v2723, 2
          %v2725 = vadd.f32 %v2723, %v2724
          %v2726 = vrot.slane %v2725, 1
          %v2727 = vadd.f32 %v2725, %v2726
          %v2728 = vadd.f32 %v2688, %v2692
          %v2729 = vadd.f32 %v2728, %v2696
          %v2730 = vadd.f32 %v2729, %v2700
          %v2731 = vrot.slane %v2730, 4
          %v2732 = vadd.f32 %v2730, %v2731
          %v2733 = vrot.slane %v2732, 2
          %v2734 = vadd.f32 %v2732, %v2733
          %v2735 = vrot.slane %v2734, 1
          %v2736 = vadd.f32 %v2734, %v2735
          %v2737 = vmul.f32 %v2709, 0.03125
          %v2738 = vmul.f32 %v2718, 0.03125
          %v2739 = vmul.f32 %v2727, 0.03125
          %v2740 = vmul.f32 %v2736, 0.03125
          %v2741 = vmul.f32 %v2681, %v2681
          %v2742 = vmul.f32 %v2682, %v2682
          %v2743 = vmul.f32 %v2683, %v2683
          %v2744 = vmul.f32 %v2684, %v2684
          %v2745 = vsub.f32 %v2737, %v2741
          %v2746 = vsub.f32 %v2738, %v2742
          %v2747 = vsub.f32 %v2739, %v2743
          %v2748 = vsub.f32 %v2740, %v2744
          %v2749 = vsub.f32 %v2627, %v2681
          %v2750 = vsub.f32 %v2628, %v2682
          %v2751 = vsub.f32 %v2629, %v2683
          %v2752 = vsub.f32 %v2630, %v2684
          %v2753 = vsub.f32 %v2631, %v2681
          %v2754 = vsub.f32 %v2632, %v2682
          %v2755 = vsub.f32 %v2633, %v2683
          %v2756 = vsub.f32 %v2634, %v2684
          %v2757 = vsub.f32 %v2635, %v2681
          %v2758 = vsub.f32 %v2636, %v2682
          %v2759 = vsub.f32 %v2637, %v2683
          %v2760 = vsub.f32 %v2638, %v2684
          %v2761 = vsub.f32 %v2639, %v2681
          %v2762 = vsub.f32 %v2640, %v2682
          %v2763 = vsub.f32 %v2641, %v2683
          %v2764 = vsub.f32 %v2642, %v2684
          %v2765 = vadd.f32 %v2745, 1e-05
          %v2766 = vadd.f32 %v2746, 1e-05
          %v2767 = vadd.f32 %v2747, 1e-05
          %v2768 = vadd.f32 %v2748, 1e-05
          %v2769 = vrsqrt.pop %v2765
          %v2770 = vmul.f32 %v2769, %v2765
          %v2771 = vmul.f32 %v2770, %v2769
          %v2772 = vmul.f32 0.5, %v2771
          %v2773 = vsub.f32 1.5, %v2772
          %v2774 = vmul.f32 %v2769, %v2773
          %vm2775 = vweird.f32 %v2765
          %vm2776 = vweird.f32 %v2769
          %vm2777 = vmor %vm2775, %vm2776
          %v2778 = vsel %vm2777, %v2769, %v2774
          %v2779 = vrsqrt.pop %v2766
          %v2780 = vmul.f32 %v2779, %v2766
          %v2781 = vmul.f32 %v2780, %v2779
          %v2782 = vmul.f32 0.5, %v2781
          %v2783 = vsub.f32 1.5, %v2782
          %v2784 = vmul.f32 %v2779, %v2783
          %vm2785 = vweird.f32 %v2766
          %vm2786 = vweird.f32 %v2779
          %vm2787 = vmor %vm2785, %vm2786
          %v2788 = vsel %vm2787, %v2779, %v2784
          %v2789 = vrsqrt.pop %v2767
          %v2790 = vmul.f32 %v2789, %v2767
          %v2791 = vmul.f32 %v2790, %v2789
          %v2792 = vmul.f32 0.5, %v2791
          %v2793 = vsub.f32 1.5, %v2792
          %v2794 = vmul.f32 %v2789, %v2793
          %vm2795 = vweird.f32 %v2767
          %vm2796 = vweird.f32 %v2789
          %vm2797 = vmor %vm2795, %vm2796
          %v2798 = vsel %vm2797, %v2789, %v2794
          %v2799 = vrsqrt.pop %v2768
          %v2800 = vmul.f32 %v2799, %v2768
          %v2801 = vmul.f32 %v2800, %v2799
          %v2802 = vmul.f32 0.5, %v2801
          %v2803 = vsub.f32 1.5, %v2802
          %v2804 = vmul.f32 %v2799, %v2803
          %vm2805 = vweird.f32 %v2768
          %vm2806 = vweird.f32 %v2799
          %vm2807 = vmor %vm2805, %vm2806
          %v2808 = vsel %vm2807, %v2799, %v2804
          %v2809 = vmul.f32 %v2749, %v2778
          %v2810 = vmul.f32 %v2750, %v2788
          %v2811 = vmul.f32 %v2751, %v2798
          %v2812 = vmul.f32 %v2752, %v2808
          %v2813 = vmul.f32 %v2753, %v2778
          %v2814 = vmul.f32 %v2754, %v2788
          %v2815 = vmul.f32 %v2755, %v2798
          %v2816 = vmul.f32 %v2756, %v2808
          %v2817 = vmul.f32 %v2757, %v2778
          %v2818 = vmul.f32 %v2758, %v2788
          %v2819 = vmul.f32 %v2759, %v2798
          %v2820 = vmul.f32 %v2760, %v2808
          %v2821 = vmul.f32 %v2761, %v2778
          %v2822 = vmul.f32 %v2762, %v2788
          %v2823 = vmul.f32 %v2763, %v2798
          %v2824 = vmul.f32 %v2764, %v2808
          %v2826 = vperm.slane %v2643, 0
          %v2827 = vperm.slane %v2643, 1
          %v2828 = vperm.slane %v2643, 2
          %v2829 = vperm.slane %v2643, 3
          %v2834 = vmul.f32 %v2809, %v2826
          %v2835 = vmul.f32 %v2810, %v2827
          %v2836 = vmul.f32 %v2811, %v2828
          %v2837 = vmul.f32 %v2812, %v2829
          %v2838 = vmul.f32 %v2813, %v2826
          %v2839 = vmul.f32 %v2814, %v2827
          %v2840 = vmul.f32 %v2815, %v2828
          %v2841 = vmul.f32 %v2816, %v2829
          %v2842 = vmul.f32 %v2817, %v2826
          %v2843 = vmul.f32 %v2818, %v2827
          %v2844 = vmul.f32 %v2819, %v2828
          %v2845 = vmul.f32 %v2820, %v2829
          %v2846 = vmul.f32 %v2821, %v2826
          %v2847 = vmul.f32 %v2822, %v2827
          %v2848 = vmul.f32 %v2823, %v2828
          %v2849 = vmul.f32 %v2824, %v2829
          %v2851 = vperm.slane %v2644, 0
          %v2852 = vperm.slane %v2644, 1
          %v2853 = vperm.slane %v2644, 2
          %v2854 = vperm.slane %v2644, 3
          %v2859 = vadd.f32 %v2834, %v2851
          %v2860 = vadd.f32 %v2835, %v2852
          %v2861 = vadd.f32 %v2836, %v2853
          %v2862 = vadd.f32 %v2837, %v2854
          %v2863 = vadd.f32 %v2838, %v2851
          %v2864 = vadd.f32 %v2839, %v2852
          %v2865 = vadd.f32 %v2840, %v2853
          %v2866 = vadd.f32 %v2841, %v2854
          %v2867 = vadd.f32 %v2842, %v2851
          %v2868 = vadd.f32 %v2843, %v2852
          %v2869 = vadd.f32 %v2844, %v2853
          %v2870 = vadd.f32 %v2845, %v2854
          %v2871 = vadd.f32 %v2846, %v2851
          %v2872 = vadd.f32 %v2847, %v2852
          %v2873 = vadd.f32 %v2848, %v2853
          %v2874 = vadd.f32 %v2849, %v2854
          %vm2875 = vcmp.gt.f32.partialorder %v2859, 0.0
          %vm2876 = vcmp.gt.f32.partialorder %v2860, 0.0
          %vm2877 = vcmp.gt.f32.partialorder %v2861, 0.0
          %vm2878 = vcmp.gt.f32.partialorder %v2862, 0.0
          %vm2879 = vcmp.gt.f32.partialorder %v2863, 0.0
          %vm2880 = vcmp.gt.f32.partialorder %v2864, 0.0
          %vm2881 = vcmp.gt.f32.partialorder %v2865, 0.0
          %vm2882 = vcmp.gt.f32.partialorder %v2866, 0.0
          %vm2883 = vcmp.gt.f32.partialorder %v2867, 0.0
          %vm2884 = vcmp.gt.f32.partialorder %v2868, 0.0
          %vm2885 = vcmp.gt.f32.partialorder %v2869, 0.0
          %vm2886 = vcmp.gt.f32.partialorder %v2870, 0.0
          %vm2887 = vcmp.gt.f32.partialorder %v2871, 0.0
          %vm2888 = vcmp.gt.f32.partialorder %v2872, 0.0
          %vm2889 = vcmp.gt.f32.partialorder %v2873, 0.0
          %vm2890 = vcmp.gt.f32.partialorder %v2874, 0.0
          %v2891 = vmul.f32 %v2859, 0.2
          %v2892 = vmul.f32 %v2860, 0.2
          %v2893 = vmul.f32 %v2861, 0.2
          %v2894 = vmul.f32 %v2862, 0.2
          %v2895 = vmul.f32 %v2863, 0.2
          %v2896 = vmul.f32 %v2864, 0.2
          %v2897 = vmul.f32 %v2865, 0.2
          %v2898 = vmul.f32 %v2866, 0.2
          %v2899 = vmul.f32 %v2867, 0.2
          %v2900 = vmul.f32 %v2868, 0.2
          %v2901 = vmul.f32 %v2869, 0.2
          %v2902 = vmul.f32 %v2870, 0.2
          %v2903 = vmul.f32 %v2871, 0.2
          %v2904 = vmul.f32 %v2872, 0.2
          %v2905 = vmul.f32 %v2873, 0.2
          %v2906 = vmul.f32 %v2874, 0.2
          %v2907 = vsel %vm2875, %v2859, %v2891
          %v2908 = vsel %vm2876, %v2860, %v2892
          %v2909 = vsel %vm2877, %v2861, %v2893
          %v2910 = vsel %vm2878, %v2862, %v2894
          %v2911 = vsel %vm2879, %v2863, %v2895
          %v2912 = vsel %vm2880, %v2864, %v2896
          %v2913 = vsel %vm2881, %v2865, %v2897
          %v2914 = vsel %vm2882, %v2866, %v2898
          %v2915 = vsel %vm2883, %v2867, %v2899
          %v2916 = vsel %vm2884, %v2868, %v2900
          %v2917 = vsel %vm2885, %v2869, %v2901
          %v2918 = vsel %vm2886, %v2870, %v2902
          %v2919 = vsel %vm2887, %v2871, %v2903
          %v2920 = vsel %vm2888, %v2872, %v2904
          %v2921 = vsel %vm2889, %v2873, %v2905
          %v2922 = vsel %vm2890, %v2874, %v2906
          %v2923 = vld [vmem:[%s4] sm:$0xff]
          %v2924 = vld [vmem:[%s4 + $0x8] sm:$0xff]
          %v2925 = vld [vmem:[%s4 + $0x10] sm:$0xff]
          %v2926 = vld [vmem:[%s4 + $0x18] sm:$0xff]
          %v2927 = vld [vmem:[%s4 + $0x20] sm:$0xff]
          %v2928 = vld [vmem:[%s4 + $0x28] sm:$0xff]
          %v2929 = vld [vmem:[%s4 + $0x30] sm:$0xff]
          %v2930 = vld [vmem:[%s4 + $0x38] sm:$0xff]
          %v2931 = vmul.f32 %v2907, %v2923
          %v2932 = vmul.f32 %v2908, %v2924
          %v2933 = vmul.f32 %v2909, %v2925
          %v2934 = vmul.f32 %v2910, %v2926
          %v2935 = vmul.f32 %v2911, %v2927
          %v2936 = vmul.f32 %v2912, %v2928
          %v2937 = vmul.f32 %v2913, %v2929
          %v2938 = vmul.f32 %v2914, %v2930
          %v2939 = vmul.f32 %v2915, %v2923
          %v2940 = vmul.f32 %v2916, %v2924
          %v2941 = vmul.f32 %v2917, %v2925
          %v2942 = vmul.f32 %v2918, %v2926
          %v2943 = vmul.f32 %v2919, %v2927
          %v2944 = vmul.f32 %v2920, %v2928
          %v2945 = vmul.f32 %v2921, %v2929
          %v2946 = vmul.f32 %v2922, %v2930
          %v2947 = vadd.f32 %v2931, %v2932
          %v2948 = vadd.f32 %v2947, %v2933
          %v2949 = vadd.f32 %v2948, %v2934
          %2950 = vadd.xlane.f32.xlu0 %v2949
          %v2951 = vpop.xlane.xlu0 %2950
          %v2952 = vadd.f32 %v2935, %v2936
          %v2953 = vadd.f32 %v2952, %v2937
          %v2954 = vadd.f32 %v2953, %v2938
          %2955 = vadd.xlane.f32.xlu0 %v2954
          %v2956 = vpop.xlane.xlu0 %2955
          %v2957 = vadd.f32 %v2939, %v2940
          %v2958 = vadd.f32 %v2957, %v2941
          %v2959 = vadd.f32 %v2958, %v2942
          %2960 = vadd.xlane.f32.xlu0 %v2959
          %v2961 = vpop.xlane.xlu0 %2960
          %v2962 = vadd.f32 %v2943, %v2944
          %v2963 = vadd.f32 %v2962, %v2945
          %v2964 = vadd.f32 %v2963, %v2946
          %2965 = vadd.xlane.f32.xlu0 %v2964
          %v2966 = vpop.xlane.xlu0 %2965
          %v2971 = vlaneseq
          %v2972 = vand.u32 %v2971, 127
          %v2973 = vperm.slane %v2951, %v2972
          %v2974 = vadd.s32 %v2972, 4294967288
          %v2975 = vperm.slane %v2956, %v2974
          %vm2976 = vcmask 130112
          %v2977 = vsel %vm2976, %v2975, %v2973
          %v2978 = vperm.slane %v2961, %v2972
          %v2979 = vperm.slane %v2966, %v2974
          %v2980 = vsel %vm2976, %v2979, %v2978
          %vm2981 = vcmask 1041409
          %v2982 = vsel %vm2981, %v2980, %v2977
          %vm2984 = vcmask 123904
          %v2985 = vsel %vm2984, %v2982, 0.0
          %2986 = vadd.xlane.f32.xlu0 %v2985
          %v2987 = vpop.xlane.xlu0 %2986
          %v2988 = vld [vmem:[#allocation3] sm:$0x1]
          %v2990 = vperm.slane %v2988, 0
          %v2992 = vadd.f32 %v2987, %v2990
          %v2993 = vxor.u32 %v2992, 2147483648
          %v2994 = vmul.f32 %v2993, 1.442695
          %v2995 = vpow.pop %v2994
          %v2996 = vadd.f32 %v2995, 1.0
          %v2997 = vrcp.pop %v2996
          %v2998 = vmul.f32 %v2996, %v2997
          %v2999 = vsub.f32 1.0, %v2998
          %v3000 = vmul.f32 %v2997, %v2999
          %v3001 = vadd.f32 %v2997, %v3000
          %vm3002 = vweird.f32 %v2996
          %vm3003 = vweird.f32 %v2997
          %vm3004 = vmor %vm3002, %vm3003
          %v3005 = vsel %vm3004, %v2997, %v3001
          %v3006 = vand.u32 2147483647, %v2996
          %vm3007 = vcmp.eq.f32.partialorder %v3006, 8.507059e+37
          %v3008 = vand.u32 %v2996, 2147483648
          %v3009 = vor.u32 1.1754944e-38, %v3008
          %v3010 = vsel %vm3007, %v3009, %v3005
          %v3011 = vmul.f32 1.0, %v3010
          %vm3012 = vcmask 1024
          %3013 = vst.msk [vmem:[%s6] sm:$0x3] %vm3012, %v3011
        $region75: #{discriminator_forward.7} parent=62 // pred_fallthru
          _
        // Predicated region
        $region76: #{discriminator_forward.7} parent=62 // pred_check
          %p3014 = pneg %p168
        $region77: #{discriminator_forward.7} parent=62 // pred_check_branch
          %3016 = sbr.rel (%p3014) target = $region79
        $region78: #{discriminator_forward.7} parent=62 // pred_region
          _
        $region79: #{discriminator_forward.7} parent=62 // pred_fallthru
          _
        // Predicated region
        $region80: #{discriminator_forward.7} parent=62 // pred_check
          %p3017 = pneg %p168
        $region81: #{discriminator_forward.7} parent=62 // pred_check_branch
          %3019 = sbr.rel (%p3017) target = $region83
        $region82: #{discriminator_forward.7} parent=62 // pred_region
          _
        $region83: #{discriminator_forward.7} parent=62 // pred_fallthru
          _
      $region63: #{discriminator_forward.7} parent=5 // pred_fallthru
        _
      %p3020 = scmp.le.s32.totalorder 2, %s14
      // Predicated region
      $region84: #{discriminator_forward.7} parent=5 // pred_check
        %p3021 = pneg %p3020
      $region85: #{discriminator_forward.7} parent=5 // pred_check_branch
        %3023 = sbr.rel (%p3021) target = $region87
      $region86: #{discriminator_forward.7} parent=5 // pred_region
        %s3024 = ssub.s32 %s14, 2
      $region87: #{discriminator_forward.7} parent=5 // pred_fallthru
        _
    $region6: #{discriminator_forward.7} parent=1 // loop_footer
      %s18 = sadd.s32 1, %s14
    $region7: #{discriminator_forward.7} parent=1 // loop_footer_branch
      %13 = sbr.rel target = $region3
    $region8: #{discriminator_forward.7} parent=1 // loop_exit
      _

</llo_original>
